<compile_context>
chip_gen: v7x
topology: tpu7x:2x2x1
jax: 0.10.0
libtpu: 0.0.40
codegen_flags: <defaults>
</compile_context>

<pallas_src>
import functools

import jax
import jax.numpy as jnp
from jax import lax
from jax.experimental import pallas as pl
from jax.experimental.pallas import tpu as pltpu


# --------------------------------------------------------------------------
# Kernel 1: 3x3 conv (stride 1, pad 1) + folded BatchNorm + ReLU
# --------------------------------------------------------------------------
def _conv3x3_bn_relu_kernel(xp_ref, w_ref, scale_ref, bias_ref, o_ref):
    # xp_ref : (1, H+2, W+2, Cin) bf16  (zero-padded input tile, one image)
    # w_ref  : (3, 3, Cin, Cout)  bf16
    # scale/bias : (1, Cout)      f32   (inference-mode BN folded to affine)
    # o_ref  : (1, H*W, Cout)     bf16  (lane-dense flat output)
    _, Hp, Wp, Cin = xp_ref.shape
    H, W = Hp - 2, Wp - 2
    Cout = o_ref.shape[-1]

    acc = jnp.zeros((H * W, Cout), jnp.float32)
    for dh in range(3):                      # 9 shifted taps, f32 accumulation
        for dw in range(3):
            patch = xp_ref[0, dh:dh + H, dw:dw + W, :].reshape(H * W, Cin)
            acc = acc + jnp.dot(patch, w_ref[dh, dw],
                                preferred_element_type=jnp.float32)
    y = jnp.maximum(acc * scale_ref[...] + bias_ref[...], 0.0)
    o_ref[0] = y.astype(o_ref.dtype)


# --------------------------------------------------------------------------
# Kernel 2: conv2 + BN2 fused with the full RIR block + residual + ReLU
# --------------------------------------------------------------------------
def _conv3x3_bn_rir_kernel(yp_ref, id_ref, w_ref, scale_ref, bias_ref,
                           se_ref, fc2_ref, o_ref, *, h1, h2):
    # yp_ref : (1, H+2, W+2, C) bf16  padded conv1 output (one image)
    # id_ref : (1, H*W, C)      f32   residual identity (flattened NHWC)
    # w_ref  : (3, 3, C, C)     bf16  conv2 weights
    # scale/bias : (1, C)       f32   folded BN2
    # se_ref : (C, d) f32;  fc2_ref : (d, 3C) f32
    # o_ref  : (1, H*W, C)      f32   final BasicBlock output (flattened NHWC)
    _, Hp, Wp, C = yp_ref.shape
    H, W = Hp - 2, Wp - 2
    HW = H * W

    # ---- conv2 + bn2 (bf16 MXU operands, f32 accumulation) ----
    acc = jnp.zeros((HW, C), jnp.float32)
    for dh in range(3):
        for dw in range(3):
            patch = yp_ref[0, dh:dh + H, dw:dw + W, :].reshape(HW, C)
            acc = acc + jnp.dot(patch, w_ref[dh, dw],
                                preferred_element_type=jnp.float32)
    y = acc * scale_ref[...] + bias_ref[...]                     # (HW, C)

    # ---- RIR attention: region means -> SE -> fc2 -> softmax (f32, tiny) ----
    r1 = jnp.sum(y[:h1 * W, :], axis=0, keepdims=True) * (1.0 / (h1 * W))
    r2 = jnp.sum(y[h1 * W:h2 * W, :], axis=0, keepdims=True) * (1.0 / ((h2 - h1) * W))
    r3 = jnp.sum(y[h2 * W:, :], axis=0, keepdims=True) * (1.0 / ((H - h2) * W))
    pooled = r1 + r2 + r3                                        # (1, C)
    z = jnp.maximum(jnp.dot(pooled, se_ref[...],
                            preferred_element_type=jnp.float32), 0.0)      # (1, d)
    logits = jnp.dot(z, fc2_ref[...], preferred_element_type=jnp.float32)  # (1, 3C)
    a0 = logits[:, 0:C]
    a1 = logits[:, C:2 * C]
    a2 = logits[:, 2 * C:3 * C]
    m = jnp.maximum(jnp.maximum(a0, a1), a2)
    e0, e1, e2 = jnp.exp(a0 - m), jnp.exp(a1 - m), jnp.exp(a2 - m)
    inv = pl.reciprocal(e0 + e1 + e2, approx=True)
    wa, wb, wc = e0 * inv, e1 * inv, e2 * inv                    # (1, C) each

    # ---- per-region scaling (dense, lane-aligned) + residual + final ReLU ----
    row = lax.broadcasted_iota(jnp.int32, (HW, 1), 0)            # flat row index
    wsel = jnp.where(row < h1 * W, wa, jnp.where(row < h2 * W, wb, wc))
    o_ref[0] = jnp.maximum(y * wsel + id_ref[0], 0.0).astype(o_ref.dtype)


# --------------------------------------------------------------------------
# Full BasicBlock forward (stride=1, downsample=None, BN in inference mode)
# --------------------------------------------------------------------------
def basic_block_forward(x_nchw, params):
    x = jnp.transpose(x_nchw, (0, 2, 3, 1)).astype(jnp.float32)  # NCHW -> NHWC
    B, H, W, Cin = x.shape
    C = params["conv1_w"].shape[0]
    if Cin != C:
        raise ValueError("stride=1 BasicBlock without downsample needs inplanes == planes")
    if H < 3:
        raise ValueError("RIR needs H >= 3 so all three row regions are non-empty")
    h1, h2 = H // 3, (2 * H) // 3
    HW = H * W
    d = params["se_w"].shape[1]

    w1 = jnp.transpose(params["conv1_w"], (2, 3, 1, 0)).astype(jnp.bfloat16)  # (3,3,Cin,C)
    w2 = jnp.transpose(params["conv2_w"], (2, 3, 1, 0)).astype(jnp.bfloat16)  # (3,3,C,C)
    s1 = params["bn1_scale"].reshape(1, C).astype(jnp.float32)
    b1 = params["bn1_bias"].reshape(1, C).astype(jnp.float32)
    s2 = params["bn2_scale"].reshape(1, C).astype(jnp.float32)
    b2 = params["bn2_bias"].reshape(1, C).astype(jnp.float32)
    se_w = params["se_w"].astype(jnp.float32)                    # (C, d)
    fc2_w = params["fc2_w"].astype(jnp.float32)                  # (d, 3C)

    cparams = pltpu.CompilerParams(
        dimension_semantics=("parallel",),        # megacore sharding on v7x
        vmem_limit_bytes=64 * 1024 * 1024)

    # ---- kernel 1: conv1 + bn1 + relu ----
    x_pad = jnp.pad(x.astype(jnp.bfloat16), ((0, 0), (1, 1), (1, 1), (0, 0)))
    flops1 = 2 * B * HW * 9 * Cin * C
    bytes1 = int(x_pad.size) * 2 + int(w1.size) * 2 + 2 * C * 4 + B * HW * C * 2
    y1 = pl.pallas_call(
        _conv3x3_bn_relu_kernel,
        out_shape=jax.ShapeDtypeStruct((B, HW, C), jnp.bfloat16),
        grid=(B,),
        in_specs=[
            pl.BlockSpec((1, H + 2, W + 2, Cin), lambda b: (b, 0, 0, 0)),
            pl.BlockSpec((3, 3, Cin, C), lambda b: (0, 0, 0, 0)),
            pl.BlockSpec((1, C), lambda b: (0, 0)),
            pl.BlockSpec((1, C), lambda b: (0, 0)),
        ],
        out_specs=pl.BlockSpec((1, HW, C), lambda b: (b, 0, 0)),
        compiler_params=cparams,
        cost_estimate=pl.CostEstimate(flops=int(flops1), transcendentals=0,
                                      bytes_accessed=int(bytes1)),
    )(x_pad, w1, s1, b1)

    # ---- kernel 2: fused conv2 + bn2 + RIR + residual + relu ----
    y1_pad = jnp.pad(y1.reshape(B, H, W, C), ((0, 0), (1, 1), (1, 1), (0, 0)))
    x_flat = x.reshape(B, HW, C)                                 # residual identity
    flops2 = 2 * B * HW * 9 * C * C + 2 * B * (C * d + d * 3 * C)
    bytes2 = (int(y1_pad.size) * 2 + int(x_flat.size) * 4 + int(w2.size) * 2
              + int(se_w.size) * 4 + int(fc2_w.size) * 4 + 2 * C * 4 + B * HW * C * 4)
    out_flat = pl.pallas_call(
        functools.partial(_conv3x3_bn_rir_kernel, h1=h1, h2=h2),
        out_shape=jax.ShapeDtypeStruct((B, HW, C), jnp.float32),
        grid=(B,),
        in_specs=[
            pl.BlockSpec((1, H + 2, W + 2, C), lambda b: (b, 0, 0, 0)),
            pl.BlockSpec((1, HW, C), lambda b: (b, 0, 0)),
            pl.BlockSpec((3, 3, C, C), lambda b: (0, 0, 0, 0)),
            pl.BlockSpec((1, C), lambda b: (0, 0)),
            pl.BlockSpec((1, C), lambda b: (0, 0)),
            pl.BlockSpec((C, d), lambda b: (0, 0)),
            pl.BlockSpec((d, 3 * C), lambda b: (0, 0)),
        ],
        out_specs=pl.BlockSpec((1, HW, C), lambda b: (b, 0, 0)),
        compiler_params=cparams,
        cost_estimate=pl.CostEstimate(flops=int(flops2), transcendentals=3 * B * C,
                                      bytes_accessed=int(bytes2)),
        input_output_aliases={1: 0},    # reuse the identity buffer for the output
    )(y1_pad, x_flat, w2, s2, b2, se_w, fc2_w)

    out = out_flat.reshape(B, H, W, C)
    return jnp.transpose(out, (0, 3, 1, 2))                      # NHWC -> NCHW


# --------------------------------------------------------------------------
# Deterministic parameter initialization (synthetic, BN folded for inference)
# --------------------------------------------------------------------------
def init_params(key, inplanes, planes):
    d = max(planes // 16, 32)
    ks = jax.random.split(key, 8)

    def n(k, shape, s=0.1):
        return (s * jax.random.normal(k, shape)).astype(jnp.float32)

    def fold_bn(k, c):
        kg, kb, km, kv = jax.random.split(k, 4)
        gamma = 1.0 + n(kg, (c,))
        beta = n(kb, (c,))
        mean = n(km, (c,))
        var = jnp.abs(1.0 + n(kv, (c,)))
        scale = gamma * lax.rsqrt(var + 1e-5)
        return scale, beta - mean * scale

    bn1_scale, bn1_bias = fold_bn(ks[2], planes)
    bn2_scale, bn2_bias = fold_bn(ks[3], planes)
    se_w_oihw = n(ks[4], (d, planes, 1, 1), 0.2)
    fc2_w_oihw = n(ks[5], (3 * planes, d, 1, 1), 0.2)
    # NOTE: RIR.up_conv / center_conv / down_conv are never used in forward().
    return dict(
        conv1_w=n(ks[0], (planes, inplanes, 3, 3)),
        conv2_w=n(ks[1], (planes, planes, 3, 3)),
        bn1_scale=bn1_scale, bn1_bias=bn1_bias,
        bn2_scale=bn2_scale, bn2_bias=bn2_bias,
        se_w=jnp.transpose(se_w_oihw[:, :, 0, 0]),    # (planes, d)
        fc2_w=jnp.transpose(fc2_w_oihw[:, :, 0, 0]),  # (d, 3*planes)
    )


# --------------------------------------------------------------------------
# Pure-JAX reference (f32, HIGHEST precision) for correctness checking
# --------------------------------------------------------------------------
def reference_forward(x_nchw, params):
    x = jnp.transpose(x_nchw, (0, 2, 3, 1))

    def conv(xin, w_oihw):
        w_hwio = jnp.transpose(w_oihw, (2, 3, 1, 0))
        return lax.conv_general_dilated(
            xin, w_hwio, (1, 1), "SAME",
            dimension_numbers=("NHWC", "HWIO", "NHWC"),
            precision=lax.Precision.HIGHEST)

    out = conv(x, params["conv1_w"]) * params["bn1_scale"] + params["bn1_bias"]
    out = jnp.maximum(out, 0.0)
    out = conv(out, params["conv2_w"]) * params["bn2_scale"] + params["bn2_bias"]

    B, H, W, C = out.shape
    h1, h2 = H // 3, (H * 2) // 3
    pooled = (out[:, :h1].mean(axis=(1, 2)) + out[:, h1:h2].mean(axis=(1, 2))
              + out[:, h2:].mean(axis=(1, 2)))
    z = jnp.maximum(pooled @ params["se_w"], 0.0)
    logits = (z @ params["fc2_w"]).reshape(B, 3, C)
    wgt = jax.nn.softmax(logits, axis=1)
    scaled = jnp.concatenate(
        [out[:, :h1] * wgt[:, 0][:, None, None, :],
         out[:, h1:h2] * wgt[:, 1][:, None, None, :],
         out[:, h2:] * wgt[:, 2][:, None, None, :]], axis=1)
    y = jnp.maximum(scaled + x, 0.0)
    return jnp.transpose(y, (0, 3, 1, 2))


if __name__ == "__main__":
    # inplanes == planes is required by the residual add (stride=1, no downsample);
    # planes=128 keeps the channel/lane dimension dense (128-multiple).
    B, planes, H, W = 2, 128, 12, 16
    key = jax.random.PRNGKey(0)
    kx, kp = jax.random.split(key)
    x = jax.random.normal(kx, (B, planes, H, W), dtype=jnp.float32)
    params = init_params(kp, planes, planes)

    out = jax.jit(basic_block_forward)(x, params)
    out = jax.block_until_ready(out)
    assert out.shape == (B, planes, H, W)

    ref = reference_forward(x, params)
    max_err = float(jnp.max(jnp.abs(out - ref)))
    # bf16 MXU operands across two chained convs (+ approx reciprocal), per TPU
    # perf guidance, widen the numerics vs the f32 HIGHEST reference. 5e-2 of the
    # output max still catches any structural/indexing bug (those are O(1)-O(10)).
    tol = 5e-2 * max(1.0, float(jnp.max(jnp.abs(ref))))
    if max_err > tol:
        raise AssertionError(f"Pallas output mismatch vs reference: {max_err} > {tol}")

    print("KERNEL_OK")
</pallas_src>

<mosaic_0001>
module attributes {stable_mosaic.version = 11 : i64} {
  func.func @_conv3x3_bn_relu_kernel(%arg0: i32, %arg1: memref<1x14x18x128xbf16, #tpu.memory_space<vmem>>, %arg2: memref<3x3x128x128xbf16, #tpu.memory_space<vmem>>, %arg3: memref<1x128xf32, #tpu.memory_space<vmem>>, %arg4: memref<1x128xf32, #tpu.memory_space<vmem>>, %arg5: memref<1x192x128xbf16, #tpu.memory_space<vmem>>) attributes {dimension_semantics = [#tpu.dimension_semantics<parallel>], iteration_bounds = array<i64: 2>, scalar_prefetch = 0 : i64, scratch_operands = 0 : i64, tpu.core_type = #tpu.core_type<tc>, window_params = [{transform_indices = @transform_0, window_bounds = array<i64: 1, 14, 18, 128>}, {pipeline_mode = #tpu.pipeline_mode<synchronous>, transform_indices = @transform_1, window_bounds = array<i64: 3, 3, 128, 128>}, {pipeline_mode = #tpu.pipeline_mode<synchronous>, transform_indices = @transform_2, window_bounds = array<i64: 1, 128>}, {pipeline_mode = #tpu.pipeline_mode<synchronous>, transform_indices = @transform_3, window_bounds = array<i64: 1, 128>}, {transform_indices = @transform_4, window_bounds = array<i64: 1, 192, 128>}]} {
    %cst = arith.constant 0.000000e+00 : f32
    %0 = vector.broadcast %cst : f32 to vector<192x128xf32>
    %c0 = arith.constant 0 : index
    %c0_0 = arith.constant 0 : index
    %c0_1 = arith.constant 0 : index
    %c0_2 = arith.constant 0 : index
    %1 = vector.load %arg1[%c0, %c0_0, %c0_1, %c0_2] : memref<1x14x18x128xbf16, #tpu.memory_space<vmem>>, vector<1x12x16x128xbf16>
    %2 = vector.shape_cast %1 : vector<1x12x16x128xbf16> to vector<12x16x128xbf16>
    %3 = vector.shape_cast %2 : vector<12x16x128xbf16> to vector<192x128xbf16>
    %c0_3 = arith.constant 0 : index
    %c0_4 = arith.constant 0 : index
    %c0_5 = arith.constant 0 : index
    %c0_6 = arith.constant 0 : index
    %4 = vector.load %arg2[%c0_3, %c0_4, %c0_5, %c0_6] : memref<3x3x128x128xbf16, #tpu.memory_space<vmem>>, vector<1x1x128x128xbf16>
    %5 = vector.shape_cast %4 : vector<1x1x128x128xbf16> to vector<128x128xbf16>
    %cst_7 = arith.constant dense<0.000000e+00> : vector<192x128xf32>
    %6 = tpu.matmul %3, %5, %cst_7 {dimension_numbers = #tpu.dot_dimension_numbers<[1], [0], [0], [1], [0, 0, 1, 1], [], []>} : vector<192x128xbf16>, vector<128x128xbf16>, vector<192x128xf32> -> vector<192x128xf32>
    %7 = arith.addf %0, %6 : vector<192x128xf32>
    %c0_8 = arith.constant 0 : index
    %c0_9 = arith.constant 0 : index
    %c1 = arith.constant 1 : index
    %c0_10 = arith.constant 0 : index
    %8 = vector.load %arg1[%c0_8, %c0_9, %c1, %c0_10] : memref<1x14x18x128xbf16, #tpu.memory_space<vmem>>, vector<1x12x16x128xbf16>
    %9 = vector.shape_cast %8 : vector<1x12x16x128xbf16> to vector<12x16x128xbf16>
    %10 = vector.shape_cast %9 : vector<12x16x128xbf16> to vector<192x128xbf16>
    %c0_11 = arith.constant 0 : index
    %c1_12 = arith.constant 1 : index
    %c0_13 = arith.constant 0 : index
    %c0_14 = arith.constant 0 : index
    %11 = vector.load %arg2[%c0_11, %c1_12, %c0_13, %c0_14] : memref<3x3x128x128xbf16, #tpu.memory_space<vmem>>, vector<1x1x128x128xbf16>
    %12 = vector.shape_cast %11 : vector<1x1x128x128xbf16> to vector<128x128xbf16>
    %cst_15 = arith.constant dense<0.000000e+00> : vector<192x128xf32>
    %13 = tpu.matmul %10, %12, %cst_15 {dimension_numbers = #tpu.dot_dimension_numbers<[1], [0], [0], [1], [0, 0, 1, 1], [], []>} : vector<192x128xbf16>, vector<128x128xbf16>, vector<192x128xf32> -> vector<192x128xf32>
    %14 = arith.addf %7, %13 : vector<192x128xf32>
    %c0_16 = arith.constant 0 : index
    %c0_17 = arith.constant 0 : index
    %c2 = arith.constant 2 : index
    %c0_18 = arith.constant 0 : index
    %15 = vector.load %arg1[%c0_16, %c0_17, %c2, %c0_18] : memref<1x14x18x128xbf16, #tpu.memory_space<vmem>>, vector<1x12x16x128xbf16>
    %16 = vector.shape_cast %15 : vector<1x12x16x128xbf16> to vector<12x16x128xbf16>
    %17 = vector.shape_cast %16 : vector<12x16x128xbf16> to vector<192x128xbf16>
    %c0_19 = arith.constant 0 : index
    %c2_20 = arith.constant 2 : index
    %c0_21 = arith.constant 0 : index
    %c0_22 = arith.constant 0 : index
    %18 = vector.load %arg2[%c0_19, %c2_20, %c0_21, %c0_22] : memref<3x3x128x128xbf16, #tpu.memory_space<vmem>>, vector<1x1x128x128xbf16>
    %19 = vector.shape_cast %18 : vector<1x1x128x128xbf16> to vector<128x128xbf16>
    %cst_23 = arith.constant dense<0.000000e+00> : vector<192x128xf32>
    %20 = tpu.matmul %17, %19, %cst_23 {dimension_numbers = #tpu.dot_dimension_numbers<[1], [0], [0], [1], [0, 0, 1, 1], [], []>} : vector<192x128xbf16>, vector<128x128xbf16>, vector<192x128xf32> -> vector<192x128xf32>
    %21 = arith.addf %14, %20 : vector<192x128xf32>
    %c0_24 = arith.constant 0 : index
    %c1_25 = arith.constant 1 : index
    %c0_26 = arith.constant 0 : index
    %c0_27 = arith.constant 0 : index
    %22 = vector.load %arg1[%c0_24, %c1_25, %c0_26, %c0_27] : memref<1x14x18x128xbf16, #tpu.memory_space<vmem>>, vector<1x12x16x128xbf16>
    %23 = vector.shape_cast %22 : vector<1x12x16x128xbf16> to vector<12x16x128xbf16>
    %24 = vector.shape_cast %23 : vector<12x16x128xbf16> to vector<192x128xbf16>
    %c1_28 = arith.constant 1 : index
    %c0_29 = arith.constant 0 : index
    %c0_30 = arith.constant 0 : index
    %c0_31 = arith.constant 0 : index
    %25 = vector.load %arg2[%c1_28, %c0_29, %c0_30, %c0_31] : memref<3x3x128x128xbf16, #tpu.memory_space<vmem>>, vector<1x1x128x128xbf16>
    %26 = vector.shape_cast %25 : vector<1x1x128x128xbf16> to vector<128x128xbf16>
    %cst_32 = arith.constant dense<0.000000e+00> : vector<192x128xf32>
    %27 = tpu.matmul %24, %26, %cst_32 {dimension_numbers = #tpu.dot_dimension_numbers<[1], [0], [0], [1], [0, 0, 1, 1], [], []>} : vector<192x128xbf16>, vector<128x128xbf16>, vector<192x128xf32> -> vector<192x128xf32>
    %28 = arith.addf %21, %27 : vector<192x128xf32>
    %c0_33 = arith.constant 0 : index
    %c1_34 = arith.constant 1 : index
    %c1_35 = arith.constant 1 : index
    %c0_36 = arith.constant 0 : index
    %29 = vector.load %arg1[%c0_33, %c1_34, %c1_35, %c0_36] : memref<1x14x18x128xbf16, #tpu.memory_space<vmem>>, vector<1x12x16x128xbf16>
    %30 = vector.shape_cast %29 : vector<1x12x16x128xbf16> to vector<12x16x128xbf16>
    %31 = vector.shape_cast %30 : vector<12x16x128xbf16> to vector<192x128xbf16>
    %c1_37 = arith.constant 1 : index
    %c1_38 = arith.constant 1 : index
    %c0_39 = arith.constant 0 : index
    %c0_40 = arith.constant 0 : index
    %32 = vector.load %arg2[%c1_37, %c1_38, %c0_39, %c0_40] : memref<3x3x128x128xbf16, #tpu.memory_space<vmem>>, vector<1x1x128x128xbf16>
    %33 = vector.shape_cast %32 : vector<1x1x128x128xbf16> to vector<128x128xbf16>
    %cst_41 = arith.constant dense<0.000000e+00> : vector<192x128xf32>
    %34 = tpu.matmul %31, %33, %cst_41 {dimension_numbers = #tpu.dot_dimension_numbers<[1], [0], [0], [1], [0, 0, 1, 1], [], []>} : vector<192x128xbf16>, vector<128x128xbf16>, vector<192x128xf32> -> vector<192x128xf32>
    %35 = arith.addf %28, %34 : vector<192x128xf32>
    %c0_42 = arith.constant 0 : index
    %c1_43 = arith.constant 1 : index
    %c2_44 = arith.constant 2 : index
    %c0_45 = arith.constant 0 : index
    %36 = vector.load %arg1[%c0_42, %c1_43, %c2_44, %c0_45] : memref<1x14x18x128xbf16, #tpu.memory_space<vmem>>, vector<1x12x16x128xbf16>
    %37 = vector.shape_cast %36 : vector<1x12x16x128xbf16> to vector<12x16x128xbf16>
    %38 = vector.shape_cast %37 : vector<12x16x128xbf16> to vector<192x128xbf16>
    %c1_46 = arith.constant 1 : index
    %c2_47 = arith.constant 2 : index
    %c0_48 = arith.constant 0 : index
    %c0_49 = arith.constant 0 : index
    %39 = vector.load %arg2[%c1_46, %c2_47, %c0_48, %c0_49] : memref<3x3x128x128xbf16, #tpu.memory_space<vmem>>, vector<1x1x128x128xbf16>
    %40 = vector.shape_cast %39 : vector<1x1x128x128xbf16> to vector<128x128xbf16>
    %cst_50 = arith.constant dense<0.000000e+00> : vector<192x128xf32>
    %41 = tpu.matmul %38, %40, %cst_50 {dimension_numbers = #tpu.dot_dimension_numbers<[1], [0], [0], [1], [0, 0, 1, 1], [], []>} : vector<192x128xbf16>, vector<128x128xbf16>, vector<192x128xf32> -> vector<192x128xf32>
    %42 = arith.addf %35, %41 : vector<192x128xf32>
    %c0_51 = arith.constant 0 : index
    %c2_52 = arith.constant 2 : index
    %c0_53 = arith.constant 0 : index
    %c0_54 = arith.constant 0 : index
    %43 = vector.load %arg1[%c0_51, %c2_52, %c0_53, %c0_54] : memref<1x14x18x128xbf16, #tpu.memory_space<vmem>>, vector<1x12x16x128xbf16>
    %44 = vector.shape_cast %43 : vector<1x12x16x128xbf16> to vector<12x16x128xbf16>
    %45 = vector.shape_cast %44 : vector<12x16x128xbf16> to vector<192x128xbf16>
    %c2_55 = arith.constant 2 : index
    %c0_56 = arith.constant 0 : index
    %c0_57 = arith.constant 0 : index
    %c0_58 = arith.constant 0 : index
    %46 = vector.load %arg2[%c2_55, %c0_56, %c0_57, %c0_58] : memref<3x3x128x128xbf16, #tpu.memory_space<vmem>>, vector<1x1x128x128xbf16>
    %47 = vector.shape_cast %46 : vector<1x1x128x128xbf16> to vector<128x128xbf16>
    %cst_59 = arith.constant dense<0.000000e+00> : vector<192x128xf32>
    %48 = tpu.matmul %45, %47, %cst_59 {dimension_numbers = #tpu.dot_dimension_numbers<[1], [0], [0], [1], [0, 0, 1, 1], [], []>} : vector<192x128xbf16>, vector<128x128xbf16>, vector<192x128xf32> -> vector<192x128xf32>
    %49 = arith.addf %42, %48 : vector<192x128xf32>
    %c0_60 = arith.constant 0 : index
    %c2_61 = arith.constant 2 : index
    %c1_62 = arith.constant 1 : index
    %c0_63 = arith.constant 0 : index
    %50 = vector.load %arg1[%c0_60, %c2_61, %c1_62, %c0_63] : memref<1x14x18x128xbf16, #tpu.memory_space<vmem>>, vector<1x12x16x128xbf16>
    %51 = vector.shape_cast %50 : vector<1x12x16x128xbf16> to vector<12x16x128xbf16>
    %52 = vector.shape_cast %51 : vector<12x16x128xbf16> to vector<192x128xbf16>
    %c2_64 = arith.constant 2 : index
    %c1_65 = arith.constant 1 : index
    %c0_66 = arith.constant 0 : index
    %c0_67 = arith.constant 0 : index
    %53 = vector.load %arg2[%c2_64, %c1_65, %c0_66, %c0_67] : memref<3x3x128x128xbf16, #tpu.memory_space<vmem>>, vector<1x1x128x128xbf16>
    %54 = vector.shape_cast %53 : vector<1x1x128x128xbf16> to vector<128x128xbf16>
    %cst_68 = arith.constant dense<0.000000e+00> : vector<192x128xf32>
    %55 = tpu.matmul %52, %54, %cst_68 {dimension_numbers = #tpu.dot_dimension_numbers<[1], [0], [0], [1], [0, 0, 1, 1], [], []>} : vector<192x128xbf16>, vector<128x128xbf16>, vector<192x128xf32> -> vector<192x128xf32>
    %56 = arith.addf %49, %55 : vector<192x128xf32>
    %c0_69 = arith.constant 0 : index
    %c2_70 = arith.constant 2 : index
    %c2_71 = arith.constant 2 : index
    %c0_72 = arith.constant 0 : index
    %57 = vector.load %arg1[%c0_69, %c2_70, %c2_71, %c0_72] : memref<1x14x18x128xbf16, #tpu.memory_space<vmem>>, vector<1x12x16x128xbf16>
    %58 = vector.shape_cast %57 : vector<1x12x16x128xbf16> to vector<12x16x128xbf16>
    %59 = vector.shape_cast %58 : vector<12x16x128xbf16> to vector<192x128xbf16>
    %c2_73 = arith.constant 2 : index
    %c2_74 = arith.constant 2 : index
    %c0_75 = arith.constant 0 : index
    %c0_76 = arith.constant 0 : index
    %60 = vector.load %arg2[%c2_73, %c2_74, %c0_75, %c0_76] : memref<3x3x128x128xbf16, #tpu.memory_space<vmem>>, vector<1x1x128x128xbf16>
    %61 = vector.shape_cast %60 : vector<1x1x128x128xbf16> to vector<128x128xbf16>
    %cst_77 = arith.constant dense<0.000000e+00> : vector<192x128xf32>
    %62 = tpu.matmul %59, %61, %cst_77 {dimension_numbers = #tpu.dot_dimension_numbers<[1], [0], [0], [1], [0, 0, 1, 1], [], []>} : vector<192x128xbf16>, vector<128x128xbf16>, vector<192x128xf32> -> vector<192x128xf32>
    %63 = arith.addf %56, %62 : vector<192x128xf32>
    %c0_78 = arith.constant 0 : index
    %c0_79 = arith.constant 0 : index
    %64 = vector.load %arg3[%c0_78, %c0_79] : memref<1x128xf32, #tpu.memory_space<vmem>>, vector<1x128xf32>
    %65 = vector.broadcast %64 : vector<1x128xf32> to vector<192x128xf32>
    %66 = arith.mulf %63, %65 : vector<192x128xf32>
    %c0_80 = arith.constant 0 : index
    %c0_81 = arith.constant 0 : index
    %67 = vector.load %arg4[%c0_80, %c0_81] : memref<1x128xf32, #tpu.memory_space<vmem>>, vector<1x128xf32>
    %68 = vector.broadcast %67 : vector<1x128xf32> to vector<192x128xf32>
    %69 = arith.addf %66, %68 : vector<192x128xf32>
    %cst_82 = arith.constant 0.000000e+00 : f32
    %70 = vector.broadcast %cst_82 : f32 to vector<192x128xf32>
    %71 = arith.maximumf %69, %70 : vector<192x128xf32>
    %72 = arith.truncf %71 : vector<192x128xf32> to vector<192x128xbf16>
    %c0_83 = arith.constant 0 : index
    %c0_84 = arith.constant 0 : index
    %c0_85 = arith.constant 0 : index
    %73 = vector.load %arg5[%c0_83, %c0_84, %c0_85] : memref<1x192x128xbf16, #tpu.memory_space<vmem>>, vector<1x192x128xbf16>
    %74 = vector.shape_cast %73 : vector<1x192x128xbf16> to vector<192x128xbf16>
    %75 = vector.shape_cast %72 : vector<192x128xbf16> to vector<1x192x128xbf16>
    tpu.vector_store %arg5[%c0_83, %c0_84, %c0_85], %75 {strides = array<i32>} : memref<1x192x128xbf16, #tpu.memory_space<vmem>>, vector<1x192x128xbf16>,
    return
  }
  func.func @transform_0(%arg0: i32) -> (i32, i32, i32, i32) {
    %c0_i32 = arith.constant 0 : i32
    %c0_i32_0 = arith.constant 0 : i32
    %c0_i32_1 = arith.constant 0 : i32
    %c0_i32_2 = arith.constant 0 : i32
    return %arg0, %c0_i32, %c0_i32_0, %c0_i32_1 : i32, i32, i32, i32
  }
  func.func @transform_1(%arg0: i32) -> (i32, i32, i32, i32) {
    %c0_i32 = arith.constant 0 : i32
    %c0_i32_0 = arith.constant 0 : i32
    %c0_i32_1 = arith.constant 0 : i32
    %c0_i32_2 = arith.constant 0 : i32
    %c0_i32_3 = arith.constant 0 : i32
    return %c0_i32, %c0_i32_0, %c0_i32_1, %c0_i32_2 : i32, i32, i32, i32
  }
  func.func @transform_2(%arg0: i32) -> (i32, i32) {
    %c0_i32 = arith.constant 0 : i32
    %c0_i32_0 = arith.constant 0 : i32
    %c0_i32_1 = arith.constant 0 : i32
    return %c0_i32, %c0_i32_0 : i32, i32
  }
  func.func @transform_3(%arg0: i32) -> (i32, i32) {
    %c0_i32 = arith.constant 0 : i32
    %c0_i32_0 = arith.constant 0 : i32
    %c0_i32_1 = arith.constant 0 : i32
    return %c0_i32, %c0_i32_0 : i32, i32
  }
  func.func @transform_4(%arg0: i32) -> (i32, i32, i32) {
    %c0_i32 = arith.constant 0 : i32
    %c0_i32_0 = arith.constant 0 : i32
    %c0_i32_1 = arith.constant 0 : i32
    return %arg0, %c0_i32, %c0_i32_0 : i32, i32, i32
  }
}

module attributes {stable_mosaic.version = 11 : i64} {
  func.func @_conv3x3_bn_rir_kernel(%arg0: i32, %arg1: memref<1x14x18x128xbf16, #tpu.memory_space<vmem>>, %arg2: memref<1x192x128xf32, #tpu.memory_space<vmem>>, %arg3: memref<3x3x128x128xbf16, #tpu.memory_space<vmem>>, %arg4: memref<1x128xf32, #tpu.memory_space<vmem>>, %arg5: memref<1x128xf32, #tpu.memory_space<vmem>>, %arg6: memref<128x32xf32, #tpu.memory_space<vmem>>, %arg7: memref<32x384xf32, #tpu.memory_space<vmem>>, %arg8: memref<1x192x128xf32, #tpu.memory_space<vmem>>) attributes {dimension_semantics = [#tpu.dimension_semantics<parallel>], iteration_bounds = array<i64: 2>, scalar_prefetch = 0 : i64, scratch_operands = 0 : i64, tpu.core_type = #tpu.core_type<tc>, window_params = [{transform_indices = @transform_0, window_bounds = array<i64: 1, 14, 18, 128>}, {transform_indices = @transform_1, window_bounds = array<i64: 1, 192, 128>}, {pipeline_mode = #tpu.pipeline_mode<synchronous>, transform_indices = @transform_2, window_bounds = array<i64: 3, 3, 128, 128>}, {pipeline_mode = #tpu.pipeline_mode<synchronous>, transform_indices = @transform_3, window_bounds = array<i64: 1, 128>}, {pipeline_mode = #tpu.pipeline_mode<synchronous>, transform_indices = @transform_4, window_bounds = array<i64: 1, 128>}, {pipeline_mode = #tpu.pipeline_mode<synchronous>, transform_indices = @transform_5, window_bounds = array<i64: 128, 32>}, {pipeline_mode = #tpu.pipeline_mode<synchronous>, transform_indices = @transform_6, window_bounds = array<i64: 32, 384>}, {transform_indices = @transform_7, window_bounds = array<i64: 1, 192, 128>}]} {
    %cst = arith.constant 0.000000e+00 : f32
    %0 = vector.broadcast %cst : f32 to vector<192x128xf32>
    %c0 = arith.constant 0 : index
    %c0_0 = arith.constant 0 : index
    %c0_1 = arith.constant 0 : index
    %c0_2 = arith.constant 0 : index
    %1 = vector.load %arg1[%c0, %c0_0, %c0_1, %c0_2] : memref<1x14x18x128xbf16, #tpu.memory_space<vmem>>, vector<1x12x16x128xbf16>
    %2 = vector.shape_cast %1 : vector<1x12x16x128xbf16> to vector<12x16x128xbf16>
    %3 = vector.shape_cast %2 : vector<12x16x128xbf16> to vector<192x128xbf16>
    %c0_3 = arith.constant 0 : index
    %c0_4 = arith.constant 0 : index
    %c0_5 = arith.constant 0 : index
    %c0_6 = arith.constant 0 : index
    %4 = vector.load %arg3[%c0_3, %c0_4, %c0_5, %c0_6] : memref<3x3x128x128xbf16, #tpu.memory_space<vmem>>, vector<1x1x128x128xbf16>
    %5 = vector.shape_cast %4 : vector<1x1x128x128xbf16> to vector<128x128xbf16>
    %cst_7 = arith.constant dense<0.000000e+00> : vector<192x128xf32>
    %6 = tpu.matmul %3, %5, %cst_7 {dimension_numbers = #tpu.dot_dimension_numbers<[1], [0], [0], [1], [0, 0, 1, 1], [], []>} : vector<192x128xbf16>, vector<128x128xbf16>, vector<192x128xf32> -> vector<192x128xf32>
    %7 = arith.addf %0, %6 : vector<192x128xf32>
    %c0_8 = arith.constant 0 : index
    %c0_9 = arith.constant 0 : index
    %c1 = arith.constant 1 : index
    %c0_10 = arith.constant 0 : index
    %8 = vector.load %arg1[%c0_8, %c0_9, %c1, %c0_10] : memref<1x14x18x128xbf16, #tpu.memory_space<vmem>>, vector<1x12x16x128xbf16>
    %9 = vector.shape_cast %8 : vector<1x12x16x128xbf16> to vector<12x16x128xbf16>
    %10 = vector.shape_cast %9 : vector<12x16x128xbf16> to vector<192x128xbf16>
    %c0_11 = arith.constant 0 : index
    %c1_12 = arith.constant 1 : index
    %c0_13 = arith.constant 0 : index
    %c0_14 = arith.constant 0 : index
    %11 = vector.load %arg3[%c0_11, %c1_12, %c0_13, %c0_14] : memref<3x3x128x128xbf16, #tpu.memory_space<vmem>>, vector<1x1x128x128xbf16>
    %12 = vector.shape_cast %11 : vector<1x1x128x128xbf16> to vector<128x128xbf16>
    %cst_15 = arith.constant dense<0.000000e+00> : vector<192x128xf32>
    %13 = tpu.matmul %10, %12, %cst_15 {dimension_numbers = #tpu.dot_dimension_numbers<[1], [0], [0], [1], [0, 0, 1, 1], [], []>} : vector<192x128xbf16>, vector<128x128xbf16>, vector<192x128xf32> -> vector<192x128xf32>
    %14 = arith.addf %7, %13 : vector<192x128xf32>
    %c0_16 = arith.constant 0 : index
    %c0_17 = arith.constant 0 : index
    %c2 = arith.constant 2 : index
    %c0_18 = arith.constant 0 : index
    %15 = vector.load %arg1[%c0_16, %c0_17, %c2, %c0_18] : memref<1x14x18x128xbf16, #tpu.memory_space<vmem>>, vector<1x12x16x128xbf16>
    %16 = vector.shape_cast %15 : vector<1x12x16x128xbf16> to vector<12x16x128xbf16>
    %17 = vector.shape_cast %16 : vector<12x16x128xbf16> to vector<192x128xbf16>
    %c0_19 = arith.constant 0 : index
    %c2_20 = arith.constant 2 : index
    %c0_21 = arith.constant 0 : index
    %c0_22 = arith.constant 0 : index
    %18 = vector.load %arg3[%c0_19, %c2_20, %c0_21, %c0_22] : memref<3x3x128x128xbf16, #tpu.memory_space<vmem>>, vector<1x1x128x128xbf16>
    %19 = vector.shape_cast %18 : vector<1x1x128x128xbf16> to vector<128x128xbf16>
    %cst_23 = arith.constant dense<0.000000e+00> : vector<192x128xf32>
    %20 = tpu.matmul %17, %19, %cst_23 {dimension_numbers = #tpu.dot_dimension_numbers<[1], [0], [0], [1], [0, 0, 1, 1], [], []>} : vector<192x128xbf16>, vector<128x128xbf16>, vector<192x128xf32> -> vector<192x128xf32>
    %21 = arith.addf %14, %20 : vector<192x128xf32>
    %c0_24 = arith.constant 0 : index
    %c1_25 = arith.constant 1 : index
    %c0_26 = arith.constant 0 : index
    %c0_27 = arith.constant 0 : index
    %22 = vector.load %arg1[%c0_24, %c1_25, %c0_26, %c0_27] : memref<1x14x18x128xbf16, #tpu.memory_space<vmem>>, vector<1x12x16x128xbf16>
    %23 = vector.shape_cast %22 : vector<1x12x16x128xbf16> to vector<12x16x128xbf16>
    %24 = vector.shape_cast %23 : vector<12x16x128xbf16> to vector<192x128xbf16>
    %c1_28 = arith.constant 1 : index
    %c0_29 = arith.constant 0 : index
    %c0_30 = arith.constant 0 : index
    %c0_31 = arith.constant 0 : index
    %25 = vector.load %arg3[%c1_28, %c0_29, %c0_30, %c0_31] : memref<3x3x128x128xbf16, #tpu.memory_space<vmem>>, vector<1x1x128x128xbf16>
    %26 = vector.shape_cast %25 : vector<1x1x128x128xbf16> to vector<128x128xbf16>
    %cst_32 = arith.constant dense<0.000000e+00> : vector<192x128xf32>
    %27 = tpu.matmul %24, %26, %cst_32 {dimension_numbers = #tpu.dot_dimension_numbers<[1], [0], [0], [1], [0, 0, 1, 1], [], []>} : vector<192x128xbf16>, vector<128x128xbf16>, vector<192x128xf32> -> vector<192x128xf32>
    %28 = arith.addf %21, %27 : vector<192x128xf32>
    %c0_33 = arith.constant 0 : index
    %c1_34 = arith.constant 1 : index
    %c1_35 = arith.constant 1 : index
    %c0_36 = arith.constant 0 : index
    %29 = vector.load %arg1[%c0_33, %c1_34, %c1_35, %c0_36] : memref<1x14x18x128xbf16, #tpu.memory_space<vmem>>, vector<1x12x16x128xbf16>
    %30 = vector.shape_cast %29 : vector<1x12x16x128xbf16> to vector<12x16x128xbf16>
    %31 = vector.shape_cast %30 : vector<12x16x128xbf16> to vector<192x128xbf16>
    %c1_37 = arith.constant 1 : index
    %c1_38 = arith.constant 1 : index
    %c0_39 = arith.constant 0 : index
    %c0_40 = arith.constant 0 : index
    %32 = vector.load %arg3[%c1_37, %c1_38, %c0_39, %c0_40] : memref<3x3x128x128xbf16, #tpu.memory_space<vmem>>, vector<1x1x128x128xbf16>
    %33 = vector.shape_cast %32 : vector<1x1x128x128xbf16> to vector<128x128xbf16>
    %cst_41 = arith.constant dense<0.000000e+00> : vector<192x128xf32>
    %34 = tpu.matmul %31, %33, %cst_41 {dimension_numbers = #tpu.dot_dimension_numbers<[1], [0], [0], [1], [0, 0, 1, 1], [], []>} : vector<192x128xbf16>, vector<128x128xbf16>, vector<192x128xf32> -> vector<192x128xf32>
    %35 = arith.addf %28, %34 : vector<192x128xf32>
    %c0_42 = arith.constant 0 : index
    %c1_43 = arith.constant 1 : index
    %c2_44 = arith.constant 2 : index
    %c0_45 = arith.constant 0 : index
    %36 = vector.load %arg1[%c0_42, %c1_43, %c2_44, %c0_45] : memref<1x14x18x128xbf16, #tpu.memory_space<vmem>>, vector<1x12x16x128xbf16>
    %37 = vector.shape_cast %36 : vector<1x12x16x128xbf16> to vector<12x16x128xbf16>
    %38 = vector.shape_cast %37 : vector<12x16x128xbf16> to vector<192x128xbf16>
    %c1_46 = arith.constant 1 : index
    %c2_47 = arith.constant 2 : index
    %c0_48 = arith.constant 0 : index
    %c0_49 = arith.constant 0 : index
    %39 = vector.load %arg3[%c1_46, %c2_47, %c0_48, %c0_49] : memref<3x3x128x128xbf16, #tpu.memory_space<vmem>>, vector<1x1x128x128xbf16>
    %40 = vector.shape_cast %39 : vector<1x1x128x128xbf16> to vector<128x128xbf16>
    %cst_50 = arith.constant dense<0.000000e+00> : vector<192x128xf32>
    %41 = tpu.matmul %38, %40, %cst_50 {dimension_numbers = #tpu.dot_dimension_numbers<[1], [0], [0], [1], [0, 0, 1, 1], [], []>} : vector<192x128xbf16>, vector<128x128xbf16>, vector<192x128xf32> -> vector<192x128xf32>
    %42 = arith.addf %35, %41 : vector<192x128xf32>
    %c0_51 = arith.constant 0 : index
    %c2_52 = arith.constant 2 : index
    %c0_53 = arith.constant 0 : index
    %c0_54 = arith.constant 0 : index
    %43 = vector.load %arg1[%c0_51, %c2_52, %c0_53, %c0_54] : memref<1x14x18x128xbf16, #tpu.memory_space<vmem>>, vector<1x12x16x128xbf16>
    %44 = vector.shape_cast %43 : vector<1x12x16x128xbf16> to vector<12x16x128xbf16>
    %45 = vector.shape_cast %44 : vector<12x16x128xbf16> to vector<192x128xbf16>
    %c2_55 = arith.constant 2 : index
    %c0_56 = arith.constant 0 : index
    %c0_57 = arith.constant 0 : index
    %c0_58 = arith.constant 0 : index
    %46 = vector.load %arg3[%c2_55, %c0_56, %c0_57, %c0_58] : memref<3x3x128x128xbf16, #tpu.memory_space<vmem>>, vector<1x1x128x128xbf16>
    %47 = vector.shape_cast %46 : vector<1x1x128x128xbf16> to vector<128x128xbf16>
    %cst_59 = arith.constant dense<0.000000e+00> : vector<192x128xf32>
    %48 = tpu.matmul %45, %47, %cst_59 {dimension_numbers = #tpu.dot_dimension_numbers<[1], [0], [0], [1], [0, 0, 1, 1], [], []>} : vector<192x128xbf16>, vector<128x128xbf16>, vector<192x128xf32> -> vector<192x128xf32>
    %49 = arith.addf %42, %48 : vector<192x128xf32>
    %c0_60 = arith.constant 0 : index
    %c2_61 = arith.constant 2 : index
    %c1_62 = arith.constant 1 : index
    %c0_63 = arith.constant 0 : index
    %50 = vector.load %arg1[%c0_60, %c2_61, %c1_62, %c0_63] : memref<1x14x18x128xbf16, #tpu.memory_space<vmem>>, vector<1x12x16x128xbf16>
    %51 = vector.shape_cast %50 : vector<1x12x16x128xbf16> to vector<12x16x128xbf16>
    %52 = vector.shape_cast %51 : vector<12x16x128xbf16> to vector<192x128xbf16>
    %c2_64 = arith.constant 2 : index
    %c1_65 = arith.constant 1 : index
    %c0_66 = arith.constant 0 : index
    %c0_67 = arith.constant 0 : index
    %53 = vector.load %arg3[%c2_64, %c1_65, %c0_66, %c0_67] : memref<3x3x128x128xbf16, #tpu.memory_space<vmem>>, vector<1x1x128x128xbf16>
    %54 = vector.shape_cast %53 : vector<1x1x128x128xbf16> to vector<128x128xbf16>
    %cst_68 = arith.constant dense<0.000000e+00> : vector<192x128xf32>
    %55 = tpu.matmul %52, %54, %cst_68 {dimension_numbers = #tpu.dot_dimension_numbers<[1], [0], [0], [1], [0, 0, 1, 1], [], []>} : vector<192x128xbf16>, vector<128x128xbf16>, vector<192x128xf32> -> vector<192x128xf32>
    %56 = arith.addf %49, %55 : vector<192x128xf32>
    %c0_69 = arith.constant 0 : index
    %c2_70 = arith.constant 2 : index
    %c2_71 = arith.constant 2 : index
    %c0_72 = arith.constant 0 : index
    %57 = vector.load %arg1[%c0_69, %c2_70, %c2_71, %c0_72] : memref<1x14x18x128xbf16, #tpu.memory_space<vmem>>, vector<1x12x16x128xbf16>
    %58 = vector.shape_cast %57 : vector<1x12x16x128xbf16> to vector<12x16x128xbf16>
    %59 = vector.shape_cast %58 : vector<12x16x128xbf16> to vector<192x128xbf16>
    %c2_73 = arith.constant 2 : index
    %c2_74 = arith.constant 2 : index
    %c0_75 = arith.constant 0 : index
    %c0_76 = arith.constant 0 : index
    %60 = vector.load %arg3[%c2_73, %c2_74, %c0_75, %c0_76] : memref<3x3x128x128xbf16, #tpu.memory_space<vmem>>, vector<1x1x128x128xbf16>
    %61 = vector.shape_cast %60 : vector<1x1x128x128xbf16> to vector<128x128xbf16>
    %cst_77 = arith.constant dense<0.000000e+00> : vector<192x128xf32>
    %62 = tpu.matmul %59, %61, %cst_77 {dimension_numbers = #tpu.dot_dimension_numbers<[1], [0], [0], [1], [0, 0, 1, 1], [], []>} : vector<192x128xbf16>, vector<128x128xbf16>, vector<192x128xf32> -> vector<192x128xf32>
    %63 = arith.addf %56, %62 : vector<192x128xf32>
    %c0_78 = arith.constant 0 : index
    %c0_79 = arith.constant 0 : index
    %64 = vector.load %arg4[%c0_78, %c0_79] : memref<1x128xf32, #tpu.memory_space<vmem>>, vector<1x128xf32>
    %65 = vector.broadcast %64 : vector<1x128xf32> to vector<192x128xf32>
    %66 = arith.mulf %63, %65 : vector<192x128xf32>
    %c0_80 = arith.constant 0 : index
    %c0_81 = arith.constant 0 : index
    %67 = vector.load %arg5[%c0_80, %c0_81] : memref<1x128xf32, #tpu.memory_space<vmem>>, vector<1x128xf32>
    %68 = vector.broadcast %67 : vector<1x128xf32> to vector<192x128xf32>
    %69 = arith.addf %66, %68 : vector<192x128xf32>
    %70 = vector.extract_strided_slice %69 {offsets = [0, 0], sizes = [64, 128], strides = [1, 1]} : vector<192x128xf32> to vector<64x128xf32>
    %cst_82 = arith.constant dense<0.000000e+00> : vector<128xf32>
    %71 = vector.multi_reduction <add>, %70, %cst_82 [0] : vector<64x128xf32> to vector<128xf32>
    %72 = vector.shape_cast %71 : vector<128xf32> to vector<1x128xf32>
    %cst_83 = arith.constant 1.562500e-02 : f32
    %73 = vector.broadcast %cst_83 : f32 to vector<1x128xf32>
    %74 = arith.mulf %72, %73 : vector<1x128xf32>
    %75 = vector.extract_strided_slice %69 {offsets = [64, 0], sizes = [64, 128], strides = [1, 1]} : vector<192x128xf32> to vector<64x128xf32>
    %cst_84 = arith.constant dense<0.000000e+00> : vector<128xf32>
    %76 = vector.multi_reduction <add>, %75, %cst_84 [0] : vector<64x128xf32> to vector<128xf32>
    %77 = vector.shape_cast %76 : vector<128xf32> to vector<1x128xf32>
    %cst_85 = arith.constant 1.562500e-02 : f32
    %78 = vector.broadcast %cst_85 : f32 to vector<1x128xf32>
    %79 = arith.mulf %77, %78 : vector<1x128xf32>
    %80 = vector.extract_strided_slice %69 {offsets = [128, 0], sizes = [64, 128], strides = [1, 1]} : vector<192x128xf32> to vector<64x128xf32>
    %cst_86 = arith.constant dense<0.000000e+00> : vector<128xf32>
    %81 = vector.multi_reduction <add>, %80, %cst_86 [0] : vector<64x128xf32> to vector<128xf32>
    %82 = vector.shape_cast %81 : vector<128xf32> to vector<1x128xf32>
    %cst_87 = arith.constant 1.562500e-02 : f32
    %83 = vector.broadcast %cst_87 : f32 to vector<1x128xf32>
    %84 = arith.mulf %82, %83 : vector<1x128xf32>
    %85 = arith.addf %74, %79 : vector<1x128xf32>
    %86 = arith.addf %85, %84 : vector<1x128xf32>
    %c0_88 = arith.constant 0 : index
    %c0_89 = arith.constant 0 : index
    %87 = vector.load %arg6[%c0_88, %c0_89] : memref<128x32xf32, #tpu.memory_space<vmem>>, vector<128x32xf32>
    %cst_90 = arith.constant dense<0.000000e+00> : vector<1x32xf32>
    %88 = tpu.matmul %86, %87, %cst_90 {dimension_numbers = #tpu.dot_dimension_numbers<[1], [0], [0], [1], [0, 0, 1, 1], [], []>} : vector<1x128xf32>, vector<128x32xf32>, vector<1x32xf32> -> vector<1x32xf32>
    %cst_91 = arith.constant 0.000000e+00 : f32
    %89 = vector.broadcast %cst_91 : f32 to vector<1x32xf32>
    %90 = arith.maximumf %88, %89 : vector<1x32xf32>
    %c0_92 = arith.constant 0 : index
    %c0_93 = arith.constant 0 : index
    %91 = vector.load %arg7[%c0_92, %c0_93] : memref<32x384xf32, #tpu.memory_space<vmem>>, vector<32x384xf32>
    %cst_94 = arith.constant dense<0.000000e+00> : vector<1x384xf32>
    %92 = tpu.matmul %90, %91, %cst_94 {dimension_numbers = #tpu.dot_dimension_numbers<[1], [0], [0], [1], [0, 0, 1, 1], [], []>} : vector<1x32xf32>, vector<32x384xf32>, vector<1x384xf32> -> vector<1x384xf32>
    %93 = vector.extract_strided_slice %92 {offsets = [0, 0], sizes = [1, 128], strides = [1, 1]} : vector<1x384xf32> to vector<1x128xf32>
    %94 = vector.extract_strided_slice %92 {offsets = [0, 128], sizes = [1, 128], strides = [1, 1]} : vector<1x384xf32> to vector<1x128xf32>
    %95 = vector.extract_strided_slice %92 {offsets = [0, 256], sizes = [1, 128], strides = [1, 1]} : vector<1x384xf32> to vector<1x128xf32>
    %96 = arith.maximumf %93, %94 : vector<1x128xf32>
    %97 = arith.maximumf %96, %95 : vector<1x128xf32>
    %98 = arith.subf %93, %97 : vector<1x128xf32>
    %99 = math.exp %98 : vector<1x128xf32>
    %100 = arith.subf %94, %97 : vector<1x128xf32>
    %101 = math.exp %100 : vector<1x128xf32>
    %102 = arith.subf %95, %97 : vector<1x128xf32>
    %103 = math.exp %102 : vector<1x128xf32>
    %104 = arith.addf %99, %101 : vector<1x128xf32>
    %105 = arith.addf %104, %103 : vector<1x128xf32>
    %106 = tpu.reciprocal %105 {approx = true} : vector<1x128xf32> -> vector<1x128xf32>
    %107 = arith.mulf %99, %106 : vector<1x128xf32>
    %108 = arith.mulf %101, %106 : vector<1x128xf32>
    %109 = arith.mulf %103, %106 : vector<1x128xf32>
    %110 = tpu.iota {dimensions = array<i32: 0>} : vector<192x1xi32>
    %c64_i32 = arith.constant 64 : i32
    %111 = vector.broadcast %c64_i32 : i32 to vector<192x1xi32>
    %112 = arith.cmpi slt, %110, %111 : vector<192x1xi32>
    %c128_i32 = arith.constant 128 : i32
    %113 = vector.broadcast %c128_i32 : i32 to vector<192x1xi32>
    %114 = arith.cmpi slt, %110, %113 : vector<192x1xi32>
    %115 = vector.shape_cast %114 : vector<192x1xi1> to vector<192x1xi1>
    %116 = vector.broadcast %115 : vector<192x1xi1> to vector<192x128xi1>
    %117 = vector.shape_cast %108 : vector<1x128xf32> to vector<1x128xf32>
    %118 = vector.broadcast %117 : vector<1x128xf32> to vector<192x128xf32>
    %119 = vector.shape_cast %109 : vector<1x128xf32> to vector<1x128xf32>
    %120 = vector.broadcast %119 : vector<1x128xf32> to vector<192x128xf32>
    %121 = arith.select %116, %118, %120 : vector<192x128xi1>, vector<192x128xf32>
    %122 = vector.shape_cast %112 : vector<192x1xi1> to vector<192x1xi1>
    %123 = vector.broadcast %122 : vector<192x1xi1> to vector<192x128xi1>
    %124 = vector.shape_cast %107 : vector<1x128xf32> to vector<1x128xf32>
    %125 = vector.broadcast %124 : vector<1x128xf32> to vector<192x128xf32>
    %126 = arith.select %123, %125, %121 : vector<192x128xi1>, vector<192x128xf32>
    %127 = arith.mulf %69, %126 : vector<192x128xf32>
    %c0_95 = arith.constant 0 : index
    %c0_96 = arith.constant 0 : index
    %c0_97 = arith.constant 0 : index
    %128 = vector.load %arg2[%c0_95, %c0_96, %c0_97] : memref<1x192x128xf32, #tpu.memory_space<vmem>>, vector<1x192x128xf32>
    %129 = vector.shape_cast %128 : vector<1x192x128xf32> to vector<192x128xf32>
    %130 = arith.addf %127, %129 : vector<192x128xf32>
    %cst_98 = arith.constant 0.000000e+00 : f32
    %131 = vector.broadcast %cst_98 : f32 to vector<192x128xf32>
    %132 = arith.maximumf %130, %131 : vector<192x128xf32>
    %c0_99 = arith.constant 0 : index
    %c0_100 = arith.constant 0 : index
    %c0_101 = arith.constant 0 : index
    %133 = vector.load %arg8[%c0_99, %c0_100, %c0_101] : memref<1x192x128xf32, #tpu.memory_space<vmem>>, vector<1x192x128xf32>
    %134 = vector.shape_cast %133 : vector<1x192x128xf32> to vector<192x128xf32>
    %135 = vector.shape_cast %132 : vector<192x128xf32> to vector<1x192x128xf32>
    tpu.vector_store %arg8[%c0_99, %c0_100, %c0_101], %135 {strides = array<i32>} : memref<1x192x128xf32, #tpu.memory_space<vmem>>, vector<1x192x128xf32>,
    return
  }
  func.func @transform_0(%arg0: i32) -> (i32, i32, i32, i32) {
    %c0_i32 = arith.constant 0 : i32
    %c0_i32_0 = arith.constant 0 : i32
    %c0_i32_1 = arith.constant 0 : i32
    %c0_i32_2 = arith.constant 0 : i32
    return %arg0, %c0_i32, %c0_i32_0, %c0_i32_1 : i32, i32, i32, i32
  }
  func.func @transform_1(%arg0: i32) -> (i32, i32, i32) {
    %c0_i32 = arith.constant 0 : i32
    %c0_i32_0 = arith.constant 0 : i32
    %c0_i32_1 = arith.constant 0 : i32
    return %arg0, %c0_i32, %c0_i32_0 : i32, i32, i32
  }
  func.func @transform_2(%arg0: i32) -> (i32, i32, i32, i32) {
    %c0_i32 = arith.constant 0 : i32
    %c0_i32_0 = arith.constant 0 : i32
    %c0_i32_1 = arith.constant 0 : i32
    %c0_i32_2 = arith.constant 0 : i32
    %c0_i32_3 = arith.constant 0 : i32
    return %c0_i32, %c0_i32_0, %c0_i32_1, %c0_i32_2 : i32, i32, i32, i32
  }
  func.func @transform_3(%arg0: i32) -> (i32, i32) {
    %c0_i32 = arith.constant 0 : i32
    %c0_i32_0 = arith.constant 0 : i32
    %c0_i32_1 = arith.constant 0 : i32
    return %c0_i32, %c0_i32_0 : i32, i32
  }
  func.func @transform_4(%arg0: i32) -> (i32, i32) {
    %c0_i32 = arith.constant 0 : i32
    %c0_i32_0 = arith.constant 0 : i32
    %c0_i32_1 = arith.constant 0 : i32
    return %c0_i32, %c0_i32_0 : i32, i32
  }
  func.func @transform_5(%arg0: i32) -> (i32, i32) {
    %c0_i32 = arith.constant 0 : i32
    %c0_i32_0 = arith.constant 0 : i32
    %c0_i32_1 = arith.constant 0 : i32
    return %c0_i32, %c0_i32_0 : i32, i32
  }
  func.func @transform_6(%arg0: i32) -> (i32, i32) {
    %c0_i32 = arith.constant 0 : i32
    %c0_i32_0 = arith.constant 0 : i32
    %c0_i32_1 = arith.constant 0 : i32
    return %c0_i32, %c0_i32_0 : i32, i32
  }
  func.func @transform_7(%arg0: i32) -> (i32, i32, i32) {
    %c0_i32 = arith.constant 0 : i32
    %c0_i32_0 = arith.constant 0 : i32
    %c0_i32_1 = arith.constant 0 : i32
    return %arg0, %c0_i32, %c0_i32_0 : i32, i32, i32
  }
}

</mosaic_0001>

<llo_original>
// kernel: basic_block_forward.2
$region0: #{basic_block_forward.2}
  #allocation0 [shape = 'u32[]', space=smem, size = 0x4, offset = 0x4, fixed_abs, tag = 'smem constant byte address 0x4 - core index']
  #allocation1 [shape = 'u32[144,128]{1,0:T(1,128)}', space=vmem, size = 0x12000, scoped, tag = 'internal scratch']
  %s0 = inlined_call_operand.hbm [shape: bf16[2,14,18,128], index: 0, kind: input, shape index: {}]
  %s1 = inlined_call_operand.hbm [shape: bf16[3,3,128,128], index: 1, kind: input, shape index: {}]
  %s2 = inlined_call_operand.hbm [shape: f32[1,128], index: 2, kind: input, shape index: {}]
  %s3 = inlined_call_operand.hbm [shape: f32[1,128], index: 3, kind: input, shape index: {}]
  %s4 = inlined_call_operand.hbm [shape: bf16[2,192,128], index: 4, kind: output, shape index: {}]
  %s5 = sld [smem:[#allocation0]]
  $region65: #{basic_block_forward.2} parent=0
    _
  %s7 = ssub.s32 1, %s5
  %s8 = scalar_select 0, %s7, %s5
  $region1: #{basic_block_forward.2} parent=0
    #allocation2 [shape = 'u8[172032]{0}', space=vmem, size = 0x2a000, scoped, tag = 'input window, operand 0']
    #allocation3 [shape = 's32[2]{0}', space=sflag, size = 0x8, scoped, tag = 'scoped memory for basic_block_forward.2']
    #allocation4 [shape = 's32[2]{0}', space=sflag, size = 0x8, scoped, tag = 'scoped memory for basic_block_forward.2']
    #allocation5 [shape = 'u8[294912]{0}', space=vmem, size = 0x48000, scoped, tag = 'input window, operand 1, single buffered']
    #allocation6 [shape = 's32[1]{0}', space=sflag, size = 0x4, scoped, tag = 'scoped memory for basic_block_forward.2']
    #allocation7 [shape = 'u8[512]{0}', space=vmem, size = 0x400, scoped, tag = 'input window, operand 2, single buffered']
    #allocation8 [shape = 'u8[512]{0}', space=vmem, size = 0x400, scoped, tag = 'input window, operand 3, single buffered']
    #allocation9 [shape = 's32[1]{0}', space=sflag, size = 0x4, scoped, tag = 'scoped memory for basic_block_forward.2']
    #allocation10 [shape = 'u8[98304]{0}', space=vmem, size = 0x18000, scoped, tag = 'output window, operand 0']
    %9 = vsyncpa [#allocation3], 0
    %s10 = scalar_lea.sflag [#allocation3], 1
    %11 = vsyncpa %s10, 0
    %12 = vsyncpa [#allocation6], 0
    %13 = vsyncpa [#allocation9], 0
    %14 = vsyncpa [#allocation4], 0
    %s15 = scalar_lea.sflag [#allocation4], 1
    %16 = vsyncpa %s15, 0
    loop: start=0, step=1, limit=4
    $region2: #{basic_block_forward.2} parent=1 // loop_pre_header
      _
    $region3: #{basic_block_forward.2} parent=1 // loop_header
      %s18 = sphi 0, %s22
      %p19 = scmp.ge.s32.totalorder %s18, 4
      %s28 = sphi 0, %s30
      %s31 = sphi 0, %s28
      %s32 = sphi 0, %s31
      %s48 = sphi 0, %s32
      %s52 = sphi 0, %s52
      %s54 = sphi 0, %s52
      %s55 = sphi 0, %s54
      %s69 = sphi 0, %s55
      %s73 = sphi 0, %s73
      %s75 = sphi 0, %s73
      %s76 = sphi 0, %s75
      %s90 = sphi 0, %s76
      %s94 = sphi 0, %s94
      %s96 = sphi 0, %s94
      %s97 = sphi 0, %s96
      %s111 = sphi 0, %s97
      %s117 = sphi 0, %s119
      %s120 = sphi 0, %s117
      %s121 = sphi 0, %s120
      %s137 = sphi 0, %s121
    $region4: #{basic_block_forward.2} parent=1 // loop_header_branch
      %21 = sbr.rel (%p19) target = $region8
    $region5: #{basic_block_forward.2} parent=1 // loop_body
      %s23 = ssub.s32 %s18, 1
      %s24 = ssub.s32 %s18, 2
      %s25 = sadd.s32 %s18, 1
      %s26 = ssub.s32 %s18, %s25
      %p27 = scmp.eq.s32.totalorder %s26, 0
      %s29 = sadd.s32 %s28, 1
      %s30 = scalar_select %p27, %s28, %s29
      %p33 = pneg %p27
      %p34 = scmp.eq.s32.totalorder %s18, 1
      %p35 = por %p33, %p34
      %p36 = scmp.ne.s32.totalorder %s28, %s31
      %p37 = scmp.eq.s32.totalorder %s18, 0
      %p38 = por %p36, %p37
      %p39 = scmp.ne.s32.totalorder %s28, %s31
      %p40 = scmp.eq.s32.totalorder %s23, 1
      %p41 = por %p39, %p40
      %p42 = scmp.ne.s32.totalorder %s31, %s32
      %p43 = scmp.eq.s32.totalorder %s23, 0
      %p44 = por %p42, %p43
      %p45 = scmp.ne.s32.totalorder %s31, %s32
      %p46 = scmp.eq.s32.totalorder %s24, 1
      %p47 = por %p45, %p46
      %p49 = scmp.ne.s32.totalorder %s32, %s48
      %p50 = scmp.eq.s32.totalorder %s24, 0
      %p51 = por %p49, %p50
      %s53 = sadd.s32 %s52, 1
      %p56 = scmp.eq.s32.totalorder %s18, 1
      %p57 = scmp.ne.s32.totalorder %s52, %s54
      %p58 = scmp.eq.s32.totalorder %s18, 0
      %p59 = por %p57, %p58
      %p60 = scmp.ne.s32.totalorder %s52, %s54
      %p61 = scmp.eq.s32.totalorder %s23, 1
      %p62 = por %p60, %p61
      %p63 = scmp.ne.s32.totalorder %s54, %s55
      %p64 = scmp.eq.s32.totalorder %s23, 0
      %p65 = por %p63, %p64
      %p66 = scmp.ne.s32.totalorder %s54, %s55
      %p67 = scmp.eq.s32.totalorder %s24, 1
      %p68 = por %p66, %p67
      %p70 = scmp.ne.s32.totalorder %s55, %s69
      %p71 = scmp.eq.s32.totalorder %s24, 0
      %p72 = por %p70, %p71
      %s74 = sadd.s32 %s73, 1
      %p77 = scmp.eq.s32.totalorder %s18, 1
      %p78 = scmp.ne.s32.totalorder %s73, %s75
      %p79 = scmp.eq.s32.totalorder %s18, 0
      %p80 = por %p78, %p79
      %p81 = scmp.ne.s32.totalorder %s73, %s75
      %p82 = scmp.eq.s32.totalorder %s23, 1
      %p83 = por %p81, %p82
      %p84 = scmp.ne.s32.totalorder %s75, %s76
      %p85 = scmp.eq.s32.totalorder %s23, 0
      %p86 = por %p84, %p85
      %p87 = scmp.ne.s32.totalorder %s75, %s76
      %p88 = scmp.eq.s32.totalorder %s24, 1
      %p89 = por %p87, %p88
      %p91 = scmp.ne.s32.totalorder %s76, %s90
      %p92 = scmp.eq.s32.totalorder %s24, 0
      %p93 = por %p91, %p92
      %s95 = sadd.s32 %s94, 1
      %p98 = scmp.eq.s32.totalorder %s18, 1
      %p99 = scmp.ne.s32.totalorder %s94, %s96
      %p100 = scmp.eq.s32.totalorder %s18, 0
      %p101 = por %p99, %p100
      %p102 = scmp.ne.s32.totalorder %s94, %s96
      %p103 = scmp.eq.s32.totalorder %s23, 1
      %p104 = por %p102, %p103
      %p105 = scmp.ne.s32.totalorder %s96, %s97
      %p106 = scmp.eq.s32.totalorder %s23, 0
      %p107 = por %p105, %p106
      %p108 = scmp.ne.s32.totalorder %s96, %s97
      %p109 = scmp.eq.s32.totalorder %s24, 1
      %p110 = por %p108, %p109
      %p112 = scmp.ne.s32.totalorder %s97, %s111
      %p113 = scmp.eq.s32.totalorder %s24, 0
      %p114 = por %p112, %p113
      %s115 = ssub.s32 %s18, %s25
      %p116 = scmp.eq.s32.totalorder %s115, 0
      %s118 = sadd.s32 %s117, 1
      %s119 = scalar_select %p116, %s117, %s118
      %p122 = pneg %p116
      %p123 = scmp.eq.s32.totalorder %s18, 1
      %p124 = por %p122, %p123
      %p125 = scmp.ne.s32.totalorder %s117, %s120
      %p126 = scmp.eq.s32.totalorder %s18, 0
      %p127 = por %p125, %p126
      %p128 = scmp.ne.s32.totalorder %s117, %s120
      %p129 = scmp.eq.s32.totalorder %s23, 1
      %p130 = por %p128, %p129
      %p131 = scmp.ne.s32.totalorder %s120, %s121
      %p132 = scmp.eq.s32.totalorder %s23, 0
      %p133 = por %p131, %p132
      %p134 = scmp.ne.s32.totalorder %s120, %s121
      %p135 = scmp.eq.s32.totalorder %s24, 1
      %p136 = por %p134, %p135
      %p138 = scmp.ne.s32.totalorder %s121, %s137
      %p139 = scmp.eq.s32.totalorder %s24, 0
      %p140 = por %p138, %p139
      %p141 = scmp.le.s32.totalorder 1, %s18
      %p142 = scmp.lt.s32.totalorder %s18, 3
      %p143 = pnand %p141, %p142
      %p144 = pneg %p143
      // Predicated region
      $region9: #{basic_block_forward.2} parent=5 // pred_check
        _
      $region10: #{basic_block_forward.2} parent=5 // pred_check_branch
        %146 = sbr.rel (%p143) target = $region12
      $region11: #{basic_block_forward.2} parent=5 // pred_region
        %s147 = ssub.s32 %s18, 1
        // Predicated region
        $region13: #{basic_block_forward.2} parent=11 // pred_check
          %p148 = pneg %p65
        $region14: #{basic_block_forward.2} parent=11 // pred_check_branch
          %150 = sbr.rel (%p148) target = $region16
        $region15: #{basic_block_forward.2} parent=11 // pred_region
          %s152 = ssub.s32 9216, 9216
          %153 = vsyncadd [#allocation6], %s152
          %s154 = sshll.u32 [#allocation5], 4
          %s155 = int_to_ptr.vmem [resolvable:$true] %s154
          %160 = dma.hbm_to_vmem [thread:$0]  %s1, 9216, %s155, [#allocation6], 64, 64, 4
        $region16: #{basic_block_forward.2} parent=11 // pred_fallthru
          _
        // Predicated region
        $region17: #{basic_block_forward.2} parent=11 // pred_check
          %p161 = pneg %p86
        $region18: #{basic_block_forward.2} parent=11 // pred_check_branch
          %163 = sbr.rel (%p161) target = $region20
        $region19: #{basic_block_forward.2} parent=11 // pred_region
          %s165 = ssub.s32 16, 16
          %166 = vsyncadd [#allocation6], %s165
          %s168 = sshll.u32 [#allocation7], 4
          %s169 = int_to_ptr.vmem [resolvable:$true] %s168
          %171 = dma.hbm_to_vmem [thread:$0]  %s2, 16, %s169, [#allocation6]
        $region20: #{basic_block_forward.2} parent=11 // pred_fallthru
          _
        // Predicated region
        $region21: #{basic_block_forward.2} parent=11 // pred_check
          %p172 = pneg %p107
        $region22: #{basic_block_forward.2} parent=11 // pred_check_branch
          %174 = sbr.rel (%p172) target = $region24
        $region23: #{basic_block_forward.2} parent=11 // pred_region
          %s176 = ssub.s32 16, 16
          %177 = vsyncadd [#allocation9], %s176
          %s179 = sshll.u32 [#allocation8], 4
          %s180 = int_to_ptr.vmem [resolvable:$true] %s179
          %182 = dma.hbm_to_vmem [thread:$0]  %s3, 16, %s180, [#allocation9]
        $region24: #{basic_block_forward.2} parent=11 // pred_fallthru
          _
      $region12: #{basic_block_forward.2} parent=5 // pred_fallthru
        _
      %p183 = scmp.lt.s32.totalorder %s18, 2
      // Predicated region
      $region25: #{basic_block_forward.2} parent=5 // pred_check
        %p184 = pneg %p183
      $region26: #{basic_block_forward.2} parent=5 // pred_check_branch
        %186 = sbr.rel (%p184) target = $region28
      $region27: #{basic_block_forward.2} parent=5 // pred_region
        // Predicated region
        $region29: #{basic_block_forward.2} parent=27 // pred_check
          %p187 = pneg %p38
        $region30: #{basic_block_forward.2} parent=27 // pred_check_branch
          %189 = sbr.rel (%p187) target = $region32
        $region31: #{basic_block_forward.2} parent=27 // pred_region
          %s190 = sand.u32 %s28, 1
          %s191 = scalar_lea.sflag [#allocation3], %s190
          %s192 = sand.u32 %s28, 1
          %s193 = smul.addr %s192, 168
          %s194 = scalar_lea.vmem [#allocation2], %s193
          %s196 = ssub.s32 2688, 2688
          %197 = vsyncadd %s191, %s196
          %s198 = smul.addr %s18, 42
          %s199 = smul.addr %s198, 64
          %s200 = scalar_lea.hbm %s0, %s199
          %s201 = sshll.u32 %s194, 4
          %s202 = int_to_ptr.vmem [resolvable:$true] %s201
          %207 = dma.hbm_to_vmem [thread:$0]  %s200, 2688, %s202, %s191, 64, 64, 4
        $region32: #{basic_block_forward.2} parent=27 // pred_fallthru
          _
      $region28: #{basic_block_forward.2} parent=5 // pred_fallthru
        _
      %p208 = scmp.le.s32.totalorder 1, %s18
      %p209 = scmp.lt.s32.totalorder %s18, 3
      %p210 = pnand %p208, %p209
      %p211 = pneg %p210
      // Predicated region
      $region33: #{basic_block_forward.2} parent=5 // pred_check
        _
      $region34: #{basic_block_forward.2} parent=5 // pred_check_branch
        %213 = sbr.rel (%p210) target = $region36
      $region35: #{basic_block_forward.2} parent=5 // pred_region
        %s214 = ssub.s32 %s18, 1
        %s215 = sand.u32 %s31, 1
        %s216 = scalar_lea.sflag [#allocation3], %s215
        %s217 = sand.u32 %s31, 1
        %s218 = smul.addr %s217, 168
        %s219 = scalar_lea.vmem [#allocation2], %s218
        // Predicated region
        $region37: #{basic_block_forward.2} parent=35 // pred_check
          %p220 = pneg %p44
        $region38: #{basic_block_forward.2} parent=35 // pred_check_branch
          %222 = sbr.rel (%p220) target = $region40
        $region39: #{basic_block_forward.2} parent=35 // pred_region
          %223 = dma.done %s216, 2688
        $region40: #{basic_block_forward.2} parent=35 // pred_fallthru
          _
        // Predicated region
        $region41: #{basic_block_forward.2} parent=35 // pred_check
          %p224 = pneg %p65
        $region42: #{basic_block_forward.2} parent=35 // pred_check_branch
          %226 = sbr.rel (%p224) target = $region44
        $region43: #{basic_block_forward.2} parent=35 // pred_region
          %227 = dma.done [#allocation6], 9216
        $region44: #{basic_block_forward.2} parent=35 // pred_fallthru
          _
        // Predicated region
        $region45: #{basic_block_forward.2} parent=35 // pred_check
          %p228 = pneg %p86
        $region46: #{basic_block_forward.2} parent=35 // pred_check_branch
          %230 = sbr.rel (%p228) target = $region48
        $region47: #{basic_block_forward.2} parent=35 // pred_region
          %231 = dma.done [#allocation6], 16
        $region48: #{basic_block_forward.2} parent=35 // pred_fallthru
          _
        // Predicated region
        $region49: #{basic_block_forward.2} parent=35 // pred_check
          %p232 = pneg %p107
        $region50: #{basic_block_forward.2} parent=35 // pred_check_branch
          %234 = sbr.rel (%p232) target = $region52
        $region51: #{basic_block_forward.2} parent=35 // pred_region
          %235 = dma.done [#allocation9], 16
        $region52: #{basic_block_forward.2} parent=35 // pred_fallthru
          _
        %s236 = sand.u32 %s31, 1
        %s237 = scalar_lea.sflag [#allocation3], %s236
        %s238 = sand.u32 %s31, 1
        %s239 = smul.addr %s238, 168
        %s240 = scalar_lea.vmem [#allocation2], %s239
        %p241 = pneg %p44
        %p242 = pneg %p41
        %p243 = pneg %p65
        %p244 = pneg %p62
        %p245 = pneg %p86
        %p246 = pneg %p83
        %p247 = pneg %p107
        %p248 = pneg %p104
        %p249 = pneg %p133
        %p250 = pneg %p130
        %s251 = sand.u32 %s120, 1
        %s252 = scalar_lea.sflag [#allocation4], %s251
        %s253 = sand.u32 %s120, 1
        %s254 = smul.addr %s253, 96
        %s255 = scalar_lea.vmem [#allocation10], %s254
        %v257 = vld [vmem:[%s219] sm:$0xf]
        %v258 = vld [vmem:[%s219 + $0x4] sm:$0xf]
        %v259 = vld [vmem:[%s219 + $0xc] sm:$0xf]
        %v260 = vld [vmem:[%s219 + $0x10] sm:$0xf]
        %v261 = vld [vmem:[%s219 + $0x18] sm:$0xf]
        %v262 = vld [vmem:[%s219 + $0x1c] sm:$0xf]
        %v263 = vld [vmem:[%s219 + $0x24] sm:$0xf]
        %v264 = vld [vmem:[%s219 + $0x28] sm:$0xf]
        %v265 = vld [vmem:[%s219 + $0x30] sm:$0xf]
        %v266 = vld [vmem:[%s219 + $0x34] sm:$0xf]
        %v267 = vld [vmem:[%s219 + $0x3c] sm:$0xf]
        %v268 = vld [vmem:[%s219 + $0x40] sm:$0xf]
        %v269 = vld [vmem:[%s219 + $0x48] sm:$0xf]
        %v270 = vld [vmem:[%s219 + $0x4c] sm:$0xf]
        %v271 = vld [vmem:[%s219 + $0x54] sm:$0xf]
        %v272 = vld [vmem:[%s219 + $0x58] sm:$0xf]
        %v273 = vld [vmem:[%s219 + $0x60] sm:$0xf]
        %v274 = vld [vmem:[%s219 + $0x64] sm:$0xf]
        %v275 = vld [vmem:[%s219 + $0x6c] sm:$0xf]
        %v276 = vld [vmem:[%s219 + $0x70] sm:$0xf]
        %v277 = vld [vmem:[%s219 + $0x78] sm:$0xf]
        %v278 = vld [vmem:[%s219 + $0x7c] sm:$0xf]
        %v279 = vld [vmem:[%s219 + $0x84] sm:$0xf]
        %v280 = vld [vmem:[%s219 + $0x88] sm:$0xf]
        %v281 = vld [vmem:[#allocation5] sm:$0xf]
        %v282 = vld [vmem:[#allocation5 + $0x4] sm:$0xf]
        %v283 = vld [vmem:[#allocation5 + $0x8] sm:$0xf]
        %v284 = vld [vmem:[#allocation5 + $0xc] sm:$0xf]
        %v285 = vld [vmem:[#allocation5 + $0x10] sm:$0xf]
        %v286 = vld [vmem:[#allocation5 + $0x14] sm:$0xf]
        %v287 = vld [vmem:[#allocation5 + $0x18] sm:$0xf]
        %v288 = vld [vmem:[#allocation5 + $0x1c] sm:$0xf]
        %v289 = vld [vmem:[#allocation5 + $0x20] sm:$0xf]
        %v290 = vld [vmem:[#allocation5 + $0x24] sm:$0xf]
        %v291 = vld [vmem:[#allocation5 + $0x28] sm:$0xf]
        %v292 = vld [vmem:[#allocation5 + $0x2c] sm:$0xf]
        %v293 = vld [vmem:[#allocation5 + $0x30] sm:$0xf]
        %v294 = vld [vmem:[#allocation5 + $0x34] sm:$0xf]
        %v295 = vld [vmem:[#allocation5 + $0x38] sm:$0xf]
        %v296 = vld [vmem:[#allocation5 + $0x3c] sm:$0xf]
        %v297 = vld [vmem:[%s219 + $0x8] sm:$0x1]
        %v298 = vld [vmem:[%s219 + $0x14] sm:$0x1]
        %v299 = vld [vmem:[%s219 + $0x20] sm:$0x1]
        %v300 = vld [vmem:[%s219 + $0x2c] sm:$0x1]
        %v301 = vld [vmem:[%s219 + $0x38] sm:$0x1]
        %v302 = vld [vmem:[%s219 + $0x44] sm:$0x1]
        %v303 = vld [vmem:[%s219 + $0x50] sm:$0x1]
        %v304 = vld [vmem:[%s219 + $0x5c] sm:$0x1]
        %v305 = vld [vmem:[%s219 + $0x68] sm:$0x1]
        %v306 = vld [vmem:[%s219 + $0x74] sm:$0x1]
        %v307 = vld [vmem:[%s219 + $0x80] sm:$0x1]
        %v308 = vld [vmem:[%s219 + $0x8c] sm:$0x1]
        %vm309 = vsmask.f32 3328
        %vm310 = vsmask.f32 7440
        %vm311 = vmor %vm309, %vm310
        %v313 = vshrl.u32 %v257, 16
        %v315 = vrot.slane %v313, 4
        %v316 = vshll.u32 %v257, 16
        %v318 = vrot.slane %v316, 5
        %v319 = vor.u32 %v315, %v318
        %v320 = vrot.slane %v319, 4
        %v322 = vshll.u32 %v258, 16
        %v324 = vrot.slane %v322, 5
        %v325 = vsel %vm311, %v320, %v324
        %v326 = vshrl.u32 %v258, 16
        %v328 = vrot.slane %v326, 4
        %v329 = vor.u32 %v328, %v324
        %v330 = vrot.slane %v329, 4
        %v332 = vshll.u32 %v297, 16
        %v334 = vrot.slane %v332, 5
        %v335 = vsel %vm311, %v330, %v334
        %v337 = vshrl.u32 %v259, 16
        %v339 = vrot.slane %v337, 4
        %v340 = vshll.u32 %v259, 16
        %v342 = vrot.slane %v340, 5
        %v343 = vor.u32 %v339, %v342
        %v344 = vrot.slane %v343, 4
        %v346 = vshll.u32 %v260, 16
        %v348 = vrot.slane %v346, 5
        %v349 = vsel %vm311, %v344, %v348
        %v350 = vshrl.u32 %v260, 16
        %v352 = vrot.slane %v350, 4
        %v353 = vor.u32 %v352, %v348
        %v354 = vrot.slane %v353, 4
        %v356 = vshll.u32 %v298, 16
        %v358 = vrot.slane %v356, 5
        %v359 = vsel %vm311, %v354, %v358
        %v361 = vshrl.u32 %v261, 16
        %v363 = vrot.slane %v361, 4
        %v364 = vshll.u32 %v261, 16
        %v366 = vrot.slane %v364, 5
        %v367 = vor.u32 %v363, %v366
        %v368 = vrot.slane %v367, 4
        %v370 = vshll.u32 %v262, 16
        %v372 = vrot.slane %v370, 5
        %v373 = vsel %vm311, %v368, %v372
        %v374 = vshrl.u32 %v262, 16
        %v376 = vrot.slane %v374, 4
        %v377 = vor.u32 %v376, %v372
        %v378 = vrot.slane %v377, 4
        %v380 = vshll.u32 %v299, 16
        %v382 = vrot.slane %v380, 5
        %v383 = vsel %vm311, %v378, %v382
        %v385 = vshrl.u32 %v263, 16
        %v387 = vrot.slane %v385, 4
        %v388 = vshll.u32 %v263, 16
        %v390 = vrot.slane %v388, 5
        %v391 = vor.u32 %v387, %v390
        %v392 = vrot.slane %v391, 4
        %v394 = vshll.u32 %v264, 16
        %v396 = vrot.slane %v394, 5
        %v397 = vsel %vm311, %v392, %v396
        %v398 = vshrl.u32 %v264, 16
        %v400 = vrot.slane %v398, 4
        %v401 = vor.u32 %v400, %v396
        %v402 = vrot.slane %v401, 4
        %v404 = vshll.u32 %v300, 16
        %v406 = vrot.slane %v404, 5
        %v407 = vsel %vm311, %v402, %v406
        %v409 = vshrl.u32 %v265, 16
        %v411 = vrot.slane %v409, 4
        %v412 = vshll.u32 %v265, 16
        %v414 = vrot.slane %v412, 5
        %v415 = vor.u32 %v411, %v414
        %v416 = vrot.slane %v415, 4
        %v418 = vshll.u32 %v266, 16
        %v420 = vrot.slane %v418, 5
        %v421 = vsel %vm311, %v416, %v420
        %v422 = vshrl.u32 %v266, 16
        %v424 = vrot.slane %v422, 4
        %v425 = vor.u32 %v424, %v420
        %v426 = vrot.slane %v425, 4
        %v428 = vshll.u32 %v301, 16
        %v430 = vrot.slane %v428, 5
        %v431 = vsel %vm311, %v426, %v430
        %v433 = vshrl.u32 %v267, 16
        %v435 = vrot.slane %v433, 4
        %v436 = vshll.u32 %v267, 16
        %v438 = vrot.slane %v436, 5
        %v439 = vor.u32 %v435, %v438
        %v440 = vrot.slane %v439, 4
        %v442 = vshll.u32 %v268, 16
        %v444 = vrot.slane %v442, 5
        %v445 = vsel %vm311, %v440, %v444
        %v446 = vshrl.u32 %v268, 16
        %v448 = vrot.slane %v446, 4
        %v449 = vor.u32 %v448, %v444
        %v450 = vrot.slane %v449, 4
        %v452 = vshll.u32 %v302, 16
        %v454 = vrot.slane %v452, 5
        %v455 = vsel %vm311, %v450, %v454
        %v457 = vshrl.u32 %v269, 16
        %v459 = vrot.slane %v457, 4
        %v460 = vshll.u32 %v269, 16
        %v462 = vrot.slane %v460, 5
        %v463 = vor.u32 %v459, %v462
        %v464 = vrot.slane %v463, 4
        %v466 = vshll.u32 %v270, 16
        %v468 = vrot.slane %v466, 5
        %v469 = vsel %vm311, %v464, %v468
        %v470 = vshrl.u32 %v270, 16
        %v472 = vrot.slane %v470, 4
        %v473 = vor.u32 %v472, %v468
        %v474 = vrot.slane %v473, 4
        %v476 = vshll.u32 %v303, 16
        %v478 = vrot.slane %v476, 5
        %v479 = vsel %vm311, %v474, %v478
        %v481 = vshrl.u32 %v271, 16
        %v483 = vrot.slane %v481, 4
        %v484 = vshll.u32 %v271, 16
        %v486 = vrot.slane %v484, 5
        %v487 = vor.u32 %v483, %v486
        %v488 = vrot.slane %v487, 4
        %v490 = vshll.u32 %v272, 16
        %v492 = vrot.slane %v490, 5
        %v493 = vsel %vm311, %v488, %v492
        %v494 = vshrl.u32 %v272, 16
        %v496 = vrot.slane %v494, 4
        %v497 = vor.u32 %v496, %v492
        %v498 = vrot.slane %v497, 4
        %v500 = vshll.u32 %v304, 16
        %v502 = vrot.slane %v500, 5
        %v503 = vsel %vm311, %v498, %v502
        %v505 = vshrl.u32 %v273, 16
        %v507 = vrot.slane %v505, 4
        %v508 = vshll.u32 %v273, 16
        %v510 = vrot.slane %v508, 5
        %v511 = vor.u32 %v507, %v510
        %v512 = vrot.slane %v511, 4
        %v514 = vshll.u32 %v274, 16
        %v516 = vrot.slane %v514, 5
        %v517 = vsel %vm311, %v512, %v516
        %v518 = vshrl.u32 %v274, 16
        %v520 = vrot.slane %v518, 4
        %v521 = vor.u32 %v520, %v516
        %v522 = vrot.slane %v521, 4
        %v524 = vshll.u32 %v305, 16
        %v526 = vrot.slane %v524, 5
        %v527 = vsel %vm311, %v522, %v526
        %v529 = vshrl.u32 %v275, 16
        %v531 = vrot.slane %v529, 4
        %v532 = vshll.u32 %v275, 16
        %v534 = vrot.slane %v532, 5
        %v535 = vor.u32 %v531, %v534
        %v536 = vrot.slane %v535, 4
        %v538 = vshll.u32 %v276, 16
        %v540 = vrot.slane %v538, 5
        %v541 = vsel %vm311, %v536, %v540
        %v542 = vshrl.u32 %v276, 16
        %v544 = vrot.slane %v542, 4
        %v545 = vor.u32 %v544, %v540
        %v546 = vrot.slane %v545, 4
        %v548 = vshll.u32 %v306, 16
        %v550 = vrot.slane %v548, 5
        %v551 = vsel %vm311, %v546, %v550
        %v553 = vshrl.u32 %v277, 16
        %v555 = vrot.slane %v553, 4
        %v556 = vshll.u32 %v277, 16
        %v558 = vrot.slane %v556, 5
        %v559 = vor.u32 %v555, %v558
        %v560 = vrot.slane %v559, 4
        %v562 = vshll.u32 %v278, 16
        %v564 = vrot.slane %v562, 5
        %v565 = vsel %vm311, %v560, %v564
        %v566 = vshrl.u32 %v278, 16
        %v568 = vrot.slane %v566, 4
        %v569 = vor.u32 %v568, %v564
        %v570 = vrot.slane %v569, 4
        %v572 = vshll.u32 %v307, 16
        %v574 = vrot.slane %v572, 5
        %v575 = vsel %vm311, %v570, %v574
        %v577 = vshrl.u32 %v279, 16
        %v579 = vrot.slane %v577, 4
        %v580 = vshll.u32 %v279, 16
        %v582 = vrot.slane %v580, 5
        %v583 = vor.u32 %v579, %v582
        %v584 = vrot.slane %v583, 4
        %v586 = vshll.u32 %v280, 16
        %v588 = vrot.slane %v586, 5
        %v589 = vsel %vm311, %v584, %v588
        %v590 = vshrl.u32 %v280, 16
        %v592 = vrot.slane %v590, 4
        %v593 = vor.u32 %v592, %v588
        %v594 = vrot.slane %v593, 4
        %v596 = vshll.u32 %v308, 16
        %v598 = vrot.slane %v596, 5
        %v599 = vsel %vm311, %v594, %v598
        %s600 = scalar_lea.vmem [#allocation5], 64
        %v601 = vld [vmem:[%s600] sm:$0xf]
        %v602 = vld [vmem:[%s600 + $0x4] sm:$0xf]
        %v603 = vld [vmem:[%s600 + $0x8] sm:$0xf]
        %v604 = vld [vmem:[%s600 + $0xc] sm:$0xf]
        %v605 = vld [vmem:[%s600 + $0x10] sm:$0xf]
        %v606 = vld [vmem:[%s600 + $0x14] sm:$0xf]
        %v607 = vld [vmem:[%s600 + $0x18] sm:$0xf]
        %v608 = vld [vmem:[%s600 + $0x1c] sm:$0xf]
        %v609 = vld [vmem:[%s600 + $0x20] sm:$0xf]
        %v610 = vld [vmem:[%s600 + $0x24] sm:$0xf]
        %v611 = vld [vmem:[%s600 + $0x28] sm:$0xf]
        %v612 = vld [vmem:[%s600 + $0x2c] sm:$0xf]
        %v613 = vld [vmem:[%s600 + $0x30] sm:$0xf]
        %v614 = vld [vmem:[%s600 + $0x34] sm:$0xf]
        %v615 = vld [vmem:[%s600 + $0x38] sm:$0xf]
        %v616 = vld [vmem:[%s600 + $0x3c] sm:$0xf]
        %v617 = vunpack.c.l.b16 %v325
        %v618 = vunpack.c.l.b16 %v335
        %v619 = vunpack.c.l.b16 %v349
        %v620 = vunpack.c.l.b16 %v359
        %v621 = vunpack.c.l.b16 %v373
        %v622 = vunpack.c.l.b16 %v383
        %v623 = vunpack.c.l.b16 %v397
        %v624 = vunpack.c.l.b16 %v407
        %v625 = vunpack.c.l.b16 %v421
        %v626 = vunpack.c.l.b16 %v431
        %v627 = vunpack.c.l.b16 %v445
        %v628 = vunpack.c.l.b16 %v455
        %v629 = vunpack.c.l.b16 %v469
        %v630 = vunpack.c.l.b16 %v479
        %v631 = vunpack.c.l.b16 %v493
        %v632 = vunpack.c.l.b16 %v503
        %v633 = vunpack.c.l.b16 %v517
        %v634 = vunpack.c.l.b16 %v527
        %v635 = vunpack.c.l.b16 %v541
        %v636 = vunpack.c.l.b16 %v551
        %v637 = vunpack.c.l.b16 %v565
        %v638 = vunpack.c.l.b16 %v575
        %v639 = vunpack.c.l.b16 %v589
        %v640 = vunpack.c.l.b16 %v599
        %v641 = vpack.c.b16 %v618, %v617
        %v642 = vpack.c.b16 %v620, %v619
        %v643 = vpack.c.b16 %v622, %v621
        %v644 = vpack.c.b16 %v624, %v623
        %v645 = vpack.c.b16 %v626, %v625
        %v646 = vpack.c.b16 %v628, %v627
        %v647 = vpack.c.b16 %v630, %v629
        %v648 = vpack.c.b16 %v632, %v631
        %v649 = vpack.c.b16 %v634, %v633
        %v650 = vpack.c.b16 %v636, %v635
        %v651 = vpack.c.b16 %v638, %v637
        %v652 = vpack.c.b16 %v640, %v639
        %v681 = vunpack.c.l.b16 %v601
        %v682 = vunpack.c.l.b16 %v602
        %v683 = vunpack.c.l.b16 %v603
        %v684 = vunpack.c.l.b16 %v604
        %v685 = vunpack.c.l.b16 %v605
        %v686 = vunpack.c.l.b16 %v606
        %v687 = vunpack.c.l.b16 %v607
        %v688 = vunpack.c.l.b16 %v608
        %v689 = vunpack.c.l.b16 %v609
        %v690 = vunpack.c.l.b16 %v610
        %v691 = vunpack.c.l.b16 %v611
        %v692 = vunpack.c.l.b16 %v612
        %v693 = vunpack.c.l.b16 %v613
        %v694 = vunpack.c.l.b16 %v614
        %v695 = vunpack.c.l.b16 %v615
        %v696 = vunpack.c.l.b16 %v616
        %v697 = vpack.c.b16 %v682, %v681
        %v698 = vpack.c.b16 %v684, %v683
        %v699 = vpack.c.b16 %v686, %v685
        %v700 = vpack.c.b16 %v688, %v687
        %v701 = vpack.c.b16 %v690, %v689
        %v702 = vpack.c.b16 %v692, %v691
        %v703 = vpack.c.b16 %v694, %v693
        %v704 = vpack.c.b16 %v696, %v695
        %713 = vmatprep.subr.bf16.mxu0 0
        %714 = vmatpush1.bf16.msra.mxu0 %v697
        %715 = vmatprep.subr.bf16.mxu0 0
        %716 = vmatpush1.bf16.msra.mxu0 %v698
        %717 = vmatprep.subr.bf16.mxu0 0
        %718 = vmatpush1.bf16.msra.mxu0 %v699
        %719 = vmatprep.subr.bf16.mxu0 0
        %720 = vmatpush1.bf16.msra.mxu0 %v700
        %721 = vmatprep.subr.bf16.mxu0 0
        %722 = vmatpush1.bf16.msra.mxu0 %v701
        %723 = vmatprep.subr.bf16.mxu0 0
        %724 = vmatpush1.bf16.msra.mxu0 %v702
        %725 = vmatprep.subr.bf16.mxu0 0
        %726 = vmatpush1.bf16.msra.mxu0 %v703
        %727 = vmatprep.subr.bf16.mxu0 0
        %728 = vmatpush1.bf16.msra.mxu0 %v704
        %729 = vmatprep.subr.bf16.mxu0 0
        %730 = vmatpush1.bf16.msra.mxu0 0
        %731 = vmatprep.subr.bf16.mxu0 0
        %732 = vmatpush1.bf16.msra.mxu0 0
        %733 = vmatprep.subr.bf16.mxu0 0
        %734 = vmatpush1.bf16.msra.mxu0 0
        %735 = vmatprep.subr.bf16.mxu0 0
        %736 = vmatpush1.bf16.msra.mxu0 0
        %737 = vmatprep.subr.bf16.mxu0 0
        %738 = vmatpush1.bf16.msra.mxu0 0
        %739 = vmatprep.subr.bf16.mxu0 0
        %740 = vmatpush1.bf16.msra.mxu0 0
        %741 = vmatprep.subr.bf16.mxu0 0
        %742 = vmatpush1.bf16.msra.mxu0 0
        %743 = vmatprep.subr.bf16.mxu0 0
        %744 = vmatpush1.bf16.msra.mxu0 0
        %745 = vmatprep.mubr.bf16.mxu0 0
        %746 = vmatmul.mubr.bf16.gmra.mrb[0].mxu0 %v641
        %v747 = vpop.f32.mrb[0].mxu0
        %v748 = vadd.f32 0.0, %v747
        %v749 = vpop.f32.mrb[0].mxu0
        %v750 = vpop.f32.mrb[0].mxu0
        %v751 = vadd.f32 0.0, %v750
        %v752 = vpop.f32.mrb[0].mxu0
        %753 = vmatprep.mubr.bf16.mxu0 0
        %754 = vmatmul.mubr.bf16.gmra.mrb[0].mxu0 %v642
        %v755 = vpop.f32.mrb[0].mxu0
        %v756 = vadd.f32 0.0, %v755
        %v757 = vpop.f32.mrb[0].mxu0
        %v758 = vpop.f32.mrb[0].mxu0
        %v759 = vadd.f32 0.0, %v758
        %v760 = vpop.f32.mrb[0].mxu0
        %761 = vmatprep.mubr.bf16.mxu0 0
        %762 = vmatmul.mubr.bf16.gmra.mrb[0].mxu0 %v643
        %v763 = vpop.f32.mrb[0].mxu0
        %v764 = vadd.f32 0.0, %v763
        %v765 = vpop.f32.mrb[0].mxu0
        %v766 = vpop.f32.mrb[0].mxu0
        %v767 = vadd.f32 0.0, %v766
        %v768 = vpop.f32.mrb[0].mxu0
        %769 = vmatprep.mubr.bf16.mxu0 0
        %770 = vmatmul.mubr.bf16.gmra.mrb[0].mxu0 %v644
        %v771 = vpop.f32.mrb[0].mxu0
        %v772 = vadd.f32 0.0, %v771
        %v773 = vpop.f32.mrb[0].mxu0
        %v774 = vpop.f32.mrb[0].mxu0
        %v775 = vadd.f32 0.0, %v774
        %v776 = vpop.f32.mrb[0].mxu0
        %777 = vmatprep.mubr.bf16.mxu0 0
        %778 = vmatmul.mubr.bf16.gmra.mrb[0].mxu0 %v645
        %v779 = vpop.f32.mrb[0].mxu0
        %v780 = vadd.f32 0.0, %v779
        %v781 = vpop.f32.mrb[0].mxu0
        %v782 = vpop.f32.mrb[0].mxu0
        %v783 = vadd.f32 0.0, %v782
        %v784 = vpop.f32.mrb[0].mxu0
        %785 = vmatprep.mubr.bf16.mxu0 0
        %786 = vmatmul.mubr.bf16.gmra.mrb[0].mxu0 %v646
        %v787 = vpop.f32.mrb[0].mxu0
        %v788 = vadd.f32 0.0, %v787
        %v789 = vpop.f32.mrb[0].mxu0
        %v790 = vpop.f32.mrb[0].mxu0
        %v791 = vadd.f32 0.0, %v790
        %v792 = vpop.f32.mrb[0].mxu0
        %793 = vmatprep.mubr.bf16.mxu0 0
        %794 = vmatmul.mubr.bf16.gmra.mrb[0].mxu0 %v647
        %v795 = vpop.f32.mrb[0].mxu0
        %v796 = vadd.f32 0.0, %v795
        %v797 = vpop.f32.mrb[0].mxu0
        %v798 = vpop.f32.mrb[0].mxu0
        %v799 = vadd.f32 0.0, %v798
        %v800 = vpop.f32.mrb[0].mxu0
        %801 = vmatprep.mubr.bf16.mxu0 0
        %802 = vmatmul.mubr.bf16.gmra.mrb[0].mxu0 %v648
        %v803 = vpop.f32.mrb[0].mxu0
        %v804 = vadd.f32 0.0, %v803
        %v805 = vpop.f32.mrb[0].mxu0
        %v806 = vpop.f32.mrb[0].mxu0
        %v807 = vadd.f32 0.0, %v806
        %v808 = vpop.f32.mrb[0].mxu0
        %809 = vmatprep.mubr.bf16.mxu0 0
        %810 = vmatmul.mubr.bf16.gmra.mrb[0].mxu0 %v649
        %v811 = vpop.f32.mrb[0].mxu0
        %v812 = vadd.f32 0.0, %v811
        %v813 = vpop.f32.mrb[0].mxu0
        %v814 = vpop.f32.mrb[0].mxu0
        %v815 = vadd.f32 0.0, %v814
        %v816 = vpop.f32.mrb[0].mxu0
        %817 = vmatprep.mubr.bf16.mxu0 0
        %818 = vmatmul.mubr.bf16.gmra.mrb[0].mxu0 %v650
        %v819 = vpop.f32.mrb[0].mxu0
        %v820 = vadd.f32 0.0, %v819
        %v821 = vpop.f32.mrb[0].mxu0
        %v822 = vpop.f32.mrb[0].mxu0
        %v823 = vadd.f32 0.0, %v822
        %v824 = vpop.f32.mrb[0].mxu0
        %825 = vmatprep.mubr.bf16.mxu0 0
        %826 = vmatmul.mubr.bf16.gmra.mrb[0].mxu0 %v651
        %v827 = vpop.f32.mrb[0].mxu0
        %v828 = vadd.f32 0.0, %v827
        %v829 = vpop.f32.mrb[0].mxu0
        %v830 = vpop.f32.mrb[0].mxu0
        %v831 = vadd.f32 0.0, %v830
        %v832 = vpop.f32.mrb[0].mxu0
        %833 = vmatprep.mubr.bf16.mxu0 0
        %834 = vmatmul.mubr.bf16.gmra.mrb[0].mxu0 %v652
        %v835 = vpop.f32.mrb[0].mxu0
        %v836 = vadd.f32 0.0, %v835
        %v837 = vpop.f32.mrb[0].mxu0
        %v838 = vpop.f32.mrb[0].mxu0
        %v839 = vadd.f32 0.0, %v838
        %v840 = vpop.f32.mrb[0].mxu0
        %841 = vdwg.mxu0
        %v866 = vunpack.c.l.b16 %v257
        %v867 = vunpack.c.l.b16 %v258
        %v868 = vunpack.c.l.b16 %v259
        %v869 = vunpack.c.l.b16 %v260
        %v870 = vunpack.c.l.b16 %v261
        %v871 = vunpack.c.l.b16 %v262
        %v872 = vunpack.c.l.b16 %v263
        %v873 = vunpack.c.l.b16 %v264
        %v874 = vunpack.c.l.b16 %v265
        %v875 = vunpack.c.l.b16 %v266
        %v876 = vunpack.c.l.b16 %v267
        %v877 = vunpack.c.l.b16 %v268
        %v878 = vunpack.c.l.b16 %v269
        %v879 = vunpack.c.l.b16 %v270
        %v880 = vunpack.c.l.b16 %v271
        %v881 = vunpack.c.l.b16 %v272
        %v882 = vunpack.c.l.b16 %v273
        %v883 = vunpack.c.l.b16 %v274
        %v884 = vunpack.c.l.b16 %v275
        %v885 = vunpack.c.l.b16 %v276
        %v886 = vunpack.c.l.b16 %v277
        %v887 = vunpack.c.l.b16 %v278
        %v888 = vunpack.c.l.b16 %v279
        %v889 = vunpack.c.l.b16 %v280
        %v890 = vpack.c.b16 %v867, %v866
        %v891 = vpack.c.b16 %v869, %v868
        %v892 = vpack.c.b16 %v871, %v870
        %v893 = vpack.c.b16 %v873, %v872
        %v894 = vpack.c.b16 %v875, %v874
        %v895 = vpack.c.b16 %v877, %v876
        %v896 = vpack.c.b16 %v879, %v878
        %v897 = vpack.c.b16 %v881, %v880
        %v898 = vpack.c.b16 %v883, %v882
        %v899 = vpack.c.b16 %v885, %v884
        %v900 = vpack.c.b16 %v887, %v886
        %v901 = vpack.c.b16 %v889, %v888
        %v930 = vunpack.c.l.b16 %v281
        %v931 = vunpack.c.l.b16 %v282
        %v932 = vunpack.c.l.b16 %v283
        %v933 = vunpack.c.l.b16 %v284
        %v934 = vunpack.c.l.b16 %v285
        %v935 = vunpack.c.l.b16 %v286
        %v936 = vunpack.c.l.b16 %v287
        %v937 = vunpack.c.l.b16 %v288
        %v938 = vunpack.c.l.b16 %v289
        %v939 = vunpack.c.l.b16 %v290
        %v940 = vunpack.c.l.b16 %v291
        %v941 = vunpack.c.l.b16 %v292
        %v942 = vunpack.c.l.b16 %v293
        %v943 = vunpack.c.l.b16 %v294
        %v944 = vunpack.c.l.b16 %v295
        %v945 = vunpack.c.l.b16 %v296
        %v946 = vpack.c.b16 %v931, %v930
        %v947 = vpack.c.b16 %v933, %v932
        %v948 = vpack.c.b16 %v935, %v934
        %v949 = vpack.c.b16 %v937, %v936
        %v950 = vpack.c.b16 %v939, %v938
        %v951 = vpack.c.b16 %v941, %v940
        %v952 = vpack.c.b16 %v943, %v942
        %v953 = vpack.c.b16 %v945, %v944
        %962 = vmatprep.subr.bf16.mxu0 0
        %963 = vmatpush1.bf16.msra.mxu0 %v946
        %964 = vmatprep.subr.bf16.mxu0 0
        %965 = vmatpush1.bf16.msra.mxu0 %v947
        %966 = vmatprep.subr.bf16.mxu0 0
        %967 = vmatpush1.bf16.msra.mxu0 %v948
        %968 = vmatprep.subr.bf16.mxu0 0
        %969 = vmatpush1.bf16.msra.mxu0 %v949
        %970 = vmatprep.subr.bf16.mxu0 0
        %971 = vmatpush1.bf16.msra.mxu0 %v950
        %972 = vmatprep.subr.bf16.mxu0 0
        %973 = vmatpush1.bf16.msra.mxu0 %v951
        %974 = vmatprep.subr.bf16.mxu0 0
        %975 = vmatpush1.bf16.msra.mxu0 %v952
        %976 = vmatprep.subr.bf16.mxu0 0
        %977 = vmatpush1.bf16.msra.mxu0 %v953
        %978 = vmatprep.subr.bf16.mxu0 0
        %979 = vmatpush1.bf16.msra.mxu0 0
        %980 = vmatprep.subr.bf16.mxu0 0
        %981 = vmatpush1.bf16.msra.mxu0 0
        %982 = vmatprep.subr.bf16.mxu0 0
        %983 = vmatpush1.bf16.msra.mxu0 0
        %984 = vmatprep.subr.bf16.mxu0 0
        %985 = vmatpush1.bf16.msra.mxu0 0
        %986 = vmatprep.subr.bf16.mxu0 0
        %987 = vmatpush1.bf16.msra.mxu0 0
        %988 = vmatprep.subr.bf16.mxu0 0
        %989 = vmatpush1.bf16.msra.mxu0 0
        %990 = vmatprep.subr.bf16.mxu0 0
        %991 = vmatpush1.bf16.msra.mxu0 0
        %992 = vmatprep.subr.bf16.mxu0 0
        %993 = vmatpush1.bf16.msra.mxu0 0
        %994 = vmatprep.mubr.bf16.mxu0 0
        %995 = vmatmul.mubr.bf16.gmra.mrb[0].mxu0 %v890
        %v996 = vpop.f32.mrb[0].mxu0
        %v997 = vadd.f32 %v748, %v996
        %v998 = vpop.f32.mrb[0].mxu0
        %v999 = vpop.f32.mrb[0].mxu0
        %v1000 = vadd.f32 %v751, %v999
        %v1001 = vpop.f32.mrb[0].mxu0
        %1002 = vmatprep.mubr.bf16.mxu0 0
        %1003 = vmatmul.mubr.bf16.gmra.mrb[0].mxu0 %v891
        %v1004 = vpop.f32.mrb[0].mxu0
        %v1005 = vadd.f32 %v756, %v1004
        %v1006 = vpop.f32.mrb[0].mxu0
        %v1007 = vpop.f32.mrb[0].mxu0
        %v1008 = vadd.f32 %v759, %v1007
        %v1009 = vpop.f32.mrb[0].mxu0
        %1010 = vmatprep.mubr.bf16.mxu0 0
        %1011 = vmatmul.mubr.bf16.gmra.mrb[0].mxu0 %v892
        %v1012 = vpop.f32.mrb[0].mxu0
        %v1013 = vadd.f32 %v764, %v1012
        %v1014 = vpop.f32.mrb[0].mxu0
        %v1015 = vpop.f32.mrb[0].mxu0
        %v1016 = vadd.f32 %v767, %v1015
        %v1017 = vpop.f32.mrb[0].mxu0
        %1018 = vmatprep.mubr.bf16.mxu0 0
        %1019 = vmatmul.mubr.bf16.gmra.mrb[0].mxu0 %v893
        %v1020 = vpop.f32.mrb[0].mxu0
        %v1021 = vadd.f32 %v772, %v1020
        %v1022 = vpop.f32.mrb[0].mxu0
        %v1023 = vpop.f32.mrb[0].mxu0
        %v1024 = vadd.f32 %v775, %v1023
        %v1025 = vpop.f32.mrb[0].mxu0
        %1026 = vmatprep.mubr.bf16.mxu0 0
        %1027 = vmatmul.mubr.bf16.gmra.mrb[0].mxu0 %v894
        %v1028 = vpop.f32.mrb[0].mxu0
        %v1029 = vadd.f32 %v780, %v1028
        %v1030 = vpop.f32.mrb[0].mxu0
        %v1031 = vpop.f32.mrb[0].mxu0
        %v1032 = vadd.f32 %v783, %v1031
        %v1033 = vpop.f32.mrb[0].mxu0
        %1034 = vmatprep.mubr.bf16.mxu0 0
        %1035 = vmatmul.mubr.bf16.gmra.mrb[0].mxu0 %v895
        %v1036 = vpop.f32.mrb[0].mxu0
        %v1037 = vadd.f32 %v788, %v1036
        %v1038 = vpop.f32.mrb[0].mxu0
        %v1039 = vpop.f32.mrb[0].mxu0
        %v1040 = vadd.f32 %v791, %v1039
        %v1041 = vpop.f32.mrb[0].mxu0
        %1042 = vmatprep.mubr.bf16.mxu0 0
        %1043 = vmatmul.mubr.bf16.gmra.mrb[0].mxu0 %v896
        %v1044 = vpop.f32.mrb[0].mxu0
        %v1045 = vadd.f32 %v796, %v1044
        %v1046 = vpop.f32.mrb[0].mxu0
        %v1047 = vpop.f32.mrb[0].mxu0
        %v1048 = vadd.f32 %v799, %v1047
        %v1049 = vpop.f32.mrb[0].mxu0
        %1050 = vmatprep.mubr.bf16.mxu0 0
        %1051 = vmatmul.mubr.bf16.gmra.mrb[0].mxu0 %v897
        %v1052 = vpop.f32.mrb[0].mxu0
        %v1053 = vadd.f32 %v804, %v1052
        %v1054 = vpop.f32.mrb[0].mxu0
        %v1055 = vpop.f32.mrb[0].mxu0
        %v1056 = vadd.f32 %v807, %v1055
        %v1057 = vpop.f32.mrb[0].mxu0
        %1058 = vmatprep.mubr.bf16.mxu0 0
        %1059 = vmatmul.mubr.bf16.gmra.mrb[0].mxu0 %v898
        %v1060 = vpop.f32.mrb[0].mxu0
        %v1061 = vadd.f32 %v812, %v1060
        %v1062 = vpop.f32.mrb[0].mxu0
        %v1063 = vpop.f32.mrb[0].mxu0
        %v1064 = vadd.f32 %v815, %v1063
        %v1065 = vpop.f32.mrb[0].mxu0
        %1066 = vmatprep.mubr.bf16.mxu0 0
        %1067 = vmatmul.mubr.bf16.gmra.mrb[0].mxu0 %v899
        %v1068 = vpop.f32.mrb[0].mxu0
        %v1069 = vadd.f32 %v820, %v1068
        %v1070 = vpop.f32.mrb[0].mxu0
        %v1071 = vpop.f32.mrb[0].mxu0
        %v1072 = vadd.f32 %v823, %v1071
        %v1073 = vpop.f32.mrb[0].mxu0
        %1074 = vmatprep.mubr.bf16.mxu0 0
        %1075 = vmatmul.mubr.bf16.gmra.mrb[0].mxu0 %v900
        %v1076 = vpop.f32.mrb[0].mxu0
        %v1077 = vadd.f32 %v828, %v1076
        %v1078 = vpop.f32.mrb[0].mxu0
        %v1079 = vpop.f32.mrb[0].mxu0
        %v1080 = vadd.f32 %v831, %v1079
        %v1081 = vpop.f32.mrb[0].mxu0
        %1082 = vmatprep.mubr.bf16.mxu0 0
        %1083 = vmatmul.mubr.bf16.gmra.mrb[0].mxu0 %v901
        %v1084 = vpop.f32.mrb[0].mxu0
        %v1085 = vadd.f32 %v836, %v1084
        %v1086 = vpop.f32.mrb[0].mxu0
        %v1087 = vpop.f32.mrb[0].mxu0
        %v1088 = vadd.f32 %v839, %v1087
        %v1089 = vpop.f32.mrb[0].mxu0
        %1090 = vdwg.mxu0
        %v1091 = vld [vmem:[%s219] sm:$0xe]
        %v1092 = vld [vmem:[%s219 + $0xc] sm:$0xe]
        %v1093 = vld [vmem:[%s219 + $0x18] sm:$0xe]
        %v1094 = vld [vmem:[%s219 + $0x24] sm:$0xe]
        %v1095 = vld [vmem:[%s219 + $0x30] sm:$0xe]
        %v1096 = vld [vmem:[%s219 + $0x3c] sm:$0xe]
        %v1097 = vld [vmem:[%s219 + $0x48] sm:$0xe]
        %v1098 = vld [vmem:[%s219 + $0x54] sm:$0xe]
        %v1099 = vld [vmem:[%s219 + $0x60] sm:$0xe]
        %v1100 = vld [vmem:[%s219 + $0x6c] sm:$0xe]
        %v1101 = vld [vmem:[%s219 + $0x78] sm:$0xe]
        %v1102 = vld [vmem:[%s219 + $0x84] sm:$0xe]
        %vm1127 = vcmask 1042432
        %vm1128 = vcmask 1046532
        %vm1129 = vmor %vm1127, %vm1128
        %v1130 = vrot.slane %v1091, 5
        %v1131 = vrot.slane %v1130, 4
        %v1132 = vrot.slane %v258, 5
        %v1133 = vsel %vm1129, %v1131, %v1132
        %v1134 = vrot.slane %v1132, 4
        %v1135 = vrot.slane %v297, 5
        %v1136 = vsel %vm1129, %v1134, %v1135
        %v1137 = vrot.slane %v1092, 5
        %v1138 = vrot.slane %v1137, 4
        %v1139 = vrot.slane %v260, 5
        %v1140 = vsel %vm1129, %v1138, %v1139
        %v1141 = vrot.slane %v1139, 4
        %v1142 = vrot.slane %v298, 5
        %v1143 = vsel %vm1129, %v1141, %v1142
        %v1144 = vrot.slane %v1093, 5
        %v1145 = vrot.slane %v1144, 4
        %v1146 = vrot.slane %v262, 5
        %v1147 = vsel %vm1129, %v1145, %v1146
        %v1148 = vrot.slane %v1146, 4
        %v1149 = vrot.slane %v299, 5
        %v1150 = vsel %vm1129, %v1148, %v1149
        %v1151 = vrot.slane %v1094, 5
        %v1152 = vrot.slane %v1151, 4
        %v1153 = vrot.slane %v264, 5
        %v1154 = vsel %vm1129, %v1152, %v1153
        %v1155 = vrot.slane %v1153, 4
        %v1156 = vrot.slane %v300, 5
        %v1157 = vsel %vm1129, %v1155, %v1156
        %v1158 = vrot.slane %v1095, 5
        %v1159 = vrot.slane %v1158, 4
        %v1160 = vrot.slane %v266, 5
        %v1161 = vsel %vm1129, %v1159, %v1160
        %v1162 = vrot.slane %v1160, 4
        %v1163 = vrot.slane %v301, 5
        %v1164 = vsel %vm1129, %v1162, %v1163
        %v1165 = vrot.slane %v1096, 5
        %v1166 = vrot.slane %v1165, 4
        %v1167 = vrot.slane %v268, 5
        %v1168 = vsel %vm1129, %v1166, %v1167
        %v1169 = vrot.slane %v1167, 4
        %v1170 = vrot.slane %v302, 5
        %v1171 = vsel %vm1129, %v1169, %v1170
        %v1172 = vrot.slane %v1097, 5
        %v1173 = vrot.slane %v1172, 4
        %v1174 = vrot.slane %v270, 5
        %v1175 = vsel %vm1129, %v1173, %v1174
        %v1176 = vrot.slane %v1174, 4
        %v1177 = vrot.slane %v303, 5
        %v1178 = vsel %vm1129, %v1176, %v1177
        %v1179 = vrot.slane %v1098, 5
        %v1180 = vrot.slane %v1179, 4
        %v1181 = vrot.slane %v272, 5
        %v1182 = vsel %vm1129, %v1180, %v1181
        %v1183 = vrot.slane %v1181, 4
        %v1184 = vrot.slane %v304, 5
        %v1185 = vsel %vm1129, %v1183, %v1184
        %v1186 = vrot.slane %v1099, 5
        %v1187 = vrot.slane %v1186, 4
        %v1188 = vrot.slane %v274, 5
        %v1189 = vsel %vm1129, %v1187, %v1188
        %v1190 = vrot.slane %v1188, 4
        %v1191 = vrot.slane %v305, 5
        %v1192 = vsel %vm1129, %v1190, %v1191
        %v1193 = vrot.slane %v1100, 5
        %v1194 = vrot.slane %v1193, 4
        %v1195 = vrot.slane %v276, 5
        %v1196 = vsel %vm1129, %v1194, %v1195
        %v1197 = vrot.slane %v1195, 4
        %v1198 = vrot.slane %v306, 5
        %v1199 = vsel %vm1129, %v1197, %v1198
        %v1200 = vrot.slane %v1101, 5
        %v1201 = vrot.slane %v1200, 4
        %v1202 = vrot.slane %v278, 5
        %v1203 = vsel %vm1129, %v1201, %v1202
        %v1204 = vrot.slane %v1202, 4
        %v1205 = vrot.slane %v307, 5
        %v1206 = vsel %vm1129, %v1204, %v1205
        %v1207 = vrot.slane %v1102, 5
        %v1208 = vrot.slane %v1207, 4
        %v1209 = vrot.slane %v280, 5
        %v1210 = vsel %vm1129, %v1208, %v1209
        %v1211 = vrot.slane %v1209, 4
        %v1212 = vrot.slane %v308, 5
        %v1213 = vsel %vm1129, %v1211, %v1212
        %s1214 = scalar_lea.vmem [#allocation5], 128
        %v1215 = vld [vmem:[%s1214] sm:$0xf]
        %v1216 = vld [vmem:[%s1214 + $0x4] sm:$0xf]
        %v1217 = vld [vmem:[%s1214 + $0x8] sm:$0xf]
        %v1218 = vld [vmem:[%s1214 + $0xc] sm:$0xf]
        %v1219 = vld [vmem:[%s1214 + $0x10] sm:$0xf]
        %v1220 = vld [vmem:[%s1214 + $0x14] sm:$0xf]
        %v1221 = vld [vmem:[%s1214 + $0x18] sm:$0xf]
        %v1222 = vld [vmem:[%s1214 + $0x1c] sm:$0xf]
        %v1223 = vld [vmem:[%s1214 + $0x20] sm:$0xf]
        %v1224 = vld [vmem:[%s1214 + $0x24] sm:$0xf]
        %v1225 = vld [vmem:[%s1214 + $0x28] sm:$0xf]
        %v1226 = vld [vmem:[%s1214 + $0x2c] sm:$0xf]
        %v1227 = vld [vmem:[%s1214 + $0x30] sm:$0xf]
        %v1228 = vld [vmem:[%s1214 + $0x34] sm:$0xf]
        %v1229 = vld [vmem:[%s1214 + $0x38] sm:$0xf]
        %v1230 = vld [vmem:[%s1214 + $0x3c] sm:$0xf]
        %v1231 = vunpack.c.l.b16 %v1133
        %v1232 = vunpack.c.l.b16 %v1136
        %v1233 = vunpack.c.l.b16 %v1140
        %v1234 = vunpack.c.l.b16 %v1143
        %v1235 = vunpack.c.l.b16 %v1147
        %v1236 = vunpack.c.l.b16 %v1150
        %v1237 = vunpack.c.l.b16 %v1154
        %v1238 = vunpack.c.l.b16 %v1157
        %v1239 = vunpack.c.l.b16 %v1161
        %v1240 = vunpack.c.l.b16 %v1164
        %v1241 = vunpack.c.l.b16 %v1168
        %v1242 = vunpack.c.l.b16 %v1171
        %v1243 = vunpack.c.l.b16 %v1175
        %v1244 = vunpack.c.l.b16 %v1178
        %v1245 = vunpack.c.l.b16 %v1182
        %v1246 = vunpack.c.l.b16 %v1185
        %v1247 = vunpack.c.l.b16 %v1189
        %v1248 = vunpack.c.l.b16 %v1192
        %v1249 = vunpack.c.l.b16 %v1196
        %v1250 = vunpack.c.l.b16 %v1199
        %v1251 = vunpack.c.l.b16 %v1203
        %v1252 = vunpack.c.l.b16 %v1206
        %v1253 = vunpack.c.l.b16 %v1210
        %v1254 = vunpack.c.l.b16 %v1213
        %v1255 = vpack.c.b16 %v1232, %v1231
        %v1256 = vpack.c.b16 %v1234, %v1233
        %v1257 = vpack.c.b16 %v1236, %v1235
        %v1258 = vpack.c.b16 %v1238, %v1237
        %v1259 = vpack.c.b16 %v1240, %v1239
        %v1260 = vpack.c.b16 %v1242, %v1241
        %v1261 = vpack.c.b16 %v1244, %v1243
        %v1262 = vpack.c.b16 %v1246, %v1245
        %v1263 = vpack.c.b16 %v1248, %v1247
        %v1264 = vpack.c.b16 %v1250, %v1249
        %v1265 = vpack.c.b16 %v1252, %v1251
        %v1266 = vpack.c.b16 %v1254, %v1253
        %v1295 = vunpack.c.l.b16 %v1215
        %v1296 = vunpack.c.l.b16 %v1216
        %v1297 = vunpack.c.l.b16 %v1217
        %v1298 = vunpack.c.l.b16 %v1218
        %v1299 = vunpack.c.l.b16 %v1219
        %v1300 = vunpack.c.l.b16 %v1220
        %v1301 = vunpack.c.l.b16 %v1221
        %v1302 = vunpack.c.l.b16 %v1222
        %v1303 = vunpack.c.l.b16 %v1223
        %v1304 = vunpack.c.l.b16 %v1224
        %v1305 = vunpack.c.l.b16 %v1225
        %v1306 = vunpack.c.l.b16 %v1226
        %v1307 = vunpack.c.l.b16 %v1227
        %v1308 = vunpack.c.l.b16 %v1228
        %v1309 = vunpack.c.l.b16 %v1229
        %v1310 = vunpack.c.l.b16 %v1230
        %v1311 = vpack.c.b16 %v1296, %v1295
        %v1312 = vpack.c.b16 %v1298, %v1297
        %v1313 = vpack.c.b16 %v1300, %v1299
        %v1314 = vpack.c.b16 %v1302, %v1301
        %v1315 = vpack.c.b16 %v1304, %v1303
        %v1316 = vpack.c.b16 %v1306, %v1305
        %v1317 = vpack.c.b16 %v1308, %v1307
        %v1318 = vpack.c.b16 %v1310, %v1309
        %1327 = vmatprep.subr.bf16.mxu0 0
        %1328 = vmatpush1.bf16.msra.mxu0 %v1311
        %1329 = vmatprep.subr.bf16.mxu0 0
        %1330 = vmatpush1.bf16.msra.mxu0 %v1312
        %1331 = vmatprep.subr.bf16.mxu0 0
        %1332 = vmatpush1.bf16.msra.mxu0 %v1313
        %1333 = vmatprep.subr.bf16.mxu0 0
        %1334 = vmatpush1.bf16.msra.mxu0 %v1314
        %1335 = vmatprep.subr.bf16.mxu0 0
        %1336 = vmatpush1.bf16.msra.mxu0 %v1315
        %1337 = vmatprep.subr.bf16.mxu0 0
        %1338 = vmatpush1.bf16.msra.mxu0 %v1316
        %1339 = vmatprep.subr.bf16.mxu0 0
        %1340 = vmatpush1.bf16.msra.mxu0 %v1317
        %1341 = vmatprep.subr.bf16.mxu0 0
        %1342 = vmatpush1.bf16.msra.mxu0 %v1318
        %1343 = vmatprep.subr.bf16.mxu0 0
        %1344 = vmatpush1.bf16.msra.mxu0 0
        %1345 = vmatprep.subr.bf16.mxu0 0
        %1346 = vmatpush1.bf16.msra.mxu0 0
        %1347 = vmatprep.subr.bf16.mxu0 0
        %1348 = vmatpush1.bf16.msra.mxu0 0
        %1349 = vmatprep.subr.bf16.mxu0 0
        %1350 = vmatpush1.bf16.msra.mxu0 0
        %1351 = vmatprep.subr.bf16.mxu0 0
        %1352 = vmatpush1.bf16.msra.mxu0 0
        %1353 = vmatprep.subr.bf16.mxu0 0
        %1354 = vmatpush1.bf16.msra.mxu0 0
        %1355 = vmatprep.subr.bf16.mxu0 0
        %1356 = vmatpush1.bf16.msra.mxu0 0
        %1357 = vmatprep.subr.bf16.mxu0 0
        %1358 = vmatpush1.bf16.msra.mxu0 0
        %1359 = vmatprep.mubr.bf16.mxu0 0
        %1360 = vmatmul.mubr.bf16.gmra.mrb[0].mxu0 %v1255
        %v1361 = vpop.f32.mrb[0].mxu0
        %v1362 = vadd.f32 0.0, %v1361
        %v1363 = vpop.f32.mrb[0].mxu0
        %v1364 = vpop.f32.mrb[0].mxu0
        %v1365 = vadd.f32 0.0, %v1364
        %v1366 = vpop.f32.mrb[0].mxu0
        %1367 = vmatprep.mubr.bf16.mxu0 0
        %1368 = vmatmul.mubr.bf16.gmra.mrb[0].mxu0 %v1256
        %v1369 = vpop.f32.mrb[0].mxu0
        %v1370 = vadd.f32 0.0, %v1369
        %v1371 = vpop.f32.mrb[0].mxu0
        %v1372 = vpop.f32.mrb[0].mxu0
        %v1373 = vadd.f32 0.0, %v1372
        %v1374 = vpop.f32.mrb[0].mxu0
        %1375 = vmatprep.mubr.bf16.mxu0 0
        %1376 = vmatmul.mubr.bf16.gmra.mrb[0].mxu0 %v1257
        %v1377 = vpop.f32.mrb[0].mxu0
        %v1378 = vadd.f32 0.0, %v1377
        %v1379 = vpop.f32.mrb[0].mxu0
        %v1380 = vpop.f32.mrb[0].mxu0
        %v1381 = vadd.f32 0.0, %v1380
        %v1382 = vpop.f32.mrb[0].mxu0
        %1383 = vmatprep.mubr.bf16.mxu0 0
        %1384 = vmatmul.mubr.bf16.gmra.mrb[0].mxu0 %v1258
        %v1385 = vpop.f32.mrb[0].mxu0
        %v1386 = vadd.f32 0.0, %v1385
        %v1387 = vpop.f32.mrb[0].mxu0
        %v1388 = vpop.f32.mrb[0].mxu0
        %v1389 = vadd.f32 0.0, %v1388
        %v1390 = vpop.f32.mrb[0].mxu0
        %1391 = vmatprep.mubr.bf16.mxu0 0
        %1392 = vmatmul.mubr.bf16.gmra.mrb[0].mxu0 %v1259
        %v1393 = vpop.f32.mrb[0].mxu0
        %v1394 = vadd.f32 0.0, %v1393
        %v1395 = vpop.f32.mrb[0].mxu0
        %v1396 = vpop.f32.mrb[0].mxu0
        %v1397 = vadd.f32 0.0, %v1396
        %v1398 = vpop.f32.mrb[0].mxu0
        %1399 = vmatprep.mubr.bf16.mxu0 0
        %1400 = vmatmul.mubr.bf16.gmra.mrb[0].mxu0 %v1260
        %v1401 = vpop.f32.mrb[0].mxu0
        %v1402 = vadd.f32 0.0, %v1401
        %v1403 = vpop.f32.mrb[0].mxu0
        %v1404 = vpop.f32.mrb[0].mxu0
        %v1405 = vadd.f32 0.0, %v1404
        %v1406 = vpop.f32.mrb[0].mxu0
        %1407 = vmatprep.mubr.bf16.mxu0 0
        %1408 = vmatmul.mubr.bf16.gmra.mrb[0].mxu0 %v1261
        %v1409 = vpop.f32.mrb[0].mxu0
        %v1410 = vadd.f32 0.0, %v1409
        %v1411 = vpop.f32.mrb[0].mxu0
        %v1412 = vpop.f32.mrb[0].mxu0
        %v1413 = vadd.f32 0.0, %v1412
        %v1414 = vpop.f32.mrb[0].mxu0
        %1415 = vmatprep.mubr.bf16.mxu0 0
        %1416 = vmatmul.mubr.bf16.gmra.mrb[0].mxu0 %v1262
        %v1417 = vpop.f32.mrb[0].mxu0
        %v1418 = vadd.f32 0.0, %v1417
        %v1419 = vpop.f32.mrb[0].mxu0
        %v1420 = vpop.f32.mrb[0].mxu0
        %v1421 = vadd.f32 0.0, %v1420
        %v1422 = vpop.f32.mrb[0].mxu0
        %1423 = vmatprep.mubr.bf16.mxu0 0
        %1424 = vmatmul.mubr.bf16.gmra.mrb[0].mxu0 %v1263
        %v1425 = vpop.f32.mrb[0].mxu0
        %v1426 = vadd.f32 0.0, %v1425
        %v1427 = vpop.f32.mrb[0].mxu0
        %v1428 = vpop.f32.mrb[0].mxu0
        %v1429 = vadd.f32 0.0, %v1428
        %v1430 = vpop.f32.mrb[0].mxu0
        %1431 = vmatprep.mubr.bf16.mxu0 0
        %1432 = vmatmul.mubr.bf16.gmra.mrb[0].mxu0 %v1264
        %v1433 = vpop.f32.mrb[0].mxu0
        %v1434 = vadd.f32 0.0, %v1433
        %v1435 = vpop.f32.mrb[0].mxu0
        %v1436 = vpop.f32.mrb[0].mxu0
        %v1437 = vadd.f32 0.0, %v1436
        %v1438 = vpop.f32.mrb[0].mxu0
        %1439 = vmatprep.mubr.bf16.mxu0 0
        %1440 = vmatmul.mubr.bf16.gmra.mrb[0].mxu0 %v1265
        %v1441 = vpop.f32.mrb[0].mxu0
        %v1442 = vadd.f32 0.0, %v1441
        %v1443 = vpop.f32.mrb[0].mxu0
        %v1444 = vpop.f32.mrb[0].mxu0
        %v1445 = vadd.f32 0.0, %v1444
        %v1446 = vpop.f32.mrb[0].mxu0
        %1447 = vmatprep.mubr.bf16.mxu0 0
        %1448 = vmatmul.mubr.bf16.gmra.mrb[0].mxu0 %v1266
        %v1449 = vpop.f32.mrb[0].mxu0
        %v1450 = vadd.f32 0.0, %v1449
        %v1451 = vpop.f32.mrb[0].mxu0
        %v1452 = vpop.f32.mrb[0].mxu0
        %v1453 = vadd.f32 0.0, %v1452
        %v1454 = vpop.f32.mrb[0].mxu0
        %1455 = vdwg.mxu0
        %v1456 = vadd.f32 %v997, %v1362
        %v1457 = vadd.f32 %v1000, %v1365
        %v1458 = vadd.f32 %v1005, %v1370
        %v1459 = vadd.f32 %v1008, %v1373
        %v1460 = vadd.f32 %v1013, %v1378
        %v1461 = vadd.f32 %v1016, %v1381
        %v1462 = vadd.f32 %v1021, %v1386
        %v1463 = vadd.f32 %v1024, %v1389
        %v1464 = vadd.f32 %v1029, %v1394
        %v1465 = vadd.f32 %v1032, %v1397
        %v1466 = vadd.f32 %v1037, %v1402
        %v1467 = vadd.f32 %v1040, %v1405
        %v1468 = vadd.f32 %v1045, %v1410
        %v1469 = vadd.f32 %v1048, %v1413
        %v1470 = vadd.f32 %v1053, %v1418
        %v1471 = vadd.f32 %v1056, %v1421
        %v1472 = vadd.f32 %v1061, %v1426
        %v1473 = vadd.f32 %v1064, %v1429
        %v1474 = vadd.f32 %v1069, %v1434
        %v1475 = vadd.f32 %v1072, %v1437
        %v1476 = vadd.f32 %v1077, %v1442
        %v1477 = vadd.f32 %v1080, %v1445
        %v1478 = vadd.f32 %v1085, %v1450
        %v1479 = vadd.f32 %v1088, %v1453
        %s1480 = scalar_lea.vmem %s219, 12 [#allocation2]
        %v1481 = vld [vmem:[%s1480] sm:$0xf]
        %v1482 = vld [vmem:[%s1480 + $0x4] sm:$0xf]
        %v1483 = vld [vmem:[%s1480 + $0xc] sm:$0xf]
        %v1484 = vld [vmem:[%s1480 + $0x10] sm:$0xf]
        %v1485 = vld [vmem:[%s1480 + $0x18] sm:$0xf]
        %v1486 = vld [vmem:[%s1480 + $0x1c] sm:$0xf]
        %v1487 = vld [vmem:[%s1480 + $0x24] sm:$0xf]
        %v1488 = vld [vmem:[%s1480 + $0x28] sm:$0xf]
        %v1489 = vld [vmem:[%s1480 + $0x30] sm:$0xf]
        %v1490 = vld [vmem:[%s1480 + $0x34] sm:$0xf]
        %v1491 = vld [vmem:[%s1480 + $0x3c] sm:$0xf]
        %v1492 = vld [vmem:[%s1480 + $0x40] sm:$0xf]
        %v1493 = vld [vmem:[%s1480 + $0x48] sm:$0xf]
        %v1494 = vld [vmem:[%s1480 + $0x4c] sm:$0xf]
        %v1495 = vld [vmem:[%s1480 + $0x54] sm:$0xf]
        %v1496 = vld [vmem:[%s1480 + $0x58] sm:$0xf]
        %v1497 = vld [vmem:[%s1480 + $0x60] sm:$0xf]
        %v1498 = vld [vmem:[%s1480 + $0x64] sm:$0xf]
        %v1499 = vld [vmem:[%s1480 + $0x6c] sm:$0xf]
        %v1500 = vld [vmem:[%s1480 + $0x70] sm:$0xf]
        %v1501 = vld [vmem:[%s1480 + $0x78] sm:$0xf]
        %v1502 = vld [vmem:[%s1480 + $0x7c] sm:$0xf]
        %v1503 = vld [vmem:[%s1480 + $0x84] sm:$0xf]
        %v1504 = vld [vmem:[%s1480 + $0x88] sm:$0xf]
        %s1505 = scalar_lea.vmem [#allocation5], 192
        %v1506 = vld [vmem:[%s1505] sm:$0xf]
        %v1507 = vld [vmem:[%s1505 + $0x4] sm:$0xf]
        %v1508 = vld [vmem:[%s1505 + $0x8] sm:$0xf]
        %v1509 = vld [vmem:[%s1505 + $0xc] sm:$0xf]
        %v1510 = vld [vmem:[%s1505 + $0x10] sm:$0xf]
        %v1511 = vld [vmem:[%s1505 + $0x14] sm:$0xf]
        %v1512 = vld [vmem:[%s1505 + $0x18] sm:$0xf]
        %v1513 = vld [vmem:[%s1505 + $0x1c] sm:$0xf]
        %v1514 = vld [vmem:[%s1505 + $0x20] sm:$0xf]
        %v1515 = vld [vmem:[%s1505 + $0x24] sm:$0xf]
        %v1516 = vld [vmem:[%s1505 + $0x28] sm:$0xf]
        %v1517 = vld [vmem:[%s1505 + $0x2c] sm:$0xf]
        %v1518 = vld [vmem:[%s1505 + $0x30] sm:$0xf]
        %v1519 = vld [vmem:[%s1505 + $0x34] sm:$0xf]
        %v1520 = vld [vmem:[%s1505 + $0x38] sm:$0xf]
        %v1521 = vld [vmem:[%s1505 + $0x3c] sm:$0xf]
        %v1546 = vunpack.c.l.b16 %v1481
        %v1547 = vunpack.c.l.b16 %v1482
        %v1548 = vunpack.c.l.b16 %v1483
        %v1549 = vunpack.c.l.b16 %v1484
        %v1550 = vunpack.c.l.b16 %v1485
        %v1551 = vunpack.c.l.b16 %v1486
        %v1552 = vunpack.c.l.b16 %v1487
        %v1553 = vunpack.c.l.b16 %v1488
        %v1554 = vunpack.c.l.b16 %v1489
        %v1555 = vunpack.c.l.b16 %v1490
        %v1556 = vunpack.c.l.b16 %v1491
        %v1557 = vunpack.c.l.b16 %v1492
        %v1558 = vunpack.c.l.b16 %v1493
        %v1559 = vunpack.c.l.b16 %v1494
        %v1560 = vunpack.c.l.b16 %v1495
        %v1561 = vunpack.c.l.b16 %v1496
        %v1562 = vunpack.c.l.b16 %v1497
        %v1563 = vunpack.c.l.b16 %v1498
        %v1564 = vunpack.c.l.b16 %v1499
        %v1565 = vunpack.c.l.b16 %v1500
        %v1566 = vunpack.c.l.b16 %v1501
        %v1567 = vunpack.c.l.b16 %v1502
        %v1568 = vunpack.c.l.b16 %v1503
        %v1569 = vunpack.c.l.b16 %v1504
        %v1570 = vpack.c.b16 %v1547, %v1546
        %v1571 = vpack.c.b16 %v1549, %v1548
        %v1572 = vpack.c.b16 %v1551, %v1550
        %v1573 = vpack.c.b16 %v1553, %v1552
        %v1574 = vpack.c.b16 %v1555, %v1554
        %v1575 = vpack.c.b16 %v1557, %v1556
        %v1576 = vpack.c.b16 %v1559, %v1558
        %v1577 = vpack.c.b16 %v1561, %v1560
        %v1578 = vpack.c.b16 %v1563, %v1562
        %v1579 = vpack.c.b16 %v1565, %v1564
        %v1580 = vpack.c.b16 %v1567, %v1566
        %v1581 = vpack.c.b16 %v1569, %v1568
        %v1610 = vunpack.c.l.b16 %v1506
        %v1611 = vunpack.c.l.b16 %v1507
        %v1612 = vunpack.c.l.b16 %v1508
        %v1613 = vunpack.c.l.b16 %v1509
        %v1614 = vunpack.c.l.b16 %v1510
        %v1615 = vunpack.c.l.b16 %v1511
        %v1616 = vunpack.c.l.b16 %v1512
        %v1617 = vunpack.c.l.b16 %v1513
        %v1618 = vunpack.c.l.b16 %v1514
        %v1619 = vunpack.c.l.b16 %v1515
        %v1620 = vunpack.c.l.b16 %v1516
        %v1621 = vunpack.c.l.b16 %v1517
        %v1622 = vunpack.c.l.b16 %v1518
        %v1623 = vunpack.c.l.b16 %v1519
        %v1624 = vunpack.c.l.b16 %v1520
        %v1625 = vunpack.c.l.b16 %v1521
        %v1626 = vpack.c.b16 %v1611, %v1610
        %v1627 = vpack.c.b16 %v1613, %v1612
        %v1628 = vpack.c.b16 %v1615, %v1614
        %v1629 = vpack.c.b16 %v1617, %v1616
        %v1630 = vpack.c.b16 %v1619, %v1618
        %v1631 = vpack.c.b16 %v1621, %v1620
        %v1632 = vpack.c.b16 %v1623, %v1622
        %v1633 = vpack.c.b16 %v1625, %v1624
        %1642 = vmatprep.subr.bf16.mxu0 0
        %1643 = vmatpush1.bf16.msra.mxu0 %v1626
        %1644 = vmatprep.subr.bf16.mxu0 0
        %1645 = vmatpush1.bf16.msra.mxu0 %v1627
        %1646 = vmatprep.subr.bf16.mxu0 0
        %1647 = vmatpush1.bf16.msra.mxu0 %v1628
        %1648 = vmatprep.subr.bf16.mxu0 0
        %1649 = vmatpush1.bf16.msra.mxu0 %v1629
        %1650 = vmatprep.subr.bf16.mxu0 0
        %1651 = vmatpush1.bf16.msra.mxu0 %v1630
        %1652 = vmatprep.subr.bf16.mxu0 0
        %1653 = vmatpush1.bf16.msra.mxu0 %v1631
        %1654 = vmatprep.subr.bf16.mxu0 0
        %1655 = vmatpush1.bf16.msra.mxu0 %v1632
        %1656 = vmatprep.subr.bf16.mxu0 0
        %1657 = vmatpush1.bf16.msra.mxu0 %v1633
        %1658 = vmatprep.subr.bf16.mxu0 0
        %1659 = vmatpush1.bf16.msra.mxu0 0
        %1660 = vmatprep.subr.bf16.mxu0 0
        %1661 = vmatpush1.bf16.msra.mxu0 0
        %1662 = vmatprep.subr.bf16.mxu0 0
        %1663 = vmatpush1.bf16.msra.mxu0 0
        %1664 = vmatprep.subr.bf16.mxu0 0
        %1665 = vmatpush1.bf16.msra.mxu0 0
        %1666 = vmatprep.subr.bf16.mxu0 0
        %1667 = vmatpush1.bf16.msra.mxu0 0
        %1668 = vmatprep.subr.bf16.mxu0 0
        %1669 = vmatpush1.bf16.msra.mxu0 0
        %1670 = vmatprep.subr.bf16.mxu0 0
        %1671 = vmatpush1.bf16.msra.mxu0 0
        %1672 = vmatprep.subr.bf16.mxu0 0
        %1673 = vmatpush1.bf16.msra.mxu0 0
        %1674 = vmatprep.mubr.bf16.mxu0 0
        %1675 = vmatmul.mubr.bf16.gmra.mrb[0].mxu0 %v1570
        %v1676 = vpop.f32.mrb[0].mxu0
        %v1677 = vadd.f32 0.0, %v1676
        %v1678 = vpop.f32.mrb[0].mxu0
        %v1679 = vpop.f32.mrb[0].mxu0
        %v1680 = vadd.f32 0.0, %v1679
        %v1681 = vpop.f32.mrb[0].mxu0
        %1682 = vmatprep.mubr.bf16.mxu0 0
        %1683 = vmatmul.mubr.bf16.gmra.mrb[0].mxu0 %v1571
        %v1684 = vpop.f32.mrb[0].mxu0
        %v1685 = vadd.f32 0.0, %v1684
        %v1686 = vpop.f32.mrb[0].mxu0
        %v1687 = vpop.f32.mrb[0].mxu0
        %v1688 = vadd.f32 0.0, %v1687
        %v1689 = vpop.f32.mrb[0].mxu0
        %1690 = vmatprep.mubr.bf16.mxu0 0
        %1691 = vmatmul.mubr.bf16.gmra.mrb[0].mxu0 %v1572
        %v1692 = vpop.f32.mrb[0].mxu0
        %v1693 = vadd.f32 0.0, %v1692
        %v1694 = vpop.f32.mrb[0].mxu0
        %v1695 = vpop.f32.mrb[0].mxu0
        %v1696 = vadd.f32 0.0, %v1695
        %v1697 = vpop.f32.mrb[0].mxu0
        %1698 = vmatprep.mubr.bf16.mxu0 0
        %1699 = vmatmul.mubr.bf16.gmra.mrb[0].mxu0 %v1573
        %v1700 = vpop.f32.mrb[0].mxu0
        %v1701 = vadd.f32 0.0, %v1700
        %v1702 = vpop.f32.mrb[0].mxu0
        %v1703 = vpop.f32.mrb[0].mxu0
        %v1704 = vadd.f32 0.0, %v1703
        %v1705 = vpop.f32.mrb[0].mxu0
        %1706 = vmatprep.mubr.bf16.mxu0 0
        %1707 = vmatmul.mubr.bf16.gmra.mrb[0].mxu0 %v1574
        %v1708 = vpop.f32.mrb[0].mxu0
        %v1709 = vadd.f32 0.0, %v1708
        %v1710 = vpop.f32.mrb[0].mxu0
        %v1711 = vpop.f32.mrb[0].mxu0
        %v1712 = vadd.f32 0.0, %v1711
        %v1713 = vpop.f32.mrb[0].mxu0
        %1714 = vmatprep.mubr.bf16.mxu0 0
        %1715 = vmatmul.mubr.bf16.gmra.mrb[0].mxu0 %v1575
        %v1716 = vpop.f32.mrb[0].mxu0
        %v1717 = vadd.f32 0.0, %v1716
        %v1718 = vpop.f32.mrb[0].mxu0
        %v1719 = vpop.f32.mrb[0].mxu0
        %v1720 = vadd.f32 0.0, %v1719
        %v1721 = vpop.f32.mrb[0].mxu0
        %1722 = vmatprep.mubr.bf16.mxu0 0
        %1723 = vmatmul.mubr.bf16.gmra.mrb[0].mxu0 %v1576
        %v1724 = vpop.f32.mrb[0].mxu0
        %v1725 = vadd.f32 0.0, %v1724
        %v1726 = vpop.f32.mrb[0].mxu0
        %v1727 = vpop.f32.mrb[0].mxu0
        %v1728 = vadd.f32 0.0, %v1727
        %v1729 = vpop.f32.mrb[0].mxu0
        %1730 = vmatprep.mubr.bf16.mxu0 0
        %1731 = vmatmul.mubr.bf16.gmra.mrb[0].mxu0 %v1577
        %v1732 = vpop.f32.mrb[0].mxu0
        %v1733 = vadd.f32 0.0, %v1732
        %v1734 = vpop.f32.mrb[0].mxu0
        %v1735 = vpop.f32.mrb[0].mxu0
        %v1736 = vadd.f32 0.0, %v1735
        %v1737 = vpop.f32.mrb[0].mxu0
        %1738 = vmatprep.mubr.bf16.mxu0 0
        %1739 = vmatmul.mubr.bf16.gmra.mrb[0].mxu0 %v1578
        %v1740 = vpop.f32.mrb[0].mxu0
        %v1741 = vadd.f32 0.0, %v1740
        %v1742 = vpop.f32.mrb[0].mxu0
        %v1743 = vpop.f32.mrb[0].mxu0
        %v1744 = vadd.f32 0.0, %v1743
        %v1745 = vpop.f32.mrb[0].mxu0
        %1746 = vmatprep.mubr.bf16.mxu0 0
        %1747 = vmatmul.mubr.bf16.gmra.mrb[0].mxu0 %v1579
        %v1748 = vpop.f32.mrb[0].mxu0
        %v1749 = vadd.f32 0.0, %v1748
        %v1750 = vpop.f32.mrb[0].mxu0
        %v1751 = vpop.f32.mrb[0].mxu0
        %v1752 = vadd.f32 0.0, %v1751
        %v1753 = vpop.f32.mrb[0].mxu0
        %1754 = vmatprep.mubr.bf16.mxu0 0
        %1755 = vmatmul.mubr.bf16.gmra.mrb[0].mxu0 %v1580
        %v1756 = vpop.f32.mrb[0].mxu0
        %v1757 = vadd.f32 0.0, %v1756
        %v1758 = vpop.f32.mrb[0].mxu0
        %v1759 = vpop.f32.mrb[0].mxu0
        %v1760 = vadd.f32 0.0, %v1759
        %v1761 = vpop.f32.mrb[0].mxu0
        %1762 = vmatprep.mubr.bf16.mxu0 0
        %1763 = vmatmul.mubr.bf16.gmra.mrb[0].mxu0 %v1581
        %v1764 = vpop.f32.mrb[0].mxu0
        %v1765 = vadd.f32 0.0, %v1764
        %v1766 = vpop.f32.mrb[0].mxu0
        %v1767 = vpop.f32.mrb[0].mxu0
        %v1768 = vadd.f32 0.0, %v1767
        %v1769 = vpop.f32.mrb[0].mxu0
        %1770 = vdwg.mxu0
        %v1771 = vadd.f32 %v1456, %v1677
        %v1772 = vadd.f32 %v1457, %v1680
        %v1773 = vadd.f32 %v1458, %v1685
        %v1774 = vadd.f32 %v1459, %v1688
        %v1775 = vadd.f32 %v1460, %v1693
        %v1776 = vadd.f32 %v1461, %v1696
        %v1777 = vadd.f32 %v1462, %v1701
        %v1778 = vadd.f32 %v1463, %v1704
        %v1779 = vadd.f32 %v1464, %v1709
        %v1780 = vadd.f32 %v1465, %v1712
        %v1781 = vadd.f32 %v1466, %v1717
        %v1782 = vadd.f32 %v1467, %v1720
        %v1783 = vadd.f32 %v1468, %v1725
        %v1784 = vadd.f32 %v1469, %v1728
        %v1785 = vadd.f32 %v1470, %v1733
        %v1786 = vadd.f32 %v1471, %v1736
        %v1787 = vadd.f32 %v1472, %v1741
        %v1788 = vadd.f32 %v1473, %v1744
        %v1789 = vadd.f32 %v1474, %v1749
        %v1790 = vadd.f32 %v1475, %v1752
        %v1791 = vadd.f32 %v1476, %v1757
        %v1792 = vadd.f32 %v1477, %v1760
        %v1793 = vadd.f32 %v1478, %v1765
        %v1794 = vadd.f32 %v1479, %v1768
        %v1795 = vld [vmem:[%s1480] sm:$0xf]
        %v1796 = vld [vmem:[%s1480 + $0x4] sm:$0xf]
        %v1797 = vld [vmem:[%s1480 + $0x8] sm:$0x1]
        %v1798 = vld [vmem:[%s1480 + $0xc] sm:$0xf]
        %v1799 = vld [vmem:[%s1480 + $0x10] sm:$0xf]
        %v1800 = vld [vmem:[%s1480 + $0x14] sm:$0x1]
        %v1801 = vld [vmem:[%s1480 + $0x18] sm:$0xf]
        %v1802 = vld [vmem:[%s1480 + $0x1c] sm:$0xf]
        %v1803 = vld [vmem:[%s1480 + $0x20] sm:$0x1]
        %v1804 = vld [vmem:[%s1480 + $0x24] sm:$0xf]
        %v1805 = vld [vmem:[%s1480 + $0x28] sm:$0xf]
        %v1806 = vld [vmem:[%s1480 + $0x2c] sm:$0x1]
        %v1807 = vld [vmem:[%s1480 + $0x30] sm:$0xf]
        %v1808 = vld [vmem:[%s1480 + $0x34] sm:$0xf]
        %v1809 = vld [vmem:[%s1480 + $0x38] sm:$0x1]
        %v1810 = vld [vmem:[%s1480 + $0x3c] sm:$0xf]
        %v1811 = vld [vmem:[%s1480 + $0x40] sm:$0xf]
        %v1812 = vld [vmem:[%s1480 + $0x44] sm:$0x1]
        %v1813 = vld [vmem:[%s1480 + $0x48] sm:$0xf]
        %v1814 = vld [vmem:[%s1480 + $0x4c] sm:$0xf]
        %v1815 = vld [vmem:[%s1480 + $0x50] sm:$0x1]
        %v1816 = vld [vmem:[%s1480 + $0x54] sm:$0xf]
        %v1817 = vld [vmem:[%s1480 + $0x58] sm:$0xf]
        %v1818 = vld [vmem:[%s1480 + $0x5c] sm:$0x1]
        %v1819 = vld [vmem:[%s1480 + $0x60] sm:$0xf]
        %v1820 = vld [vmem:[%s1480 + $0x64] sm:$0xf]
        %v1821 = vld [vmem:[%s1480 + $0x68] sm:$0x1]
        %v1822 = vld [vmem:[%s1480 + $0x6c] sm:$0xf]
        %v1823 = vld [vmem:[%s1480 + $0x70] sm:$0xf]
        %v1824 = vld [vmem:[%s1480 + $0x74] sm:$0x1]
        %v1825 = vld [vmem:[%s1480 + $0x78] sm:$0xf]
        %v1826 = vld [vmem:[%s1480 + $0x7c] sm:$0xf]
        %v1827 = vld [vmem:[%s1480 + $0x80] sm:$0x1]
        %v1828 = vld [vmem:[%s1480 + $0x84] sm:$0xf]
        %v1829 = vld [vmem:[%s1480 + $0x88] sm:$0xf]
        %v1830 = vld [vmem:[%s1480 + $0x8c] sm:$0x1]
        %v1832 = vshrl.u32 %v1795, 16
        %v1834 = vrot.slane %v1832, 4
        %v1835 = vshll.u32 %v1795, 16
        %v1837 = vrot.slane %v1835, 5
        %v1838 = vor.u32 %v1834, %v1837
        %v1839 = vrot.slane %v1838, 4
        %v1841 = vshll.u32 %v1796, 16
        %v1843 = vrot.slane %v1841, 5
        %v1844 = vsel %vm311, %v1839, %v1843
        %v1845 = vshrl.u32 %v1796, 16
        %v1847 = vrot.slane %v1845, 4
        %v1848 = vor.u32 %v1847, %v1843
        %v1849 = vrot.slane %v1848, 4
        %v1851 = vshll.u32 %v1797, 16
        %v1853 = vrot.slane %v1851, 5
        %v1854 = vsel %vm311, %v1849, %v1853
        %v1856 = vshrl.u32 %v1798, 16
        %v1858 = vrot.slane %v1856, 4
        %v1859 = vshll.u32 %v1798, 16
        %v1861 = vrot.slane %v1859, 5
        %v1862 = vor.u32 %v1858, %v1861
        %v1863 = vrot.slane %v1862, 4
        %v1865 = vshll.u32 %v1799, 16
        %v1867 = vrot.slane %v1865, 5
        %v1868 = vsel %vm311, %v1863, %v1867
        %v1869 = vshrl.u32 %v1799, 16
        %v1871 = vrot.slane %v1869, 4
        %v1872 = vor.u32 %v1871, %v1867
        %v1873 = vrot.slane %v1872, 4
        %v1875 = vshll.u32 %v1800, 16
        %v1877 = vrot.slane %v1875, 5
        %v1878 = vsel %vm311, %v1873, %v1877
        %v1880 = vshrl.u32 %v1801, 16
        %v1882 = vrot.slane %v1880, 4
        %v1883 = vshll.u32 %v1801, 16
        %v1885 = vrot.slane %v1883, 5
        %v1886 = vor.u32 %v1882, %v1885
        %v1887 = vrot.slane %v1886, 4
        %v1889 = vshll.u32 %v1802, 16
        %v1891 = vrot.slane %v1889, 5
        %v1892 = vsel %vm311, %v1887, %v1891
        %v1893 = vshrl.u32 %v1802, 16
        %v1895 = vrot.slane %v1893, 4
        %v1896 = vor.u32 %v1895, %v1891
        %v1897 = vrot.slane %v1896, 4
        %v1899 = vshll.u32 %v1803, 16
        %v1901 = vrot.slane %v1899, 5
        %v1902 = vsel %vm311, %v1897, %v1901
        %v1904 = vshrl.u32 %v1804, 16
        %v1906 = vrot.slane %v1904, 4
        %v1907 = vshll.u32 %v1804, 16
        %v1909 = vrot.slane %v1907, 5
        %v1910 = vor.u32 %v1906, %v1909
        %v1911 = vrot.slane %v1910, 4
        %v1913 = vshll.u32 %v1805, 16
        %v1915 = vrot.slane %v1913, 5
        %v1916 = vsel %vm311, %v1911, %v1915
        %v1917 = vshrl.u32 %v1805, 16
        %v1919 = vrot.slane %v1917, 4
        %v1920 = vor.u32 %v1919, %v1915
        %v1921 = vrot.slane %v1920, 4
        %v1923 = vshll.u32 %v1806, 16
        %v1925 = vrot.slane %v1923, 5
        %v1926 = vsel %vm311, %v1921, %v1925
        %v1928 = vshrl.u32 %v1807, 16
        %v1930 = vrot.slane %v1928, 4
        %v1931 = vshll.u32 %v1807, 16
        %v1933 = vrot.slane %v1931, 5
        %v1934 = vor.u32 %v1930, %v1933
        %v1935 = vrot.slane %v1934, 4
        %v1937 = vshll.u32 %v1808, 16
        %v1939 = vrot.slane %v1937, 5
        %v1940 = vsel %vm311, %v1935, %v1939
        %v1941 = vshrl.u32 %v1808, 16
        %v1943 = vrot.slane %v1941, 4
        %v1944 = vor.u32 %v1943, %v1939
        %v1945 = vrot.slane %v1944, 4
        %v1947 = vshll.u32 %v1809, 16
        %v1949 = vrot.slane %v1947, 5
        %v1950 = vsel %vm311, %v1945, %v1949
        %v1952 = vshrl.u32 %v1810, 16
        %v1954 = vrot.slane %v1952, 4
        %v1955 = vshll.u32 %v1810, 16
        %v1957 = vrot.slane %v1955, 5
        %v1958 = vor.u32 %v1954, %v1957
        %v1959 = vrot.slane %v1958, 4
        %v1961 = vshll.u32 %v1811, 16
        %v1963 = vrot.slane %v1961, 5
        %v1964 = vsel %vm311, %v1959, %v1963
        %v1965 = vshrl.u32 %v1811, 16
        %v1967 = vrot.slane %v1965, 4
        %v1968 = vor.u32 %v1967, %v1963
        %v1969 = vrot.slane %v1968, 4
        %v1971 = vshll.u32 %v1812, 16
        %v1973 = vrot.slane %v1971, 5
        %v1974 = vsel %vm311, %v1969, %v1973
        %v1976 = vshrl.u32 %v1813, 16
        %v1978 = vrot.slane %v1976, 4
        %v1979 = vshll.u32 %v1813, 16
        %v1981 = vrot.slane %v1979, 5
        %v1982 = vor.u32 %v1978, %v1981
        %v1983 = vrot.slane %v1982, 4
        %v1985 = vshll.u32 %v1814, 16
        %v1987 = vrot.slane %v1985, 5
        %v1988 = vsel %vm311, %v1983, %v1987
        %v1989 = vshrl.u32 %v1814, 16
        %v1991 = vrot.slane %v1989, 4
        %v1992 = vor.u32 %v1991, %v1987
        %v1993 = vrot.slane %v1992, 4
        %v1995 = vshll.u32 %v1815, 16
        %v1997 = vrot.slane %v1995, 5
        %v1998 = vsel %vm311, %v1993, %v1997
        %v2000 = vshrl.u32 %v1816, 16
        %v2002 = vrot.slane %v2000, 4
        %v2003 = vshll.u32 %v1816, 16
        %v2005 = vrot.slane %v2003, 5
        %v2006 = vor.u32 %v2002, %v2005
        %v2007 = vrot.slane %v2006, 4
        %v2009 = vshll.u32 %v1817, 16
        %v2011 = vrot.slane %v2009, 5
        %v2012 = vsel %vm311, %v2007, %v2011
        %v2013 = vshrl.u32 %v1817, 16
        %v2015 = vrot.slane %v2013, 4
        %v2016 = vor.u32 %v2015, %v2011
        %v2017 = vrot.slane %v2016, 4
        %v2019 = vshll.u32 %v1818, 16
        %v2021 = vrot.slane %v2019, 5
        %v2022 = vsel %vm311, %v2017, %v2021
        %v2024 = vshrl.u32 %v1819, 16
        %v2026 = vrot.slane %v2024, 4
        %v2027 = vshll.u32 %v1819, 16
        %v2029 = vrot.slane %v2027, 5
        %v2030 = vor.u32 %v2026, %v2029
        %v2031 = vrot.slane %v2030, 4
        %v2033 = vshll.u32 %v1820, 16
        %v2035 = vrot.slane %v2033, 5
        %v2036 = vsel %vm311, %v2031, %v2035
        %v2037 = vshrl.u32 %v1820, 16
        %v2039 = vrot.slane %v2037, 4
        %v2040 = vor.u32 %v2039, %v2035
        %v2041 = vrot.slane %v2040, 4
        %v2043 = vshll.u32 %v1821, 16
        %v2045 = vrot.slane %v2043, 5
        %v2046 = vsel %vm311, %v2041, %v2045
        %v2048 = vshrl.u32 %v1822, 16
        %v2050 = vrot.slane %v2048, 4
        %v2051 = vshll.u32 %v1822, 16
        %v2053 = vrot.slane %v2051, 5
        %v2054 = vor.u32 %v2050, %v2053
        %v2055 = vrot.slane %v2054, 4
        %v2057 = vshll.u32 %v1823, 16
        %v2059 = vrot.slane %v2057, 5
        %v2060 = vsel %vm311, %v2055, %v2059
        %v2061 = vshrl.u32 %v1823, 16
        %v2063 = vrot.slane %v2061, 4
        %v2064 = vor.u32 %v2063, %v2059
        %v2065 = vrot.slane %v2064, 4
        %v2067 = vshll.u32 %v1824, 16
        %v2069 = vrot.slane %v2067, 5
        %v2070 = vsel %vm311, %v2065, %v2069
        %v2072 = vshrl.u32 %v1825, 16
        %v2074 = vrot.slane %v2072, 4
        %v2075 = vshll.u32 %v1825, 16
        %v2077 = vrot.slane %v2075, 5
        %v2078 = vor.u32 %v2074, %v2077
        %v2079 = vrot.slane %v2078, 4
        %v2081 = vshll.u32 %v1826, 16
        %v2083 = vrot.slane %v2081, 5
        %v2084 = vsel %vm311, %v2079, %v2083
        %v2085 = vshrl.u32 %v1826, 16
        %v2087 = vrot.slane %v2085, 4
        %v2088 = vor.u32 %v2087, %v2083
        %v2089 = vrot.slane %v2088, 4
        %v2091 = vshll.u32 %v1827, 16
        %v2093 = vrot.slane %v2091, 5
        %v2094 = vsel %vm311, %v2089, %v2093
        %v2096 = vshrl.u32 %v1828, 16
        %v2098 = vrot.slane %v2096, 4
        %v2099 = vshll.u32 %v1828, 16
        %v2101 = vrot.slane %v2099, 5
        %v2102 = vor.u32 %v2098, %v2101
        %v2103 = vrot.slane %v2102, 4
        %v2105 = vshll.u32 %v1829, 16
        %v2107 = vrot.slane %v2105, 5
        %v2108 = vsel %vm311, %v2103, %v2107
        %v2109 = vshrl.u32 %v1829, 16
        %v2111 = vrot.slane %v2109, 4
        %v2112 = vor.u32 %v2111, %v2107
        %v2113 = vrot.slane %v2112, 4
        %v2115 = vshll.u32 %v1830, 16
        %v2117 = vrot.slane %v2115, 5
        %v2118 = vsel %vm311, %v2113, %v2117
        %s2119 = scalar_lea.vmem [#allocation5], 256
        %v2120 = vld [vmem:[%s2119] sm:$0xf]
        %v2121 = vld [vmem:[%s2119 + $0x4] sm:$0xf]
        %v2122 = vld [vmem:[%s2119 + $0x8] sm:$0xf]
        %v2123 = vld [vmem:[%s2119 + $0xc] sm:$0xf]
        %v2124 = vld [vmem:[%s2119 + $0x10] sm:$0xf]
        %v2125 = vld [vmem:[%s2119 + $0x14] sm:$0xf]
        %v2126 = vld [vmem:[%s2119 + $0x18] sm:$0xf]
        %v2127 = vld [vmem:[%s2119 + $0x1c] sm:$0xf]
        %v2128 = vld [vmem:[%s2119 + $0x20] sm:$0xf]
        %v2129 = vld [vmem:[%s2119 + $0x24] sm:$0xf]
        %v2130 = vld [vmem:[%s2119 + $0x28] sm:$0xf]
        %v2131 = vld [vmem:[%s2119 + $0x2c] sm:$0xf]
        %v2132 = vld [vmem:[%s2119 + $0x30] sm:$0xf]
        %v2133 = vld [vmem:[%s2119 + $0x34] sm:$0xf]
        %v2134 = vld [vmem:[%s2119 + $0x38] sm:$0xf]
        %v2135 = vld [vmem:[%s2119 + $0x3c] sm:$0xf]
        %v2136 = vunpack.c.l.b16 %v1844
        %v2137 = vunpack.c.l.b16 %v1854
        %v2138 = vunpack.c.l.b16 %v1868
        %v2139 = vunpack.c.l.b16 %v1878
        %v2140 = vunpack.c.l.b16 %v1892
        %v2141 = vunpack.c.l.b16 %v1902
        %v2142 = vunpack.c.l.b16 %v1916
        %v2143 = vunpack.c.l.b16 %v1926
        %v2144 = vunpack.c.l.b16 %v1940
        %v2145 = vunpack.c.l.b16 %v1950
        %v2146 = vunpack.c.l.b16 %v1964
        %v2147 = vunpack.c.l.b16 %v1974
        %v2148 = vunpack.c.l.b16 %v1988
        %v2149 = vunpack.c.l.b16 %v1998
        %v2150 = vunpack.c.l.b16 %v2012
        %v2151 = vunpack.c.l.b16 %v2022
        %v2152 = vunpack.c.l.b16 %v2036
        %v2153 = vunpack.c.l.b16 %v2046
        %v2154 = vunpack.c.l.b16 %v2060
        %v2155 = vunpack.c.l.b16 %v2070
        %v2156 = vunpack.c.l.b16 %v2084
        %v2157 = vunpack.c.l.b16 %v2094
        %v2158 = vunpack.c.l.b16 %v2108
        %v2159 = vunpack.c.l.b16 %v2118
        %v2160 = vpack.c.b16 %v2137, %v2136
        %v2161 = vpack.c.b16 %v2139, %v2138
        %v2162 = vpack.c.b16 %v2141, %v2140
        %v2163 = vpack.c.b16 %v2143, %v2142
        %v2164 = vpack.c.b16 %v2145, %v2144
        %v2165 = vpack.c.b16 %v2147, %v2146
        %v2166 = vpack.c.b16 %v2149, %v2148
        %v2167 = vpack.c.b16 %v2151, %v2150
        %v2168 = vpack.c.b16 %v2153, %v2152
        %v2169 = vpack.c.b16 %v2155, %v2154
        %v2170 = vpack.c.b16 %v2157, %v2156
        %v2171 = vpack.c.b16 %v2159, %v2158
        %v2200 = vunpack.c.l.b16 %v2120
        %v2201 = vunpack.c.l.b16 %v2121
        %v2202 = vunpack.c.l.b16 %v2122
        %v2203 = vunpack.c.l.b16 %v2123
        %v2204 = vunpack.c.l.b16 %v2124
        %v2205 = vunpack.c.l.b16 %v2125
        %v2206 = vunpack.c.l.b16 %v2126
        %v2207 = vunpack.c.l.b16 %v2127
        %v2208 = vunpack.c.l.b16 %v2128
        %v2209 = vunpack.c.l.b16 %v2129
        %v2210 = vunpack.c.l.b16 %v2130
        %v2211 = vunpack.c.l.b16 %v2131
        %v2212 = vunpack.c.l.b16 %v2132
        %v2213 = vunpack.c.l.b16 %v2133
        %v2214 = vunpack.c.l.b16 %v2134
        %v2215 = vunpack.c.l.b16 %v2135
        %v2216 = vpack.c.b16 %v2201, %v2200
        %v2217 = vpack.c.b16 %v2203, %v2202
        %v2218 = vpack.c.b16 %v2205, %v2204
        %v2219 = vpack.c.b16 %v2207, %v2206
        %v2220 = vpack.c.b16 %v2209, %v2208
        %v2221 = vpack.c.b16 %v2211, %v2210
        %v2222 = vpack.c.b16 %v2213, %v2212
        %v2223 = vpack.c.b16 %v2215, %v2214
        %2232 = vmatprep.subr.bf16.mxu0 0
        %2233 = vmatpush1.bf16.msra.mxu0 %v2216
        %2234 = vmatprep.subr.bf16.mxu0 0
        %2235 = vmatpush1.bf16.msra.mxu0 %v2217
        %2236 = vmatprep.subr.bf16.mxu0 0
        %2237 = vmatpush1.bf16.msra.mxu0 %v2218
        %2238 = vmatprep.subr.bf16.mxu0 0
        %2239 = vmatpush1.bf16.msra.mxu0 %v2219
        %2240 = vmatprep.subr.bf16.mxu0 0
        %2241 = vmatpush1.bf16.msra.mxu0 %v2220
        %2242 = vmatprep.subr.bf16.mxu0 0
        %2243 = vmatpush1.bf16.msra.mxu0 %v2221
        %2244 = vmatprep.subr.bf16.mxu0 0
        %2245 = vmatpush1.bf16.msra.mxu0 %v2222
        %2246 = vmatprep.subr.bf16.mxu0 0
        %2247 = vmatpush1.bf16.msra.mxu0 %v2223
        %2248 = vmatprep.subr.bf16.mxu0 0
        %2249 = vmatpush1.bf16.msra.mxu0 0
        %2250 = vmatprep.subr.bf16.mxu0 0
        %2251 = vmatpush1.bf16.msra.mxu0 0
        %2252 = vmatprep.subr.bf16.mxu0 0
        %2253 = vmatpush1.bf16.msra.mxu0 0
        %2254 = vmatprep.subr.bf16.mxu0 0
        %2255 = vmatpush1.bf16.msra.mxu0 0
        %2256 = vmatprep.subr.bf16.mxu0 0
        %2257 = vmatpush1.bf16.msra.mxu0 0
        %2258 = vmatprep.subr.bf16.mxu0 0
        %2259 = vmatpush1.bf16.msra.mxu0 0
        %2260 = vmatprep.subr.bf16.mxu0 0
        %2261 = vmatpush1.bf16.msra.mxu0 0
        %2262 = vmatprep.subr.bf16.mxu0 0
        %2263 = vmatpush1.bf16.msra.mxu0 0
        %2264 = vmatprep.mubr.bf16.mxu0 0
        %2265 = vmatmul.mubr.bf16.gmra.mrb[0].mxu0 %v2160
        %v2266 = vpop.f32.mrb[0].mxu0
        %v2267 = vadd.f32 0.0, %v2266
        %v2268 = vpop.f32.mrb[0].mxu0
        %v2269 = vpop.f32.mrb[0].mxu0
        %v2270 = vadd.f32 0.0, %v2269
        %v2271 = vpop.f32.mrb[0].mxu0
        %2272 = vmatprep.mubr.bf16.mxu0 0
        %2273 = vmatmul.mubr.bf16.gmra.mrb[0].mxu0 %v2161
        %v2274 = vpop.f32.mrb[0].mxu0
        %v2275 = vadd.f32 0.0, %v2274
        %v2276 = vpop.f32.mrb[0].mxu0
        %v2277 = vpop.f32.mrb[0].mxu0
        %v2278 = vadd.f32 0.0, %v2277
        %v2279 = vpop.f32.mrb[0].mxu0
        %2280 = vmatprep.mubr.bf16.mxu0 0
        %2281 = vmatmul.mubr.bf16.gmra.mrb[0].mxu0 %v2162
        %v2282 = vpop.f32.mrb[0].mxu0
        %v2283 = vadd.f32 0.0, %v2282
        %v2284 = vpop.f32.mrb[0].mxu0
        %v2285 = vpop.f32.mrb[0].mxu0
        %v2286 = vadd.f32 0.0, %v2285
        %v2287 = vpop.f32.mrb[0].mxu0
        %2288 = vmatprep.mubr.bf16.mxu0 0
        %2289 = vmatmul.mubr.bf16.gmra.mrb[0].mxu0 %v2163
        %v2290 = vpop.f32.mrb[0].mxu0
        %v2291 = vadd.f32 0.0, %v2290
        %v2292 = vpop.f32.mrb[0].mxu0
        %v2293 = vpop.f32.mrb[0].mxu0
        %v2294 = vadd.f32 0.0, %v2293
        %v2295 = vpop.f32.mrb[0].mxu0
        %2296 = vmatprep.mubr.bf16.mxu0 0
        %2297 = vmatmul.mubr.bf16.gmra.mrb[0].mxu0 %v2164
        %v2298 = vpop.f32.mrb[0].mxu0
        %v2299 = vadd.f32 0.0, %v2298
        %v2300 = vpop.f32.mrb[0].mxu0
        %v2301 = vpop.f32.mrb[0].mxu0
        %v2302 = vadd.f32 0.0, %v2301
        %v2303 = vpop.f32.mrb[0].mxu0
        %2304 = vmatprep.mubr.bf16.mxu0 0
        %2305 = vmatmul.mubr.bf16.gmra.mrb[0].mxu0 %v2165
        %v2306 = vpop.f32.mrb[0].mxu0
        %v2307 = vadd.f32 0.0, %v2306
        %v2308 = vpop.f32.mrb[0].mxu0
        %v2309 = vpop.f32.mrb[0].mxu0
        %v2310 = vadd.f32 0.0, %v2309
        %v2311 = vpop.f32.mrb[0].mxu0
        %2312 = vmatprep.mubr.bf16.mxu0 0
        %2313 = vmatmul.mubr.bf16.gmra.mrb[0].mxu0 %v2166
        %v2314 = vpop.f32.mrb[0].mxu0
        %v2315 = vadd.f32 0.0, %v2314
        %v2316 = vpop.f32.mrb[0].mxu0
        %v2317 = vpop.f32.mrb[0].mxu0
        %v2318 = vadd.f32 0.0, %v2317
        %v2319 = vpop.f32.mrb[0].mxu0
        %2320 = vmatprep.mubr.bf16.mxu0 0
        %2321 = vmatmul.mubr.bf16.gmra.mrb[0].mxu0 %v2167
        %v2322 = vpop.f32.mrb[0].mxu0
        %v2323 = vadd.f32 0.0, %v2322
        %v2324 = vpop.f32.mrb[0].mxu0
        %v2325 = vpop.f32.mrb[0].mxu0
        %v2326 = vadd.f32 0.0, %v2325
        %v2327 = vpop.f32.mrb[0].mxu0
        %2328 = vmatprep.mubr.bf16.mxu0 0
        %2329 = vmatmul.mubr.bf16.gmra.mrb[0].mxu0 %v2168
        %v2330 = vpop.f32.mrb[0].mxu0
        %v2331 = vadd.f32 0.0, %v2330
        %v2332 = vpop.f32.mrb[0].mxu0
        %v2333 = vpop.f32.mrb[0].mxu0
        %v2334 = vadd.f32 0.0, %v2333
        %v2335 = vpop.f32.mrb[0].mxu0
        %2336 = vmatprep.mubr.bf16.mxu0 0
        %2337 = vmatmul.mubr.bf16.gmra.mrb[0].mxu0 %v2169
        %v2338 = vpop.f32.mrb[0].mxu0
        %v2339 = vadd.f32 0.0, %v2338
        %v2340 = vpop.f32.mrb[0].mxu0
        %v2341 = vpop.f32.mrb[0].mxu0
        %v2342 = vadd.f32 0.0, %v2341
        %v2343 = vpop.f32.mrb[0].mxu0
        %2344 = vmatprep.mubr.bf16.mxu0 0
        %2345 = vmatmul.mubr.bf16.gmra.mrb[0].mxu0 %v2170
        %v2346 = vpop.f32.mrb[0].mxu0
        %v2347 = vadd.f32 0.0, %v2346
        %v2348 = vpop.f32.mrb[0].mxu0
        %v2349 = vpop.f32.mrb[0].mxu0
        %v2350 = vadd.f32 0.0, %v2349
        %v2351 = vpop.f32.mrb[0].mxu0
        %2352 = vmatprep.mubr.bf16.mxu0 0
        %2353 = vmatmul.mubr.bf16.gmra.mrb[0].mxu0 %v2171
        %v2354 = vpop.f32.mrb[0].mxu0
        %v2355 = vadd.f32 0.0, %v2354
        %v2356 = vpop.f32.mrb[0].mxu0
        %v2357 = vpop.f32.mrb[0].mxu0
        %v2358 = vadd.f32 0.0, %v2357
        %v2359 = vpop.f32.mrb[0].mxu0
        %2360 = vdwg.mxu0
        %v2361 = vadd.f32 %v1771, %v2267
        %v2362 = vadd.f32 %v1772, %v2270
        %v2363 = vadd.f32 %v1773, %v2275
        %v2364 = vadd.f32 %v1774, %v2278
        %v2365 = vadd.f32 %v1775, %v2283
        %v2366 = vadd.f32 %v1776, %v2286
        %v2367 = vadd.f32 %v1777, %v2291
        %v2368 = vadd.f32 %v1778, %v2294
        %v2369 = vadd.f32 %v1779, %v2299
        %v2370 = vadd.f32 %v1780, %v2302
        %v2371 = vadd.f32 %v1781, %v2307
        %v2372 = vadd.f32 %v1782, %v2310
        %v2373 = vadd.f32 %v1783, %v2315
        %v2374 = vadd.f32 %v1784, %v2318
        %v2375 = vadd.f32 %v1785, %v2323
        %v2376 = vadd.f32 %v1786, %v2326
        %v2377 = vadd.f32 %v1787, %v2331
        %v2378 = vadd.f32 %v1788, %v2334
        %v2379 = vadd.f32 %v1789, %v2339
        %v2380 = vadd.f32 %v1790, %v2342
        %v2381 = vadd.f32 %v1791, %v2347
        %v2382 = vadd.f32 %v1792, %v2350
        %v2383 = vadd.f32 %v1793, %v2355
        %v2384 = vadd.f32 %v1794, %v2358
        %v2385 = vld [vmem:[%s1480] sm:$0xe]
        %v2386 = vld [vmem:[%s1480 + $0xc] sm:$0xe]
        %v2387 = vld [vmem:[%s1480 + $0x18] sm:$0xe]
        %v2388 = vld [vmem:[%s1480 + $0x24] sm:$0xe]
        %v2389 = vld [vmem:[%s1480 + $0x30] sm:$0xe]
        %v2390 = vld [vmem:[%s1480 + $0x3c] sm:$0xe]
        %v2391 = vld [vmem:[%s1480 + $0x48] sm:$0xe]
        %v2392 = vld [vmem:[%s1480 + $0x54] sm:$0xe]
        %v2393 = vld [vmem:[%s1480 + $0x60] sm:$0xe]
        %v2394 = vld [vmem:[%s1480 + $0x6c] sm:$0xe]
        %v2395 = vld [vmem:[%s1480 + $0x78] sm:$0xe]
        %v2396 = vld [vmem:[%s1480 + $0x84] sm:$0xe]
        %v2433 = vrot.slane %v2385, 5
        %v2434 = vrot.slane %v2433, 4
        %v2435 = vrot.slane %v1796, 5
        %v2436 = vsel %vm1129, %v2434, %v2435
        %v2437 = vrot.slane %v2435, 4
        %v2438 = vrot.slane %v1797, 5
        %v2439 = vsel %vm1129, %v2437, %v2438
        %v2440 = vrot.slane %v2386, 5
        %v2441 = vrot.slane %v2440, 4
        %v2442 = vrot.slane %v1799, 5
        %v2443 = vsel %vm1129, %v2441, %v2442
        %v2444 = vrot.slane %v2442, 4
        %v2445 = vrot.slane %v1800, 5
        %v2446 = vsel %vm1129, %v2444, %v2445
        %v2447 = vrot.slane %v2387, 5
        %v2448 = vrot.slane %v2447, 4
        %v2449 = vrot.slane %v1802, 5
        %v2450 = vsel %vm1129, %v2448, %v2449
        %v2451 = vrot.slane %v2449, 4
        %v2452 = vrot.slane %v1803, 5
        %v2453 = vsel %vm1129, %v2451, %v2452
        %v2454 = vrot.slane %v2388, 5
        %v2455 = vrot.slane %v2454, 4
        %v2456 = vrot.slane %v1805, 5
        %v2457 = vsel %vm1129, %v2455, %v2456
        %v2458 = vrot.slane %v2456, 4
        %v2459 = vrot.slane %v1806, 5
        %v2460 = vsel %vm1129, %v2458, %v2459
        %v2461 = vrot.slane %v2389, 5
        %v2462 = vrot.slane %v2461, 4
        %v2463 = vrot.slane %v1808, 5
        %v2464 = vsel %vm1129, %v2462, %v2463
        %v2465 = vrot.slane %v2463, 4
        %v2466 = vrot.slane %v1809, 5
        %v2467 = vsel %vm1129, %v2465, %v2466
        %v2468 = vrot.slane %v2390, 5
        %v2469 = vrot.slane %v2468, 4
        %v2470 = vrot.slane %v1811, 5
        %v2471 = vsel %vm1129, %v2469, %v2470
        %v2472 = vrot.slane %v2470, 4
        %v2473 = vrot.slane %v1812, 5
        %v2474 = vsel %vm1129, %v2472, %v2473
        %v2475 = vrot.slane %v2391, 5
        %v2476 = vrot.slane %v2475, 4
        %v2477 = vrot.slane %v1814, 5
        %v2478 = vsel %vm1129, %v2476, %v2477
        %v2479 = vrot.slane %v2477, 4
        %v2480 = vrot.slane %v1815, 5
        %v2481 = vsel %vm1129, %v2479, %v2480
        %v2482 = vrot.slane %v2392, 5
        %v2483 = vrot.slane %v2482, 4
        %v2484 = vrot.slane %v1817, 5
        %v2485 = vsel %vm1129, %v2483, %v2484
        %v2486 = vrot.slane %v2484, 4
        %v2487 = vrot.slane %v1818, 5
        %v2488 = vsel %vm1129, %v2486, %v2487
        %v2489 = vrot.slane %v2393, 5
        %v2490 = vrot.slane %v2489, 4
        %v2491 = vrot.slane %v1820, 5
        %v2492 = vsel %vm1129, %v2490, %v2491
        %v2493 = vrot.slane %v2491, 4
        %v2494 = vrot.slane %v1821, 5
        %v2495 = vsel %vm1129, %v2493, %v2494
        %v2496 = vrot.slane %v2394, 5
        %v2497 = vrot.slane %v2496, 4
        %v2498 = vrot.slane %v1823, 5
        %v2499 = vsel %vm1129, %v2497, %v2498
        %v2500 = vrot.slane %v2498, 4
        %v2501 = vrot.slane %v1824, 5
        %v2502 = vsel %vm1129, %v2500, %v2501
        %v2503 = vrot.slane %v2395, 5
        %v2504 = vrot.slane %v2503, 4
        %v2505 = vrot.slane %v1826, 5
        %v2506 = vsel %vm1129, %v2504, %v2505
        %v2507 = vrot.slane %v2505, 4
        %v2508 = vrot.slane %v1827, 5
        %v2509 = vsel %vm1129, %v2507, %v2508
        %v2510 = vrot.slane %v2396, 5
        %v2511 = vrot.slane %v2510, 4
        %v2512 = vrot.slane %v1829, 5
        %v2513 = vsel %vm1129, %v2511, %v2512
        %v2514 = vrot.slane %v2512, 4
        %v2515 = vrot.slane %v1830, 5
        %v2516 = vsel %vm1129, %v2514, %v2515
        %s2517 = scalar_lea.vmem [#allocation5], 320
        %v2518 = vld [vmem:[%s2517] sm:$0xf]
        %v2519 = vld [vmem:[%s2517 + $0x4] sm:$0xf]
        %v2520 = vld [vmem:[%s2517 + $0x8] sm:$0xf]
        %v2521 = vld [vmem:[%s2517 + $0xc] sm:$0xf]
        %v2522 = vld [vmem:[%s2517 + $0x10] sm:$0xf]
        %v2523 = vld [vmem:[%s2517 + $0x14] sm:$0xf]
        %v2524 = vld [vmem:[%s2517 + $0x18] sm:$0xf]
        %v2525 = vld [vmem:[%s2517 + $0x1c] sm:$0xf]
        %v2526 = vld [vmem:[%s2517 + $0x20] sm:$0xf]
        %v2527 = vld [vmem:[%s2517 + $0x24] sm:$0xf]
        %v2528 = vld [vmem:[%s2517 + $0x28] sm:$0xf]
        %v2529 = vld [vmem:[%s2517 + $0x2c] sm:$0xf]
        %v2530 = vld [vmem:[%s2517 + $0x30] sm:$0xf]
        %v2531 = vld [vmem:[%s2517 + $0x34] sm:$0xf]
        %v2532 = vld [vmem:[%s2517 + $0x38] sm:$0xf]
        %v2533 = vld [vmem:[%s2517 + $0x3c] sm:$0xf]
        %v2534 = vunpack.c.l.b16 %v2436
        %v2535 = vunpack.c.l.b16 %v2439
        %v2536 = vunpack.c.l.b16 %v2443
        %v2537 = vunpack.c.l.b16 %v2446
        %v2538 = vunpack.c.l.b16 %v2450
        %v2539 = vunpack.c.l.b16 %v2453
        %v2540 = vunpack.c.l.b16 %v2457
        %v2541 = vunpack.c.l.b16 %v2460
        %v2542 = vunpack.c.l.b16 %v2464
        %v2543 = vunpack.c.l.b16 %v2467
        %v2544 = vunpack.c.l.b16 %v2471
        %v2545 = vunpack.c.l.b16 %v2474
        %v2546 = vunpack.c.l.b16 %v2478
        %v2547 = vunpack.c.l.b16 %v2481
        %v2548 = vunpack.c.l.b16 %v2485
        %v2549 = vunpack.c.l.b16 %v2488
        %v2550 = vunpack.c.l.b16 %v2492
        %v2551 = vunpack.c.l.b16 %v2495
        %v2552 = vunpack.c.l.b16 %v2499
        %v2553 = vunpack.c.l.b16 %v2502
        %v2554 = vunpack.c.l.b16 %v2506
        %v2555 = vunpack.c.l.b16 %v2509
        %v2556 = vunpack.c.l.b16 %v2513
        %v2557 = vunpack.c.l.b16 %v2516
        %v2558 = vpack.c.b16 %v2535, %v2534
        %v2559 = vpack.c.b16 %v2537, %v2536
        %v2560 = vpack.c.b16 %v2539, %v2538
        %v2561 = vpack.c.b16 %v2541, %v2540
        %v2562 = vpack.c.b16 %v2543, %v2542
        %v2563 = vpack.c.b16 %v2545, %v2544
        %v2564 = vpack.c.b16 %v2547, %v2546
        %v2565 = vpack.c.b16 %v2549, %v2548
        %v2566 = vpack.c.b16 %v2551, %v2550
        %v2567 = vpack.c.b16 %v2553, %v2552
        %v2568 = vpack.c.b16 %v2555, %v2554
        %v2569 = vpack.c.b16 %v2557, %v2556
        %v2598 = vunpack.c.l.b16 %v2518
        %v2599 = vunpack.c.l.b16 %v2519
        %v2600 = vunpack.c.l.b16 %v2520
        %v2601 = vunpack.c.l.b16 %v2521
        %v2602 = vunpack.c.l.b16 %v2522
        %v2603 = vunpack.c.l.b16 %v2523
        %v2604 = vunpack.c.l.b16 %v2524
        %v2605 = vunpack.c.l.b16 %v2525
        %v2606 = vunpack.c.l.b16 %v2526
        %v2607 = vunpack.c.l.b16 %v2527
        %v2608 = vunpack.c.l.b16 %v2528
        %v2609 = vunpack.c.l.b16 %v2529
        %v2610 = vunpack.c.l.b16 %v2530
        %v2611 = vunpack.c.l.b16 %v2531
        %v2612 = vunpack.c.l.b16 %v2532
        %v2613 = vunpack.c.l.b16 %v2533
        %v2614 = vpack.c.b16 %v2599, %v2598
        %v2615 = vpack.c.b16 %v2601, %v2600
        %v2616 = vpack.c.b16 %v2603, %v2602
        %v2617 = vpack.c.b16 %v2605, %v2604
        %v2618 = vpack.c.b16 %v2607, %v2606
        %v2619 = vpack.c.b16 %v2609, %v2608
        %v2620 = vpack.c.b16 %v2611, %v2610
        %v2621 = vpack.c.b16 %v2613, %v2612
        %2630 = vmatprep.subr.bf16.mxu0 0
        %2631 = vmatpush1.bf16.msra.mxu0 %v2614
        %2632 = vmatprep.subr.bf16.mxu0 0
        %2633 = vmatpush1.bf16.msra.mxu0 %v2615
        %2634 = vmatprep.subr.bf16.mxu0 0
        %2635 = vmatpush1.bf16.msra.mxu0 %v2616
        %2636 = vmatprep.subr.bf16.mxu0 0
        %2637 = vmatpush1.bf16.msra.mxu0 %v2617
        %2638 = vmatprep.subr.bf16.mxu0 0
        %2639 = vmatpush1.bf16.msra.mxu0 %v2618
        %2640 = vmatprep.subr.bf16.mxu0 0
        %2641 = vmatpush1.bf16.msra.mxu0 %v2619
        %2642 = vmatprep.subr.bf16.mxu0 0
        %2643 = vmatpush1.bf16.msra.mxu0 %v2620
        %2644 = vmatprep.subr.bf16.mxu0 0
        %2645 = vmatpush1.bf16.msra.mxu0 %v2621
        %2646 = vmatprep.subr.bf16.mxu0 0
        %2647 = vmatpush1.bf16.msra.mxu0 0
        %2648 = vmatprep.subr.bf16.mxu0 0
        %2649 = vmatpush1.bf16.msra.mxu0 0
        %2650 = vmatprep.subr.bf16.mxu0 0
        %2651 = vmatpush1.bf16.msra.mxu0 0
        %2652 = vmatprep.subr.bf16.mxu0 0
        %2653 = vmatpush1.bf16.msra.mxu0 0
        %2654 = vmatprep.subr.bf16.mxu0 0
        %2655 = vmatpush1.bf16.msra.mxu0 0
        %2656 = vmatprep.subr.bf16.mxu0 0
        %2657 = vmatpush1.bf16.msra.mxu0 0
        %2658 = vmatprep.subr.bf16.mxu0 0
        %2659 = vmatpush1.bf16.msra.mxu0 0
        %2660 = vmatprep.subr.bf16.mxu0 0
        %2661 = vmatpush1.bf16.msra.mxu0 0
        %2662 = vmatprep.mubr.bf16.mxu0 0
        %2663 = vmatmul.mubr.bf16.gmra.mrb[0].mxu0 %v2558
        %v2664 = vpop.f32.mrb[0].mxu0
        %v2665 = vadd.f32 0.0, %v2664
        %v2666 = vpop.f32.mrb[0].mxu0
        %v2667 = vpop.f32.mrb[0].mxu0
        %v2668 = vadd.f32 0.0, %v2667
        %v2669 = vpop.f32.mrb[0].mxu0
        %2670 = vmatprep.mubr.bf16.mxu0 0
        %2671 = vmatmul.mubr.bf16.gmra.mrb[0].mxu0 %v2559
        %v2672 = vpop.f32.mrb[0].mxu0
        %v2673 = vadd.f32 0.0, %v2672
        %v2674 = vpop.f32.mrb[0].mxu0
        %v2675 = vpop.f32.mrb[0].mxu0
        %v2676 = vadd.f32 0.0, %v2675
        %v2677 = vpop.f32.mrb[0].mxu0
        %2678 = vmatprep.mubr.bf16.mxu0 0
        %2679 = vmatmul.mubr.bf16.gmra.mrb[0].mxu0 %v2560
        %v2680 = vpop.f32.mrb[0].mxu0
        %v2681 = vadd.f32 0.0, %v2680
        %v2682 = vpop.f32.mrb[0].mxu0
        %v2683 = vpop.f32.mrb[0].mxu0
        %v2684 = vadd.f32 0.0, %v2683
        %v2685 = vpop.f32.mrb[0].mxu0
        %2686 = vmatprep.mubr.bf16.mxu0 0
        %2687 = vmatmul.mubr.bf16.gmra.mrb[0].mxu0 %v2561
        %v2688 = vpop.f32.mrb[0].mxu0
        %v2689 = vadd.f32 0.0, %v2688
        %v2690 = vpop.f32.mrb[0].mxu0
        %v2691 = vpop.f32.mrb[0].mxu0
        %v2692 = vadd.f32 0.0, %v2691
        %v2693 = vpop.f32.mrb[0].mxu0
        %2694 = vmatprep.mubr.bf16.mxu0 0
        %2695 = vmatmul.mubr.bf16.gmra.mrb[0].mxu0 %v2562
        %v2696 = vpop.f32.mrb[0].mxu0
        %v2697 = vadd.f32 0.0, %v2696
        %v2698 = vpop.f32.mrb[0].mxu0
        %v2699 = vpop.f32.mrb[0].mxu0
        %v2700 = vadd.f32 0.0, %v2699
        %v2701 = vpop.f32.mrb[0].mxu0
        %2702 = vmatprep.mubr.bf16.mxu0 0
        %2703 = vmatmul.mubr.bf16.gmra.mrb[0].mxu0 %v2563
        %v2704 = vpop.f32.mrb[0].mxu0
        %v2705 = vadd.f32 0.0, %v2704
        %v2706 = vpop.f32.mrb[0].mxu0
        %v2707 = vpop.f32.mrb[0].mxu0
        %v2708 = vadd.f32 0.0, %v2707
        %v2709 = vpop.f32.mrb[0].mxu0
        %2710 = vmatprep.mubr.bf16.mxu0 0
        %2711 = vmatmul.mubr.bf16.gmra.mrb[0].mxu0 %v2564
        %v2712 = vpop.f32.mrb[0].mxu0
        %v2713 = vadd.f32 0.0, %v2712
        %v2714 = vpop.f32.mrb[0].mxu0
        %v2715 = vpop.f32.mrb[0].mxu0
        %v2716 = vadd.f32 0.0, %v2715
        %v2717 = vpop.f32.mrb[0].mxu0
        %2718 = vmatprep.mubr.bf16.mxu0 0
        %2719 = vmatmul.mubr.bf16.gmra.mrb[0].mxu0 %v2565
        %v2720 = vpop.f32.mrb[0].mxu0
        %v2721 = vadd.f32 0.0, %v2720
        %v2722 = vpop.f32.mrb[0].mxu0
        %v2723 = vpop.f32.mrb[0].mxu0
        %v2724 = vadd.f32 0.0, %v2723
        %v2725 = vpop.f32.mrb[0].mxu0
        %2726 = vmatprep.mubr.bf16.mxu0 0
        %2727 = vmatmul.mubr.bf16.gmra.mrb[0].mxu0 %v2566
        %v2728 = vpop.f32.mrb[0].mxu0
        %v2729 = vadd.f32 0.0, %v2728
        %v2730 = vpop.f32.mrb[0].mxu0
        %v2731 = vpop.f32.mrb[0].mxu0
        %v2732 = vadd.f32 0.0, %v2731
        %v2733 = vpop.f32.mrb[0].mxu0
        %2734 = vmatprep.mubr.bf16.mxu0 0
        %2735 = vmatmul.mubr.bf16.gmra.mrb[0].mxu0 %v2567
        %v2736 = vpop.f32.mrb[0].mxu0
        %v2737 = vadd.f32 0.0, %v2736
        %v2738 = vpop.f32.mrb[0].mxu0
        %v2739 = vpop.f32.mrb[0].mxu0
        %v2740 = vadd.f32 0.0, %v2739
        %v2741 = vpop.f32.mrb[0].mxu0
        %2742 = vmatprep.mubr.bf16.mxu0 0
        %2743 = vmatmul.mubr.bf16.gmra.mrb[0].mxu0 %v2568
        %v2744 = vpop.f32.mrb[0].mxu0
        %v2745 = vadd.f32 0.0, %v2744
        %v2746 = vpop.f32.mrb[0].mxu0
        %v2747 = vpop.f32.mrb[0].mxu0
        %v2748 = vadd.f32 0.0, %v2747
        %v2749 = vpop.f32.mrb[0].mxu0
        %2750 = vmatprep.mubr.bf16.mxu0 0
        %2751 = vmatmul.mubr.bf16.gmra.mrb[0].mxu0 %v2569
        %v2752 = vpop.f32.mrb[0].mxu0
        %v2753 = vadd.f32 0.0, %v2752
        %v2754 = vpop.f32.mrb[0].mxu0
        %v2755 = vpop.f32.mrb[0].mxu0
        %v2756 = vadd.f32 0.0, %v2755
        %v2757 = vpop.f32.mrb[0].mxu0
        %2758 = vdwg.mxu0
        %v2759 = vadd.f32 %v2361, %v2665
        %v2760 = vadd.f32 %v2362, %v2668
        %v2761 = vadd.f32 %v2363, %v2673
        %v2762 = vadd.f32 %v2364, %v2676
        %v2763 = vadd.f32 %v2365, %v2681
        %v2764 = vadd.f32 %v2366, %v2684
        %v2765 = vadd.f32 %v2367, %v2689
        %v2766 = vadd.f32 %v2368, %v2692
        %v2767 = vadd.f32 %v2369, %v2697
        %v2768 = vadd.f32 %v2370, %v2700
        %v2769 = vadd.f32 %v2371, %v2705
        %v2770 = vadd.f32 %v2372, %v2708
        %v2771 = vadd.f32 %v2373, %v2713
        %v2772 = vadd.f32 %v2374, %v2716
        %v2773 = vadd.f32 %v2375, %v2721
        %v2774 = vadd.f32 %v2376, %v2724
        %v2775 = vadd.f32 %v2377, %v2729
        %v2776 = vadd.f32 %v2378, %v2732
        %v2777 = vadd.f32 %v2379, %v2737
        %v2778 = vadd.f32 %v2380, %v2740
        %v2779 = vadd.f32 %v2381, %v2745
        %v2780 = vadd.f32 %v2382, %v2748
        %v2781 = vadd.f32 %v2383, %v2753
        %v2782 = vadd.f32 %v2384, %v2756
        %s2783 = scalar_lea.vmem %s219, 24 [#allocation2]
        %v2784 = vld [vmem:[%s2783] sm:$0xf]
        %v2785 = vld [vmem:[%s2783 + $0x4] sm:$0xf]
        %v2786 = vld [vmem:[%s2783 + $0xc] sm:$0xf]
        %v2787 = vld [vmem:[%s2783 + $0x10] sm:$0xf]
        %v2788 = vld [vmem:[%s2783 + $0x18] sm:$0xf]
        %v2789 = vld [vmem:[%s2783 + $0x1c] sm:$0xf]
        %v2790 = vld [vmem:[%s2783 + $0x24] sm:$0xf]
        %v2791 = vld [vmem:[%s2783 + $0x28] sm:$0xf]
        %v2792 = vld [vmem:[%s2783 + $0x30] sm:$0xf]
        %v2793 = vld [vmem:[%s2783 + $0x34] sm:$0xf]
        %v2794 = vld [vmem:[%s2783 + $0x3c] sm:$0xf]
        %v2795 = vld [vmem:[%s2783 + $0x40] sm:$0xf]
        %v2796 = vld [vmem:[%s2783 + $0x48] sm:$0xf]
        %v2797 = vld [vmem:[%s2783 + $0x4c] sm:$0xf]
        %v2798 = vld [vmem:[%s2783 + $0x54] sm:$0xf]
        %v2799 = vld [vmem:[%s2783 + $0x58] sm:$0xf]
        %v2800 = vld [vmem:[%s2783 + $0x60] sm:$0xf]
        %v2801 = vld [vmem:[%s2783 + $0x64] sm:$0xf]
        %v2802 = vld [vmem:[%s2783 + $0x6c] sm:$0xf]
        %v2803 = vld [vmem:[%s2783 + $0x70] sm:$0xf]
        %v2804 = vld [vmem:[%s2783 + $0x78] sm:$0xf]
        %v2805 = vld [vmem:[%s2783 + $0x7c] sm:$0xf]
        %v2806 = vld [vmem:[%s2783 + $0x84] sm:$0xf]
        %v2807 = vld [vmem:[%s2783 + $0x88] sm:$0xf]
        %s2808 = scalar_lea.vmem [#allocation5], 384
        %v2809 = vld [vmem:[%s2808] sm:$0xf]
        %v2810 = vld [vmem:[%s2808 + $0x4] sm:$0xf]
        %v2811 = vld [vmem:[%s2808 + $0x8] sm:$0xf]
        %v2812 = vld [vmem:[%s2808 + $0xc] sm:$0xf]
        %v2813 = vld [vmem:[%s2808 + $0x10] sm:$0xf]
        %v2814 = vld [vmem:[%s2808 + $0x14] sm:$0xf]
        %v2815 = vld [vmem:[%s2808 + $0x18] sm:$0xf]
        %v2816 = vld [vmem:[%s2808 + $0x1c] sm:$0xf]
        %v2817 = vld [vmem:[%s2808 + $0x20] sm:$0xf]
        %v2818 = vld [vmem:[%s2808 + $0x24] sm:$0xf]
        %v2819 = vld [vmem:[%s2808 + $0x28] sm:$0xf]
        %v2820 = vld [vmem:[%s2808 + $0x2c] sm:$0xf]
        %v2821 = vld [vmem:[%s2808 + $0x30] sm:$0xf]
        %v2822 = vld [vmem:[%s2808 + $0x34] sm:$0xf]
        %v2823 = vld [vmem:[%s2808 + $0x38] sm:$0xf]
        %v2824 = vld [vmem:[%s2808 + $0x3c] sm:$0xf]
        %v2849 = vunpack.c.l.b16 %v2784
        %v2850 = vunpack.c.l.b16 %v2785
        %v2851 = vunpack.c.l.b16 %v2786
        %v2852 = vunpack.c.l.b16 %v2787
        %v2853 = vunpack.c.l.b16 %v2788
        %v2854 = vunpack.c.l.b16 %v2789
        %v2855 = vunpack.c.l.b16 %v2790
        %v2856 = vunpack.c.l.b16 %v2791
        %v2857 = vunpack.c.l.b16 %v2792
        %v2858 = vunpack.c.l.b16 %v2793
        %v2859 = vunpack.c.l.b16 %v2794
        %v2860 = vunpack.c.l.b16 %v2795
        %v2861 = vunpack.c.l.b16 %v2796
        %v2862 = vunpack.c.l.b16 %v2797
        %v2863 = vunpack.c.l.b16 %v2798
        %v2864 = vunpack.c.l.b16 %v2799
        %v2865 = vunpack.c.l.b16 %v2800
        %v2866 = vunpack.c.l.b16 %v2801
        %v2867 = vunpack.c.l.b16 %v2802
        %v2868 = vunpack.c.l.b16 %v2803
        %v2869 = vunpack.c.l.b16 %v2804
        %v2870 = vunpack.c.l.b16 %v2805
        %v2871 = vunpack.c.l.b16 %v2806
        %v2872 = vunpack.c.l.b16 %v2807
        %v2873 = vpack.c.b16 %v2850, %v2849
        %v2874 = vpack.c.b16 %v2852, %v2851
        %v2875 = vpack.c.b16 %v2854, %v2853
        %v2876 = vpack.c.b16 %v2856, %v2855
        %v2877 = vpack.c.b16 %v2858, %v2857
        %v2878 = vpack.c.b16 %v2860, %v2859
        %v2879 = vpack.c.b16 %v2862, %v2861
        %v2880 = vpack.c.b16 %v2864, %v2863
        %v2881 = vpack.c.b16 %v2866, %v2865
        %v2882 = vpack.c.b16 %v2868, %v2867
        %v2883 = vpack.c.b16 %v2870, %v2869
        %v2884 = vpack.c.b16 %v2872, %v2871
        %v2913 = vunpack.c.l.b16 %v2809
        %v2914 = vunpack.c.l.b16 %v2810
        %v2915 = vunpack.c.l.b16 %v2811
        %v2916 = vunpack.c.l.b16 %v2812
        %v2917 = vunpack.c.l.b16 %v2813
        %v2918 = vunpack.c.l.b16 %v2814
        %v2919 = vunpack.c.l.b16 %v2815
        %v2920 = vunpack.c.l.b16 %v2816
        %v2921 = vunpack.c.l.b16 %v2817
        %v2922 = vunpack.c.l.b16 %v2818
        %v2923 = vunpack.c.l.b16 %v2819
        %v2924 = vunpack.c.l.b16 %v2820
        %v2925 = vunpack.c.l.b16 %v2821
        %v2926 = vunpack.c.l.b16 %v2822
        %v2927 = vunpack.c.l.b16 %v2823
        %v2928 = vunpack.c.l.b16 %v2824
        %v2929 = vpack.c.b16 %v2914, %v2913
        %v2930 = vpack.c.b16 %v2916, %v2915
        %v2931 = vpack.c.b16 %v2918, %v2917
        %v2932 = vpack.c.b16 %v2920, %v2919
        %v2933 = vpack.c.b16 %v2922, %v2921
        %v2934 = vpack.c.b16 %v2924, %v2923
        %v2935 = vpack.c.b16 %v2926, %v2925
        %v2936 = vpack.c.b16 %v2928, %v2927
        %2945 = vmatprep.subr.bf16.mxu0 0
        %2946 = vmatpush1.bf16.msra.mxu0 %v2929
        %2947 = vmatprep.subr.bf16.mxu0 0
        %2948 = vmatpush1.bf16.msra.mxu0 %v2930
        %2949 = vmatprep.subr.bf16.mxu0 0
        %2950 = vmatpush1.bf16.msra.mxu0 %v2931
        %2951 = vmatprep.subr.bf16.mxu0 0
        %2952 = vmatpush1.bf16.msra.mxu0 %v2932
        %2953 = vmatprep.subr.bf16.mxu0 0
        %2954 = vmatpush1.bf16.msra.mxu0 %v2933
        %2955 = vmatprep.subr.bf16.mxu0 0
        %2956 = vmatpush1.bf16.msra.mxu0 %v2934
        %2957 = vmatprep.subr.bf16.mxu0 0
        %2958 = vmatpush1.bf16.msra.mxu0 %v2935
        %2959 = vmatprep.subr.bf16.mxu0 0
        %2960 = vmatpush1.bf16.msra.mxu0 %v2936
        %2961 = vmatprep.subr.bf16.mxu0 0
        %2962 = vmatpush1.bf16.msra.mxu0 0
        %2963 = vmatprep.subr.bf16.mxu0 0
        %2964 = vmatpush1.bf16.msra.mxu0 0
        %2965 = vmatprep.subr.bf16.mxu0 0
        %2966 = vmatpush1.bf16.msra.mxu0 0
        %2967 = vmatprep.subr.bf16.mxu0 0
        %2968 = vmatpush1.bf16.msra.mxu0 0
        %2969 = vmatprep.subr.bf16.mxu0 0
        %2970 = vmatpush1.bf16.msra.mxu0 0
        %2971 = vmatprep.subr.bf16.mxu0 0
        %2972 = vmatpush1.bf16.msra.mxu0 0
        %2973 = vmatprep.subr.bf16.mxu0 0
        %2974 = vmatpush1.bf16.msra.mxu0 0
        %2975 = vmatprep.subr.bf16.mxu0 0
        %2976 = vmatpush1.bf16.msra.mxu0 0
        %2977 = vmatprep.mubr.bf16.mxu0 0
        %2978 = vmatmul.mubr.bf16.gmra.mrb[0].mxu0 %v2873
        %v2979 = vpop.f32.mrb[0].mxu0
        %v2980 = vadd.f32 0.0, %v2979
        %v2981 = vpop.f32.mrb[0].mxu0
        %v2982 = vpop.f32.mrb[0].mxu0
        %v2983 = vadd.f32 0.0, %v2982
        %v2984 = vpop.f32.mrb[0].mxu0
        %2985 = vmatprep.mubr.bf16.mxu0 0
        %2986 = vmatmul.mubr.bf16.gmra.mrb[0].mxu0 %v2874
        %v2987 = vpop.f32.mrb[0].mxu0
        %v2988 = vadd.f32 0.0, %v2987
        %v2989 = vpop.f32.mrb[0].mxu0
        %v2990 = vpop.f32.mrb[0].mxu0
        %v2991 = vadd.f32 0.0, %v2990
        %v2992 = vpop.f32.mrb[0].mxu0
        %2993 = vmatprep.mubr.bf16.mxu0 0
        %2994 = vmatmul.mubr.bf16.gmra.mrb[0].mxu0 %v2875
        %v2995 = vpop.f32.mrb[0].mxu0
        %v2996 = vadd.f32 0.0, %v2995
        %v2997 = vpop.f32.mrb[0].mxu0
        %v2998 = vpop.f32.mrb[0].mxu0
        %v2999 = vadd.f32 0.0, %v2998
        %v3000 = vpop.f32.mrb[0].mxu0
        %3001 = vmatprep.mubr.bf16.mxu0 0
        %3002 = vmatmul.mubr.bf16.gmra.mrb[0].mxu0 %v2876
        %v3003 = vpop.f32.mrb[0].mxu0
        %v3004 = vadd.f32 0.0, %v3003
        %v3005 = vpop.f32.mrb[0].mxu0
        %v3006 = vpop.f32.mrb[0].mxu0
        %v3007 = vadd.f32 0.0, %v3006
        %v3008 = vpop.f32.mrb[0].mxu0
        %3009 = vmatprep.mubr.bf16.mxu0 0
        %3010 = vmatmul.mubr.bf16.gmra.mrb[0].mxu0 %v2877
        %v3011 = vpop.f32.mrb[0].mxu0
        %v3012 = vadd.f32 0.0, %v3011
        %v3013 = vpop.f32.mrb[0].mxu0
        %v3014 = vpop.f32.mrb[0].mxu0
        %v3015 = vadd.f32 0.0, %v3014
        %v3016 = vpop.f32.mrb[0].mxu0
        %3017 = vmatprep.mubr.bf16.mxu0 0
        %3018 = vmatmul.mubr.bf16.gmra.mrb[0].mxu0 %v2878
        %v3019 = vpop.f32.mrb[0].mxu0
        %v3020 = vadd.f32 0.0, %v3019
        %v3021 = vpop.f32.mrb[0].mxu0
        %v3022 = vpop.f32.mrb[0].mxu0
        %v3023 = vadd.f32 0.0, %v3022
        %v3024 = vpop.f32.mrb[0].mxu0
        %3025 = vmatprep.mubr.bf16.mxu0 0
        %3026 = vmatmul.mubr.bf16.gmra.mrb[0].mxu0 %v2879
        %v3027 = vpop.f32.mrb[0].mxu0
        %v3028 = vadd.f32 0.0, %v3027
        %v3029 = vpop.f32.mrb[0].mxu0
        %v3030 = vpop.f32.mrb[0].mxu0
        %v3031 = vadd.f32 0.0, %v3030
        %v3032 = vpop.f32.mrb[0].mxu0
        %3033 = vmatprep.mubr.bf16.mxu0 0
        %3034 = vmatmul.mubr.bf16.gmra.mrb[0].mxu0 %v2880
        %v3035 = vpop.f32.mrb[0].mxu0
        %v3036 = vadd.f32 0.0, %v3035
        %v3037 = vpop.f32.mrb[0].mxu0
        %v3038 = vpop.f32.mrb[0].mxu0
        %v3039 = vadd.f32 0.0, %v3038
        %v3040 = vpop.f32.mrb[0].mxu0
        %3041 = vmatprep.mubr.bf16.mxu0 0
        %3042 = vmatmul.mubr.bf16.gmra.mrb[0].mxu0 %v2881
        %v3043 = vpop.f32.mrb[0].mxu0
        %v3044 = vadd.f32 0.0, %v3043
        %v3045 = vpop.f32.mrb[0].mxu0
        %v3046 = vpop.f32.mrb[0].mxu0
        %v3047 = vadd.f32 0.0, %v3046
        %v3048 = vpop.f32.mrb[0].mxu0
        %3049 = vmatprep.mubr.bf16.mxu0 0
        %3050 = vmatmul.mubr.bf16.gmra.mrb[0].mxu0 %v2882
        %v3051 = vpop.f32.mrb[0].mxu0
        %v3052 = vadd.f32 0.0, %v3051
        %v3053 = vpop.f32.mrb[0].mxu0
        %v3054 = vpop.f32.mrb[0].mxu0
        %v3055 = vadd.f32 0.0, %v3054
        %v3056 = vpop.f32.mrb[0].mxu0
        %3057 = vmatprep.mubr.bf16.mxu0 0
        %3058 = vmatmul.mubr.bf16.gmra.mrb[0].mxu0 %v2883
        %v3059 = vpop.f32.mrb[0].mxu0
        %v3060 = vadd.f32 0.0, %v3059
        %v3061 = vpop.f32.mrb[0].mxu0
        %v3062 = vpop.f32.mrb[0].mxu0
        %v3063 = vadd.f32 0.0, %v3062
        %v3064 = vpop.f32.mrb[0].mxu0
        %3065 = vmatprep.mubr.bf16.mxu0 0
        %3066 = vmatmul.mubr.bf16.gmra.mrb[0].mxu0 %v2884
        %v3067 = vpop.f32.mrb[0].mxu0
        %v3068 = vadd.f32 0.0, %v3067
        %v3069 = vpop.f32.mrb[0].mxu0
        %v3070 = vpop.f32.mrb[0].mxu0
        %v3071 = vadd.f32 0.0, %v3070
        %v3072 = vpop.f32.mrb[0].mxu0
        %3073 = vdwg.mxu0
        %v3074 = vadd.f32 %v2759, %v2980
        %v3075 = vadd.f32 %v2760, %v2983
        %v3076 = vadd.f32 %v2761, %v2988
        %v3077 = vadd.f32 %v2762, %v2991
        %v3078 = vadd.f32 %v2763, %v2996
        %v3079 = vadd.f32 %v2764, %v2999
        %v3080 = vadd.f32 %v2765, %v3004
        %v3081 = vadd.f32 %v2766, %v3007
        %v3082 = vadd.f32 %v2767, %v3012
        %v3083 = vadd.f32 %v2768, %v3015
        %v3084 = vadd.f32 %v2769, %v3020
        %v3085 = vadd.f32 %v2770, %v3023
        %v3086 = vadd.f32 %v2771, %v3028
        %v3087 = vadd.f32 %v2772, %v3031
        %v3088 = vadd.f32 %v2773, %v3036
        %v3089 = vadd.f32 %v2774, %v3039
        %v3090 = vadd.f32 %v2775, %v3044
        %v3091 = vadd.f32 %v2776, %v3047
        %v3092 = vadd.f32 %v2777, %v3052
        %v3093 = vadd.f32 %v2778, %v3055
        %v3094 = vadd.f32 %v2779, %v3060
        %v3095 = vadd.f32 %v2780, %v3063
        %v3096 = vadd.f32 %v2781, %v3068
        %v3097 = vadd.f32 %v2782, %v3071
        %v3098 = vld [vmem:[%s2783] sm:$0xf]
        %v3099 = vld [vmem:[%s2783 + $0x4] sm:$0xf]
        %v3100 = vld [vmem:[%s2783 + $0x8] sm:$0x1]
        %v3101 = vld [vmem:[%s2783 + $0xc] sm:$0xf]
        %v3102 = vld [vmem:[%s2783 + $0x10] sm:$0xf]
        %v3103 = vld [vmem:[%s2783 + $0x14] sm:$0x1]
        %v3104 = vld [vmem:[%s2783 + $0x18] sm:$0xf]
        %v3105 = vld [vmem:[%s2783 + $0x1c] sm:$0xf]
        %v3106 = vld [vmem:[%s2783 + $0x20] sm:$0x1]
        %v3107 = vld [vmem:[%s2783 + $0x24] sm:$0xf]
        %v3108 = vld [vmem:[%s2783 + $0x28] sm:$0xf]
        %v3109 = vld [vmem:[%s2783 + $0x2c] sm:$0x1]
        %v3110 = vld [vmem:[%s2783 + $0x30] sm:$0xf]
        %v3111 = vld [vmem:[%s2783 + $0x34] sm:$0xf]
        %v3112 = vld [vmem:[%s2783 + $0x38] sm:$0x1]
        %v3113 = vld [vmem:[%s2783 + $0x3c] sm:$0xf]
        %v3114 = vld [vmem:[%s2783 + $0x40] sm:$0xf]
        %v3115 = vld [vmem:[%s2783 + $0x44] sm:$0x1]
        %v3116 = vld [vmem:[%s2783 + $0x48] sm:$0xf]
        %v3117 = vld [vmem:[%s2783 + $0x4c] sm:$0xf]
        %v3118 = vld [vmem:[%s2783 + $0x50] sm:$0x1]
        %v3119 = vld [vmem:[%s2783 + $0x54] sm:$0xf]
        %v3120 = vld [vmem:[%s2783 + $0x58] sm:$0xf]
        %v3121 = vld [vmem:[%s2783 + $0x5c] sm:$0x1]
        %v3122 = vld [vmem:[%s2783 + $0x60] sm:$0xf]
        %v3123 = vld [vmem:[%s2783 + $0x64] sm:$0xf]
        %v3124 = vld [vmem:[%s2783 + $0x68] sm:$0x1]
        %v3125 = vld [vmem:[%s2783 + $0x6c] sm:$0xf]
        %v3126 = vld [vmem:[%s2783 + $0x70] sm:$0xf]
        %v3127 = vld [vmem:[%s2783 + $0x74] sm:$0x1]
        %v3128 = vld [vmem:[%s2783 + $0x78] sm:$0xf]
        %v3129 = vld [vmem:[%s2783 + $0x7c] sm:$0xf]
        %v3130 = vld [vmem:[%s2783 + $0x80] sm:$0x1]
        %v3131 = vld [vmem:[%s2783 + $0x84] sm:$0xf]
        %v3132 = vld [vmem:[%s2783 + $0x88] sm:$0xf]
        %v3133 = vld [vmem:[%s2783 + $0x8c] sm:$0x1]
        %v3135 = vshrl.u32 %v3098, 16
        %v3137 = vrot.slane %v3135, 4
        %v3138 = vshll.u32 %v3098, 16
        %v3140 = vrot.slane %v3138, 5
        %v3141 = vor.u32 %v3137, %v3140
        %v3142 = vrot.slane %v3141, 4
        %v3144 = vshll.u32 %v3099, 16
        %v3146 = vrot.slane %v3144, 5
        %v3147 = vsel %vm311, %v3142, %v3146
        %v3148 = vshrl.u32 %v3099, 16
        %v3150 = vrot.slane %v3148, 4
        %v3151 = vor.u32 %v3150, %v3146
        %v3152 = vrot.slane %v3151, 4
        %v3154 = vshll.u32 %v3100, 16
        %v3156 = vrot.slane %v3154, 5
        %v3157 = vsel %vm311, %v3152, %v3156
        %v3159 = vshrl.u32 %v3101, 16
        %v3161 = vrot.slane %v3159, 4
        %v3162 = vshll.u32 %v3101, 16
        %v3164 = vrot.slane %v3162, 5
        %v3165 = vor.u32 %v3161, %v3164
        %v3166 = vrot.slane %v3165, 4
        %v3168 = vshll.u32 %v3102, 16
        %v3170 = vrot.slane %v3168, 5
        %v3171 = vsel %vm311, %v3166, %v3170
        %v3172 = vshrl.u32 %v3102, 16
        %v3174 = vrot.slane %v3172, 4
        %v3175 = vor.u32 %v3174, %v3170
        %v3176 = vrot.slane %v3175, 4
        %v3178 = vshll.u32 %v3103, 16
        %v3180 = vrot.slane %v3178, 5
        %v3181 = vsel %vm311, %v3176, %v3180
        %v3183 = vshrl.u32 %v3104, 16
        %v3185 = vrot.slane %v3183, 4
        %v3186 = vshll.u32 %v3104, 16
        %v3188 = vrot.slane %v3186, 5
        %v3189 = vor.u32 %v3185, %v3188
        %v3190 = vrot.slane %v3189, 4
        %v3192 = vshll.u32 %v3105, 16
        %v3194 = vrot.slane %v3192, 5
        %v3195 = vsel %vm311, %v3190, %v3194
        %v3196 = vshrl.u32 %v3105, 16
        %v3198 = vrot.slane %v3196, 4
        %v3199 = vor.u32 %v3198, %v3194
        %v3200 = vrot.slane %v3199, 4
        %v3202 = vshll.u32 %v3106, 16
        %v3204 = vrot.slane %v3202, 5
        %v3205 = vsel %vm311, %v3200, %v3204
        %v3207 = vshrl.u32 %v3107, 16
        %v3209 = vrot.slane %v3207, 4
        %v3210 = vshll.u32 %v3107, 16
        %v3212 = vrot.slane %v3210, 5
        %v3213 = vor.u32 %v3209, %v3212
        %v3214 = vrot.slane %v3213, 4
        %v3216 = vshll.u32 %v3108, 16
        %v3218 = vrot.slane %v3216, 5
        %v3219 = vsel %vm311, %v3214, %v3218
        %v3220 = vshrl.u32 %v3108, 16
        %v3222 = vrot.slane %v3220, 4
        %v3223 = vor.u32 %v3222, %v3218
        %v3224 = vrot.slane %v3223, 4
        %v3226 = vshll.u32 %v3109, 16
        %v3228 = vrot.slane %v3226, 5
        %v3229 = vsel %vm311, %v3224, %v3228
        %v3231 = vshrl.u32 %v3110, 16
        %v3233 = vrot.slane %v3231, 4
        %v3234 = vshll.u32 %v3110, 16
        %v3236 = vrot.slane %v3234, 5
        %v3237 = vor.u32 %v3233, %v3236
        %v3238 = vrot.slane %v3237, 4
        %v3240 = vshll.u32 %v3111, 16
        %v3242 = vrot.slane %v3240, 5
        %v3243 = vsel %vm311, %v3238, %v3242
        %v3244 = vshrl.u32 %v3111, 16
        %v3246 = vrot.slane %v3244, 4
        %v3247 = vor.u32 %v3246, %v3242
        %v3248 = vrot.slane %v3247, 4
        %v3250 = vshll.u32 %v3112, 16
        %v3252 = vrot.slane %v3250, 5
        %v3253 = vsel %vm311, %v3248, %v3252
        %v3255 = vshrl.u32 %v3113, 16
        %v3257 = vrot.slane %v3255, 4
        %v3258 = vshll.u32 %v3113, 16
        %v3260 = vrot.slane %v3258, 5
        %v3261 = vor.u32 %v3257, %v3260
        %v3262 = vrot.slane %v3261, 4
        %v3264 = vshll.u32 %v3114, 16
        %v3266 = vrot.slane %v3264, 5
        %v3267 = vsel %vm311, %v3262, %v3266
        %v3268 = vshrl.u32 %v3114, 16
        %v3270 = vrot.slane %v3268, 4
        %v3271 = vor.u32 %v3270, %v3266
        %v3272 = vrot.slane %v3271, 4
        %v3274 = vshll.u32 %v3115, 16
        %v3276 = vrot.slane %v3274, 5
        %v3277 = vsel %vm311, %v3272, %v3276
        %v3279 = vshrl.u32 %v3116, 16
        %v3281 = vrot.slane %v3279, 4
        %v3282 = vshll.u32 %v3116, 16
        %v3284 = vrot.slane %v3282, 5
        %v3285 = vor.u32 %v3281, %v3284
        %v3286 = vrot.slane %v3285, 4
        %v3288 = vshll.u32 %v3117, 16
        %v3290 = vrot.slane %v3288, 5
        %v3291 = vsel %vm311, %v3286, %v3290
        %v3292 = vshrl.u32 %v3117, 16
        %v3294 = vrot.slane %v3292, 4
        %v3295 = vor.u32 %v3294, %v3290
        %v3296 = vrot.slane %v3295, 4
        %v3298 = vshll.u32 %v3118, 16
        %v3300 = vrot.slane %v3298, 5
        %v3301 = vsel %vm311, %v3296, %v3300
        %v3303 = vshrl.u32 %v3119, 16
        %v3305 = vrot.slane %v3303, 4
        %v3306 = vshll.u32 %v3119, 16
        %v3308 = vrot.slane %v3306, 5
        %v3309 = vor.u32 %v3305, %v3308
        %v3310 = vrot.slane %v3309, 4
        %v3312 = vshll.u32 %v3120, 16
        %v3314 = vrot.slane %v3312, 5
        %v3315 = vsel %vm311, %v3310, %v3314
        %v3316 = vshrl.u32 %v3120, 16
        %v3318 = vrot.slane %v3316, 4
        %v3319 = vor.u32 %v3318, %v3314
        %v3320 = vrot.slane %v3319, 4
        %v3322 = vshll.u32 %v3121, 16
        %v3324 = vrot.slane %v3322, 5
        %v3325 = vsel %vm311, %v3320, %v3324
        %v3327 = vshrl.u32 %v3122, 16
        %v3329 = vrot.slane %v3327, 4
        %v3330 = vshll.u32 %v3122, 16
        %v3332 = vrot.slane %v3330, 5
        %v3333 = vor.u32 %v3329, %v3332
        %v3334 = vrot.slane %v3333, 4
        %v3336 = vshll.u32 %v3123, 16
        %v3338 = vrot.slane %v3336, 5
        %v3339 = vsel %vm311, %v3334, %v3338
        %v3340 = vshrl.u32 %v3123, 16
        %v3342 = vrot.slane %v3340, 4
        %v3343 = vor.u32 %v3342, %v3338
        %v3344 = vrot.slane %v3343, 4
        %v3346 = vshll.u32 %v3124, 16
        %v3348 = vrot.slane %v3346, 5
        %v3349 = vsel %vm311, %v3344, %v3348
        %v3351 = vshrl.u32 %v3125, 16
        %v3353 = vrot.slane %v3351, 4
        %v3354 = vshll.u32 %v3125, 16
        %v3356 = vrot.slane %v3354, 5
        %v3357 = vor.u32 %v3353, %v3356
        %v3358 = vrot.slane %v3357, 4
        %v3360 = vshll.u32 %v3126, 16
        %v3362 = vrot.slane %v3360, 5
        %v3363 = vsel %vm311, %v3358, %v3362
        %v3364 = vshrl.u32 %v3126, 16
        %v3366 = vrot.slane %v3364, 4
        %v3367 = vor.u32 %v3366, %v3362
        %v3368 = vrot.slane %v3367, 4
        %v3370 = vshll.u32 %v3127, 16
        %v3372 = vrot.slane %v3370, 5
        %v3373 = vsel %vm311, %v3368, %v3372
        %v3375 = vshrl.u32 %v3128, 16
        %v3377 = vrot.slane %v3375, 4
        %v3378 = vshll.u32 %v3128, 16
        %v3380 = vrot.slane %v3378, 5
        %v3381 = vor.u32 %v3377, %v3380
        %v3382 = vrot.slane %v3381, 4
        %v3384 = vshll.u32 %v3129, 16
        %v3386 = vrot.slane %v3384, 5
        %v3387 = vsel %vm311, %v3382, %v3386
        %v3388 = vshrl.u32 %v3129, 16
        %v3390 = vrot.slane %v3388, 4
        %v3391 = vor.u32 %v3390, %v3386
        %v3392 = vrot.slane %v3391, 4
        %v3394 = vshll.u32 %v3130, 16
        %v3396 = vrot.slane %v3394, 5
        %v3397 = vsel %vm311, %v3392, %v3396
        %v3399 = vshrl.u32 %v3131, 16
        %v3401 = vrot.slane %v3399, 4
        %v3402 = vshll.u32 %v3131, 16
        %v3404 = vrot.slane %v3402, 5
        %v3405 = vor.u32 %v3401, %v3404
        %v3406 = vrot.slane %v3405, 4
        %v3408 = vshll.u32 %v3132, 16
        %v3410 = vrot.slane %v3408, 5
        %v3411 = vsel %vm311, %v3406, %v3410
        %v3412 = vshrl.u32 %v3132, 16
        %v3414 = vrot.slane %v3412, 4
        %v3415 = vor.u32 %v3414, %v3410
        %v3416 = vrot.slane %v3415, 4
        %v3418 = vshll.u32 %v3133, 16
        %v3420 = vrot.slane %v3418, 5
        %v3421 = vsel %vm311, %v3416, %v3420
        %s3422 = scalar_lea.vmem [#allocation5], 448
        %v3423 = vld [vmem:[%s3422] sm:$0xf]
        %v3424 = vld [vmem:[%s3422 + $0x4] sm:$0xf]
        %v3425 = vld [vmem:[%s3422 + $0x8] sm:$0xf]
        %v3426 = vld [vmem:[%s3422 + $0xc] sm:$0xf]
        %v3427 = vld [vmem:[%s3422 + $0x10] sm:$0xf]
        %v3428 = vld [vmem:[%s3422 + $0x14] sm:$0xf]
        %v3429 = vld [vmem:[%s3422 + $0x18] sm:$0xf]
        %v3430 = vld [vmem:[%s3422 + $0x1c] sm:$0xf]
        %v3431 = vld [vmem:[%s3422 + $0x20] sm:$0xf]
        %v3432 = vld [vmem:[%s3422 + $0x24] sm:$0xf]
        %v3433 = vld [vmem:[%s3422 + $0x28] sm:$0xf]
        %v3434 = vld [vmem:[%s3422 + $0x2c] sm:$0xf]
        %v3435 = vld [vmem:[%s3422 + $0x30] sm:$0xf]
        %v3436 = vld [vmem:[%s3422 + $0x34] sm:$0xf]
        %v3437 = vld [vmem:[%s3422 + $0x38] sm:$0xf]
        %v3438 = vld [vmem:[%s3422 + $0x3c] sm:$0xf]
        %v3439 = vunpack.c.l.b16 %v3147
        %v3440 = vunpack.c.l.b16 %v3157
        %v3441 = vunpack.c.l.b16 %v3171
        %v3442 = vunpack.c.l.b16 %v3181
        %v3443 = vunpack.c.l.b16 %v3195
        %v3444 = vunpack.c.l.b16 %v3205
        %v3445 = vunpack.c.l.b16 %v3219
        %v3446 = vunpack.c.l.b16 %v3229
        %v3447 = vunpack.c.l.b16 %v3243
        %v3448 = vunpack.c.l.b16 %v3253
        %v3449 = vunpack.c.l.b16 %v3267
        %v3450 = vunpack.c.l.b16 %v3277
        %v3451 = vunpack.c.l.b16 %v3291
        %v3452 = vunpack.c.l.b16 %v3301
        %v3453 = vunpack.c.l.b16 %v3315
        %v3454 = vunpack.c.l.b16 %v3325
        %v3455 = vunpack.c.l.b16 %v3339
        %v3456 = vunpack.c.l.b16 %v3349
        %v3457 = vunpack.c.l.b16 %v3363
        %v3458 = vunpack.c.l.b16 %v3373
        %v3459 = vunpack.c.l.b16 %v3387
        %v3460 = vunpack.c.l.b16 %v3397
        %v3461 = vunpack.c.l.b16 %v3411
        %v3462 = vunpack.c.l.b16 %v3421
        %v3463 = vpack.c.b16 %v3440, %v3439
        %v3464 = vpack.c.b16 %v3442, %v3441
        %v3465 = vpack.c.b16 %v3444, %v3443
        %v3466 = vpack.c.b16 %v3446, %v3445
        %v3467 = vpack.c.b16 %v3448, %v3447
        %v3468 = vpack.c.b16 %v3450, %v3449
        %v3469 = vpack.c.b16 %v3452, %v3451
        %v3470 = vpack.c.b16 %v3454, %v3453
        %v3471 = vpack.c.b16 %v3456, %v3455
        %v3472 = vpack.c.b16 %v3458, %v3457
        %v3473 = vpack.c.b16 %v3460, %v3459
        %v3474 = vpack.c.b16 %v3462, %v3461
        %v3503 = vunpack.c.l.b16 %v3423
        %v3504 = vunpack.c.l.b16 %v3424
        %v3505 = vunpack.c.l.b16 %v3425
        %v3506 = vunpack.c.l.b16 %v3426
        %v3507 = vunpack.c.l.b16 %v3427
        %v3508 = vunpack.c.l.b16 %v3428
        %v3509 = vunpack.c.l.b16 %v3429
        %v3510 = vunpack.c.l.b16 %v3430
        %v3511 = vunpack.c.l.b16 %v3431
        %v3512 = vunpack.c.l.b16 %v3432
        %v3513 = vunpack.c.l.b16 %v3433
        %v3514 = vunpack.c.l.b16 %v3434
        %v3515 = vunpack.c.l.b16 %v3435
        %v3516 = vunpack.c.l.b16 %v3436
        %v3517 = vunpack.c.l.b16 %v3437
        %v3518 = vunpack.c.l.b16 %v3438
        %v3519 = vpack.c.b16 %v3504, %v3503
        %v3520 = vpack.c.b16 %v3506, %v3505
        %v3521 = vpack.c.b16 %v3508, %v3507
        %v3522 = vpack.c.b16 %v3510, %v3509
        %v3523 = vpack.c.b16 %v3512, %v3511
        %v3524 = vpack.c.b16 %v3514, %v3513
        %v3525 = vpack.c.b16 %v3516, %v3515
        %v3526 = vpack.c.b16 %v3518, %v3517
        %3535 = vmatprep.subr.bf16.mxu0 0
        %3536 = vmatpush1.bf16.msra.mxu0 %v3519
        %3537 = vmatprep.subr.bf16.mxu0 0
        %3538 = vmatpush1.bf16.msra.mxu0 %v3520
        %3539 = vmatprep.subr.bf16.mxu0 0
        %3540 = vmatpush1.bf16.msra.mxu0 %v3521
        %3541 = vmatprep.subr.bf16.mxu0 0
        %3542 = vmatpush1.bf16.msra.mxu0 %v3522
        %3543 = vmatprep.subr.bf16.mxu0 0
        %3544 = vmatpush1.bf16.msra.mxu0 %v3523
        %3545 = vmatprep.subr.bf16.mxu0 0
        %3546 = vmatpush1.bf16.msra.mxu0 %v3524
        %3547 = vmatprep.subr.bf16.mxu0 0
        %3548 = vmatpush1.bf16.msra.mxu0 %v3525
        %3549 = vmatprep.subr.bf16.mxu0 0
        %3550 = vmatpush1.bf16.msra.mxu0 %v3526
        %3551 = vmatprep.subr.bf16.mxu0 0
        %3552 = vmatpush1.bf16.msra.mxu0 0
        %3553 = vmatprep.subr.bf16.mxu0 0
        %3554 = vmatpush1.bf16.msra.mxu0 0
        %3555 = vmatprep.subr.bf16.mxu0 0
        %3556 = vmatpush1.bf16.msra.mxu0 0
        %3557 = vmatprep.subr.bf16.mxu0 0
        %3558 = vmatpush1.bf16.msra.mxu0 0
        %3559 = vmatprep.subr.bf16.mxu0 0
        %3560 = vmatpush1.bf16.msra.mxu0 0
        %3561 = vmatprep.subr.bf16.mxu0 0
        %3562 = vmatpush1.bf16.msra.mxu0 0
        %3563 = vmatprep.subr.bf16.mxu0 0
        %3564 = vmatpush1.bf16.msra.mxu0 0
        %3565 = vmatprep.subr.bf16.mxu0 0
        %3566 = vmatpush1.bf16.msra.mxu0 0
        %3567 = vmatprep.mubr.bf16.mxu0 0
        %3568 = vmatmul.mubr.bf16.gmra.mrb[0].mxu0 %v3463
        %v3569 = vpop.f32.mrb[0].mxu0
        %v3570 = vadd.f32 0.0, %v3569
        %v3571 = vpop.f32.mrb[0].mxu0
        %v3572 = vpop.f32.mrb[0].mxu0
        %v3573 = vadd.f32 0.0, %v3572
        %v3574 = vpop.f32.mrb[0].mxu0
        %3575 = vmatprep.mubr.bf16.mxu0 0
        %3576 = vmatmul.mubr.bf16.gmra.mrb[0].mxu0 %v3464
        %v3577 = vpop.f32.mrb[0].mxu0
        %v3578 = vadd.f32 0.0, %v3577
        %v3579 = vpop.f32.mrb[0].mxu0
        %v3580 = vpop.f32.mrb[0].mxu0
        %v3581 = vadd.f32 0.0, %v3580
        %v3582 = vpop.f32.mrb[0].mxu0
        %3583 = vmatprep.mubr.bf16.mxu0 0
        %3584 = vmatmul.mubr.bf16.gmra.mrb[0].mxu0 %v3465
        %v3585 = vpop.f32.mrb[0].mxu0
        %v3586 = vadd.f32 0.0, %v3585
        %v3587 = vpop.f32.mrb[0].mxu0
        %v3588 = vpop.f32.mrb[0].mxu0
        %v3589 = vadd.f32 0.0, %v3588
        %v3590 = vpop.f32.mrb[0].mxu0
        %3591 = vmatprep.mubr.bf16.mxu0 0
        %3592 = vmatmul.mubr.bf16.gmra.mrb[0].mxu0 %v3466
        %v3593 = vpop.f32.mrb[0].mxu0
        %v3594 = vadd.f32 0.0, %v3593
        %v3595 = vpop.f32.mrb[0].mxu0
        %v3596 = vpop.f32.mrb[0].mxu0
        %v3597 = vadd.f32 0.0, %v3596
        %v3598 = vpop.f32.mrb[0].mxu0
        %3599 = vmatprep.mubr.bf16.mxu0 0
        %3600 = vmatmul.mubr.bf16.gmra.mrb[0].mxu0 %v3467
        %v3601 = vpop.f32.mrb[0].mxu0
        %v3602 = vadd.f32 0.0, %v3601
        %v3603 = vpop.f32.mrb[0].mxu0
        %v3604 = vpop.f32.mrb[0].mxu0
        %v3605 = vadd.f32 0.0, %v3604
        %v3606 = vpop.f32.mrb[0].mxu0
        %3607 = vmatprep.mubr.bf16.mxu0 0
        %3608 = vmatmul.mubr.bf16.gmra.mrb[0].mxu0 %v3468
        %v3609 = vpop.f32.mrb[0].mxu0
        %v3610 = vadd.f32 0.0, %v3609
        %v3611 = vpop.f32.mrb[0].mxu0
        %v3612 = vpop.f32.mrb[0].mxu0
        %v3613 = vadd.f32 0.0, %v3612
        %v3614 = vpop.f32.mrb[0].mxu0
        %3615 = vmatprep.mubr.bf16.mxu0 0
        %3616 = vmatmul.mubr.bf16.gmra.mrb[0].mxu0 %v3469
        %v3617 = vpop.f32.mrb[0].mxu0
        %v3618 = vadd.f32 0.0, %v3617
        %v3619 = vpop.f32.mrb[0].mxu0
        %v3620 = vpop.f32.mrb[0].mxu0
        %v3621 = vadd.f32 0.0, %v3620
        %v3622 = vpop.f32.mrb[0].mxu0
        %3623 = vmatprep.mubr.bf16.mxu0 0
        %3624 = vmatmul.mubr.bf16.gmra.mrb[0].mxu0 %v3470
        %v3625 = vpop.f32.mrb[0].mxu0
        %v3626 = vadd.f32 0.0, %v3625
        %v3627 = vpop.f32.mrb[0].mxu0
        %v3628 = vpop.f32.mrb[0].mxu0
        %v3629 = vadd.f32 0.0, %v3628
        %v3630 = vpop.f32.mrb[0].mxu0
        %3631 = vmatprep.mubr.bf16.mxu0 0
        %3632 = vmatmul.mubr.bf16.gmra.mrb[0].mxu0 %v3471
        %v3633 = vpop.f32.mrb[0].mxu0
        %v3634 = vadd.f32 0.0, %v3633
        %v3635 = vpop.f32.mrb[0].mxu0
        %v3636 = vpop.f32.mrb[0].mxu0
        %v3637 = vadd.f32 0.0, %v3636
        %v3638 = vpop.f32.mrb[0].mxu0
        %3639 = vmatprep.mubr.bf16.mxu0 0
        %3640 = vmatmul.mubr.bf16.gmra.mrb[0].mxu0 %v3472
        %v3641 = vpop.f32.mrb[0].mxu0
        %v3642 = vadd.f32 0.0, %v3641
        %v3643 = vpop.f32.mrb[0].mxu0
        %v3644 = vpop.f32.mrb[0].mxu0
        %v3645 = vadd.f32 0.0, %v3644
        %v3646 = vpop.f32.mrb[0].mxu0
        %3647 = vmatprep.mubr.bf16.mxu0 0
        %3648 = vmatmul.mubr.bf16.gmra.mrb[0].mxu0 %v3473
        %v3649 = vpop.f32.mrb[0].mxu0
        %v3650 = vadd.f32 0.0, %v3649
        %v3651 = vpop.f32.mrb[0].mxu0
        %v3652 = vpop.f32.mrb[0].mxu0
        %v3653 = vadd.f32 0.0, %v3652
        %v3654 = vpop.f32.mrb[0].mxu0
        %3655 = vmatprep.mubr.bf16.mxu0 0
        %3656 = vmatmul.mubr.bf16.gmra.mrb[0].mxu0 %v3474
        %v3657 = vpop.f32.mrb[0].mxu0
        %v3658 = vadd.f32 0.0, %v3657
        %v3659 = vpop.f32.mrb[0].mxu0
        %v3660 = vpop.f32.mrb[0].mxu0
        %v3661 = vadd.f32 0.0, %v3660
        %v3662 = vpop.f32.mrb[0].mxu0
        %3663 = vdwg.mxu0
        %v3664 = vadd.f32 %v3074, %v3570
        %v3665 = vadd.f32 %v3075, %v3573
        %v3666 = vadd.f32 %v3076, %v3578
        %v3667 = vadd.f32 %v3077, %v3581
        %v3668 = vadd.f32 %v3078, %v3586
        %v3669 = vadd.f32 %v3079, %v3589
        %v3670 = vadd.f32 %v3080, %v3594
        %v3671 = vadd.f32 %v3081, %v3597
        %v3672 = vadd.f32 %v3082, %v3602
        %v3673 = vadd.f32 %v3083, %v3605
        %v3674 = vadd.f32 %v3084, %v3610
        %v3675 = vadd.f32 %v3085, %v3613
        %v3676 = vadd.f32 %v3086, %v3618
        %v3677 = vadd.f32 %v3087, %v3621
        %v3678 = vadd.f32 %v3088, %v3626
        %v3679 = vadd.f32 %v3089, %v3629
        %v3680 = vadd.f32 %v3090, %v3634
        %v3681 = vadd.f32 %v3091, %v3637
        %v3682 = vadd.f32 %v3092, %v3642
        %v3683 = vadd.f32 %v3093, %v3645
        %v3684 = vadd.f32 %v3094, %v3650
        %v3685 = vadd.f32 %v3095, %v3653
        %v3686 = vadd.f32 %v3096, %v3658
        %v3687 = vadd.f32 %v3097, %v3661
        %v3688 = vld [vmem:[%s2783] sm:$0xe]
        %v3689 = vld [vmem:[%s2783 + $0xc] sm:$0xe]
        %v3690 = vld [vmem:[%s2783 + $0x18] sm:$0xe]
        %v3691 = vld [vmem:[%s2783 + $0x24] sm:$0xe]
        %v3692 = vld [vmem:[%s2783 + $0x30] sm:$0xe]
        %v3693 = vld [vmem:[%s2783 + $0x3c] sm:$0xe]
        %v3694 = vld [vmem:[%s2783 + $0x48] sm:$0xe]
        %v3695 = vld [vmem:[%s2783 + $0x54] sm:$0xe]
        %v3696 = vld [vmem:[%s2783 + $0x60] sm:$0xe]
        %v3697 = vld [vmem:[%s2783 + $0x6c] sm:$0xe]
        %v3698 = vld [vmem:[%s2783 + $0x78] sm:$0xe]
        %v3699 = vld [vmem:[%s2783 + $0x84] sm:$0xe]
        %v3736 = vrot.slane %v3688, 5
        %v3737 = vrot.slane %v3736, 4
        %v3738 = vrot.slane %v3099, 5
        %v3739 = vsel %vm1129, %v3737, %v3738
        %v3740 = vrot.slane %v3738, 4
        %v3741 = vrot.slane %v3100, 5
        %v3742 = vsel %vm1129, %v3740, %v3741
        %v3743 = vrot.slane %v3689, 5
        %v3744 = vrot.slane %v3743, 4
        %v3745 = vrot.slane %v3102, 5
        %v3746 = vsel %vm1129, %v3744, %v3745
        %v3747 = vrot.slane %v3745, 4
        %v3748 = vrot.slane %v3103, 5
        %v3749 = vsel %vm1129, %v3747, %v3748
        %v3750 = vrot.slane %v3690, 5
        %v3751 = vrot.slane %v3750, 4
        %v3752 = vrot.slane %v3105, 5
        %v3753 = vsel %vm1129, %v3751, %v3752
        %v3754 = vrot.slane %v3752, 4
        %v3755 = vrot.slane %v3106, 5
        %v3756 = vsel %vm1129, %v3754, %v3755
        %v3757 = vrot.slane %v3691, 5
        %v3758 = vrot.slane %v3757, 4
        %v3759 = vrot.slane %v3108, 5
        %v3760 = vsel %vm1129, %v3758, %v3759
        %v3761 = vrot.slane %v3759, 4
        %v3762 = vrot.slane %v3109, 5
        %v3763 = vsel %vm1129, %v3761, %v3762
        %v3764 = vrot.slane %v3692, 5
        %v3765 = vrot.slane %v3764, 4
        %v3766 = vrot.slane %v3111, 5
        %v3767 = vsel %vm1129, %v3765, %v3766
        %v3768 = vrot.slane %v3766, 4
        %v3769 = vrot.slane %v3112, 5
        %v3770 = vsel %vm1129, %v3768, %v3769
        %v3771 = vrot.slane %v3693, 5
        %v3772 = vrot.slane %v3771, 4
        %v3773 = vrot.slane %v3114, 5
        %v3774 = vsel %vm1129, %v3772, %v3773
        %v3775 = vrot.slane %v3773, 4
        %v3776 = vrot.slane %v3115, 5
        %v3777 = vsel %vm1129, %v3775, %v3776
        %v3778 = vrot.slane %v3694, 5
        %v3779 = vrot.slane %v3778, 4
        %v3780 = vrot.slane %v3117, 5
        %v3781 = vsel %vm1129, %v3779, %v3780
        %v3782 = vrot.slane %v3780, 4
        %v3783 = vrot.slane %v3118, 5
        %v3784 = vsel %vm1129, %v3782, %v3783
        %v3785 = vrot.slane %v3695, 5
        %v3786 = vrot.slane %v3785, 4
        %v3787 = vrot.slane %v3120, 5
        %v3788 = vsel %vm1129, %v3786, %v3787
        %v3789 = vrot.slane %v3787, 4
        %v3790 = vrot.slane %v3121, 5
        %v3791 = vsel %vm1129, %v3789, %v3790
        %v3792 = vrot.slane %v3696, 5
        %v3793 = vrot.slane %v3792, 4
        %v3794 = vrot.slane %v3123, 5
        %v3795 = vsel %vm1129, %v3793, %v3794
        %v3796 = vrot.slane %v3794, 4
        %v3797 = vrot.slane %v3124, 5
        %v3798 = vsel %vm1129, %v3796, %v3797
        %v3799 = vrot.slane %v3697, 5
        %v3800 = vrot.slane %v3799, 4
        %v3801 = vrot.slane %v3126, 5
        %v3802 = vsel %vm1129, %v3800, %v3801
        %v3803 = vrot.slane %v3801, 4
        %v3804 = vrot.slane %v3127, 5
        %v3805 = vsel %vm1129, %v3803, %v3804
        %v3806 = vrot.slane %v3698, 5
        %v3807 = vrot.slane %v3806, 4
        %v3808 = vrot.slane %v3129, 5
        %v3809 = vsel %vm1129, %v3807, %v3808
        %v3810 = vrot.slane %v3808, 4
        %v3811 = vrot.slane %v3130, 5
        %v3812 = vsel %vm1129, %v3810, %v3811
        %v3813 = vrot.slane %v3699, 5
        %v3814 = vrot.slane %v3813, 4
        %v3815 = vrot.slane %v3132, 5
        %v3816 = vsel %vm1129, %v3814, %v3815
        %v3817 = vrot.slane %v3815, 4
        %v3818 = vrot.slane %v3133, 5
        %v3819 = vsel %vm1129, %v3817, %v3818
        %s3820 = scalar_lea.vmem [#allocation5], 512
        %v3821 = vld [vmem:[%s3820] sm:$0xf]
        %v3822 = vld [vmem:[%s3820 + $0x4] sm:$0xf]
        %v3823 = vld [vmem:[%s3820 + $0x8] sm:$0xf]
        %v3824 = vld [vmem:[%s3820 + $0xc] sm:$0xf]
        %v3825 = vld [vmem:[%s3820 + $0x10] sm:$0xf]
        %v3826 = vld [vmem:[%s3820 + $0x14] sm:$0xf]
        %v3827 = vld [vmem:[%s3820 + $0x18] sm:$0xf]
        %v3828 = vld [vmem:[%s3820 + $0x1c] sm:$0xf]
        %v3829 = vld [vmem:[%s3820 + $0x20] sm:$0xf]
        %v3830 = vld [vmem:[%s3820 + $0x24] sm:$0xf]
        %v3831 = vld [vmem:[%s3820 + $0x28] sm:$0xf]
        %v3832 = vld [vmem:[%s3820 + $0x2c] sm:$0xf]
        %v3833 = vld [vmem:[%s3820 + $0x30] sm:$0xf]
        %v3834 = vld [vmem:[%s3820 + $0x34] sm:$0xf]
        %v3835 = vld [vmem:[%s3820 + $0x38] sm:$0xf]
        %v3836 = vld [vmem:[%s3820 + $0x3c] sm:$0xf]
        %v3837 = vunpack.c.l.b16 %v3739
        %v3838 = vunpack.c.l.b16 %v3742
        %v3839 = vunpack.c.l.b16 %v3746
        %v3840 = vunpack.c.l.b16 %v3749
        %v3841 = vunpack.c.l.b16 %v3753
        %v3842 = vunpack.c.l.b16 %v3756
        %v3843 = vunpack.c.l.b16 %v3760
        %v3844 = vunpack.c.l.b16 %v3763
        %v3845 = vunpack.c.l.b16 %v3767
        %v3846 = vunpack.c.l.b16 %v3770
        %v3847 = vunpack.c.l.b16 %v3774
        %v3848 = vunpack.c.l.b16 %v3777
        %v3849 = vunpack.c.l.b16 %v3781
        %v3850 = vunpack.c.l.b16 %v3784
        %v3851 = vunpack.c.l.b16 %v3788
        %v3852 = vunpack.c.l.b16 %v3791
        %v3853 = vunpack.c.l.b16 %v3795
        %v3854 = vunpack.c.l.b16 %v3798
        %v3855 = vunpack.c.l.b16 %v3802
        %v3856 = vunpack.c.l.b16 %v3805
        %v3857 = vunpack.c.l.b16 %v3809
        %v3858 = vunpack.c.l.b16 %v3812
        %v3859 = vunpack.c.l.b16 %v3816
        %v3860 = vunpack.c.l.b16 %v3819
        %v3861 = vpack.c.b16 %v3838, %v3837
        %v3862 = vpack.c.b16 %v3840, %v3839
        %v3863 = vpack.c.b16 %v3842, %v3841
        %v3864 = vpack.c.b16 %v3844, %v3843
        %v3865 = vpack.c.b16 %v3846, %v3845
        %v3866 = vpack.c.b16 %v3848, %v3847
        %v3867 = vpack.c.b16 %v3850, %v3849
        %v3868 = vpack.c.b16 %v3852, %v3851
        %v3869 = vpack.c.b16 %v3854, %v3853
        %v3870 = vpack.c.b16 %v3856, %v3855
        %v3871 = vpack.c.b16 %v3858, %v3857
        %v3872 = vpack.c.b16 %v3860, %v3859
        %v3901 = vunpack.c.l.b16 %v3821
        %v3902 = vunpack.c.l.b16 %v3822
        %v3903 = vunpack.c.l.b16 %v3823
        %v3904 = vunpack.c.l.b16 %v3824
        %v3905 = vunpack.c.l.b16 %v3825
        %v3906 = vunpack.c.l.b16 %v3826
        %v3907 = vunpack.c.l.b16 %v3827
        %v3908 = vunpack.c.l.b16 %v3828
        %v3909 = vunpack.c.l.b16 %v3829
        %v3910 = vunpack.c.l.b16 %v3830
        %v3911 = vunpack.c.l.b16 %v3831
        %v3912 = vunpack.c.l.b16 %v3832
        %v3913 = vunpack.c.l.b16 %v3833
        %v3914 = vunpack.c.l.b16 %v3834
        %v3915 = vunpack.c.l.b16 %v3835
        %v3916 = vunpack.c.l.b16 %v3836
        %v3917 = vpack.c.b16 %v3902, %v3901
        %v3918 = vpack.c.b16 %v3904, %v3903
        %v3919 = vpack.c.b16 %v3906, %v3905
        %v3920 = vpack.c.b16 %v3908, %v3907
        %v3921 = vpack.c.b16 %v3910, %v3909
        %v3922 = vpack.c.b16 %v3912, %v3911
        %v3923 = vpack.c.b16 %v3914, %v3913
        %v3924 = vpack.c.b16 %v3916, %v3915
        %3933 = vmatprep.subr.bf16.mxu0 0
        %3934 = vmatpush1.bf16.msra.mxu0 %v3917
        %3935 = vmatprep.subr.bf16.mxu0 0
        %3936 = vmatpush1.bf16.msra.mxu0 %v3918
        %3937 = vmatprep.subr.bf16.mxu0 0
        %3938 = vmatpush1.bf16.msra.mxu0 %v3919
        %3939 = vmatprep.subr.bf16.mxu0 0
        %3940 = vmatpush1.bf16.msra.mxu0 %v3920
        %3941 = vmatprep.subr.bf16.mxu0 0
        %3942 = vmatpush1.bf16.msra.mxu0 %v3921
        %3943 = vmatprep.subr.bf16.mxu0 0
        %3944 = vmatpush1.bf16.msra.mxu0 %v3922
        %3945 = vmatprep.subr.bf16.mxu0 0
        %3946 = vmatpush1.bf16.msra.mxu0 %v3923
        %3947 = vmatprep.subr.bf16.mxu0 0
        %3948 = vmatpush1.bf16.msra.mxu0 %v3924
        %3949 = vmatprep.subr.bf16.mxu0 0
        %3950 = vmatpush1.bf16.msra.mxu0 0
        %3951 = vmatprep.subr.bf16.mxu0 0
        %3952 = vmatpush1.bf16.msra.mxu0 0
        %3953 = vmatprep.subr.bf16.mxu0 0
        %3954 = vmatpush1.bf16.msra.mxu0 0
        %3955 = vmatprep.subr.bf16.mxu0 0
        %3956 = vmatpush1.bf16.msra.mxu0 0
        %3957 = vmatprep.subr.bf16.mxu0 0
        %3958 = vmatpush1.bf16.msra.mxu0 0
        %3959 = vmatprep.subr.bf16.mxu0 0
        %3960 = vmatpush1.bf16.msra.mxu0 0
        %3961 = vmatprep.subr.bf16.mxu0 0
        %3962 = vmatpush1.bf16.msra.mxu0 0
        %3963 = vmatprep.subr.bf16.mxu0 0
        %3964 = vmatpush1.bf16.msra.mxu0 0
        %3965 = vmatprep.mubr.bf16.mxu0 0
        %3966 = vmatmul.mubr.bf16.gmra.mrb[0].mxu0 %v3861
        %v3967 = vpop.f32.mrb[0].mxu0
        %v3968 = vadd.f32 0.0, %v3967
        %v3969 = vpop.f32.mrb[0].mxu0
        %v3970 = vpop.f32.mrb[0].mxu0
        %v3971 = vadd.f32 0.0, %v3970
        %v3972 = vpop.f32.mrb[0].mxu0
        %3973 = vmatprep.mubr.bf16.mxu0 0
        %3974 = vmatmul.mubr.bf16.gmra.mrb[0].mxu0 %v3862
        %v3975 = vpop.f32.mrb[0].mxu0
        %v3976 = vadd.f32 0.0, %v3975
        %v3977 = vpop.f32.mrb[0].mxu0
        %v3978 = vpop.f32.mrb[0].mxu0
        %v3979 = vadd.f32 0.0, %v3978
        %v3980 = vpop.f32.mrb[0].mxu0
        %3981 = vmatprep.mubr.bf16.mxu0 0
        %3982 = vmatmul.mubr.bf16.gmra.mrb[0].mxu0 %v3863
        %v3983 = vpop.f32.mrb[0].mxu0
        %v3984 = vadd.f32 0.0, %v3983
        %v3985 = vpop.f32.mrb[0].mxu0
        %v3986 = vpop.f32.mrb[0].mxu0
        %v3987 = vadd.f32 0.0, %v3986
        %v3988 = vpop.f32.mrb[0].mxu0
        %3989 = vmatprep.mubr.bf16.mxu0 0
        %3990 = vmatmul.mubr.bf16.gmra.mrb[0].mxu0 %v3864
        %v3991 = vpop.f32.mrb[0].mxu0
        %v3992 = vadd.f32 0.0, %v3991
        %v3993 = vpop.f32.mrb[0].mxu0
        %v3994 = vpop.f32.mrb[0].mxu0
        %v3995 = vadd.f32 0.0, %v3994
        %v3996 = vpop.f32.mrb[0].mxu0
        %3997 = vmatprep.mubr.bf16.mxu0 0
        %3998 = vmatmul.mubr.bf16.gmra.mrb[0].mxu0 %v3865
        %v3999 = vpop.f32.mrb[0].mxu0
        %v4000 = vadd.f32 0.0, %v3999
        %v4001 = vpop.f32.mrb[0].mxu0
        %v4002 = vpop.f32.mrb[0].mxu0
        %v4003 = vadd.f32 0.0, %v4002
        %v4004 = vpop.f32.mrb[0].mxu0
        %4005 = vmatprep.mubr.bf16.mxu0 0
        %4006 = vmatmul.mubr.bf16.gmra.mrb[0].mxu0 %v3866
        %v4007 = vpop.f32.mrb[0].mxu0
        %v4008 = vadd.f32 0.0, %v4007
        %v4009 = vpop.f32.mrb[0].mxu0
        %v4010 = vpop.f32.mrb[0].mxu0
        %v4011 = vadd.f32 0.0, %v4010
        %v4012 = vpop.f32.mrb[0].mxu0
        %4013 = vmatprep.mubr.bf16.mxu0 0
        %4014 = vmatmul.mubr.bf16.gmra.mrb[0].mxu0 %v3867
        %v4015 = vpop.f32.mrb[0].mxu0
        %v4016 = vadd.f32 0.0, %v4015
        %v4017 = vpop.f32.mrb[0].mxu0
        %v4018 = vpop.f32.mrb[0].mxu0
        %v4019 = vadd.f32 0.0, %v4018
        %v4020 = vpop.f32.mrb[0].mxu0
        %4021 = vmatprep.mubr.bf16.mxu0 0
        %4022 = vmatmul.mubr.bf16.gmra.mrb[0].mxu0 %v3868
        %v4023 = vpop.f32.mrb[0].mxu0
        %v4024 = vadd.f32 0.0, %v4023
        %v4025 = vpop.f32.mrb[0].mxu0
        %v4026 = vpop.f32.mrb[0].mxu0
        %v4027 = vadd.f32 0.0, %v4026
        %v4028 = vpop.f32.mrb[0].mxu0
        %4029 = vmatprep.mubr.bf16.mxu0 0
        %4030 = vmatmul.mubr.bf16.gmra.mrb[0].mxu0 %v3869
        %v4031 = vpop.f32.mrb[0].mxu0
        %v4032 = vadd.f32 0.0, %v4031
        %v4033 = vpop.f32.mrb[0].mxu0
        %v4034 = vpop.f32.mrb[0].mxu0
        %v4035 = vadd.f32 0.0, %v4034
        %v4036 = vpop.f32.mrb[0].mxu0
        %4037 = vmatprep.mubr.bf16.mxu0 0
        %4038 = vmatmul.mubr.bf16.gmra.mrb[0].mxu0 %v3870
        %v4039 = vpop.f32.mrb[0].mxu0
        %v4040 = vadd.f32 0.0, %v4039
        %v4041 = vpop.f32.mrb[0].mxu0
        %v4042 = vpop.f32.mrb[0].mxu0
        %v4043 = vadd.f32 0.0, %v4042
        %v4044 = vpop.f32.mrb[0].mxu0
        %4045 = vmatprep.mubr.bf16.mxu0 0
        %4046 = vmatmul.mubr.bf16.gmra.mrb[0].mxu0 %v3871
        %v4047 = vpop.f32.mrb[0].mxu0
        %v4048 = vadd.f32 0.0, %v4047
        %v4049 = vpop.f32.mrb[0].mxu0
        %v4050 = vpop.f32.mrb[0].mxu0
        %v4051 = vadd.f32 0.0, %v4050
        %v4052 = vpop.f32.mrb[0].mxu0
        %4053 = vmatprep.mubr.bf16.mxu0 0
        %4054 = vmatmul.mubr.bf16.gmra.mrb[0].mxu0 %v3872
        %v4055 = vpop.f32.mrb[0].mxu0
        %v4056 = vadd.f32 0.0, %v4055
        %v4057 = vpop.f32.mrb[0].mxu0
        %v4058 = vpop.f32.mrb[0].mxu0
        %v4059 = vadd.f32 0.0, %v4058
        %v4060 = vpop.f32.mrb[0].mxu0
        %4061 = vdwg.mxu0
        %v4062 = vadd.f32 %v3664, %v3968
        %v4063 = vadd.f32 %v3665, %v3971
        %v4064 = vadd.f32 %v3666, %v3976
        %v4065 = vadd.f32 %v3667, %v3979
        %v4066 = vadd.f32 %v3668, %v3984
        %v4067 = vadd.f32 %v3669, %v3987
        %v4068 = vadd.f32 %v3670, %v3992
        %v4069 = vadd.f32 %v3671, %v3995
        %v4070 = vadd.f32 %v3672, %v4000
        %v4071 = vadd.f32 %v3673, %v4003
        %v4072 = vadd.f32 %v3674, %v4008
        %v4073 = vadd.f32 %v3675, %v4011
        %v4074 = vadd.f32 %v3676, %v4016
        %v4075 = vadd.f32 %v3677, %v4019
        %v4076 = vadd.f32 %v3678, %v4024
        %v4077 = vadd.f32 %v3679, %v4027
        %v4078 = vadd.f32 %v3680, %v4032
        %v4079 = vadd.f32 %v3681, %v4035
        %v4080 = vadd.f32 %v3682, %v4040
        %v4081 = vadd.f32 %v3683, %v4043
        %v4082 = vadd.f32 %v3684, %v4048
        %v4083 = vadd.f32 %v3685, %v4051
        %v4084 = vadd.f32 %v3686, %v4056
        %v4085 = vadd.f32 %v3687, %v4059
        %v4086 = vld [vmem:[#allocation7] sm:$0x1]
        %v4088 = vlaneseq
        %v4089 = vshrl.u32 %v4088, 7
        %v4090 = vsub.s32 0, %v4089
        %v4091 = vrot.slane %v4086, %v4090
        %v4093 = vmul.f32 %v4062, %v4091
        %v4094 = vmul.f32 %v4063, %v4091
        %v4095 = vmul.f32 %v4064, %v4091
        %v4096 = vmul.f32 %v4065, %v4091
        %v4097 = vmul.f32 %v4066, %v4091
        %v4098 = vmul.f32 %v4067, %v4091
        %v4099 = vmul.f32 %v4068, %v4091
        %v4100 = vmul.f32 %v4069, %v4091
        %v4101 = vmul.f32 %v4070, %v4091
        %v4102 = vmul.f32 %v4071, %v4091
        %v4103 = vmul.f32 %v4072, %v4091
        %v4104 = vmul.f32 %v4073, %v4091
        %v4105 = vmul.f32 %v4074, %v4091
        %v4106 = vmul.f32 %v4075, %v4091
        %v4107 = vmul.f32 %v4076, %v4091
        %v4108 = vmul.f32 %v4077, %v4091
        %v4109 = vmul.f32 %v4078, %v4091
        %v4110 = vmul.f32 %v4079, %v4091
        %v4111 = vmul.f32 %v4080, %v4091
        %v4112 = vmul.f32 %v4081, %v4091
        %v4113 = vmul.f32 %v4082, %v4091
        %v4114 = vmul.f32 %v4083, %v4091
        %v4115 = vmul.f32 %v4084, %v4091
        %v4116 = vmul.f32 %v4085, %v4091
        %v4117 = vld [vmem:[#allocation8] sm:$0x1]
        %v4119 = vlaneseq
        %v4120 = vshrl.u32 %v4119, 7
        %v4121 = vsub.s32 0, %v4120
        %v4122 = vrot.slane %v4117, %v4121
        %v4124 = vadd.f32 %v4093, %v4122
        %v4125 = vadd.f32 %v4094, %v4122
        %v4126 = vadd.f32 %v4095, %v4122
        %v4127 = vadd.f32 %v4096, %v4122
        %v4128 = vadd.f32 %v4097, %v4122
        %v4129 = vadd.f32 %v4098, %v4122
        %v4130 = vadd.f32 %v4099, %v4122
        %v4131 = vadd.f32 %v4100, %v4122
        %v4132 = vadd.f32 %v4101, %v4122
        %v4133 = vadd.f32 %v4102, %v4122
        %v4134 = vadd.f32 %v4103, %v4122
        %v4135 = vadd.f32 %v4104, %v4122
        %v4136 = vadd.f32 %v4105, %v4122
        %v4137 = vadd.f32 %v4106, %v4122
        %v4138 = vadd.f32 %v4107, %v4122
        %v4139 = vadd.f32 %v4108, %v4122
        %v4140 = vadd.f32 %v4109, %v4122
        %v4141 = vadd.f32 %v4110, %v4122
        %v4142 = vadd.f32 %v4111, %v4122
        %v4143 = vadd.f32 %v4112, %v4122
        %v4144 = vadd.f32 %v4113, %v4122
        %v4145 = vadd.f32 %v4114, %v4122
        %v4146 = vadd.f32 %v4115, %v4122
        %v4147 = vadd.f32 %v4116, %v4122
        %v4148 = vmax.f32 %v4124, 0.0
        %v4149 = vmax.f32 %v4125, 0.0
        %v4150 = vmax.f32 %v4126, 0.0
        %v4151 = vmax.f32 %v4127, 0.0
        %v4152 = vmax.f32 %v4128, 0.0
        %v4153 = vmax.f32 %v4129, 0.0
        %v4154 = vmax.f32 %v4130, 0.0
        %v4155 = vmax.f32 %v4131, 0.0
        %v4156 = vmax.f32 %v4132, 0.0
        %v4157 = vmax.f32 %v4133, 0.0
        %v4158 = vmax.f32 %v4134, 0.0
        %v4159 = vmax.f32 %v4135, 0.0
        %v4160 = vmax.f32 %v4136, 0.0
        %v4161 = vmax.f32 %v4137, 0.0
        %v4162 = vmax.f32 %v4138, 0.0
        %v4163 = vmax.f32 %v4139, 0.0
        %v4164 = vmax.f32 %v4140, 0.0
        %v4165 = vmax.f32 %v4141, 0.0
        %v4166 = vmax.f32 %v4142, 0.0
        %v4167 = vmax.f32 %v4143, 0.0
        %v4168 = vmax.f32 %v4144, 0.0
        %v4169 = vmax.f32 %v4145, 0.0
        %v4170 = vmax.f32 %v4146, 0.0
        %v4171 = vmax.f32 %v4147, 0.0
        %v4172 = vpack.c.bf16 %v4149, %v4148
        %v4173 = vpack.c.bf16 %v4151, %v4150
        %v4174 = vpack.c.bf16 %v4153, %v4152
        %v4175 = vpack.c.bf16 %v4155, %v4154
        %v4176 = vpack.c.bf16 %v4157, %v4156
        %v4177 = vpack.c.bf16 %v4159, %v4158
        %v4178 = vpack.c.bf16 %v4161, %v4160
        %v4179 = vpack.c.bf16 %v4163, %v4162
        %v4180 = vpack.c.bf16 %v4165, %v4164
        %v4181 = vpack.c.bf16 %v4167, %v4166
        %v4182 = vpack.c.bf16 %v4169, %v4168
        %v4183 = vpack.c.bf16 %v4171, %v4170
        %v4196 = vunpack.c.l.b16 %v4172
        %v4197 = vunpack.c.h.b16 %v4172
        %v4198 = vunpack.c.l.b16 %v4173
        %v4199 = vunpack.c.h.b16 %v4173
        %v4200 = vunpack.c.l.b16 %v4174
        %v4201 = vunpack.c.h.b16 %v4174
        %v4202 = vunpack.c.l.b16 %v4175
        %v4203 = vunpack.c.h.b16 %v4175
        %v4204 = vunpack.c.l.b16 %v4176
        %v4205 = vunpack.c.h.b16 %v4176
        %v4206 = vunpack.c.l.b16 %v4177
        %v4207 = vunpack.c.h.b16 %v4177
        %v4208 = vunpack.c.l.b16 %v4178
        %v4209 = vunpack.c.h.b16 %v4178
        %v4210 = vunpack.c.l.b16 %v4179
        %v4211 = vunpack.c.h.b16 %v4179
        %v4212 = vunpack.c.l.b16 %v4180
        %v4213 = vunpack.c.h.b16 %v4180
        %v4214 = vunpack.c.l.b16 %v4181
        %v4215 = vunpack.c.h.b16 %v4181
        %v4216 = vunpack.c.l.b16 %v4182
        %v4217 = vunpack.c.h.b16 %v4182
        %v4218 = vunpack.c.l.b16 %v4183
        %v4219 = vunpack.c.h.b16 %v4183
        %v4220 = vpack.c.b16 %v4196, %v4196
        %v4221 = vpack.c.b16 %v4197, %v4197
        %v4222 = vpack.c.b16 %v4198, %v4198
        %v4223 = vpack.c.b16 %v4199, %v4199
        %v4224 = vpack.c.b16 %v4200, %v4200
        %v4225 = vpack.c.b16 %v4201, %v4201
        %v4226 = vpack.c.b16 %v4202, %v4202
        %v4227 = vpack.c.b16 %v4203, %v4203
        %v4228 = vpack.c.b16 %v4204, %v4204
        %v4229 = vpack.c.b16 %v4205, %v4205
        %v4230 = vpack.c.b16 %v4206, %v4206
        %v4231 = vpack.c.b16 %v4207, %v4207
        %v4232 = vpack.c.b16 %v4208, %v4208
        %v4233 = vpack.c.b16 %v4209, %v4209
        %v4234 = vpack.c.b16 %v4210, %v4210
        %v4235 = vpack.c.b16 %v4211, %v4211
        %v4236 = vpack.c.b16 %v4212, %v4212
        %v4237 = vpack.c.b16 %v4213, %v4213
        %v4238 = vpack.c.b16 %v4214, %v4214
        %v4239 = vpack.c.b16 %v4215, %v4215
        %v4240 = vpack.c.b16 %v4216, %v4216
        %v4241 = vpack.c.b16 %v4217, %v4217
        %v4242 = vpack.c.b16 %v4218, %v4218
        %v4243 = vpack.c.b16 %v4219, %v4219
        %4268 = vst [vmem:[%s255] sm:$0xf] %v4220
        %4269 = vst [vmem:[%s255 + $0x4] sm:$0xf] %v4221
        %4270 = vst [vmem:[%s255 + $0x8] sm:$0xf] %v4222
        %4271 = vst [vmem:[%s255 + $0xc] sm:$0xf] %v4223
        %4272 = vst [vmem:[%s255 + $0x10] sm:$0xf] %v4224
        %4273 = vst [vmem:[%s255 + $0x14] sm:$0xf] %v4225
        %4274 = vst [vmem:[%s255 + $0x18] sm:$0xf] %v4226
        %4275 = vst [vmem:[%s255 + $0x1c] sm:$0xf] %v4227
        %4276 = vst [vmem:[%s255 + $0x20] sm:$0xf] %v4228
        %4277 = vst [vmem:[%s255 + $0x24] sm:$0xf] %v4229
        %4278 = vst [vmem:[%s255 + $0x28] sm:$0xf] %v4230
        %4279 = vst [vmem:[%s255 + $0x2c] sm:$0xf] %v4231
        %4280 = vst [vmem:[%s255 + $0x30] sm:$0xf] %v4232
        %4281 = vst [vmem:[%s255 + $0x34] sm:$0xf] %v4233
        %4282 = vst [vmem:[%s255 + $0x38] sm:$0xf] %v4234
        %4283 = vst [vmem:[%s255 + $0x3c] sm:$0xf] %v4235
        %4284 = vst [vmem:[%s255 + $0x40] sm:$0xf] %v4236
        %4285 = vst [vmem:[%s255 + $0x44] sm:$0xf] %v4237
        %4286 = vst [vmem:[%s255 + $0x48] sm:$0xf] %v4238
        %4287 = vst [vmem:[%s255 + $0x4c] sm:$0xf] %v4239
        %4288 = vst [vmem:[%s255 + $0x50] sm:$0xf] %v4240
        %4289 = vst [vmem:[%s255 + $0x54] sm:$0xf] %v4241
        %4290 = vst [vmem:[%s255 + $0x58] sm:$0xf] %v4242
        %4291 = vst [vmem:[%s255 + $0x5c] sm:$0xf] %v4243
        %s4292 = sand.u32 %s120, 1
        %s4293 = scalar_lea.sflag [#allocation4], %s4292
        %s4294 = sand.u32 %s120, 1
        %s4295 = smul.addr %s4294, 96
        %s4296 = scalar_lea.vmem [#allocation10], %s4295
        // Predicated region
        $region53: #{basic_block_forward.2} parent=35 // pred_check
          %p4297 = pneg %p130
        $region54: #{basic_block_forward.2} parent=35 // pred_check_branch
          %4299 = sbr.rel (%p4297) target = $region56
        $region55: #{basic_block_forward.2} parent=35 // pred_region
          %s4301 = ssub.s32 1536, 1536
          %4302 = vsyncadd %s4293, %s4301
          %s4303 = smul.addr %s23, 24
          %s4304 = smul.addr %s4303, 64
          %s4305 = scalar_lea.hbm %s4, %s4304
          %s4306 = sshll.u32 %s4296, 4
          %s4307 = int_to_ptr.vmem [resolvable:$true] %s4306
          %4312 = dma.vmem_to_hbm [thread:$0]  %s4307, 1536, %s4305, %s4293, 64, 64, 4
        $region56: #{basic_block_forward.2} parent=35 // pred_fallthru
          _
      $region36: #{basic_block_forward.2} parent=5 // pred_fallthru
        _
      %p4313 = scmp.le.s32.totalorder 2, %s18
      // Predicated region
      $region57: #{basic_block_forward.2} parent=5 // pred_check
        %p4314 = pneg %p4313
      $region58: #{basic_block_forward.2} parent=5 // pred_check_branch
        %4316 = sbr.rel (%p4314) target = $region60
      $region59: #{basic_block_forward.2} parent=5 // pred_region
        %s4317 = ssub.s32 %s18, 2
        // Predicated region
        $region61: #{basic_block_forward.2} parent=59 // pred_check
          %p4318 = pneg %p136
        $region62: #{basic_block_forward.2} parent=59 // pred_check_branch
          %4320 = sbr.rel (%p4318) target = $region64
        $region63: #{basic_block_forward.2} parent=59 // pred_region
          %s4321 = sand.u32 %s121, 1
          %s4322 = scalar_lea.sflag [#allocation4], %s4321
          %s4323 = sand.u32 %s121, 1
          %s4324 = smul.addr %s4323, 96
          %s4325 = scalar_lea.vmem [#allocation10], %s4324
          %4326 = dma.done %s4322, 1536
        $region64: #{basic_block_forward.2} parent=59 // pred_fallthru
          _
      $region60: #{basic_block_forward.2} parent=5 // pred_fallthru
        _
    $region6: #{basic_block_forward.2} parent=1 // loop_footer
      %s22 = sadd.s32 1, %s18
    $region7: #{basic_block_forward.2} parent=1 // loop_footer_branch
      %17 = sbr.rel target = $region3
    $region8: #{basic_block_forward.2} parent=1 // loop_exit
      _
    %4327 = vsyncpa [#allocation3], 1
    %s4328 = scalar_lea.sflag [#allocation3], 1
    %4329 = vsyncpa %s4328, 1
    %4330 = vsyncpa [#allocation6], 1
    %4331 = vsyncpa [#allocation9], 1
    %4332 = vsyncpa [#allocation4], 1
    %s4333 = scalar_lea.sflag [#allocation4], 1
    %4334 = vsyncpa %s4333, 1

// kernel: basic_block_forward.3
$region0: #{basic_block_forward.3}
  #allocation0 [shape = 'u32[]', space=smem, size = 0x4, offset = 0x4, fixed_abs, tag = 'smem constant byte address 0x4 - core index']
  #allocation1 [shape = 'u32[144,128]{1,0:T(1,128)}', space=vmem, size = 0x12000, scoped, tag = 'internal scratch']
  %s0 = inlined_call_operand.hbm [shape: bf16[2,14,18,128], index: 0, kind: input, shape index: {}]
  %s1 = inlined_call_operand.hbm [shape: f32[2,192,128], index: 1, kind: input, shape index: {}, may-alias: {1,7}]
  %s2 = inlined_call_operand.hbm [shape: bf16[3,3,128,128], index: 2, kind: input, shape index: {}]
  %s3 = inlined_call_operand.hbm [shape: f32[1,128], index: 3, kind: input, shape index: {}]
  %s4 = inlined_call_operand.hbm [shape: f32[1,128], index: 4, kind: input, shape index: {}]
  %s5 = inlined_call_operand.hbm [shape: f32[128,32], index: 5, kind: input, shape index: {}]
  %s6 = inlined_call_operand.hbm [shape: f32[32,384], index: 6, kind: input, shape index: {}]
  %s7 = inlined_call_operand.hbm [shape: f32[2,192,128], index: 7, kind: output, shape index: {}, may-alias: {1,7}]
  %s8 = sld [smem:[#allocation0]]
  $region89: #{basic_block_forward.3} parent=0
    _
  %s10 = ssub.s32 1, %s8
  %s11 = scalar_select 0, %s10, %s8
  $region1: #{basic_block_forward.3} parent=0
    #allocation2 [shape = 'u8[172032]{0}', space=vmem, size = 0x2a000, scoped, tag = 'input window, operand 0']
    #allocation3 [shape = 's32[2]{0}', space=sflag, size = 0x8, scoped, tag = 'scoped memory for basic_block_forward.3']
    #allocation4 [shape = 's32[2]{0}', space=sflag, size = 0x8, scoped, tag = 'scoped memory for basic_block_forward.3']
    #allocation5 [shape = 'u8[196608]{0}', space=vmem, size = 0x30000, scoped, tag = 'input window, operand 1']
    #allocation6 [shape = 's32[2]{0}', space=sflag, size = 0x8, scoped, tag = 'scoped memory for basic_block_forward.3']
    #allocation7 [shape = 'u8[294912]{0}', space=vmem, size = 0x48000, scoped, tag = 'input window, operand 2, single buffered']
    #allocation8 [shape = 'u8[512]{0}', space=vmem, size = 0x400, scoped, tag = 'input window, operand 3, single buffered']
    #allocation9 [shape = 's32[1]{0}', space=sflag, size = 0x4, scoped, tag = 'scoped memory for basic_block_forward.3']
    #allocation10 [shape = 'u8[512]{0}', space=vmem, size = 0x400, scoped, tag = 'input window, operand 4, single buffered']
    #allocation11 [shape = 'u8[65536]{0}', space=vmem, size = 0x10000, scoped, tag = 'input window, operand 5, single buffered']
    #allocation12 [shape = 's32[1]{0}', space=sflag, size = 0x4, scoped, tag = 'scoped memory for basic_block_forward.3']
    #allocation13 [shape = 'u8[49152]{0}', space=vmem, size = 0xc000, scoped, tag = 'input window, operand 6, single buffered']
    #allocation14 [shape = 'u8[196608]{0}', space=vmem, size = 0x30000, scoped, tag = 'output window, operand 0']
    %12 = vsyncpa [#allocation3], 0
    %s13 = scalar_lea.sflag [#allocation3], 1
    %14 = vsyncpa %s13, 0
    %15 = vsyncpa [#allocation6], 0
    %s16 = scalar_lea.sflag [#allocation6], 1
    %17 = vsyncpa %s16, 0
    %18 = vsyncpa [#allocation9], 0
    %19 = vsyncpa [#allocation12], 0
    %20 = vsyncpa [#allocation4], 0
    %s21 = scalar_lea.sflag [#allocation4], 1
    %22 = vsyncpa %s21, 0
    loop: start=0, step=1, limit=4
    $region2: #{basic_block_forward.3} parent=1 // loop_pre_header
      _
    $region3: #{basic_block_forward.3} parent=1 // loop_header
      %s24 = sphi 0, %s28
      %p25 = scmp.ge.s32.totalorder %s24, 4
      %s34 = sphi 0, %s36
      %s37 = sphi 0, %s34
      %s38 = sphi 0, %s37
      %s54 = sphi 0, %s38
      %s60 = sphi 0, %s62
      %s63 = sphi 0, %s60
      %s64 = sphi 0, %s63
      %s80 = sphi 0, %s64
      %s84 = sphi 0, %s84
      %s86 = sphi 0, %s84
      %s87 = sphi 0, %s86
      %s101 = sphi 0, %s87
      %s105 = sphi 0, %s105
      %s107 = sphi 0, %s105
      %s108 = sphi 0, %s107
      %s122 = sphi 0, %s108
      %s126 = sphi 0, %s126
      %s128 = sphi 0, %s126
      %s129 = sphi 0, %s128
      %s143 = sphi 0, %s129
      %s147 = sphi 0, %s147
      %s149 = sphi 0, %s147
      %s150 = sphi 0, %s149
      %s164 = sphi 0, %s150
      %s168 = sphi 0, %s168
      %s170 = sphi 0, %s168
      %s171 = sphi 0, %s170
      %s185 = sphi 0, %s171
      %s191 = sphi 0, %s193
      %s194 = sphi 0, %s191
      %s195 = sphi 0, %s194
      %s211 = sphi 0, %s195
    $region4: #{basic_block_forward.3} parent=1 // loop_header_branch
      %27 = sbr.rel (%p25) target = $region8
    $region5: #{basic_block_forward.3} parent=1 // loop_body
      %s29 = ssub.s32 %s24, 1
      %s30 = ssub.s32 %s24, 2
      %s31 = sadd.s32 %s24, 1
      %s32 = ssub.s32 %s24, %s31
      %p33 = scmp.eq.s32.totalorder %s32, 0
      %s35 = sadd.s32 %s34, 1
      %s36 = scalar_select %p33, %s34, %s35
      %p39 = pneg %p33
      %p40 = scmp.eq.s32.totalorder %s24, 1
      %p41 = por %p39, %p40
      %p42 = scmp.ne.s32.totalorder %s34, %s37
      %p43 = scmp.eq.s32.totalorder %s24, 0
      %p44 = por %p42, %p43
      %p45 = scmp.ne.s32.totalorder %s34, %s37
      %p46 = scmp.eq.s32.totalorder %s29, 1
      %p47 = por %p45, %p46
      %p48 = scmp.ne.s32.totalorder %s37, %s38
      %p49 = scmp.eq.s32.totalorder %s29, 0
      %p50 = por %p48, %p49
      %p51 = scmp.ne.s32.totalorder %s37, %s38
      %p52 = scmp.eq.s32.totalorder %s30, 1
      %p53 = por %p51, %p52
      %p55 = scmp.ne.s32.totalorder %s38, %s54
      %p56 = scmp.eq.s32.totalorder %s30, 0
      %p57 = por %p55, %p56
      %s58 = ssub.s32 %s24, %s31
      %p59 = scmp.eq.s32.totalorder %s58, 0
      %s61 = sadd.s32 %s60, 1
      %s62 = scalar_select %p59, %s60, %s61
      %p65 = pneg %p59
      %p66 = scmp.eq.s32.totalorder %s24, 1
      %p67 = por %p65, %p66
      %p68 = scmp.ne.s32.totalorder %s60, %s63
      %p69 = scmp.eq.s32.totalorder %s24, 0
      %p70 = por %p68, %p69
      %p71 = scmp.ne.s32.totalorder %s60, %s63
      %p72 = scmp.eq.s32.totalorder %s29, 1
      %p73 = por %p71, %p72
      %p74 = scmp.ne.s32.totalorder %s63, %s64
      %p75 = scmp.eq.s32.totalorder %s29, 0
      %p76 = por %p74, %p75
      %p77 = scmp.ne.s32.totalorder %s63, %s64
      %p78 = scmp.eq.s32.totalorder %s30, 1
      %p79 = por %p77, %p78
      %p81 = scmp.ne.s32.totalorder %s64, %s80
      %p82 = scmp.eq.s32.totalorder %s30, 0
      %p83 = por %p81, %p82
      %s85 = sadd.s32 %s84, 1
      %p88 = scmp.eq.s32.totalorder %s24, 1
      %p89 = scmp.ne.s32.totalorder %s84, %s86
      %p90 = scmp.eq.s32.totalorder %s24, 0
      %p91 = por %p89, %p90
      %p92 = scmp.ne.s32.totalorder %s84, %s86
      %p93 = scmp.eq.s32.totalorder %s29, 1
      %p94 = por %p92, %p93
      %p95 = scmp.ne.s32.totalorder %s86, %s87
      %p96 = scmp.eq.s32.totalorder %s29, 0
      %p97 = por %p95, %p96
      %p98 = scmp.ne.s32.totalorder %s86, %s87
      %p99 = scmp.eq.s32.totalorder %s30, 1
      %p100 = por %p98, %p99
      %p102 = scmp.ne.s32.totalorder %s87, %s101
      %p103 = scmp.eq.s32.totalorder %s30, 0
      %p104 = por %p102, %p103
      %s106 = sadd.s32 %s105, 1
      %p109 = scmp.eq.s32.totalorder %s24, 1
      %p110 = scmp.ne.s32.totalorder %s105, %s107
      %p111 = scmp.eq.s32.totalorder %s24, 0
      %p112 = por %p110, %p111
      %p113 = scmp.ne.s32.totalorder %s105, %s107
      %p114 = scmp.eq.s32.totalorder %s29, 1
      %p115 = por %p113, %p114
      %p116 = scmp.ne.s32.totalorder %s107, %s108
      %p117 = scmp.eq.s32.totalorder %s29, 0
      %p118 = por %p116, %p117
      %p119 = scmp.ne.s32.totalorder %s107, %s108
      %p120 = scmp.eq.s32.totalorder %s30, 1
      %p121 = por %p119, %p120
      %p123 = scmp.ne.s32.totalorder %s108, %s122
      %p124 = scmp.eq.s32.totalorder %s30, 0
      %p125 = por %p123, %p124
      %s127 = sadd.s32 %s126, 1
      %p130 = scmp.eq.s32.totalorder %s24, 1
      %p131 = scmp.ne.s32.totalorder %s126, %s128
      %p132 = scmp.eq.s32.totalorder %s24, 0
      %p133 = por %p131, %p132
      %p134 = scmp.ne.s32.totalorder %s126, %s128
      %p135 = scmp.eq.s32.totalorder %s29, 1
      %p136 = por %p134, %p135
      %p137 = scmp.ne.s32.totalorder %s128, %s129
      %p138 = scmp.eq.s32.totalorder %s29, 0
      %p139 = por %p137, %p138
      %p140 = scmp.ne.s32.totalorder %s128, %s129
      %p141 = scmp.eq.s32.totalorder %s30, 1
      %p142 = por %p140, %p141
      %p144 = scmp.ne.s32.totalorder %s129, %s143
      %p145 = scmp.eq.s32.totalorder %s30, 0
      %p146 = por %p144, %p145
      %s148 = sadd.s32 %s147, 1
      %p151 = scmp.eq.s32.totalorder %s24, 1
      %p152 = scmp.ne.s32.totalorder %s147, %s149
      %p153 = scmp.eq.s32.totalorder %s24, 0
      %p154 = por %p152, %p153
      %p155 = scmp.ne.s32.totalorder %s147, %s149
      %p156 = scmp.eq.s32.totalorder %s29, 1
      %p157 = por %p155, %p156
      %p158 = scmp.ne.s32.totalorder %s149, %s150
      %p159 = scmp.eq.s32.totalorder %s29, 0
      %p160 = por %p158, %p159
      %p161 = scmp.ne.s32.totalorder %s149, %s150
      %p162 = scmp.eq.s32.totalorder %s30, 1
      %p163 = por %p161, %p162
      %p165 = scmp.ne.s32.totalorder %s150, %s164
      %p166 = scmp.eq.s32.totalorder %s30, 0
      %p167 = por %p165, %p166
      %s169 = sadd.s32 %s168, 1
      %p172 = scmp.eq.s32.totalorder %s24, 1
      %p173 = scmp.ne.s32.totalorder %s168, %s170
      %p174 = scmp.eq.s32.totalorder %s24, 0
      %p175 = por %p173, %p174
      %p176 = scmp.ne.s32.totalorder %s168, %s170
      %p177 = scmp.eq.s32.totalorder %s29, 1
      %p178 = por %p176, %p177
      %p179 = scmp.ne.s32.totalorder %s170, %s171
      %p180 = scmp.eq.s32.totalorder %s29, 0
      %p181 = por %p179, %p180
      %p182 = scmp.ne.s32.totalorder %s170, %s171
      %p183 = scmp.eq.s32.totalorder %s30, 1
      %p184 = por %p182, %p183
      %p186 = scmp.ne.s32.totalorder %s171, %s185
      %p187 = scmp.eq.s32.totalorder %s30, 0
      %p188 = por %p186, %p187
      %s189 = ssub.s32 %s24, %s31
      %p190 = scmp.eq.s32.totalorder %s189, 0
      %s192 = sadd.s32 %s191, 1
      %s193 = scalar_select %p190, %s191, %s192
      %p196 = pneg %p190
      %p197 = scmp.eq.s32.totalorder %s24, 1
      %p198 = por %p196, %p197
      %p199 = scmp.ne.s32.totalorder %s191, %s194
      %p200 = scmp.eq.s32.totalorder %s24, 0
      %p201 = por %p199, %p200
      %p202 = scmp.ne.s32.totalorder %s191, %s194
      %p203 = scmp.eq.s32.totalorder %s29, 1
      %p204 = por %p202, %p203
      %p205 = scmp.ne.s32.totalorder %s194, %s195
      %p206 = scmp.eq.s32.totalorder %s29, 0
      %p207 = por %p205, %p206
      %p208 = scmp.ne.s32.totalorder %s194, %s195
      %p209 = scmp.eq.s32.totalorder %s30, 1
      %p210 = por %p208, %p209
      %p212 = scmp.ne.s32.totalorder %s195, %s211
      %p213 = scmp.eq.s32.totalorder %s30, 0
      %p214 = por %p212, %p213
      %p215 = scmp.le.s32.totalorder 1, %s24
      %p216 = scmp.lt.s32.totalorder %s24, 3
      %p217 = pnand %p215, %p216
      %p218 = pneg %p217
      // Predicated region
      $region9: #{basic_block_forward.3} parent=5 // pred_check
        _
      $region10: #{basic_block_forward.3} parent=5 // pred_check_branch
        %220 = sbr.rel (%p217) target = $region12
      $region11: #{basic_block_forward.3} parent=5 // pred_region
        %s221 = ssub.s32 %s24, 1
        // Predicated region
        $region13: #{basic_block_forward.3} parent=11 // pred_check
          %p222 = pneg %p97
        $region14: #{basic_block_forward.3} parent=11 // pred_check_branch
          %224 = sbr.rel (%p222) target = $region16
        $region15: #{basic_block_forward.3} parent=11 // pred_region
          %s226 = ssub.s32 9216, 9216
          %227 = vsyncadd [#allocation6], %s226
          %s228 = sshll.u32 [#allocation7], 4
          %s229 = int_to_ptr.vmem [resolvable:$true] %s228
          %234 = dma.hbm_to_vmem [thread:$0]  %s2, 9216, %s229, [#allocation6], 64, 64, 4
        $region16: #{basic_block_forward.3} parent=11 // pred_fallthru
          _
        // Predicated region
        $region17: #{basic_block_forward.3} parent=11 // pred_check
          %p235 = pneg %p118
        $region18: #{basic_block_forward.3} parent=11 // pred_check_branch
          %237 = sbr.rel (%p235) target = $region20
        $region19: #{basic_block_forward.3} parent=11 // pred_region
          %s239 = ssub.s32 16, 16
          %240 = vsyncadd [#allocation9], %s239
          %s242 = sshll.u32 [#allocation8], 4
          %s243 = int_to_ptr.vmem [resolvable:$true] %s242
          %245 = dma.hbm_to_vmem [thread:$0]  %s3, 16, %s243, [#allocation9]
        $region20: #{basic_block_forward.3} parent=11 // pred_fallthru
          _
        // Predicated region
        $region21: #{basic_block_forward.3} parent=11 // pred_check
          %p246 = pneg %p139
        $region22: #{basic_block_forward.3} parent=11 // pred_check_branch
          %248 = sbr.rel (%p246) target = $region24
        $region23: #{basic_block_forward.3} parent=11 // pred_region
          %s250 = ssub.s32 16, 16
          %251 = vsyncadd [#allocation9], %s250
          %s253 = sshll.u32 [#allocation10], 4
          %s254 = int_to_ptr.vmem [resolvable:$true] %s253
          %256 = dma.hbm_to_vmem [thread:$0]  %s4, 16, %s254, [#allocation9]
        $region24: #{basic_block_forward.3} parent=11 // pred_fallthru
          _
        // Predicated region
        $region25: #{basic_block_forward.3} parent=11 // pred_check
          %p257 = pneg %p160
        $region26: #{basic_block_forward.3} parent=11 // pred_check_branch
          %259 = sbr.rel (%p257) target = $region28
        $region27: #{basic_block_forward.3} parent=11 // pred_region
          %s261 = ssub.s32 2048, 2048
          %262 = vsyncadd [#allocation12], %s261
          %s263 = sshll.u32 [#allocation11], 4
          %s264 = int_to_ptr.vmem [resolvable:$true] %s263
          %269 = dma.hbm_to_vmem [thread:$0]  %s5, 2048, %s264, [#allocation12], 128, 128, 8
        $region28: #{basic_block_forward.3} parent=11 // pred_fallthru
          _
        // Predicated region
        $region29: #{basic_block_forward.3} parent=11 // pred_check
          %p270 = pneg %p181
        $region30: #{basic_block_forward.3} parent=11 // pred_check_branch
          %272 = sbr.rel (%p270) target = $region32
        $region31: #{basic_block_forward.3} parent=11 // pred_region
          %s274 = ssub.s32 1536, 1536
          %275 = vsyncadd [#allocation12], %s274
          %s276 = sshll.u32 [#allocation13], 4
          %s277 = int_to_ptr.vmem [resolvable:$true] %s276
          %282 = dma.hbm_to_vmem [thread:$0]  %s6, 1536, %s277, [#allocation12], 384, 384, 24
        $region32: #{basic_block_forward.3} parent=11 // pred_fallthru
          _
      $region12: #{basic_block_forward.3} parent=5 // pred_fallthru
        _
      %p283 = scmp.lt.s32.totalorder %s24, 2
      // Predicated region
      $region33: #{basic_block_forward.3} parent=5 // pred_check
        %p284 = pneg %p283
      $region34: #{basic_block_forward.3} parent=5 // pred_check_branch
        %286 = sbr.rel (%p284) target = $region36
      $region35: #{basic_block_forward.3} parent=5 // pred_region
        // Predicated region
        $region37: #{basic_block_forward.3} parent=35 // pred_check
          %p287 = pneg %p44
        $region38: #{basic_block_forward.3} parent=35 // pred_check_branch
          %289 = sbr.rel (%p287) target = $region40
        $region39: #{basic_block_forward.3} parent=35 // pred_region
          %s290 = sand.u32 %s34, 1
          %s291 = scalar_lea.sflag [#allocation3], %s290
          %s292 = sand.u32 %s34, 1
          %s293 = smul.addr %s292, 168
          %s294 = scalar_lea.vmem [#allocation2], %s293
          %s296 = ssub.s32 2688, 2688
          %297 = vsyncadd %s291, %s296
          %s298 = smul.addr %s24, 42
          %s299 = smul.addr %s298, 64
          %s300 = scalar_lea.hbm %s0, %s299
          %s301 = sshll.u32 %s294, 4
          %s302 = int_to_ptr.vmem [resolvable:$true] %s301
          %307 = dma.hbm_to_vmem [thread:$0]  %s300, 2688, %s302, %s291, 64, 64, 4
        $region40: #{basic_block_forward.3} parent=35 // pred_fallthru
          _
        // Predicated region
        $region41: #{basic_block_forward.3} parent=35 // pred_check
          %p308 = pneg %p70
        $region42: #{basic_block_forward.3} parent=35 // pred_check_branch
          %310 = sbr.rel (%p308) target = $region44
        $region43: #{basic_block_forward.3} parent=35 // pred_region
          %s311 = sand.u32 %s24, 1
          %s312 = scalar_lea.sflag [#allocation6], %s311
          %s313 = sand.u32 %s60, 1
          %s314 = smul.addr %s313, 192
          %s315 = scalar_lea.vmem [#allocation5], %s314
          %s317 = ssub.s32 3072, 3072
          %318 = vsyncadd %s312, %s317
          %s319 = smul.addr %s24, 24
          %s320 = smul.addr %s319, 128
          %s321 = scalar_lea.hbm %s1, %s320
          %s322 = sshll.u32 %s315, 4
          %s323 = int_to_ptr.vmem [resolvable:$true] %s322
          %328 = dma.hbm_to_vmem [thread:$0]  %s321, 3072, %s323, %s312, 128, 128, 8
        $region44: #{basic_block_forward.3} parent=35 // pred_fallthru
          _
      $region36: #{basic_block_forward.3} parent=5 // pred_fallthru
        _
      %p329 = scmp.le.s32.totalorder 1, %s24
      %p330 = scmp.lt.s32.totalorder %s24, 3
      %p331 = pnand %p329, %p330
      %p332 = pneg %p331
      // Predicated region
      $region45: #{basic_block_forward.3} parent=5 // pred_check
        _
      $region46: #{basic_block_forward.3} parent=5 // pred_check_branch
        %334 = sbr.rel (%p331) target = $region48
      $region47: #{basic_block_forward.3} parent=5 // pred_region
        %s335 = ssub.s32 %s24, 1
        %s336 = sand.u32 %s37, 1
        %s337 = scalar_lea.sflag [#allocation3], %s336
        %s338 = sand.u32 %s37, 1
        %s339 = smul.addr %s338, 168
        %s340 = scalar_lea.vmem [#allocation2], %s339
        // Predicated region
        $region49: #{basic_block_forward.3} parent=47 // pred_check
          %p341 = pneg %p50
        $region50: #{basic_block_forward.3} parent=47 // pred_check_branch
          %343 = sbr.rel (%p341) target = $region52
        $region51: #{basic_block_forward.3} parent=47 // pred_region
          %344 = dma.done %s337, 2688
        $region52: #{basic_block_forward.3} parent=47 // pred_fallthru
          _
        %s345 = sand.u32 %s29, 1
        %s346 = scalar_lea.sflag [#allocation6], %s345
        %s347 = sand.u32 %s63, 1
        %s348 = smul.addr %s347, 192
        %s349 = scalar_lea.vmem [#allocation5], %s348
        // Predicated region
        $region53: #{basic_block_forward.3} parent=47 // pred_check
          %p350 = pneg %p76
        $region54: #{basic_block_forward.3} parent=47 // pred_check_branch
          %352 = sbr.rel (%p350) target = $region56
        $region55: #{basic_block_forward.3} parent=47 // pred_region
          %353 = dma.done %s346, 3072
        $region56: #{basic_block_forward.3} parent=47 // pred_fallthru
          _
        // Predicated region
        $region57: #{basic_block_forward.3} parent=47 // pred_check
          %p354 = pneg %p97
        $region58: #{basic_block_forward.3} parent=47 // pred_check_branch
          %356 = sbr.rel (%p354) target = $region60
        $region59: #{basic_block_forward.3} parent=47 // pred_region
          %357 = dma.done [#allocation6], 9216
        $region60: #{basic_block_forward.3} parent=47 // pred_fallthru
          _
        // Predicated region
        $region61: #{basic_block_forward.3} parent=47 // pred_check
          %p358 = pneg %p118
        $region62: #{basic_block_forward.3} parent=47 // pred_check_branch
          %360 = sbr.rel (%p358) target = $region64
        $region63: #{basic_block_forward.3} parent=47 // pred_region
          %361 = dma.done [#allocation9], 16
        $region64: #{basic_block_forward.3} parent=47 // pred_fallthru
          _
        // Predicated region
        $region65: #{basic_block_forward.3} parent=47 // pred_check
          %p362 = pneg %p139
        $region66: #{basic_block_forward.3} parent=47 // pred_check_branch
          %364 = sbr.rel (%p362) target = $region68
        $region67: #{basic_block_forward.3} parent=47 // pred_region
          %365 = dma.done [#allocation9], 16
        $region68: #{basic_block_forward.3} parent=47 // pred_fallthru
          _
        // Predicated region
        $region69: #{basic_block_forward.3} parent=47 // pred_check
          %p366 = pneg %p160
        $region70: #{basic_block_forward.3} parent=47 // pred_check_branch
          %368 = sbr.rel (%p366) target = $region72
        $region71: #{basic_block_forward.3} parent=47 // pred_region
          %369 = dma.done [#allocation12], 2048
        $region72: #{basic_block_forward.3} parent=47 // pred_fallthru
          _
        // Predicated region
        $region73: #{basic_block_forward.3} parent=47 // pred_check
          %p370 = pneg %p181
        $region74: #{basic_block_forward.3} parent=47 // pred_check_branch
          %372 = sbr.rel (%p370) target = $region76
        $region75: #{basic_block_forward.3} parent=47 // pred_region
          %373 = dma.done [#allocation12], 1536
        $region76: #{basic_block_forward.3} parent=47 // pred_fallthru
          _
        %s374 = sand.u32 %s37, 1
        %s375 = scalar_lea.sflag [#allocation3], %s374
        %s376 = sand.u32 %s37, 1
        %s377 = smul.addr %s376, 168
        %s378 = scalar_lea.vmem [#allocation2], %s377
        %p379 = pneg %p50
        %p380 = pneg %p47
        %s381 = sand.u32 %s29, 1
        %s382 = scalar_lea.sflag [#allocation6], %s381
        %s383 = sand.u32 %s63, 1
        %s384 = smul.addr %s383, 192
        %s385 = scalar_lea.vmem [#allocation5], %s384
        %p386 = pneg %p76
        %p387 = pneg %p73
        %p388 = pneg %p97
        %p389 = pneg %p94
        %p390 = pneg %p118
        %p391 = pneg %p115
        %p392 = pneg %p139
        %p393 = pneg %p136
        %p394 = pneg %p160
        %p395 = pneg %p157
        %p396 = pneg %p181
        %p397 = pneg %p178
        %p398 = pneg %p207
        %p399 = pneg %p204
        %s400 = sand.u32 %s194, 1
        %s401 = scalar_lea.sflag [#allocation4], %s400
        %s402 = sand.u32 %s194, 1
        %s403 = smul.addr %s402, 192
        %s404 = scalar_lea.vmem [#allocation14], %s403
        %v406 = vld [vmem:[%s340] sm:$0xf]
        %v407 = vld [vmem:[%s340 + $0x4] sm:$0xf]
        %v408 = vld [vmem:[%s340 + $0xc] sm:$0xf]
        %v409 = vld [vmem:[%s340 + $0x10] sm:$0xf]
        %v410 = vld [vmem:[%s340 + $0x18] sm:$0xf]
        %v411 = vld [vmem:[%s340 + $0x1c] sm:$0xf]
        %v412 = vld [vmem:[%s340 + $0x24] sm:$0xf]
        %v413 = vld [vmem:[%s340 + $0x28] sm:$0xf]
        %v414 = vld [vmem:[%s340 + $0x30] sm:$0xf]
        %v415 = vld [vmem:[%s340 + $0x34] sm:$0xf]
        %v416 = vld [vmem:[%s340 + $0x3c] sm:$0xf]
        %v417 = vld [vmem:[%s340 + $0x40] sm:$0xf]
        %v418 = vld [vmem:[%s340 + $0x48] sm:$0xf]
        %v419 = vld [vmem:[%s340 + $0x4c] sm:$0xf]
        %v420 = vld [vmem:[%s340 + $0x54] sm:$0xf]
        %v421 = vld [vmem:[%s340 + $0x58] sm:$0xf]
        %v422 = vld [vmem:[%s340 + $0x60] sm:$0xf]
        %v423 = vld [vmem:[%s340 + $0x64] sm:$0xf]
        %v424 = vld [vmem:[%s340 + $0x6c] sm:$0xf]
        %v425 = vld [vmem:[%s340 + $0x70] sm:$0xf]
        %v426 = vld [vmem:[%s340 + $0x78] sm:$0xf]
        %v427 = vld [vmem:[%s340 + $0x7c] sm:$0xf]
        %v428 = vld [vmem:[%s340 + $0x84] sm:$0xf]
        %v429 = vld [vmem:[%s340 + $0x88] sm:$0xf]
        %v430 = vld [vmem:[#allocation7] sm:$0xf]
        %v431 = vld [vmem:[#allocation7 + $0x4] sm:$0xf]
        %v432 = vld [vmem:[#allocation7 + $0x8] sm:$0xf]
        %v433 = vld [vmem:[#allocation7 + $0xc] sm:$0xf]
        %v434 = vld [vmem:[#allocation7 + $0x10] sm:$0xf]
        %v435 = vld [vmem:[#allocation7 + $0x14] sm:$0xf]
        %v436 = vld [vmem:[#allocation7 + $0x18] sm:$0xf]
        %v437 = vld [vmem:[#allocation7 + $0x1c] sm:$0xf]
        %v438 = vld [vmem:[#allocation7 + $0x20] sm:$0xf]
        %v439 = vld [vmem:[#allocation7 + $0x24] sm:$0xf]
        %v440 = vld [vmem:[#allocation7 + $0x28] sm:$0xf]
        %v441 = vld [vmem:[#allocation7 + $0x2c] sm:$0xf]
        %v442 = vld [vmem:[#allocation7 + $0x30] sm:$0xf]
        %v443 = vld [vmem:[#allocation7 + $0x34] sm:$0xf]
        %v444 = vld [vmem:[#allocation7 + $0x38] sm:$0xf]
        %v445 = vld [vmem:[#allocation7 + $0x3c] sm:$0xf]
        %v446 = vld [vmem:[%s340 + $0x8] sm:$0x1]
        %v447 = vld [vmem:[%s340 + $0x14] sm:$0x1]
        %v448 = vld [vmem:[%s340 + $0x20] sm:$0x1]
        %v449 = vld [vmem:[%s340 + $0x2c] sm:$0x1]
        %v450 = vld [vmem:[%s340 + $0x38] sm:$0x1]
        %v451 = vld [vmem:[%s340 + $0x44] sm:$0x1]
        %v452 = vld [vmem:[%s340 + $0x50] sm:$0x1]
        %v453 = vld [vmem:[%s340 + $0x5c] sm:$0x1]
        %v454 = vld [vmem:[%s340 + $0x68] sm:$0x1]
        %v455 = vld [vmem:[%s340 + $0x74] sm:$0x1]
        %v456 = vld [vmem:[%s340 + $0x80] sm:$0x1]
        %v457 = vld [vmem:[%s340 + $0x8c] sm:$0x1]
        %vm458 = vsmask.f32 3328
        %vm459 = vsmask.f32 7440
        %vm460 = vmor %vm458, %vm459
        %v462 = vshrl.u32 %v406, 16
        %v464 = vrot.slane %v462, 4
        %v465 = vshll.u32 %v406, 16
        %v467 = vrot.slane %v465, 5
        %v468 = vor.u32 %v464, %v467
        %v469 = vrot.slane %v468, 4
        %v471 = vshll.u32 %v407, 16
        %v473 = vrot.slane %v471, 5
        %v474 = vsel %vm460, %v469, %v473
        %v475 = vshrl.u32 %v407, 16
        %v477 = vrot.slane %v475, 4
        %v478 = vor.u32 %v477, %v473
        %v479 = vrot.slane %v478, 4
        %v481 = vshll.u32 %v446, 16
        %v483 = vrot.slane %v481, 5
        %v484 = vsel %vm460, %v479, %v483
        %v486 = vshrl.u32 %v408, 16
        %v488 = vrot.slane %v486, 4
        %v489 = vshll.u32 %v408, 16
        %v491 = vrot.slane %v489, 5
        %v492 = vor.u32 %v488, %v491
        %v493 = vrot.slane %v492, 4
        %v495 = vshll.u32 %v409, 16
        %v497 = vrot.slane %v495, 5
        %v498 = vsel %vm460, %v493, %v497
        %v499 = vshrl.u32 %v409, 16
        %v501 = vrot.slane %v499, 4
        %v502 = vor.u32 %v501, %v497
        %v503 = vrot.slane %v502, 4
        %v505 = vshll.u32 %v447, 16
        %v507 = vrot.slane %v505, 5
        %v508 = vsel %vm460, %v503, %v507
        %v510 = vshrl.u32 %v410, 16
        %v512 = vrot.slane %v510, 4
        %v513 = vshll.u32 %v410, 16
        %v515 = vrot.slane %v513, 5
        %v516 = vor.u32 %v512, %v515
        %v517 = vrot.slane %v516, 4
        %v519 = vshll.u32 %v411, 16
        %v521 = vrot.slane %v519, 5
        %v522 = vsel %vm460, %v517, %v521
        %v523 = vshrl.u32 %v411, 16
        %v525 = vrot.slane %v523, 4
        %v526 = vor.u32 %v525, %v521
        %v527 = vrot.slane %v526, 4
        %v529 = vshll.u32 %v448, 16
        %v531 = vrot.slane %v529, 5
        %v532 = vsel %vm460, %v527, %v531
        %v534 = vshrl.u32 %v412, 16
        %v536 = vrot.slane %v534, 4
        %v537 = vshll.u32 %v412, 16
        %v539 = vrot.slane %v537, 5
        %v540 = vor.u32 %v536, %v539
        %v541 = vrot.slane %v540, 4
        %v543 = vshll.u32 %v413, 16
        %v545 = vrot.slane %v543, 5
        %v546 = vsel %vm460, %v541, %v545
        %v547 = vshrl.u32 %v413, 16
        %v549 = vrot.slane %v547, 4
        %v550 = vor.u32 %v549, %v545
        %v551 = vrot.slane %v550, 4
        %v553 = vshll.u32 %v449, 16
        %v555 = vrot.slane %v553, 5
        %v556 = vsel %vm460, %v551, %v555
        %v558 = vshrl.u32 %v414, 16
        %v560 = vrot.slane %v558, 4
        %v561 = vshll.u32 %v414, 16
        %v563 = vrot.slane %v561, 5
        %v564 = vor.u32 %v560, %v563
        %v565 = vrot.slane %v564, 4
        %v567 = vshll.u32 %v415, 16
        %v569 = vrot.slane %v567, 5
        %v570 = vsel %vm460, %v565, %v569
        %v571 = vshrl.u32 %v415, 16
        %v573 = vrot.slane %v571, 4
        %v574 = vor.u32 %v573, %v569
        %v575 = vrot.slane %v574, 4
        %v577 = vshll.u32 %v450, 16
        %v579 = vrot.slane %v577, 5
        %v580 = vsel %vm460, %v575, %v579
        %v582 = vshrl.u32 %v416, 16
        %v584 = vrot.slane %v582, 4
        %v585 = vshll.u32 %v416, 16
        %v587 = vrot.slane %v585, 5
        %v588 = vor.u32 %v584, %v587
        %v589 = vrot.slane %v588, 4
        %v591 = vshll.u32 %v417, 16
        %v593 = vrot.slane %v591, 5
        %v594 = vsel %vm460, %v589, %v593
        %v595 = vshrl.u32 %v417, 16
        %v597 = vrot.slane %v595, 4
        %v598 = vor.u32 %v597, %v593
        %v599 = vrot.slane %v598, 4
        %v601 = vshll.u32 %v451, 16
        %v603 = vrot.slane %v601, 5
        %v604 = vsel %vm460, %v599, %v603
        %v606 = vshrl.u32 %v418, 16
        %v608 = vrot.slane %v606, 4
        %v609 = vshll.u32 %v418, 16
        %v611 = vrot.slane %v609, 5
        %v612 = vor.u32 %v608, %v611
        %v613 = vrot.slane %v612, 4
        %v615 = vshll.u32 %v419, 16
        %v617 = vrot.slane %v615, 5
        %v618 = vsel %vm460, %v613, %v617
        %v619 = vshrl.u32 %v419, 16
        %v621 = vrot.slane %v619, 4
        %v622 = vor.u32 %v621, %v617
        %v623 = vrot.slane %v622, 4
        %v625 = vshll.u32 %v452, 16
        %v627 = vrot.slane %v625, 5
        %v628 = vsel %vm460, %v623, %v627
        %v630 = vshrl.u32 %v420, 16
        %v632 = vrot.slane %v630, 4
        %v633 = vshll.u32 %v420, 16
        %v635 = vrot.slane %v633, 5
        %v636 = vor.u32 %v632, %v635
        %v637 = vrot.slane %v636, 4
        %v639 = vshll.u32 %v421, 16
        %v641 = vrot.slane %v639, 5
        %v642 = vsel %vm460, %v637, %v641
        %v643 = vshrl.u32 %v421, 16
        %v645 = vrot.slane %v643, 4
        %v646 = vor.u32 %v645, %v641
        %v647 = vrot.slane %v646, 4
        %v649 = vshll.u32 %v453, 16
        %v651 = vrot.slane %v649, 5
        %v652 = vsel %vm460, %v647, %v651
        %v654 = vshrl.u32 %v422, 16
        %v656 = vrot.slane %v654, 4
        %v657 = vshll.u32 %v422, 16
        %v659 = vrot.slane %v657, 5
        %v660 = vor.u32 %v656, %v659
        %v661 = vrot.slane %v660, 4
        %v663 = vshll.u32 %v423, 16
        %v665 = vrot.slane %v663, 5
        %v666 = vsel %vm460, %v661, %v665
        %v667 = vshrl.u32 %v423, 16
        %v669 = vrot.slane %v667, 4
        %v670 = vor.u32 %v669, %v665
        %v671 = vrot.slane %v670, 4
        %v673 = vshll.u32 %v454, 16
        %v675 = vrot.slane %v673, 5
        %v676 = vsel %vm460, %v671, %v675
        %v678 = vshrl.u32 %v424, 16
        %v680 = vrot.slane %v678, 4
        %v681 = vshll.u32 %v424, 16
        %v683 = vrot.slane %v681, 5
        %v684 = vor.u32 %v680, %v683
        %v685 = vrot.slane %v684, 4
        %v687 = vshll.u32 %v425, 16
        %v689 = vrot.slane %v687, 5
        %v690 = vsel %vm460, %v685, %v689
        %v691 = vshrl.u32 %v425, 16
        %v693 = vrot.slane %v691, 4
        %v694 = vor.u32 %v693, %v689
        %v695 = vrot.slane %v694, 4
        %v697 = vshll.u32 %v455, 16
        %v699 = vrot.slane %v697, 5
        %v700 = vsel %vm460, %v695, %v699
        %v702 = vshrl.u32 %v426, 16
        %v704 = vrot.slane %v702, 4
        %v705 = vshll.u32 %v426, 16
        %v707 = vrot.slane %v705, 5
        %v708 = vor.u32 %v704, %v707
        %v709 = vrot.slane %v708, 4
        %v711 = vshll.u32 %v427, 16
        %v713 = vrot.slane %v711, 5
        %v714 = vsel %vm460, %v709, %v713
        %v715 = vshrl.u32 %v427, 16
        %v717 = vrot.slane %v715, 4
        %v718 = vor.u32 %v717, %v713
        %v719 = vrot.slane %v718, 4
        %v721 = vshll.u32 %v456, 16
        %v723 = vrot.slane %v721, 5
        %v724 = vsel %vm460, %v719, %v723
        %v726 = vshrl.u32 %v428, 16
        %v728 = vrot.slane %v726, 4
        %v729 = vshll.u32 %v428, 16
        %v731 = vrot.slane %v729, 5
        %v732 = vor.u32 %v728, %v731
        %v733 = vrot.slane %v732, 4
        %v735 = vshll.u32 %v429, 16
        %v737 = vrot.slane %v735, 5
        %v738 = vsel %vm460, %v733, %v737
        %v739 = vshrl.u32 %v429, 16
        %v741 = vrot.slane %v739, 4
        %v742 = vor.u32 %v741, %v737
        %v743 = vrot.slane %v742, 4
        %v745 = vshll.u32 %v457, 16
        %v747 = vrot.slane %v745, 5
        %v748 = vsel %vm460, %v743, %v747
        %s749 = scalar_lea.vmem [#allocation7], 64
        %v750 = vld [vmem:[%s749] sm:$0xf]
        %v751 = vld [vmem:[%s749 + $0x4] sm:$0xf]
        %v752 = vld [vmem:[%s749 + $0x8] sm:$0xf]
        %v753 = vld [vmem:[%s749 + $0xc] sm:$0xf]
        %v754 = vld [vmem:[%s749 + $0x10] sm:$0xf]
        %v755 = vld [vmem:[%s749 + $0x14] sm:$0xf]
        %v756 = vld [vmem:[%s749 + $0x18] sm:$0xf]
        %v757 = vld [vmem:[%s749 + $0x1c] sm:$0xf]
        %v758 = vld [vmem:[%s749 + $0x20] sm:$0xf]
        %v759 = vld [vmem:[%s749 + $0x24] sm:$0xf]
        %v760 = vld [vmem:[%s749 + $0x28] sm:$0xf]
        %v761 = vld [vmem:[%s749 + $0x2c] sm:$0xf]
        %v762 = vld [vmem:[%s749 + $0x30] sm:$0xf]
        %v763 = vld [vmem:[%s749 + $0x34] sm:$0xf]
        %v764 = vld [vmem:[%s749 + $0x38] sm:$0xf]
        %v765 = vld [vmem:[%s749 + $0x3c] sm:$0xf]
        %v766 = vunpack.c.l.b16 %v474
        %v767 = vunpack.c.l.b16 %v484
        %v768 = vunpack.c.l.b16 %v498
        %v769 = vunpack.c.l.b16 %v508
        %v770 = vunpack.c.l.b16 %v522
        %v771 = vunpack.c.l.b16 %v532
        %v772 = vunpack.c.l.b16 %v546
        %v773 = vunpack.c.l.b16 %v556
        %v774 = vunpack.c.l.b16 %v570
        %v775 = vunpack.c.l.b16 %v580
        %v776 = vunpack.c.l.b16 %v594
        %v777 = vunpack.c.l.b16 %v604
        %v778 = vunpack.c.l.b16 %v618
        %v779 = vunpack.c.l.b16 %v628
        %v780 = vunpack.c.l.b16 %v642
        %v781 = vunpack.c.l.b16 %v652
        %v782 = vunpack.c.l.b16 %v666
        %v783 = vunpack.c.l.b16 %v676
        %v784 = vunpack.c.l.b16 %v690
        %v785 = vunpack.c.l.b16 %v700
        %v786 = vunpack.c.l.b16 %v714
        %v787 = vunpack.c.l.b16 %v724
        %v788 = vunpack.c.l.b16 %v738
        %v789 = vunpack.c.l.b16 %v748
        %v790 = vpack.c.b16 %v767, %v766
        %v791 = vpack.c.b16 %v769, %v768
        %v792 = vpack.c.b16 %v771, %v770
        %v793 = vpack.c.b16 %v773, %v772
        %v794 = vpack.c.b16 %v775, %v774
        %v795 = vpack.c.b16 %v777, %v776
        %v796 = vpack.c.b16 %v779, %v778
        %v797 = vpack.c.b16 %v781, %v780
        %v798 = vpack.c.b16 %v783, %v782
        %v799 = vpack.c.b16 %v785, %v784
        %v800 = vpack.c.b16 %v787, %v786
        %v801 = vpack.c.b16 %v789, %v788
        %v830 = vunpack.c.l.b16 %v750
        %v831 = vunpack.c.l.b16 %v751
        %v832 = vunpack.c.l.b16 %v752
        %v833 = vunpack.c.l.b16 %v753
        %v834 = vunpack.c.l.b16 %v754
        %v835 = vunpack.c.l.b16 %v755
        %v836 = vunpack.c.l.b16 %v756
        %v837 = vunpack.c.l.b16 %v757
        %v838 = vunpack.c.l.b16 %v758
        %v839 = vunpack.c.l.b16 %v759
        %v840 = vunpack.c.l.b16 %v760
        %v841 = vunpack.c.l.b16 %v761
        %v842 = vunpack.c.l.b16 %v762
        %v843 = vunpack.c.l.b16 %v763
        %v844 = vunpack.c.l.b16 %v764
        %v845 = vunpack.c.l.b16 %v765
        %v846 = vpack.c.b16 %v831, %v830
        %v847 = vpack.c.b16 %v833, %v832
        %v848 = vpack.c.b16 %v835, %v834
        %v849 = vpack.c.b16 %v837, %v836
        %v850 = vpack.c.b16 %v839, %v838
        %v851 = vpack.c.b16 %v841, %v840
        %v852 = vpack.c.b16 %v843, %v842
        %v853 = vpack.c.b16 %v845, %v844
        %862 = vmatprep.subr.bf16.mxu0 0
        %863 = vmatpush1.bf16.msra.mxu0 %v846
        %864 = vmatprep.subr.bf16.mxu0 0
        %865 = vmatpush1.bf16.msra.mxu0 %v847
        %866 = vmatprep.subr.bf16.mxu0 0
        %867 = vmatpush1.bf16.msra.mxu0 %v848
        %868 = vmatprep.subr.bf16.mxu0 0
        %869 = vmatpush1.bf16.msra.mxu0 %v849
        %870 = vmatprep.subr.bf16.mxu0 0
        %871 = vmatpush1.bf16.msra.mxu0 %v850
        %872 = vmatprep.subr.bf16.mxu0 0
        %873 = vmatpush1.bf16.msra.mxu0 %v851
        %874 = vmatprep.subr.bf16.mxu0 0
        %875 = vmatpush1.bf16.msra.mxu0 %v852
        %876 = vmatprep.subr.bf16.mxu0 0
        %877 = vmatpush1.bf16.msra.mxu0 %v853
        %878 = vmatprep.subr.bf16.mxu0 0
        %879 = vmatpush1.bf16.msra.mxu0 0
        %880 = vmatprep.subr.bf16.mxu0 0
        %881 = vmatpush1.bf16.msra.mxu0 0
        %882 = vmatprep.subr.bf16.mxu0 0
        %883 = vmatpush1.bf16.msra.mxu0 0
        %884 = vmatprep.subr.bf16.mxu0 0
        %885 = vmatpush1.bf16.msra.mxu0 0
        %886 = vmatprep.subr.bf16.mxu0 0
        %887 = vmatpush1.bf16.msra.mxu0 0
        %888 = vmatprep.subr.bf16.mxu0 0
        %889 = vmatpush1.bf16.msra.mxu0 0
        %890 = vmatprep.subr.bf16.mxu0 0
        %891 = vmatpush1.bf16.msra.mxu0 0
        %892 = vmatprep.subr.bf16.mxu0 0
        %893 = vmatpush1.bf16.msra.mxu0 0
        %894 = vmatprep.mubr.bf16.mxu0 0
        %895 = vmatmul.mubr.bf16.gmra.mrb[0].mxu0 %v790
        %v896 = vpop.f32.mrb[0].mxu0
        %v897 = vadd.f32 0.0, %v896
        %v898 = vpop.f32.mrb[0].mxu0
        %v899 = vpop.f32.mrb[0].mxu0
        %v900 = vadd.f32 0.0, %v899
        %v901 = vpop.f32.mrb[0].mxu0
        %902 = vmatprep.mubr.bf16.mxu0 0
        %903 = vmatmul.mubr.bf16.gmra.mrb[0].mxu0 %v791
        %v904 = vpop.f32.mrb[0].mxu0
        %v905 = vadd.f32 0.0, %v904
        %v906 = vpop.f32.mrb[0].mxu0
        %v907 = vpop.f32.mrb[0].mxu0
        %v908 = vadd.f32 0.0, %v907
        %v909 = vpop.f32.mrb[0].mxu0
        %910 = vmatprep.mubr.bf16.mxu0 0
        %911 = vmatmul.mubr.bf16.gmra.mrb[0].mxu0 %v792
        %v912 = vpop.f32.mrb[0].mxu0
        %v913 = vadd.f32 0.0, %v912
        %v914 = vpop.f32.mrb[0].mxu0
        %v915 = vpop.f32.mrb[0].mxu0
        %v916 = vadd.f32 0.0, %v915
        %v917 = vpop.f32.mrb[0].mxu0
        %918 = vmatprep.mubr.bf16.mxu0 0
        %919 = vmatmul.mubr.bf16.gmra.mrb[0].mxu0 %v793
        %v920 = vpop.f32.mrb[0].mxu0
        %v921 = vadd.f32 0.0, %v920
        %v922 = vpop.f32.mrb[0].mxu0
        %v923 = vpop.f32.mrb[0].mxu0
        %v924 = vadd.f32 0.0, %v923
        %v925 = vpop.f32.mrb[0].mxu0
        %926 = vmatprep.mubr.bf16.mxu0 0
        %927 = vmatmul.mubr.bf16.gmra.mrb[0].mxu0 %v794
        %v928 = vpop.f32.mrb[0].mxu0
        %v929 = vadd.f32 0.0, %v928
        %v930 = vpop.f32.mrb[0].mxu0
        %v931 = vpop.f32.mrb[0].mxu0
        %v932 = vadd.f32 0.0, %v931
        %v933 = vpop.f32.mrb[0].mxu0
        %934 = vmatprep.mubr.bf16.mxu0 0
        %935 = vmatmul.mubr.bf16.gmra.mrb[0].mxu0 %v795
        %v936 = vpop.f32.mrb[0].mxu0
        %v937 = vadd.f32 0.0, %v936
        %v938 = vpop.f32.mrb[0].mxu0
        %v939 = vpop.f32.mrb[0].mxu0
        %v940 = vadd.f32 0.0, %v939
        %v941 = vpop.f32.mrb[0].mxu0
        %942 = vmatprep.mubr.bf16.mxu0 0
        %943 = vmatmul.mubr.bf16.gmra.mrb[0].mxu0 %v796
        %v944 = vpop.f32.mrb[0].mxu0
        %v945 = vadd.f32 0.0, %v944
        %v946 = vpop.f32.mrb[0].mxu0
        %v947 = vpop.f32.mrb[0].mxu0
        %v948 = vadd.f32 0.0, %v947
        %v949 = vpop.f32.mrb[0].mxu0
        %950 = vmatprep.mubr.bf16.mxu0 0
        %951 = vmatmul.mubr.bf16.gmra.mrb[0].mxu0 %v797
        %v952 = vpop.f32.mrb[0].mxu0
        %v953 = vadd.f32 0.0, %v952
        %v954 = vpop.f32.mrb[0].mxu0
        %v955 = vpop.f32.mrb[0].mxu0
        %v956 = vadd.f32 0.0, %v955
        %v957 = vpop.f32.mrb[0].mxu0
        %958 = vmatprep.mubr.bf16.mxu0 0
        %959 = vmatmul.mubr.bf16.gmra.mrb[0].mxu0 %v798
        %v960 = vpop.f32.mrb[0].mxu0
        %v961 = vadd.f32 0.0, %v960
        %v962 = vpop.f32.mrb[0].mxu0
        %v963 = vpop.f32.mrb[0].mxu0
        %v964 = vadd.f32 0.0, %v963
        %v965 = vpop.f32.mrb[0].mxu0
        %966 = vmatprep.mubr.bf16.mxu0 0
        %967 = vmatmul.mubr.bf16.gmra.mrb[0].mxu0 %v799
        %v968 = vpop.f32.mrb[0].mxu0
        %v969 = vadd.f32 0.0, %v968
        %v970 = vpop.f32.mrb[0].mxu0
        %v971 = vpop.f32.mrb[0].mxu0
        %v972 = vadd.f32 0.0, %v971
        %v973 = vpop.f32.mrb[0].mxu0
        %974 = vmatprep.mubr.bf16.mxu0 0
        %975 = vmatmul.mubr.bf16.gmra.mrb[0].mxu0 %v800
        %v976 = vpop.f32.mrb[0].mxu0
        %v977 = vadd.f32 0.0, %v976
        %v978 = vpop.f32.mrb[0].mxu0
        %v979 = vpop.f32.mrb[0].mxu0
        %v980 = vadd.f32 0.0, %v979
        %v981 = vpop.f32.mrb[0].mxu0
        %982 = vmatprep.mubr.bf16.mxu0 0
        %983 = vmatmul.mubr.bf16.gmra.mrb[0].mxu0 %v801
        %v984 = vpop.f32.mrb[0].mxu0
        %v985 = vadd.f32 0.0, %v984
        %v986 = vpop.f32.mrb[0].mxu0
        %v987 = vpop.f32.mrb[0].mxu0
        %v988 = vadd.f32 0.0, %v987
        %v989 = vpop.f32.mrb[0].mxu0
        %990 = vdwg.mxu0
        %v1015 = vunpack.c.l.b16 %v406
        %v1016 = vunpack.c.l.b16 %v407
        %v1017 = vunpack.c.l.b16 %v408
        %v1018 = vunpack.c.l.b16 %v409
        %v1019 = vunpack.c.l.b16 %v410
        %v1020 = vunpack.c.l.b16 %v411
        %v1021 = vunpack.c.l.b16 %v412
        %v1022 = vunpack.c.l.b16 %v413
        %v1023 = vunpack.c.l.b16 %v414
        %v1024 = vunpack.c.l.b16 %v415
        %v1025 = vunpack.c.l.b16 %v416
        %v1026 = vunpack.c.l.b16 %v417
        %v1027 = vunpack.c.l.b16 %v418
        %v1028 = vunpack.c.l.b16 %v419
        %v1029 = vunpack.c.l.b16 %v420
        %v1030 = vunpack.c.l.b16 %v421
        %v1031 = vunpack.c.l.b16 %v422
        %v1032 = vunpack.c.l.b16 %v423
        %v1033 = vunpack.c.l.b16 %v424
        %v1034 = vunpack.c.l.b16 %v425
        %v1035 = vunpack.c.l.b16 %v426
        %v1036 = vunpack.c.l.b16 %v427
        %v1037 = vunpack.c.l.b16 %v428
        %v1038 = vunpack.c.l.b16 %v429
        %v1039 = vpack.c.b16 %v1016, %v1015
        %v1040 = vpack.c.b16 %v1018, %v1017
        %v1041 = vpack.c.b16 %v1020, %v1019
        %v1042 = vpack.c.b16 %v1022, %v1021
        %v1043 = vpack.c.b16 %v1024, %v1023
        %v1044 = vpack.c.b16 %v1026, %v1025
        %v1045 = vpack.c.b16 %v1028, %v1027
        %v1046 = vpack.c.b16 %v1030, %v1029
        %v1047 = vpack.c.b16 %v1032, %v1031
        %v1048 = vpack.c.b16 %v1034, %v1033
        %v1049 = vpack.c.b16 %v1036, %v1035
        %v1050 = vpack.c.b16 %v1038, %v1037
        %v1079 = vunpack.c.l.b16 %v430
        %v1080 = vunpack.c.l.b16 %v431
        %v1081 = vunpack.c.l.b16 %v432
        %v1082 = vunpack.c.l.b16 %v433
        %v1083 = vunpack.c.l.b16 %v434
        %v1084 = vunpack.c.l.b16 %v435
        %v1085 = vunpack.c.l.b16 %v436
        %v1086 = vunpack.c.l.b16 %v437
        %v1087 = vunpack.c.l.b16 %v438
        %v1088 = vunpack.c.l.b16 %v439
        %v1089 = vunpack.c.l.b16 %v440
        %v1090 = vunpack.c.l.b16 %v441
        %v1091 = vunpack.c.l.b16 %v442
        %v1092 = vunpack.c.l.b16 %v443
        %v1093 = vunpack.c.l.b16 %v444
        %v1094 = vunpack.c.l.b16 %v445
        %v1095 = vpack.c.b16 %v1080, %v1079
        %v1096 = vpack.c.b16 %v1082, %v1081
        %v1097 = vpack.c.b16 %v1084, %v1083
        %v1098 = vpack.c.b16 %v1086, %v1085
        %v1099 = vpack.c.b16 %v1088, %v1087
        %v1100 = vpack.c.b16 %v1090, %v1089
        %v1101 = vpack.c.b16 %v1092, %v1091
        %v1102 = vpack.c.b16 %v1094, %v1093
        %1111 = vmatprep.subr.bf16.mxu0 0
        %1112 = vmatpush1.bf16.msra.mxu0 %v1095
        %1113 = vmatprep.subr.bf16.mxu0 0
        %1114 = vmatpush1.bf16.msra.mxu0 %v1096
        %1115 = vmatprep.subr.bf16.mxu0 0
        %1116 = vmatpush1.bf16.msra.mxu0 %v1097
        %1117 = vmatprep.subr.bf16.mxu0 0
        %1118 = vmatpush1.bf16.msra.mxu0 %v1098
        %1119 = vmatprep.subr.bf16.mxu0 0
        %1120 = vmatpush1.bf16.msra.mxu0 %v1099
        %1121 = vmatprep.subr.bf16.mxu0 0
        %1122 = vmatpush1.bf16.msra.mxu0 %v1100
        %1123 = vmatprep.subr.bf16.mxu0 0
        %1124 = vmatpush1.bf16.msra.mxu0 %v1101
        %1125 = vmatprep.subr.bf16.mxu0 0
        %1126 = vmatpush1.bf16.msra.mxu0 %v1102
        %1127 = vmatprep.subr.bf16.mxu0 0
        %1128 = vmatpush1.bf16.msra.mxu0 0
        %1129 = vmatprep.subr.bf16.mxu0 0
        %1130 = vmatpush1.bf16.msra.mxu0 0
        %1131 = vmatprep.subr.bf16.mxu0 0
        %1132 = vmatpush1.bf16.msra.mxu0 0
        %1133 = vmatprep.subr.bf16.mxu0 0
        %1134 = vmatpush1.bf16.msra.mxu0 0
        %1135 = vmatprep.subr.bf16.mxu0 0
        %1136 = vmatpush1.bf16.msra.mxu0 0
        %1137 = vmatprep.subr.bf16.mxu0 0
        %1138 = vmatpush1.bf16.msra.mxu0 0
        %1139 = vmatprep.subr.bf16.mxu0 0
        %1140 = vmatpush1.bf16.msra.mxu0 0
        %1141 = vmatprep.subr.bf16.mxu0 0
        %1142 = vmatpush1.bf16.msra.mxu0 0
        %1143 = vmatprep.mubr.bf16.mxu0 0
        %1144 = vmatmul.mubr.bf16.gmra.mrb[0].mxu0 %v1039
        %v1145 = vpop.f32.mrb[0].mxu0
        %v1146 = vadd.f32 %v897, %v1145
        %v1147 = vpop.f32.mrb[0].mxu0
        %v1148 = vpop.f32.mrb[0].mxu0
        %v1149 = vadd.f32 %v900, %v1148
        %v1150 = vpop.f32.mrb[0].mxu0
        %1151 = vmatprep.mubr.bf16.mxu0 0
        %1152 = vmatmul.mubr.bf16.gmra.mrb[0].mxu0 %v1040
        %v1153 = vpop.f32.mrb[0].mxu0
        %v1154 = vadd.f32 %v905, %v1153
        %v1155 = vpop.f32.mrb[0].mxu0
        %v1156 = vpop.f32.mrb[0].mxu0
        %v1157 = vadd.f32 %v908, %v1156
        %v1158 = vpop.f32.mrb[0].mxu0
        %1159 = vmatprep.mubr.bf16.mxu0 0
        %1160 = vmatmul.mubr.bf16.gmra.mrb[0].mxu0 %v1041
        %v1161 = vpop.f32.mrb[0].mxu0
        %v1162 = vadd.f32 %v913, %v1161
        %v1163 = vpop.f32.mrb[0].mxu0
        %v1164 = vpop.f32.mrb[0].mxu0
        %v1165 = vadd.f32 %v916, %v1164
        %v1166 = vpop.f32.mrb[0].mxu0
        %1167 = vmatprep.mubr.bf16.mxu0 0
        %1168 = vmatmul.mubr.bf16.gmra.mrb[0].mxu0 %v1042
        %v1169 = vpop.f32.mrb[0].mxu0
        %v1170 = vadd.f32 %v921, %v1169
        %v1171 = vpop.f32.mrb[0].mxu0
        %v1172 = vpop.f32.mrb[0].mxu0
        %v1173 = vadd.f32 %v924, %v1172
        %v1174 = vpop.f32.mrb[0].mxu0
        %1175 = vmatprep.mubr.bf16.mxu0 0
        %1176 = vmatmul.mubr.bf16.gmra.mrb[0].mxu0 %v1043
        %v1177 = vpop.f32.mrb[0].mxu0
        %v1178 = vadd.f32 %v929, %v1177
        %v1179 = vpop.f32.mrb[0].mxu0
        %v1180 = vpop.f32.mrb[0].mxu0
        %v1181 = vadd.f32 %v932, %v1180
        %v1182 = vpop.f32.mrb[0].mxu0
        %1183 = vmatprep.mubr.bf16.mxu0 0
        %1184 = vmatmul.mubr.bf16.gmra.mrb[0].mxu0 %v1044
        %v1185 = vpop.f32.mrb[0].mxu0
        %v1186 = vadd.f32 %v937, %v1185
        %v1187 = vpop.f32.mrb[0].mxu0
        %v1188 = vpop.f32.mrb[0].mxu0
        %v1189 = vadd.f32 %v940, %v1188
        %v1190 = vpop.f32.mrb[0].mxu0
        %1191 = vmatprep.mubr.bf16.mxu0 0
        %1192 = vmatmul.mubr.bf16.gmra.mrb[0].mxu0 %v1045
        %v1193 = vpop.f32.mrb[0].mxu0
        %v1194 = vadd.f32 %v945, %v1193
        %v1195 = vpop.f32.mrb[0].mxu0
        %v1196 = vpop.f32.mrb[0].mxu0
        %v1197 = vadd.f32 %v948, %v1196
        %v1198 = vpop.f32.mrb[0].mxu0
        %1199 = vmatprep.mubr.bf16.mxu0 0
        %1200 = vmatmul.mubr.bf16.gmra.mrb[0].mxu0 %v1046
        %v1201 = vpop.f32.mrb[0].mxu0
        %v1202 = vadd.f32 %v953, %v1201
        %v1203 = vpop.f32.mrb[0].mxu0
        %v1204 = vpop.f32.mrb[0].mxu0
        %v1205 = vadd.f32 %v956, %v1204
        %v1206 = vpop.f32.mrb[0].mxu0
        %1207 = vmatprep.mubr.bf16.mxu0 0
        %1208 = vmatmul.mubr.bf16.gmra.mrb[0].mxu0 %v1047
        %v1209 = vpop.f32.mrb[0].mxu0
        %v1210 = vadd.f32 %v961, %v1209
        %v1211 = vpop.f32.mrb[0].mxu0
        %v1212 = vpop.f32.mrb[0].mxu0
        %v1213 = vadd.f32 %v964, %v1212
        %v1214 = vpop.f32.mrb[0].mxu0
        %1215 = vmatprep.mubr.bf16.mxu0 0
        %1216 = vmatmul.mubr.bf16.gmra.mrb[0].mxu0 %v1048
        %v1217 = vpop.f32.mrb[0].mxu0
        %v1218 = vadd.f32 %v969, %v1217
        %v1219 = vpop.f32.mrb[0].mxu0
        %v1220 = vpop.f32.mrb[0].mxu0
        %v1221 = vadd.f32 %v972, %v1220
        %v1222 = vpop.f32.mrb[0].mxu0
        %1223 = vmatprep.mubr.bf16.mxu0 0
        %1224 = vmatmul.mubr.bf16.gmra.mrb[0].mxu0 %v1049
        %v1225 = vpop.f32.mrb[0].mxu0
        %v1226 = vadd.f32 %v977, %v1225
        %v1227 = vpop.f32.mrb[0].mxu0
        %v1228 = vpop.f32.mrb[0].mxu0
        %v1229 = vadd.f32 %v980, %v1228
        %v1230 = vpop.f32.mrb[0].mxu0
        %1231 = vmatprep.mubr.bf16.mxu0 0
        %1232 = vmatmul.mubr.bf16.gmra.mrb[0].mxu0 %v1050
        %v1233 = vpop.f32.mrb[0].mxu0
        %v1234 = vadd.f32 %v985, %v1233
        %v1235 = vpop.f32.mrb[0].mxu0
        %v1236 = vpop.f32.mrb[0].mxu0
        %v1237 = vadd.f32 %v988, %v1236
        %v1238 = vpop.f32.mrb[0].mxu0
        %1239 = vdwg.mxu0
        %v1240 = vld [vmem:[%s340] sm:$0xe]
        %v1241 = vld [vmem:[%s340 + $0xc] sm:$0xe]
        %v1242 = vld [vmem:[%s340 + $0x18] sm:$0xe]
        %v1243 = vld [vmem:[%s340 + $0x24] sm:$0xe]
        %v1244 = vld [vmem:[%s340 + $0x30] sm:$0xe]
        %v1245 = vld [vmem:[%s340 + $0x3c] sm:$0xe]
        %v1246 = vld [vmem:[%s340 + $0x48] sm:$0xe]
        %v1247 = vld [vmem:[%s340 + $0x54] sm:$0xe]
        %v1248 = vld [vmem:[%s340 + $0x60] sm:$0xe]
        %v1249 = vld [vmem:[%s340 + $0x6c] sm:$0xe]
        %v1250 = vld [vmem:[%s340 + $0x78] sm:$0xe]
        %v1251 = vld [vmem:[%s340 + $0x84] sm:$0xe]
        %vm1276 = vcmask 1042432
        %vm1277 = vcmask 1046532
        %vm1278 = vmor %vm1276, %vm1277
        %v1279 = vrot.slane %v1240, 5
        %v1280 = vrot.slane %v1279, 4
        %v1281 = vrot.slane %v407, 5
        %v1282 = vsel %vm1278, %v1280, %v1281
        %v1283 = vrot.slane %v1281, 4
        %v1284 = vrot.slane %v446, 5
        %v1285 = vsel %vm1278, %v1283, %v1284
        %v1286 = vrot.slane %v1241, 5
        %v1287 = vrot.slane %v1286, 4
        %v1288 = vrot.slane %v409, 5
        %v1289 = vsel %vm1278, %v1287, %v1288
        %v1290 = vrot.slane %v1288, 4
        %v1291 = vrot.slane %v447, 5
        %v1292 = vsel %vm1278, %v1290, %v1291
        %v1293 = vrot.slane %v1242, 5
        %v1294 = vrot.slane %v1293, 4
        %v1295 = vrot.slane %v411, 5
        %v1296 = vsel %vm1278, %v1294, %v1295
        %v1297 = vrot.slane %v1295, 4
        %v1298 = vrot.slane %v448, 5
        %v1299 = vsel %vm1278, %v1297, %v1298
        %v1300 = vrot.slane %v1243, 5
        %v1301 = vrot.slane %v1300, 4
        %v1302 = vrot.slane %v413, 5
        %v1303 = vsel %vm1278, %v1301, %v1302
        %v1304 = vrot.slane %v1302, 4
        %v1305 = vrot.slane %v449, 5
        %v1306 = vsel %vm1278, %v1304, %v1305
        %v1307 = vrot.slane %v1244, 5
        %v1308 = vrot.slane %v1307, 4
        %v1309 = vrot.slane %v415, 5
        %v1310 = vsel %vm1278, %v1308, %v1309
        %v1311 = vrot.slane %v1309, 4
        %v1312 = vrot.slane %v450, 5
        %v1313 = vsel %vm1278, %v1311, %v1312
        %v1314 = vrot.slane %v1245, 5
        %v1315 = vrot.slane %v1314, 4
        %v1316 = vrot.slane %v417, 5
        %v1317 = vsel %vm1278, %v1315, %v1316
        %v1318 = vrot.slane %v1316, 4
        %v1319 = vrot.slane %v451, 5
        %v1320 = vsel %vm1278, %v1318, %v1319
        %v1321 = vrot.slane %v1246, 5
        %v1322 = vrot.slane %v1321, 4
        %v1323 = vrot.slane %v419, 5
        %v1324 = vsel %vm1278, %v1322, %v1323
        %v1325 = vrot.slane %v1323, 4
        %v1326 = vrot.slane %v452, 5
        %v1327 = vsel %vm1278, %v1325, %v1326
        %v1328 = vrot.slane %v1247, 5
        %v1329 = vrot.slane %v1328, 4
        %v1330 = vrot.slane %v421, 5
        %v1331 = vsel %vm1278, %v1329, %v1330
        %v1332 = vrot.slane %v1330, 4
        %v1333 = vrot.slane %v453, 5
        %v1334 = vsel %vm1278, %v1332, %v1333
        %v1335 = vrot.slane %v1248, 5
        %v1336 = vrot.slane %v1335, 4
        %v1337 = vrot.slane %v423, 5
        %v1338 = vsel %vm1278, %v1336, %v1337
        %v1339 = vrot.slane %v1337, 4
        %v1340 = vrot.slane %v454, 5
        %v1341 = vsel %vm1278, %v1339, %v1340
        %v1342 = vrot.slane %v1249, 5
        %v1343 = vrot.slane %v1342, 4
        %v1344 = vrot.slane %v425, 5
        %v1345 = vsel %vm1278, %v1343, %v1344
        %v1346 = vrot.slane %v1344, 4
        %v1347 = vrot.slane %v455, 5
        %v1348 = vsel %vm1278, %v1346, %v1347
        %v1349 = vrot.slane %v1250, 5
        %v1350 = vrot.slane %v1349, 4
        %v1351 = vrot.slane %v427, 5
        %v1352 = vsel %vm1278, %v1350, %v1351
        %v1353 = vrot.slane %v1351, 4
        %v1354 = vrot.slane %v456, 5
        %v1355 = vsel %vm1278, %v1353, %v1354
        %v1356 = vrot.slane %v1251, 5
        %v1357 = vrot.slane %v1356, 4
        %v1358 = vrot.slane %v429, 5
        %v1359 = vsel %vm1278, %v1357, %v1358
        %v1360 = vrot.slane %v1358, 4
        %v1361 = vrot.slane %v457, 5
        %v1362 = vsel %vm1278, %v1360, %v1361
        %s1363 = scalar_lea.vmem [#allocation7], 128
        %v1364 = vld [vmem:[%s1363] sm:$0xf]
        %v1365 = vld [vmem:[%s1363 + $0x4] sm:$0xf]
        %v1366 = vld [vmem:[%s1363 + $0x8] sm:$0xf]
        %v1367 = vld [vmem:[%s1363 + $0xc] sm:$0xf]
        %v1368 = vld [vmem:[%s1363 + $0x10] sm:$0xf]
        %v1369 = vld [vmem:[%s1363 + $0x14] sm:$0xf]
        %v1370 = vld [vmem:[%s1363 + $0x18] sm:$0xf]
        %v1371 = vld [vmem:[%s1363 + $0x1c] sm:$0xf]
        %v1372 = vld [vmem:[%s1363 + $0x20] sm:$0xf]
        %v1373 = vld [vmem:[%s1363 + $0x24] sm:$0xf]
        %v1374 = vld [vmem:[%s1363 + $0x28] sm:$0xf]
        %v1375 = vld [vmem:[%s1363 + $0x2c] sm:$0xf]
        %v1376 = vld [vmem:[%s1363 + $0x30] sm:$0xf]
        %v1377 = vld [vmem:[%s1363 + $0x34] sm:$0xf]
        %v1378 = vld [vmem:[%s1363 + $0x38] sm:$0xf]
        %v1379 = vld [vmem:[%s1363 + $0x3c] sm:$0xf]
        %v1380 = vunpack.c.l.b16 %v1282
        %v1381 = vunpack.c.l.b16 %v1285
        %v1382 = vunpack.c.l.b16 %v1289
        %v1383 = vunpack.c.l.b16 %v1292
        %v1384 = vunpack.c.l.b16 %v1296
        %v1385 = vunpack.c.l.b16 %v1299
        %v1386 = vunpack.c.l.b16 %v1303
        %v1387 = vunpack.c.l.b16 %v1306
        %v1388 = vunpack.c.l.b16 %v1310
        %v1389 = vunpack.c.l.b16 %v1313
        %v1390 = vunpack.c.l.b16 %v1317
        %v1391 = vunpack.c.l.b16 %v1320
        %v1392 = vunpack.c.l.b16 %v1324
        %v1393 = vunpack.c.l.b16 %v1327
        %v1394 = vunpack.c.l.b16 %v1331
        %v1395 = vunpack.c.l.b16 %v1334
        %v1396 = vunpack.c.l.b16 %v1338
        %v1397 = vunpack.c.l.b16 %v1341
        %v1398 = vunpack.c.l.b16 %v1345
        %v1399 = vunpack.c.l.b16 %v1348
        %v1400 = vunpack.c.l.b16 %v1352
        %v1401 = vunpack.c.l.b16 %v1355
        %v1402 = vunpack.c.l.b16 %v1359
        %v1403 = vunpack.c.l.b16 %v1362
        %v1404 = vpack.c.b16 %v1381, %v1380
        %v1405 = vpack.c.b16 %v1383, %v1382
        %v1406 = vpack.c.b16 %v1385, %v1384
        %v1407 = vpack.c.b16 %v1387, %v1386
        %v1408 = vpack.c.b16 %v1389, %v1388
        %v1409 = vpack.c.b16 %v1391, %v1390
        %v1410 = vpack.c.b16 %v1393, %v1392
        %v1411 = vpack.c.b16 %v1395, %v1394
        %v1412 = vpack.c.b16 %v1397, %v1396
        %v1413 = vpack.c.b16 %v1399, %v1398
        %v1414 = vpack.c.b16 %v1401, %v1400
        %v1415 = vpack.c.b16 %v1403, %v1402
        %v1444 = vunpack.c.l.b16 %v1364
        %v1445 = vunpack.c.l.b16 %v1365
        %v1446 = vunpack.c.l.b16 %v1366
        %v1447 = vunpack.c.l.b16 %v1367
        %v1448 = vunpack.c.l.b16 %v1368
        %v1449 = vunpack.c.l.b16 %v1369
        %v1450 = vunpack.c.l.b16 %v1370
        %v1451 = vunpack.c.l.b16 %v1371
        %v1452 = vunpack.c.l.b16 %v1372
        %v1453 = vunpack.c.l.b16 %v1373
        %v1454 = vunpack.c.l.b16 %v1374
        %v1455 = vunpack.c.l.b16 %v1375
        %v1456 = vunpack.c.l.b16 %v1376
        %v1457 = vunpack.c.l.b16 %v1377
        %v1458 = vunpack.c.l.b16 %v1378
        %v1459 = vunpack.c.l.b16 %v1379
        %v1460 = vpack.c.b16 %v1445, %v1444
        %v1461 = vpack.c.b16 %v1447, %v1446
        %v1462 = vpack.c.b16 %v1449, %v1448
        %v1463 = vpack.c.b16 %v1451, %v1450
        %v1464 = vpack.c.b16 %v1453, %v1452
        %v1465 = vpack.c.b16 %v1455, %v1454
        %v1466 = vpack.c.b16 %v1457, %v1456
        %v1467 = vpack.c.b16 %v1459, %v1458
        %1476 = vmatprep.subr.bf16.mxu0 0
        %1477 = vmatpush1.bf16.msra.mxu0 %v1460
        %1478 = vmatprep.subr.bf16.mxu0 0
        %1479 = vmatpush1.bf16.msra.mxu0 %v1461
        %1480 = vmatprep.subr.bf16.mxu0 0
        %1481 = vmatpush1.bf16.msra.mxu0 %v1462
        %1482 = vmatprep.subr.bf16.mxu0 0
        %1483 = vmatpush1.bf16.msra.mxu0 %v1463
        %1484 = vmatprep.subr.bf16.mxu0 0
        %1485 = vmatpush1.bf16.msra.mxu0 %v1464
        %1486 = vmatprep.subr.bf16.mxu0 0
        %1487 = vmatpush1.bf16.msra.mxu0 %v1465
        %1488 = vmatprep.subr.bf16.mxu0 0
        %1489 = vmatpush1.bf16.msra.mxu0 %v1466
        %1490 = vmatprep.subr.bf16.mxu0 0
        %1491 = vmatpush1.bf16.msra.mxu0 %v1467
        %1492 = vmatprep.subr.bf16.mxu0 0
        %1493 = vmatpush1.bf16.msra.mxu0 0
        %1494 = vmatprep.subr.bf16.mxu0 0
        %1495 = vmatpush1.bf16.msra.mxu0 0
        %1496 = vmatprep.subr.bf16.mxu0 0
        %1497 = vmatpush1.bf16.msra.mxu0 0
        %1498 = vmatprep.subr.bf16.mxu0 0
        %1499 = vmatpush1.bf16.msra.mxu0 0
        %1500 = vmatprep.subr.bf16.mxu0 0
        %1501 = vmatpush1.bf16.msra.mxu0 0
        %1502 = vmatprep.subr.bf16.mxu0 0
        %1503 = vmatpush1.bf16.msra.mxu0 0
        %1504 = vmatprep.subr.bf16.mxu0 0
        %1505 = vmatpush1.bf16.msra.mxu0 0
        %1506 = vmatprep.subr.bf16.mxu0 0
        %1507 = vmatpush1.bf16.msra.mxu0 0
        %1508 = vmatprep.mubr.bf16.mxu0 0
        %1509 = vmatmul.mubr.bf16.gmra.mrb[0].mxu0 %v1404
        %v1510 = vpop.f32.mrb[0].mxu0
        %v1511 = vadd.f32 0.0, %v1510
        %v1512 = vpop.f32.mrb[0].mxu0
        %v1513 = vpop.f32.mrb[0].mxu0
        %v1514 = vadd.f32 0.0, %v1513
        %v1515 = vpop.f32.mrb[0].mxu0
        %1516 = vmatprep.mubr.bf16.mxu0 0
        %1517 = vmatmul.mubr.bf16.gmra.mrb[0].mxu0 %v1405
        %v1518 = vpop.f32.mrb[0].mxu0
        %v1519 = vadd.f32 0.0, %v1518
        %v1520 = vpop.f32.mrb[0].mxu0
        %v1521 = vpop.f32.mrb[0].mxu0
        %v1522 = vadd.f32 0.0, %v1521
        %v1523 = vpop.f32.mrb[0].mxu0
        %1524 = vmatprep.mubr.bf16.mxu0 0
        %1525 = vmatmul.mubr.bf16.gmra.mrb[0].mxu0 %v1406
        %v1526 = vpop.f32.mrb[0].mxu0
        %v1527 = vadd.f32 0.0, %v1526
        %v1528 = vpop.f32.mrb[0].mxu0
        %v1529 = vpop.f32.mrb[0].mxu0
        %v1530 = vadd.f32 0.0, %v1529
        %v1531 = vpop.f32.mrb[0].mxu0
        %1532 = vmatprep.mubr.bf16.mxu0 0
        %1533 = vmatmul.mubr.bf16.gmra.mrb[0].mxu0 %v1407
        %v1534 = vpop.f32.mrb[0].mxu0
        %v1535 = vadd.f32 0.0, %v1534
        %v1536 = vpop.f32.mrb[0].mxu0
        %v1537 = vpop.f32.mrb[0].mxu0
        %v1538 = vadd.f32 0.0, %v1537
        %v1539 = vpop.f32.mrb[0].mxu0
        %1540 = vmatprep.mubr.bf16.mxu0 0
        %1541 = vmatmul.mubr.bf16.gmra.mrb[0].mxu0 %v1408
        %v1542 = vpop.f32.mrb[0].mxu0
        %v1543 = vadd.f32 0.0, %v1542
        %v1544 = vpop.f32.mrb[0].mxu0
        %v1545 = vpop.f32.mrb[0].mxu0
        %v1546 = vadd.f32 0.0, %v1545
        %v1547 = vpop.f32.mrb[0].mxu0
        %1548 = vmatprep.mubr.bf16.mxu0 0
        %1549 = vmatmul.mubr.bf16.gmra.mrb[0].mxu0 %v1409
        %v1550 = vpop.f32.mrb[0].mxu0
        %v1551 = vadd.f32 0.0, %v1550
        %v1552 = vpop.f32.mrb[0].mxu0
        %v1553 = vpop.f32.mrb[0].mxu0
        %v1554 = vadd.f32 0.0, %v1553
        %v1555 = vpop.f32.mrb[0].mxu0
        %1556 = vmatprep.mubr.bf16.mxu0 0
        %1557 = vmatmul.mubr.bf16.gmra.mrb[0].mxu0 %v1410
        %v1558 = vpop.f32.mrb[0].mxu0
        %v1559 = vadd.f32 0.0, %v1558
        %v1560 = vpop.f32.mrb[0].mxu0
        %v1561 = vpop.f32.mrb[0].mxu0
        %v1562 = vadd.f32 0.0, %v1561
        %v1563 = vpop.f32.mrb[0].mxu0
        %1564 = vmatprep.mubr.bf16.mxu0 0
        %1565 = vmatmul.mubr.bf16.gmra.mrb[0].mxu0 %v1411
        %v1566 = vpop.f32.mrb[0].mxu0
        %v1567 = vadd.f32 0.0, %v1566
        %v1568 = vpop.f32.mrb[0].mxu0
        %v1569 = vpop.f32.mrb[0].mxu0
        %v1570 = vadd.f32 0.0, %v1569
        %v1571 = vpop.f32.mrb[0].mxu0
        %1572 = vmatprep.mubr.bf16.mxu0 0
        %1573 = vmatmul.mubr.bf16.gmra.mrb[0].mxu0 %v1412
        %v1574 = vpop.f32.mrb[0].mxu0
        %v1575 = vadd.f32 0.0, %v1574
        %v1576 = vpop.f32.mrb[0].mxu0
        %v1577 = vpop.f32.mrb[0].mxu0
        %v1578 = vadd.f32 0.0, %v1577
        %v1579 = vpop.f32.mrb[0].mxu0
        %1580 = vmatprep.mubr.bf16.mxu0 0
        %1581 = vmatmul.mubr.bf16.gmra.mrb[0].mxu0 %v1413
        %v1582 = vpop.f32.mrb[0].mxu0
        %v1583 = vadd.f32 0.0, %v1582
        %v1584 = vpop.f32.mrb[0].mxu0
        %v1585 = vpop.f32.mrb[0].mxu0
        %v1586 = vadd.f32 0.0, %v1585
        %v1587 = vpop.f32.mrb[0].mxu0
        %1588 = vmatprep.mubr.bf16.mxu0 0
        %1589 = vmatmul.mubr.bf16.gmra.mrb[0].mxu0 %v1414
        %v1590 = vpop.f32.mrb[0].mxu0
        %v1591 = vadd.f32 0.0, %v1590
        %v1592 = vpop.f32.mrb[0].mxu0
        %v1593 = vpop.f32.mrb[0].mxu0
        %v1594 = vadd.f32 0.0, %v1593
        %v1595 = vpop.f32.mrb[0].mxu0
        %1596 = vmatprep.mubr.bf16.mxu0 0
        %1597 = vmatmul.mubr.bf16.gmra.mrb[0].mxu0 %v1415
        %v1598 = vpop.f32.mrb[0].mxu0
        %v1599 = vadd.f32 0.0, %v1598
        %v1600 = vpop.f32.mrb[0].mxu0
        %v1601 = vpop.f32.mrb[0].mxu0
        %v1602 = vadd.f32 0.0, %v1601
        %v1603 = vpop.f32.mrb[0].mxu0
        %1604 = vdwg.mxu0
        %v1605 = vadd.f32 %v1146, %v1511
        %v1606 = vadd.f32 %v1149, %v1514
        %v1607 = vadd.f32 %v1154, %v1519
        %v1608 = vadd.f32 %v1157, %v1522
        %v1609 = vadd.f32 %v1162, %v1527
        %v1610 = vadd.f32 %v1165, %v1530
        %v1611 = vadd.f32 %v1170, %v1535
        %v1612 = vadd.f32 %v1173, %v1538
        %v1613 = vadd.f32 %v1178, %v1543
        %v1614 = vadd.f32 %v1181, %v1546
        %v1615 = vadd.f32 %v1186, %v1551
        %v1616 = vadd.f32 %v1189, %v1554
        %v1617 = vadd.f32 %v1194, %v1559
        %v1618 = vadd.f32 %v1197, %v1562
        %v1619 = vadd.f32 %v1202, %v1567
        %v1620 = vadd.f32 %v1205, %v1570
        %v1621 = vadd.f32 %v1210, %v1575
        %v1622 = vadd.f32 %v1213, %v1578
        %v1623 = vadd.f32 %v1218, %v1583
        %v1624 = vadd.f32 %v1221, %v1586
        %v1625 = vadd.f32 %v1226, %v1591
        %v1626 = vadd.f32 %v1229, %v1594
        %v1627 = vadd.f32 %v1234, %v1599
        %v1628 = vadd.f32 %v1237, %v1602
        %s1629 = scalar_lea.vmem %s340, 12 [#allocation2]
        %v1630 = vld [vmem:[%s1629] sm:$0xf]
        %v1631 = vld [vmem:[%s1629 + $0x4] sm:$0xf]
        %v1632 = vld [vmem:[%s1629 + $0xc] sm:$0xf]
        %v1633 = vld [vmem:[%s1629 + $0x10] sm:$0xf]
        %v1634 = vld [vmem:[%s1629 + $0x18] sm:$0xf]
        %v1635 = vld [vmem:[%s1629 + $0x1c] sm:$0xf]
        %v1636 = vld [vmem:[%s1629 + $0x24] sm:$0xf]
        %v1637 = vld [vmem:[%s1629 + $0x28] sm:$0xf]
        %v1638 = vld [vmem:[%s1629 + $0x30] sm:$0xf]
        %v1639 = vld [vmem:[%s1629 + $0x34] sm:$0xf]
        %v1640 = vld [vmem:[%s1629 + $0x3c] sm:$0xf]
        %v1641 = vld [vmem:[%s1629 + $0x40] sm:$0xf]
        %v1642 = vld [vmem:[%s1629 + $0x48] sm:$0xf]
        %v1643 = vld [vmem:[%s1629 + $0x4c] sm:$0xf]
        %v1644 = vld [vmem:[%s1629 + $0x54] sm:$0xf]
        %v1645 = vld [vmem:[%s1629 + $0x58] sm:$0xf]
        %v1646 = vld [vmem:[%s1629 + $0x60] sm:$0xf]
        %v1647 = vld [vmem:[%s1629 + $0x64] sm:$0xf]
        %v1648 = vld [vmem:[%s1629 + $0x6c] sm:$0xf]
        %v1649 = vld [vmem:[%s1629 + $0x70] sm:$0xf]
        %v1650 = vld [vmem:[%s1629 + $0x78] sm:$0xf]
        %v1651 = vld [vmem:[%s1629 + $0x7c] sm:$0xf]
        %v1652 = vld [vmem:[%s1629 + $0x84] sm:$0xf]
        %v1653 = vld [vmem:[%s1629 + $0x88] sm:$0xf]
        %s1654 = scalar_lea.vmem [#allocation7], 192
        %v1655 = vld [vmem:[%s1654] sm:$0xf]
        %v1656 = vld [vmem:[%s1654 + $0x4] sm:$0xf]
        %v1657 = vld [vmem:[%s1654 + $0x8] sm:$0xf]
        %v1658 = vld [vmem:[%s1654 + $0xc] sm:$0xf]
        %v1659 = vld [vmem:[%s1654 + $0x10] sm:$0xf]
        %v1660 = vld [vmem:[%s1654 + $0x14] sm:$0xf]
        %v1661 = vld [vmem:[%s1654 + $0x18] sm:$0xf]
        %v1662 = vld [vmem:[%s1654 + $0x1c] sm:$0xf]
        %v1663 = vld [vmem:[%s1654 + $0x20] sm:$0xf]
        %v1664 = vld [vmem:[%s1654 + $0x24] sm:$0xf]
        %v1665 = vld [vmem:[%s1654 + $0x28] sm:$0xf]
        %v1666 = vld [vmem:[%s1654 + $0x2c] sm:$0xf]
        %v1667 = vld [vmem:[%s1654 + $0x30] sm:$0xf]
        %v1668 = vld [vmem:[%s1654 + $0x34] sm:$0xf]
        %v1669 = vld [vmem:[%s1654 + $0x38] sm:$0xf]
        %v1670 = vld [vmem:[%s1654 + $0x3c] sm:$0xf]
        %v1695 = vunpack.c.l.b16 %v1630
        %v1696 = vunpack.c.l.b16 %v1631
        %v1697 = vunpack.c.l.b16 %v1632
        %v1698 = vunpack.c.l.b16 %v1633
        %v1699 = vunpack.c.l.b16 %v1634
        %v1700 = vunpack.c.l.b16 %v1635
        %v1701 = vunpack.c.l.b16 %v1636
        %v1702 = vunpack.c.l.b16 %v1637
        %v1703 = vunpack.c.l.b16 %v1638
        %v1704 = vunpack.c.l.b16 %v1639
        %v1705 = vunpack.c.l.b16 %v1640
        %v1706 = vunpack.c.l.b16 %v1641
        %v1707 = vunpack.c.l.b16 %v1642
        %v1708 = vunpack.c.l.b16 %v1643
        %v1709 = vunpack.c.l.b16 %v1644
        %v1710 = vunpack.c.l.b16 %v1645
        %v1711 = vunpack.c.l.b16 %v1646
        %v1712 = vunpack.c.l.b16 %v1647
        %v1713 = vunpack.c.l.b16 %v1648
        %v1714 = vunpack.c.l.b16 %v1649
        %v1715 = vunpack.c.l.b16 %v1650
        %v1716 = vunpack.c.l.b16 %v1651
        %v1717 = vunpack.c.l.b16 %v1652
        %v1718 = vunpack.c.l.b16 %v1653
        %v1719 = vpack.c.b16 %v1696, %v1695
        %v1720 = vpack.c.b16 %v1698, %v1697
        %v1721 = vpack.c.b16 %v1700, %v1699
        %v1722 = vpack.c.b16 %v1702, %v1701
        %v1723 = vpack.c.b16 %v1704, %v1703
        %v1724 = vpack.c.b16 %v1706, %v1705
        %v1725 = vpack.c.b16 %v1708, %v1707
        %v1726 = vpack.c.b16 %v1710, %v1709
        %v1727 = vpack.c.b16 %v1712, %v1711
        %v1728 = vpack.c.b16 %v1714, %v1713
        %v1729 = vpack.c.b16 %v1716, %v1715
        %v1730 = vpack.c.b16 %v1718, %v1717
        %v1759 = vunpack.c.l.b16 %v1655
        %v1760 = vunpack.c.l.b16 %v1656
        %v1761 = vunpack.c.l.b16 %v1657
        %v1762 = vunpack.c.l.b16 %v1658
        %v1763 = vunpack.c.l.b16 %v1659
        %v1764 = vunpack.c.l.b16 %v1660
        %v1765 = vunpack.c.l.b16 %v1661
        %v1766 = vunpack.c.l.b16 %v1662
        %v1767 = vunpack.c.l.b16 %v1663
        %v1768 = vunpack.c.l.b16 %v1664
        %v1769 = vunpack.c.l.b16 %v1665
        %v1770 = vunpack.c.l.b16 %v1666
        %v1771 = vunpack.c.l.b16 %v1667
        %v1772 = vunpack.c.l.b16 %v1668
        %v1773 = vunpack.c.l.b16 %v1669
        %v1774 = vunpack.c.l.b16 %v1670
        %v1775 = vpack.c.b16 %v1760, %v1759
        %v1776 = vpack.c.b16 %v1762, %v1761
        %v1777 = vpack.c.b16 %v1764, %v1763
        %v1778 = vpack.c.b16 %v1766, %v1765
        %v1779 = vpack.c.b16 %v1768, %v1767
        %v1780 = vpack.c.b16 %v1770, %v1769
        %v1781 = vpack.c.b16 %v1772, %v1771
        %v1782 = vpack.c.b16 %v1774, %v1773
        %1791 = vmatprep.subr.bf16.mxu0 0
        %1792 = vmatpush1.bf16.msra.mxu0 %v1775
        %1793 = vmatprep.subr.bf16.mxu0 0
        %1794 = vmatpush1.bf16.msra.mxu0 %v1776
        %1795 = vmatprep.subr.bf16.mxu0 0
        %1796 = vmatpush1.bf16.msra.mxu0 %v1777
        %1797 = vmatprep.subr.bf16.mxu0 0
        %1798 = vmatpush1.bf16.msra.mxu0 %v1778
        %1799 = vmatprep.subr.bf16.mxu0 0
        %1800 = vmatpush1.bf16.msra.mxu0 %v1779
        %1801 = vmatprep.subr.bf16.mxu0 0
        %1802 = vmatpush1.bf16.msra.mxu0 %v1780
        %1803 = vmatprep.subr.bf16.mxu0 0
        %1804 = vmatpush1.bf16.msra.mxu0 %v1781
        %1805 = vmatprep.subr.bf16.mxu0 0
        %1806 = vmatpush1.bf16.msra.mxu0 %v1782
        %1807 = vmatprep.subr.bf16.mxu0 0
        %1808 = vmatpush1.bf16.msra.mxu0 0
        %1809 = vmatprep.subr.bf16.mxu0 0
        %1810 = vmatpush1.bf16.msra.mxu0 0
        %1811 = vmatprep.subr.bf16.mxu0 0
        %1812 = vmatpush1.bf16.msra.mxu0 0
        %1813 = vmatprep.subr.bf16.mxu0 0
        %1814 = vmatpush1.bf16.msra.mxu0 0
        %1815 = vmatprep.subr.bf16.mxu0 0
        %1816 = vmatpush1.bf16.msra.mxu0 0
        %1817 = vmatprep.subr.bf16.mxu0 0
        %1818 = vmatpush1.bf16.msra.mxu0 0
        %1819 = vmatprep.subr.bf16.mxu0 0
        %1820 = vmatpush1.bf16.msra.mxu0 0
        %1821 = vmatprep.subr.bf16.mxu0 0
        %1822 = vmatpush1.bf16.msra.mxu0 0
        %1823 = vmatprep.mubr.bf16.mxu0 0
        %1824 = vmatmul.mubr.bf16.gmra.mrb[0].mxu0 %v1719
        %v1825 = vpop.f32.mrb[0].mxu0
        %v1826 = vadd.f32 0.0, %v1825
        %v1827 = vpop.f32.mrb[0].mxu0
        %v1828 = vpop.f32.mrb[0].mxu0
        %v1829 = vadd.f32 0.0, %v1828
        %v1830 = vpop.f32.mrb[0].mxu0
        %1831 = vmatprep.mubr.bf16.mxu0 0
        %1832 = vmatmul.mubr.bf16.gmra.mrb[0].mxu0 %v1720
        %v1833 = vpop.f32.mrb[0].mxu0
        %v1834 = vadd.f32 0.0, %v1833
        %v1835 = vpop.f32.mrb[0].mxu0
        %v1836 = vpop.f32.mrb[0].mxu0
        %v1837 = vadd.f32 0.0, %v1836
        %v1838 = vpop.f32.mrb[0].mxu0
        %1839 = vmatprep.mubr.bf16.mxu0 0
        %1840 = vmatmul.mubr.bf16.gmra.mrb[0].mxu0 %v1721
        %v1841 = vpop.f32.mrb[0].mxu0
        %v1842 = vadd.f32 0.0, %v1841
        %v1843 = vpop.f32.mrb[0].mxu0
        %v1844 = vpop.f32.mrb[0].mxu0
        %v1845 = vadd.f32 0.0, %v1844
        %v1846 = vpop.f32.mrb[0].mxu0
        %1847 = vmatprep.mubr.bf16.mxu0 0
        %1848 = vmatmul.mubr.bf16.gmra.mrb[0].mxu0 %v1722
        %v1849 = vpop.f32.mrb[0].mxu0
        %v1850 = vadd.f32 0.0, %v1849
        %v1851 = vpop.f32.mrb[0].mxu0
        %v1852 = vpop.f32.mrb[0].mxu0
        %v1853 = vadd.f32 0.0, %v1852
        %v1854 = vpop.f32.mrb[0].mxu0
        %1855 = vmatprep.mubr.bf16.mxu0 0
        %1856 = vmatmul.mubr.bf16.gmra.mrb[0].mxu0 %v1723
        %v1857 = vpop.f32.mrb[0].mxu0
        %v1858 = vadd.f32 0.0, %v1857
        %v1859 = vpop.f32.mrb[0].mxu0
        %v1860 = vpop.f32.mrb[0].mxu0
        %v1861 = vadd.f32 0.0, %v1860
        %v1862 = vpop.f32.mrb[0].mxu0
        %1863 = vmatprep.mubr.bf16.mxu0 0
        %1864 = vmatmul.mubr.bf16.gmra.mrb[0].mxu0 %v1724
        %v1865 = vpop.f32.mrb[0].mxu0
        %v1866 = vadd.f32 0.0, %v1865
        %v1867 = vpop.f32.mrb[0].mxu0
        %v1868 = vpop.f32.mrb[0].mxu0
        %v1869 = vadd.f32 0.0, %v1868
        %v1870 = vpop.f32.mrb[0].mxu0
        %1871 = vmatprep.mubr.bf16.mxu0 0
        %1872 = vmatmul.mubr.bf16.gmra.mrb[0].mxu0 %v1725
        %v1873 = vpop.f32.mrb[0].mxu0
        %v1874 = vadd.f32 0.0, %v1873
        %v1875 = vpop.f32.mrb[0].mxu0
        %v1876 = vpop.f32.mrb[0].mxu0
        %v1877 = vadd.f32 0.0, %v1876
        %v1878 = vpop.f32.mrb[0].mxu0
        %1879 = vmatprep.mubr.bf16.mxu0 0
        %1880 = vmatmul.mubr.bf16.gmra.mrb[0].mxu0 %v1726
        %v1881 = vpop.f32.mrb[0].mxu0
        %v1882 = vadd.f32 0.0, %v1881
        %v1883 = vpop.f32.mrb[0].mxu0
        %v1884 = vpop.f32.mrb[0].mxu0
        %v1885 = vadd.f32 0.0, %v1884
        %v1886 = vpop.f32.mrb[0].mxu0
        %1887 = vmatprep.mubr.bf16.mxu0 0
        %1888 = vmatmul.mubr.bf16.gmra.mrb[0].mxu0 %v1727
        %v1889 = vpop.f32.mrb[0].mxu0
        %v1890 = vadd.f32 0.0, %v1889
        %v1891 = vpop.f32.mrb[0].mxu0
        %v1892 = vpop.f32.mrb[0].mxu0
        %v1893 = vadd.f32 0.0, %v1892
        %v1894 = vpop.f32.mrb[0].mxu0
        %1895 = vmatprep.mubr.bf16.mxu0 0
        %1896 = vmatmul.mubr.bf16.gmra.mrb[0].mxu0 %v1728
        %v1897 = vpop.f32.mrb[0].mxu0
        %v1898 = vadd.f32 0.0, %v1897
        %v1899 = vpop.f32.mrb[0].mxu0
        %v1900 = vpop.f32.mrb[0].mxu0
        %v1901 = vadd.f32 0.0, %v1900
        %v1902 = vpop.f32.mrb[0].mxu0
        %1903 = vmatprep.mubr.bf16.mxu0 0
        %1904 = vmatmul.mubr.bf16.gmra.mrb[0].mxu0 %v1729
        %v1905 = vpop.f32.mrb[0].mxu0
        %v1906 = vadd.f32 0.0, %v1905
        %v1907 = vpop.f32.mrb[0].mxu0
        %v1908 = vpop.f32.mrb[0].mxu0
        %v1909 = vadd.f32 0.0, %v1908
        %v1910 = vpop.f32.mrb[0].mxu0
        %1911 = vmatprep.mubr.bf16.mxu0 0
        %1912 = vmatmul.mubr.bf16.gmra.mrb[0].mxu0 %v1730
        %v1913 = vpop.f32.mrb[0].mxu0
        %v1914 = vadd.f32 0.0, %v1913
        %v1915 = vpop.f32.mrb[0].mxu0
        %v1916 = vpop.f32.mrb[0].mxu0
        %v1917 = vadd.f32 0.0, %v1916
        %v1918 = vpop.f32.mrb[0].mxu0
        %1919 = vdwg.mxu0
        %v1920 = vadd.f32 %v1605, %v1826
        %v1921 = vadd.f32 %v1606, %v1829
        %v1922 = vadd.f32 %v1607, %v1834
        %v1923 = vadd.f32 %v1608, %v1837
        %v1924 = vadd.f32 %v1609, %v1842
        %v1925 = vadd.f32 %v1610, %v1845
        %v1926 = vadd.f32 %v1611, %v1850
        %v1927 = vadd.f32 %v1612, %v1853
        %v1928 = vadd.f32 %v1613, %v1858
        %v1929 = vadd.f32 %v1614, %v1861
        %v1930 = vadd.f32 %v1615, %v1866
        %v1931 = vadd.f32 %v1616, %v1869
        %v1932 = vadd.f32 %v1617, %v1874
        %v1933 = vadd.f32 %v1618, %v1877
        %v1934 = vadd.f32 %v1619, %v1882
        %v1935 = vadd.f32 %v1620, %v1885
        %v1936 = vadd.f32 %v1621, %v1890
        %v1937 = vadd.f32 %v1622, %v1893
        %v1938 = vadd.f32 %v1623, %v1898
        %v1939 = vadd.f32 %v1624, %v1901
        %v1940 = vadd.f32 %v1625, %v1906
        %v1941 = vadd.f32 %v1626, %v1909
        %v1942 = vadd.f32 %v1627, %v1914
        %v1943 = vadd.f32 %v1628, %v1917
        %v1944 = vld [vmem:[%s1629] sm:$0xf]
        %v1945 = vld [vmem:[%s1629 + $0x4] sm:$0xf]
        %v1946 = vld [vmem:[%s1629 + $0x8] sm:$0x1]
        %v1947 = vld [vmem:[%s1629 + $0xc] sm:$0xf]
        %v1948 = vld [vmem:[%s1629 + $0x10] sm:$0xf]
        %v1949 = vld [vmem:[%s1629 + $0x14] sm:$0x1]
        %v1950 = vld [vmem:[%s1629 + $0x18] sm:$0xf]
        %v1951 = vld [vmem:[%s1629 + $0x1c] sm:$0xf]
        %v1952 = vld [vmem:[%s1629 + $0x20] sm:$0x1]
        %v1953 = vld [vmem:[%s1629 + $0x24] sm:$0xf]
        %v1954 = vld [vmem:[%s1629 + $0x28] sm:$0xf]
        %v1955 = vld [vmem:[%s1629 + $0x2c] sm:$0x1]
        %v1956 = vld [vmem:[%s1629 + $0x30] sm:$0xf]
        %v1957 = vld [vmem:[%s1629 + $0x34] sm:$0xf]
        %v1958 = vld [vmem:[%s1629 + $0x38] sm:$0x1]
        %v1959 = vld [vmem:[%s1629 + $0x3c] sm:$0xf]
        %v1960 = vld [vmem:[%s1629 + $0x40] sm:$0xf]
        %v1961 = vld [vmem:[%s1629 + $0x44] sm:$0x1]
        %v1962 = vld [vmem:[%s1629 + $0x48] sm:$0xf]
        %v1963 = vld [vmem:[%s1629 + $0x4c] sm:$0xf]
        %v1964 = vld [vmem:[%s1629 + $0x50] sm:$0x1]
        %v1965 = vld [vmem:[%s1629 + $0x54] sm:$0xf]
        %v1966 = vld [vmem:[%s1629 + $0x58] sm:$0xf]
        %v1967 = vld [vmem:[%s1629 + $0x5c] sm:$0x1]
        %v1968 = vld [vmem:[%s1629 + $0x60] sm:$0xf]
        %v1969 = vld [vmem:[%s1629 + $0x64] sm:$0xf]
        %v1970 = vld [vmem:[%s1629 + $0x68] sm:$0x1]
        %v1971 = vld [vmem:[%s1629 + $0x6c] sm:$0xf]
        %v1972 = vld [vmem:[%s1629 + $0x70] sm:$0xf]
        %v1973 = vld [vmem:[%s1629 + $0x74] sm:$0x1]
        %v1974 = vld [vmem:[%s1629 + $0x78] sm:$0xf]
        %v1975 = vld [vmem:[%s1629 + $0x7c] sm:$0xf]
        %v1976 = vld [vmem:[%s1629 + $0x80] sm:$0x1]
        %v1977 = vld [vmem:[%s1629 + $0x84] sm:$0xf]
        %v1978 = vld [vmem:[%s1629 + $0x88] sm:$0xf]
        %v1979 = vld [vmem:[%s1629 + $0x8c] sm:$0x1]
        %v1981 = vshrl.u32 %v1944, 16
        %v1983 = vrot.slane %v1981, 4
        %v1984 = vshll.u32 %v1944, 16
        %v1986 = vrot.slane %v1984, 5
        %v1987 = vor.u32 %v1983, %v1986
        %v1988 = vrot.slane %v1987, 4
        %v1990 = vshll.u32 %v1945, 16
        %v1992 = vrot.slane %v1990, 5
        %v1993 = vsel %vm460, %v1988, %v1992
        %v1994 = vshrl.u32 %v1945, 16
        %v1996 = vrot.slane %v1994, 4
        %v1997 = vor.u32 %v1996, %v1992
        %v1998 = vrot.slane %v1997, 4
        %v2000 = vshll.u32 %v1946, 16
        %v2002 = vrot.slane %v2000, 5
        %v2003 = vsel %vm460, %v1998, %v2002
        %v2005 = vshrl.u32 %v1947, 16
        %v2007 = vrot.slane %v2005, 4
        %v2008 = vshll.u32 %v1947, 16
        %v2010 = vrot.slane %v2008, 5
        %v2011 = vor.u32 %v2007, %v2010
        %v2012 = vrot.slane %v2011, 4
        %v2014 = vshll.u32 %v1948, 16
        %v2016 = vrot.slane %v2014, 5
        %v2017 = vsel %vm460, %v2012, %v2016
        %v2018 = vshrl.u32 %v1948, 16
        %v2020 = vrot.slane %v2018, 4
        %v2021 = vor.u32 %v2020, %v2016
        %v2022 = vrot.slane %v2021, 4
        %v2024 = vshll.u32 %v1949, 16
        %v2026 = vrot.slane %v2024, 5
        %v2027 = vsel %vm460, %v2022, %v2026
        %v2029 = vshrl.u32 %v1950, 16
        %v2031 = vrot.slane %v2029, 4
        %v2032 = vshll.u32 %v1950, 16
        %v2034 = vrot.slane %v2032, 5
        %v2035 = vor.u32 %v2031, %v2034
        %v2036 = vrot.slane %v2035, 4
        %v2038 = vshll.u32 %v1951, 16
        %v2040 = vrot.slane %v2038, 5
        %v2041 = vsel %vm460, %v2036, %v2040
        %v2042 = vshrl.u32 %v1951, 16
        %v2044 = vrot.slane %v2042, 4
        %v2045 = vor.u32 %v2044, %v2040
        %v2046 = vrot.slane %v2045, 4
        %v2048 = vshll.u32 %v1952, 16
        %v2050 = vrot.slane %v2048, 5
        %v2051 = vsel %vm460, %v2046, %v2050
        %v2053 = vshrl.u32 %v1953, 16
        %v2055 = vrot.slane %v2053, 4
        %v2056 = vshll.u32 %v1953, 16
        %v2058 = vrot.slane %v2056, 5
        %v2059 = vor.u32 %v2055, %v2058
        %v2060 = vrot.slane %v2059, 4
        %v2062 = vshll.u32 %v1954, 16
        %v2064 = vrot.slane %v2062, 5
        %v2065 = vsel %vm460, %v2060, %v2064
        %v2066 = vshrl.u32 %v1954, 16
        %v2068 = vrot.slane %v2066, 4
        %v2069 = vor.u32 %v2068, %v2064
        %v2070 = vrot.slane %v2069, 4
        %v2072 = vshll.u32 %v1955, 16
        %v2074 = vrot.slane %v2072, 5
        %v2075 = vsel %vm460, %v2070, %v2074
        %v2077 = vshrl.u32 %v1956, 16
        %v2079 = vrot.slane %v2077, 4
        %v2080 = vshll.u32 %v1956, 16
        %v2082 = vrot.slane %v2080, 5
        %v2083 = vor.u32 %v2079, %v2082
        %v2084 = vrot.slane %v2083, 4
        %v2086 = vshll.u32 %v1957, 16
        %v2088 = vrot.slane %v2086, 5
        %v2089 = vsel %vm460, %v2084, %v2088
        %v2090 = vshrl.u32 %v1957, 16
        %v2092 = vrot.slane %v2090, 4
        %v2093 = vor.u32 %v2092, %v2088
        %v2094 = vrot.slane %v2093, 4
        %v2096 = vshll.u32 %v1958, 16
        %v2098 = vrot.slane %v2096, 5
        %v2099 = vsel %vm460, %v2094, %v2098
        %v2101 = vshrl.u32 %v1959, 16
        %v2103 = vrot.slane %v2101, 4
        %v2104 = vshll.u32 %v1959, 16
        %v2106 = vrot.slane %v2104, 5
        %v2107 = vor.u32 %v2103, %v2106
        %v2108 = vrot.slane %v2107, 4
        %v2110 = vshll.u32 %v1960, 16
        %v2112 = vrot.slane %v2110, 5
        %v2113 = vsel %vm460, %v2108, %v2112
        %v2114 = vshrl.u32 %v1960, 16
        %v2116 = vrot.slane %v2114, 4
        %v2117 = vor.u32 %v2116, %v2112
        %v2118 = vrot.slane %v2117, 4
        %v2120 = vshll.u32 %v1961, 16
        %v2122 = vrot.slane %v2120, 5
        %v2123 = vsel %vm460, %v2118, %v2122
        %v2125 = vshrl.u32 %v1962, 16
        %v2127 = vrot.slane %v2125, 4
        %v2128 = vshll.u32 %v1962, 16
        %v2130 = vrot.slane %v2128, 5
        %v2131 = vor.u32 %v2127, %v2130
        %v2132 = vrot.slane %v2131, 4
        %v2134 = vshll.u32 %v1963, 16
        %v2136 = vrot.slane %v2134, 5
        %v2137 = vsel %vm460, %v2132, %v2136
        %v2138 = vshrl.u32 %v1963, 16
        %v2140 = vrot.slane %v2138, 4
        %v2141 = vor.u32 %v2140, %v2136
        %v2142 = vrot.slane %v2141, 4
        %v2144 = vshll.u32 %v1964, 16
        %v2146 = vrot.slane %v2144, 5
        %v2147 = vsel %vm460, %v2142, %v2146
        %v2149 = vshrl.u32 %v1965, 16
        %v2151 = vrot.slane %v2149, 4
        %v2152 = vshll.u32 %v1965, 16
        %v2154 = vrot.slane %v2152, 5
        %v2155 = vor.u32 %v2151, %v2154
        %v2156 = vrot.slane %v2155, 4
        %v2158 = vshll.u32 %v1966, 16
        %v2160 = vrot.slane %v2158, 5
        %v2161 = vsel %vm460, %v2156, %v2160
        %v2162 = vshrl.u32 %v1966, 16
        %v2164 = vrot.slane %v2162, 4
        %v2165 = vor.u32 %v2164, %v2160
        %v2166 = vrot.slane %v2165, 4
        %v2168 = vshll.u32 %v1967, 16
        %v2170 = vrot.slane %v2168, 5
        %v2171 = vsel %vm460, %v2166, %v2170
        %v2173 = vshrl.u32 %v1968, 16
        %v2175 = vrot.slane %v2173, 4
        %v2176 = vshll.u32 %v1968, 16
        %v2178 = vrot.slane %v2176, 5
        %v2179 = vor.u32 %v2175, %v2178
        %v2180 = vrot.slane %v2179, 4
        %v2182 = vshll.u32 %v1969, 16
        %v2184 = vrot.slane %v2182, 5
        %v2185 = vsel %vm460, %v2180, %v2184
        %v2186 = vshrl.u32 %v1969, 16
        %v2188 = vrot.slane %v2186, 4
        %v2189 = vor.u32 %v2188, %v2184
        %v2190 = vrot.slane %v2189, 4
        %v2192 = vshll.u32 %v1970, 16
        %v2194 = vrot.slane %v2192, 5
        %v2195 = vsel %vm460, %v2190, %v2194
        %v2197 = vshrl.u32 %v1971, 16
        %v2199 = vrot.slane %v2197, 4
        %v2200 = vshll.u32 %v1971, 16
        %v2202 = vrot.slane %v2200, 5
        %v2203 = vor.u32 %v2199, %v2202
        %v2204 = vrot.slane %v2203, 4
        %v2206 = vshll.u32 %v1972, 16
        %v2208 = vrot.slane %v2206, 5
        %v2209 = vsel %vm460, %v2204, %v2208
        %v2210 = vshrl.u32 %v1972, 16
        %v2212 = vrot.slane %v2210, 4
        %v2213 = vor.u32 %v2212, %v2208
        %v2214 = vrot.slane %v2213, 4
        %v2216 = vshll.u32 %v1973, 16
        %v2218 = vrot.slane %v2216, 5
        %v2219 = vsel %vm460, %v2214, %v2218
        %v2221 = vshrl.u32 %v1974, 16
        %v2223 = vrot.slane %v2221, 4
        %v2224 = vshll.u32 %v1974, 16
        %v2226 = vrot.slane %v2224, 5
        %v2227 = vor.u32 %v2223, %v2226
        %v2228 = vrot.slane %v2227, 4
        %v2230 = vshll.u32 %v1975, 16
        %v2232 = vrot.slane %v2230, 5
        %v2233 = vsel %vm460, %v2228, %v2232
        %v2234 = vshrl.u32 %v1975, 16
        %v2236 = vrot.slane %v2234, 4
        %v2237 = vor.u32 %v2236, %v2232
        %v2238 = vrot.slane %v2237, 4
        %v2240 = vshll.u32 %v1976, 16
        %v2242 = vrot.slane %v2240, 5
        %v2243 = vsel %vm460, %v2238, %v2242
        %v2245 = vshrl.u32 %v1977, 16
        %v2247 = vrot.slane %v2245, 4
        %v2248 = vshll.u32 %v1977, 16
        %v2250 = vrot.slane %v2248, 5
        %v2251 = vor.u32 %v2247, %v2250
        %v2252 = vrot.slane %v2251, 4
        %v2254 = vshll.u32 %v1978, 16
        %v2256 = vrot.slane %v2254, 5
        %v2257 = vsel %vm460, %v2252, %v2256
        %v2258 = vshrl.u32 %v1978, 16
        %v2260 = vrot.slane %v2258, 4
        %v2261 = vor.u32 %v2260, %v2256
        %v2262 = vrot.slane %v2261, 4
        %v2264 = vshll.u32 %v1979, 16
        %v2266 = vrot.slane %v2264, 5
        %v2267 = vsel %vm460, %v2262, %v2266
        %s2268 = scalar_lea.vmem [#allocation7], 256
        %v2269 = vld [vmem:[%s2268] sm:$0xf]
        %v2270 = vld [vmem:[%s2268 + $0x4] sm:$0xf]
        %v2271 = vld [vmem:[%s2268 + $0x8] sm:$0xf]
        %v2272 = vld [vmem:[%s2268 + $0xc] sm:$0xf]
        %v2273 = vld [vmem:[%s2268 + $0x10] sm:$0xf]
        %v2274 = vld [vmem:[%s2268 + $0x14] sm:$0xf]
        %v2275 = vld [vmem:[%s2268 + $0x18] sm:$0xf]
        %v2276 = vld [vmem:[%s2268 + $0x1c] sm:$0xf]
        %v2277 = vld [vmem:[%s2268 + $0x20] sm:$0xf]
        %v2278 = vld [vmem:[%s2268 + $0x24] sm:$0xf]
        %v2279 = vld [vmem:[%s2268 + $0x28] sm:$0xf]
        %v2280 = vld [vmem:[%s2268 + $0x2c] sm:$0xf]
        %v2281 = vld [vmem:[%s2268 + $0x30] sm:$0xf]
        %v2282 = vld [vmem:[%s2268 + $0x34] sm:$0xf]
        %v2283 = vld [vmem:[%s2268 + $0x38] sm:$0xf]
        %v2284 = vld [vmem:[%s2268 + $0x3c] sm:$0xf]
        %v2285 = vunpack.c.l.b16 %v1993
        %v2286 = vunpack.c.l.b16 %v2003
        %v2287 = vunpack.c.l.b16 %v2017
        %v2288 = vunpack.c.l.b16 %v2027
        %v2289 = vunpack.c.l.b16 %v2041
        %v2290 = vunpack.c.l.b16 %v2051
        %v2291 = vunpack.c.l.b16 %v2065
        %v2292 = vunpack.c.l.b16 %v2075
        %v2293 = vunpack.c.l.b16 %v2089
        %v2294 = vunpack.c.l.b16 %v2099
        %v2295 = vunpack.c.l.b16 %v2113
        %v2296 = vunpack.c.l.b16 %v2123
        %v2297 = vunpack.c.l.b16 %v2137
        %v2298 = vunpack.c.l.b16 %v2147
        %v2299 = vunpack.c.l.b16 %v2161
        %v2300 = vunpack.c.l.b16 %v2171
        %v2301 = vunpack.c.l.b16 %v2185
        %v2302 = vunpack.c.l.b16 %v2195
        %v2303 = vunpack.c.l.b16 %v2209
        %v2304 = vunpack.c.l.b16 %v2219
        %v2305 = vunpack.c.l.b16 %v2233
        %v2306 = vunpack.c.l.b16 %v2243
        %v2307 = vunpack.c.l.b16 %v2257
        %v2308 = vunpack.c.l.b16 %v2267
        %v2309 = vpack.c.b16 %v2286, %v2285
        %v2310 = vpack.c.b16 %v2288, %v2287
        %v2311 = vpack.c.b16 %v2290, %v2289
        %v2312 = vpack.c.b16 %v2292, %v2291
        %v2313 = vpack.c.b16 %v2294, %v2293
        %v2314 = vpack.c.b16 %v2296, %v2295
        %v2315 = vpack.c.b16 %v2298, %v2297
        %v2316 = vpack.c.b16 %v2300, %v2299
        %v2317 = vpack.c.b16 %v2302, %v2301
        %v2318 = vpack.c.b16 %v2304, %v2303
        %v2319 = vpack.c.b16 %v2306, %v2305
        %v2320 = vpack.c.b16 %v2308, %v2307
        %v2349 = vunpack.c.l.b16 %v2269
        %v2350 = vunpack.c.l.b16 %v2270
        %v2351 = vunpack.c.l.b16 %v2271
        %v2352 = vunpack.c.l.b16 %v2272
        %v2353 = vunpack.c.l.b16 %v2273
        %v2354 = vunpack.c.l.b16 %v2274
        %v2355 = vunpack.c.l.b16 %v2275
        %v2356 = vunpack.c.l.b16 %v2276
        %v2357 = vunpack.c.l.b16 %v2277
        %v2358 = vunpack.c.l.b16 %v2278
        %v2359 = vunpack.c.l.b16 %v2279
        %v2360 = vunpack.c.l.b16 %v2280
        %v2361 = vunpack.c.l.b16 %v2281
        %v2362 = vunpack.c.l.b16 %v2282
        %v2363 = vunpack.c.l.b16 %v2283
        %v2364 = vunpack.c.l.b16 %v2284
        %v2365 = vpack.c.b16 %v2350, %v2349
        %v2366 = vpack.c.b16 %v2352, %v2351
        %v2367 = vpack.c.b16 %v2354, %v2353
        %v2368 = vpack.c.b16 %v2356, %v2355
        %v2369 = vpack.c.b16 %v2358, %v2357
        %v2370 = vpack.c.b16 %v2360, %v2359
        %v2371 = vpack.c.b16 %v2362, %v2361
        %v2372 = vpack.c.b16 %v2364, %v2363
        %2381 = vmatprep.subr.bf16.mxu0 0
        %2382 = vmatpush1.bf16.msra.mxu0 %v2365
        %2383 = vmatprep.subr.bf16.mxu0 0
        %2384 = vmatpush1.bf16.msra.mxu0 %v2366
        %2385 = vmatprep.subr.bf16.mxu0 0
        %2386 = vmatpush1.bf16.msra.mxu0 %v2367
        %2387 = vmatprep.subr.bf16.mxu0 0
        %2388 = vmatpush1.bf16.msra.mxu0 %v2368
        %2389 = vmatprep.subr.bf16.mxu0 0
        %2390 = vmatpush1.bf16.msra.mxu0 %v2369
        %2391 = vmatprep.subr.bf16.mxu0 0
        %2392 = vmatpush1.bf16.msra.mxu0 %v2370
        %2393 = vmatprep.subr.bf16.mxu0 0
        %2394 = vmatpush1.bf16.msra.mxu0 %v2371
        %2395 = vmatprep.subr.bf16.mxu0 0
        %2396 = vmatpush1.bf16.msra.mxu0 %v2372
        %2397 = vmatprep.subr.bf16.mxu0 0
        %2398 = vmatpush1.bf16.msra.mxu0 0
        %2399 = vmatprep.subr.bf16.mxu0 0
        %2400 = vmatpush1.bf16.msra.mxu0 0
        %2401 = vmatprep.subr.bf16.mxu0 0
        %2402 = vmatpush1.bf16.msra.mxu0 0
        %2403 = vmatprep.subr.bf16.mxu0 0
        %2404 = vmatpush1.bf16.msra.mxu0 0
        %2405 = vmatprep.subr.bf16.mxu0 0
        %2406 = vmatpush1.bf16.msra.mxu0 0
        %2407 = vmatprep.subr.bf16.mxu0 0
        %2408 = vmatpush1.bf16.msra.mxu0 0
        %2409 = vmatprep.subr.bf16.mxu0 0
        %2410 = vmatpush1.bf16.msra.mxu0 0
        %2411 = vmatprep.subr.bf16.mxu0 0
        %2412 = vmatpush1.bf16.msra.mxu0 0
        %2413 = vmatprep.mubr.bf16.mxu0 0
        %2414 = vmatmul.mubr.bf16.gmra.mrb[0].mxu0 %v2309
        %v2415 = vpop.f32.mrb[0].mxu0
        %v2416 = vadd.f32 0.0, %v2415
        %v2417 = vpop.f32.mrb[0].mxu0
        %v2418 = vpop.f32.mrb[0].mxu0
        %v2419 = vadd.f32 0.0, %v2418
        %v2420 = vpop.f32.mrb[0].mxu0
        %2421 = vmatprep.mubr.bf16.mxu0 0
        %2422 = vmatmul.mubr.bf16.gmra.mrb[0].mxu0 %v2310
        %v2423 = vpop.f32.mrb[0].mxu0
        %v2424 = vadd.f32 0.0, %v2423
        %v2425 = vpop.f32.mrb[0].mxu0
        %v2426 = vpop.f32.mrb[0].mxu0
        %v2427 = vadd.f32 0.0, %v2426
        %v2428 = vpop.f32.mrb[0].mxu0
        %2429 = vmatprep.mubr.bf16.mxu0 0
        %2430 = vmatmul.mubr.bf16.gmra.mrb[0].mxu0 %v2311
        %v2431 = vpop.f32.mrb[0].mxu0
        %v2432 = vadd.f32 0.0, %v2431
        %v2433 = vpop.f32.mrb[0].mxu0
        %v2434 = vpop.f32.mrb[0].mxu0
        %v2435 = vadd.f32 0.0, %v2434
        %v2436 = vpop.f32.mrb[0].mxu0
        %2437 = vmatprep.mubr.bf16.mxu0 0
        %2438 = vmatmul.mubr.bf16.gmra.mrb[0].mxu0 %v2312
        %v2439 = vpop.f32.mrb[0].mxu0
        %v2440 = vadd.f32 0.0, %v2439
        %v2441 = vpop.f32.mrb[0].mxu0
        %v2442 = vpop.f32.mrb[0].mxu0
        %v2443 = vadd.f32 0.0, %v2442
        %v2444 = vpop.f32.mrb[0].mxu0
        %2445 = vmatprep.mubr.bf16.mxu0 0
        %2446 = vmatmul.mubr.bf16.gmra.mrb[0].mxu0 %v2313
        %v2447 = vpop.f32.mrb[0].mxu0
        %v2448 = vadd.f32 0.0, %v2447
        %v2449 = vpop.f32.mrb[0].mxu0
        %v2450 = vpop.f32.mrb[0].mxu0
        %v2451 = vadd.f32 0.0, %v2450
        %v2452 = vpop.f32.mrb[0].mxu0
        %2453 = vmatprep.mubr.bf16.mxu0 0
        %2454 = vmatmul.mubr.bf16.gmra.mrb[0].mxu0 %v2314
        %v2455 = vpop.f32.mrb[0].mxu0
        %v2456 = vadd.f32 0.0, %v2455
        %v2457 = vpop.f32.mrb[0].mxu0
        %v2458 = vpop.f32.mrb[0].mxu0
        %v2459 = vadd.f32 0.0, %v2458
        %v2460 = vpop.f32.mrb[0].mxu0
        %2461 = vmatprep.mubr.bf16.mxu0 0
        %2462 = vmatmul.mubr.bf16.gmra.mrb[0].mxu0 %v2315
        %v2463 = vpop.f32.mrb[0].mxu0
        %v2464 = vadd.f32 0.0, %v2463
        %v2465 = vpop.f32.mrb[0].mxu0
        %v2466 = vpop.f32.mrb[0].mxu0
        %v2467 = vadd.f32 0.0, %v2466
        %v2468 = vpop.f32.mrb[0].mxu0
        %2469 = vmatprep.mubr.bf16.mxu0 0
        %2470 = vmatmul.mubr.bf16.gmra.mrb[0].mxu0 %v2316
        %v2471 = vpop.f32.mrb[0].mxu0
        %v2472 = vadd.f32 0.0, %v2471
        %v2473 = vpop.f32.mrb[0].mxu0
        %v2474 = vpop.f32.mrb[0].mxu0
        %v2475 = vadd.f32 0.0, %v2474
        %v2476 = vpop.f32.mrb[0].mxu0
        %2477 = vmatprep.mubr.bf16.mxu0 0
        %2478 = vmatmul.mubr.bf16.gmra.mrb[0].mxu0 %v2317
        %v2479 = vpop.f32.mrb[0].mxu0
        %v2480 = vadd.f32 0.0, %v2479
        %v2481 = vpop.f32.mrb[0].mxu0
        %v2482 = vpop.f32.mrb[0].mxu0
        %v2483 = vadd.f32 0.0, %v2482
        %v2484 = vpop.f32.mrb[0].mxu0
        %2485 = vmatprep.mubr.bf16.mxu0 0
        %2486 = vmatmul.mubr.bf16.gmra.mrb[0].mxu0 %v2318
        %v2487 = vpop.f32.mrb[0].mxu0
        %v2488 = vadd.f32 0.0, %v2487
        %v2489 = vpop.f32.mrb[0].mxu0
        %v2490 = vpop.f32.mrb[0].mxu0
        %v2491 = vadd.f32 0.0, %v2490
        %v2492 = vpop.f32.mrb[0].mxu0
        %2493 = vmatprep.mubr.bf16.mxu0 0
        %2494 = vmatmul.mubr.bf16.gmra.mrb[0].mxu0 %v2319
        %v2495 = vpop.f32.mrb[0].mxu0
        %v2496 = vadd.f32 0.0, %v2495
        %v2497 = vpop.f32.mrb[0].mxu0
        %v2498 = vpop.f32.mrb[0].mxu0
        %v2499 = vadd.f32 0.0, %v2498
        %v2500 = vpop.f32.mrb[0].mxu0
        %2501 = vmatprep.mubr.bf16.mxu0 0
        %2502 = vmatmul.mubr.bf16.gmra.mrb[0].mxu0 %v2320
        %v2503 = vpop.f32.mrb[0].mxu0
        %v2504 = vadd.f32 0.0, %v2503
        %v2505 = vpop.f32.mrb[0].mxu0
        %v2506 = vpop.f32.mrb[0].mxu0
        %v2507 = vadd.f32 0.0, %v2506
        %v2508 = vpop.f32.mrb[0].mxu0
        %2509 = vdwg.mxu0
        %v2510 = vadd.f32 %v1920, %v2416
        %v2511 = vadd.f32 %v1921, %v2419
        %v2512 = vadd.f32 %v1922, %v2424
        %v2513 = vadd.f32 %v1923, %v2427
        %v2514 = vadd.f32 %v1924, %v2432
        %v2515 = vadd.f32 %v1925, %v2435
        %v2516 = vadd.f32 %v1926, %v2440
        %v2517 = vadd.f32 %v1927, %v2443
        %v2518 = vadd.f32 %v1928, %v2448
        %v2519 = vadd.f32 %v1929, %v2451
        %v2520 = vadd.f32 %v1930, %v2456
        %v2521 = vadd.f32 %v1931, %v2459
        %v2522 = vadd.f32 %v1932, %v2464
        %v2523 = vadd.f32 %v1933, %v2467
        %v2524 = vadd.f32 %v1934, %v2472
        %v2525 = vadd.f32 %v1935, %v2475
        %v2526 = vadd.f32 %v1936, %v2480
        %v2527 = vadd.f32 %v1937, %v2483
        %v2528 = vadd.f32 %v1938, %v2488
        %v2529 = vadd.f32 %v1939, %v2491
        %v2530 = vadd.f32 %v1940, %v2496
        %v2531 = vadd.f32 %v1941, %v2499
        %v2532 = vadd.f32 %v1942, %v2504
        %v2533 = vadd.f32 %v1943, %v2507
        %v2534 = vld [vmem:[%s1629] sm:$0xe]
        %v2535 = vld [vmem:[%s1629 + $0xc] sm:$0xe]
        %v2536 = vld [vmem:[%s1629 + $0x18] sm:$0xe]
        %v2537 = vld [vmem:[%s1629 + $0x24] sm:$0xe]
        %v2538 = vld [vmem:[%s1629 + $0x30] sm:$0xe]
        %v2539 = vld [vmem:[%s1629 + $0x3c] sm:$0xe]
        %v2540 = vld [vmem:[%s1629 + $0x48] sm:$0xe]
        %v2541 = vld [vmem:[%s1629 + $0x54] sm:$0xe]
        %v2542 = vld [vmem:[%s1629 + $0x60] sm:$0xe]
        %v2543 = vld [vmem:[%s1629 + $0x6c] sm:$0xe]
        %v2544 = vld [vmem:[%s1629 + $0x78] sm:$0xe]
        %v2545 = vld [vmem:[%s1629 + $0x84] sm:$0xe]
        %v2582 = vrot.slane %v2534, 5
        %v2583 = vrot.slane %v2582, 4
        %v2584 = vrot.slane %v1945, 5
        %v2585 = vsel %vm1278, %v2583, %v2584
        %v2586 = vrot.slane %v2584, 4
        %v2587 = vrot.slane %v1946, 5
        %v2588 = vsel %vm1278, %v2586, %v2587
        %v2589 = vrot.slane %v2535, 5
        %v2590 = vrot.slane %v2589, 4
        %v2591 = vrot.slane %v1948, 5
        %v2592 = vsel %vm1278, %v2590, %v2591
        %v2593 = vrot.slane %v2591, 4
        %v2594 = vrot.slane %v1949, 5
        %v2595 = vsel %vm1278, %v2593, %v2594
        %v2596 = vrot.slane %v2536, 5
        %v2597 = vrot.slane %v2596, 4
        %v2598 = vrot.slane %v1951, 5
        %v2599 = vsel %vm1278, %v2597, %v2598
        %v2600 = vrot.slane %v2598, 4
        %v2601 = vrot.slane %v1952, 5
        %v2602 = vsel %vm1278, %v2600, %v2601
        %v2603 = vrot.slane %v2537, 5
        %v2604 = vrot.slane %v2603, 4
        %v2605 = vrot.slane %v1954, 5
        %v2606 = vsel %vm1278, %v2604, %v2605
        %v2607 = vrot.slane %v2605, 4
        %v2608 = vrot.slane %v1955, 5
        %v2609 = vsel %vm1278, %v2607, %v2608
        %v2610 = vrot.slane %v2538, 5
        %v2611 = vrot.slane %v2610, 4
        %v2612 = vrot.slane %v1957, 5
        %v2613 = vsel %vm1278, %v2611, %v2612
        %v2614 = vrot.slane %v2612, 4
        %v2615 = vrot.slane %v1958, 5
        %v2616 = vsel %vm1278, %v2614, %v2615
        %v2617 = vrot.slane %v2539, 5
        %v2618 = vrot.slane %v2617, 4
        %v2619 = vrot.slane %v1960, 5
        %v2620 = vsel %vm1278, %v2618, %v2619
        %v2621 = vrot.slane %v2619, 4
        %v2622 = vrot.slane %v1961, 5
        %v2623 = vsel %vm1278, %v2621, %v2622
        %v2624 = vrot.slane %v2540, 5
        %v2625 = vrot.slane %v2624, 4
        %v2626 = vrot.slane %v1963, 5
        %v2627 = vsel %vm1278, %v2625, %v2626
        %v2628 = vrot.slane %v2626, 4
        %v2629 = vrot.slane %v1964, 5
        %v2630 = vsel %vm1278, %v2628, %v2629
        %v2631 = vrot.slane %v2541, 5
        %v2632 = vrot.slane %v2631, 4
        %v2633 = vrot.slane %v1966, 5
        %v2634 = vsel %vm1278, %v2632, %v2633
        %v2635 = vrot.slane %v2633, 4
        %v2636 = vrot.slane %v1967, 5
        %v2637 = vsel %vm1278, %v2635, %v2636
        %v2638 = vrot.slane %v2542, 5
        %v2639 = vrot.slane %v2638, 4
        %v2640 = vrot.slane %v1969, 5
        %v2641 = vsel %vm1278, %v2639, %v2640
        %v2642 = vrot.slane %v2640, 4
        %v2643 = vrot.slane %v1970, 5
        %v2644 = vsel %vm1278, %v2642, %v2643
        %v2645 = vrot.slane %v2543, 5
        %v2646 = vrot.slane %v2645, 4
        %v2647 = vrot.slane %v1972, 5
        %v2648 = vsel %vm1278, %v2646, %v2647
        %v2649 = vrot.slane %v2647, 4
        %v2650 = vrot.slane %v1973, 5
        %v2651 = vsel %vm1278, %v2649, %v2650
        %v2652 = vrot.slane %v2544, 5
        %v2653 = vrot.slane %v2652, 4
        %v2654 = vrot.slane %v1975, 5
        %v2655 = vsel %vm1278, %v2653, %v2654
        %v2656 = vrot.slane %v2654, 4
        %v2657 = vrot.slane %v1976, 5
        %v2658 = vsel %vm1278, %v2656, %v2657
        %v2659 = vrot.slane %v2545, 5
        %v2660 = vrot.slane %v2659, 4
        %v2661 = vrot.slane %v1978, 5
        %v2662 = vsel %vm1278, %v2660, %v2661
        %v2663 = vrot.slane %v2661, 4
        %v2664 = vrot.slane %v1979, 5
        %v2665 = vsel %vm1278, %v2663, %v2664
        %s2666 = scalar_lea.vmem [#allocation7], 320
        %v2667 = vld [vmem:[%s2666] sm:$0xf]
        %v2668 = vld [vmem:[%s2666 + $0x4] sm:$0xf]
        %v2669 = vld [vmem:[%s2666 + $0x8] sm:$0xf]
        %v2670 = vld [vmem:[%s2666 + $0xc] sm:$0xf]
        %v2671 = vld [vmem:[%s2666 + $0x10] sm:$0xf]
        %v2672 = vld [vmem:[%s2666 + $0x14] sm:$0xf]
        %v2673 = vld [vmem:[%s2666 + $0x18] sm:$0xf]
        %v2674 = vld [vmem:[%s2666 + $0x1c] sm:$0xf]
        %v2675 = vld [vmem:[%s2666 + $0x20] sm:$0xf]
        %v2676 = vld [vmem:[%s2666 + $0x24] sm:$0xf]
        %v2677 = vld [vmem:[%s2666 + $0x28] sm:$0xf]
        %v2678 = vld [vmem:[%s2666 + $0x2c] sm:$0xf]
        %v2679 = vld [vmem:[%s2666 + $0x30] sm:$0xf]
        %v2680 = vld [vmem:[%s2666 + $0x34] sm:$0xf]
        %v2681 = vld [vmem:[%s2666 + $0x38] sm:$0xf]
        %v2682 = vld [vmem:[%s2666 + $0x3c] sm:$0xf]
        %v2683 = vunpack.c.l.b16 %v2585
        %v2684 = vunpack.c.l.b16 %v2588
        %v2685 = vunpack.c.l.b16 %v2592
        %v2686 = vunpack.c.l.b16 %v2595
        %v2687 = vunpack.c.l.b16 %v2599
        %v2688 = vunpack.c.l.b16 %v2602
        %v2689 = vunpack.c.l.b16 %v2606
        %v2690 = vunpack.c.l.b16 %v2609
        %v2691 = vunpack.c.l.b16 %v2613
        %v2692 = vunpack.c.l.b16 %v2616
        %v2693 = vunpack.c.l.b16 %v2620
        %v2694 = vunpack.c.l.b16 %v2623
        %v2695 = vunpack.c.l.b16 %v2627
        %v2696 = vunpack.c.l.b16 %v2630
        %v2697 = vunpack.c.l.b16 %v2634
        %v2698 = vunpack.c.l.b16 %v2637
        %v2699 = vunpack.c.l.b16 %v2641
        %v2700 = vunpack.c.l.b16 %v2644
        %v2701 = vunpack.c.l.b16 %v2648
        %v2702 = vunpack.c.l.b16 %v2651
        %v2703 = vunpack.c.l.b16 %v2655
        %v2704 = vunpack.c.l.b16 %v2658
        %v2705 = vunpack.c.l.b16 %v2662
        %v2706 = vunpack.c.l.b16 %v2665
        %v2707 = vpack.c.b16 %v2684, %v2683
        %v2708 = vpack.c.b16 %v2686, %v2685
        %v2709 = vpack.c.b16 %v2688, %v2687
        %v2710 = vpack.c.b16 %v2690, %v2689
        %v2711 = vpack.c.b16 %v2692, %v2691
        %v2712 = vpack.c.b16 %v2694, %v2693
        %v2713 = vpack.c.b16 %v2696, %v2695
        %v2714 = vpack.c.b16 %v2698, %v2697
        %v2715 = vpack.c.b16 %v2700, %v2699
        %v2716 = vpack.c.b16 %v2702, %v2701
        %v2717 = vpack.c.b16 %v2704, %v2703
        %v2718 = vpack.c.b16 %v2706, %v2705
        %v2747 = vunpack.c.l.b16 %v2667
        %v2748 = vunpack.c.l.b16 %v2668
        %v2749 = vunpack.c.l.b16 %v2669
        %v2750 = vunpack.c.l.b16 %v2670
        %v2751 = vunpack.c.l.b16 %v2671
        %v2752 = vunpack.c.l.b16 %v2672
        %v2753 = vunpack.c.l.b16 %v2673
        %v2754 = vunpack.c.l.b16 %v2674
        %v2755 = vunpack.c.l.b16 %v2675
        %v2756 = vunpack.c.l.b16 %v2676
        %v2757 = vunpack.c.l.b16 %v2677
        %v2758 = vunpack.c.l.b16 %v2678
        %v2759 = vunpack.c.l.b16 %v2679
        %v2760 = vunpack.c.l.b16 %v2680
        %v2761 = vunpack.c.l.b16 %v2681
        %v2762 = vunpack.c.l.b16 %v2682
        %v2763 = vpack.c.b16 %v2748, %v2747
        %v2764 = vpack.c.b16 %v2750, %v2749
        %v2765 = vpack.c.b16 %v2752, %v2751
        %v2766 = vpack.c.b16 %v2754, %v2753
        %v2767 = vpack.c.b16 %v2756, %v2755
        %v2768 = vpack.c.b16 %v2758, %v2757
        %v2769 = vpack.c.b16 %v2760, %v2759
        %v2770 = vpack.c.b16 %v2762, %v2761
        %2779 = vmatprep.subr.bf16.mxu0 0
        %2780 = vmatpush1.bf16.msra.mxu0 %v2763
        %2781 = vmatprep.subr.bf16.mxu0 0
        %2782 = vmatpush1.bf16.msra.mxu0 %v2764
        %2783 = vmatprep.subr.bf16.mxu0 0
        %2784 = vmatpush1.bf16.msra.mxu0 %v2765
        %2785 = vmatprep.subr.bf16.mxu0 0
        %2786 = vmatpush1.bf16.msra.mxu0 %v2766
        %2787 = vmatprep.subr.bf16.mxu0 0
        %2788 = vmatpush1.bf16.msra.mxu0 %v2767
        %2789 = vmatprep.subr.bf16.mxu0 0
        %2790 = vmatpush1.bf16.msra.mxu0 %v2768
        %2791 = vmatprep.subr.bf16.mxu0 0
        %2792 = vmatpush1.bf16.msra.mxu0 %v2769
        %2793 = vmatprep.subr.bf16.mxu0 0
        %2794 = vmatpush1.bf16.msra.mxu0 %v2770
        %2795 = vmatprep.subr.bf16.mxu0 0
        %2796 = vmatpush1.bf16.msra.mxu0 0
        %2797 = vmatprep.subr.bf16.mxu0 0
        %2798 = vmatpush1.bf16.msra.mxu0 0
        %2799 = vmatprep.subr.bf16.mxu0 0
        %2800 = vmatpush1.bf16.msra.mxu0 0
        %2801 = vmatprep.subr.bf16.mxu0 0
        %2802 = vmatpush1.bf16.msra.mxu0 0
        %2803 = vmatprep.subr.bf16.mxu0 0
        %2804 = vmatpush1.bf16.msra.mxu0 0
        %2805 = vmatprep.subr.bf16.mxu0 0
        %2806 = vmatpush1.bf16.msra.mxu0 0
        %2807 = vmatprep.subr.bf16.mxu0 0
        %2808 = vmatpush1.bf16.msra.mxu0 0
        %2809 = vmatprep.subr.bf16.mxu0 0
        %2810 = vmatpush1.bf16.msra.mxu0 0
        %2811 = vmatprep.mubr.bf16.mxu0 0
        %2812 = vmatmul.mubr.bf16.gmra.mrb[0].mxu0 %v2707
        %v2813 = vpop.f32.mrb[0].mxu0
        %v2814 = vadd.f32 0.0, %v2813
        %v2815 = vpop.f32.mrb[0].mxu0
        %v2816 = vpop.f32.mrb[0].mxu0
        %v2817 = vadd.f32 0.0, %v2816
        %v2818 = vpop.f32.mrb[0].mxu0
        %2819 = vmatprep.mubr.bf16.mxu0 0
        %2820 = vmatmul.mubr.bf16.gmra.mrb[0].mxu0 %v2708
        %v2821 = vpop.f32.mrb[0].mxu0
        %v2822 = vadd.f32 0.0, %v2821
        %v2823 = vpop.f32.mrb[0].mxu0
        %v2824 = vpop.f32.mrb[0].mxu0
        %v2825 = vadd.f32 0.0, %v2824
        %v2826 = vpop.f32.mrb[0].mxu0
        %2827 = vmatprep.mubr.bf16.mxu0 0
        %2828 = vmatmul.mubr.bf16.gmra.mrb[0].mxu0 %v2709
        %v2829 = vpop.f32.mrb[0].mxu0
        %v2830 = vadd.f32 0.0, %v2829
        %v2831 = vpop.f32.mrb[0].mxu0
        %v2832 = vpop.f32.mrb[0].mxu0
        %v2833 = vadd.f32 0.0, %v2832
        %v2834 = vpop.f32.mrb[0].mxu0
        %2835 = vmatprep.mubr.bf16.mxu0 0
        %2836 = vmatmul.mubr.bf16.gmra.mrb[0].mxu0 %v2710
        %v2837 = vpop.f32.mrb[0].mxu0
        %v2838 = vadd.f32 0.0, %v2837
        %v2839 = vpop.f32.mrb[0].mxu0
        %v2840 = vpop.f32.mrb[0].mxu0
        %v2841 = vadd.f32 0.0, %v2840
        %v2842 = vpop.f32.mrb[0].mxu0
        %2843 = vmatprep.mubr.bf16.mxu0 0
        %2844 = vmatmul.mubr.bf16.gmra.mrb[0].mxu0 %v2711
        %v2845 = vpop.f32.mrb[0].mxu0
        %v2846 = vadd.f32 0.0, %v2845
        %v2847 = vpop.f32.mrb[0].mxu0
        %v2848 = vpop.f32.mrb[0].mxu0
        %v2849 = vadd.f32 0.0, %v2848
        %v2850 = vpop.f32.mrb[0].mxu0
        %2851 = vmatprep.mubr.bf16.mxu0 0
        %2852 = vmatmul.mubr.bf16.gmra.mrb[0].mxu0 %v2712
        %v2853 = vpop.f32.mrb[0].mxu0
        %v2854 = vadd.f32 0.0, %v2853
        %v2855 = vpop.f32.mrb[0].mxu0
        %v2856 = vpop.f32.mrb[0].mxu0
        %v2857 = vadd.f32 0.0, %v2856
        %v2858 = vpop.f32.mrb[0].mxu0
        %2859 = vmatprep.mubr.bf16.mxu0 0
        %2860 = vmatmul.mubr.bf16.gmra.mrb[0].mxu0 %v2713
        %v2861 = vpop.f32.mrb[0].mxu0
        %v2862 = vadd.f32 0.0, %v2861
        %v2863 = vpop.f32.mrb[0].mxu0
        %v2864 = vpop.f32.mrb[0].mxu0
        %v2865 = vadd.f32 0.0, %v2864
        %v2866 = vpop.f32.mrb[0].mxu0
        %2867 = vmatprep.mubr.bf16.mxu0 0
        %2868 = vmatmul.mubr.bf16.gmra.mrb[0].mxu0 %v2714
        %v2869 = vpop.f32.mrb[0].mxu0
        %v2870 = vadd.f32 0.0, %v2869
        %v2871 = vpop.f32.mrb[0].mxu0
        %v2872 = vpop.f32.mrb[0].mxu0
        %v2873 = vadd.f32 0.0, %v2872
        %v2874 = vpop.f32.mrb[0].mxu0
        %2875 = vmatprep.mubr.bf16.mxu0 0
        %2876 = vmatmul.mubr.bf16.gmra.mrb[0].mxu0 %v2715
        %v2877 = vpop.f32.mrb[0].mxu0
        %v2878 = vadd.f32 0.0, %v2877
        %v2879 = vpop.f32.mrb[0].mxu0
        %v2880 = vpop.f32.mrb[0].mxu0
        %v2881 = vadd.f32 0.0, %v2880
        %v2882 = vpop.f32.mrb[0].mxu0
        %2883 = vmatprep.mubr.bf16.mxu0 0
        %2884 = vmatmul.mubr.bf16.gmra.mrb[0].mxu0 %v2716
        %v2885 = vpop.f32.mrb[0].mxu0
        %v2886 = vadd.f32 0.0, %v2885
        %v2887 = vpop.f32.mrb[0].mxu0
        %v2888 = vpop.f32.mrb[0].mxu0
        %v2889 = vadd.f32 0.0, %v2888
        %v2890 = vpop.f32.mrb[0].mxu0
        %2891 = vmatprep.mubr.bf16.mxu0 0
        %2892 = vmatmul.mubr.bf16.gmra.mrb[0].mxu0 %v2717
        %v2893 = vpop.f32.mrb[0].mxu0
        %v2894 = vadd.f32 0.0, %v2893
        %v2895 = vpop.f32.mrb[0].mxu0
        %v2896 = vpop.f32.mrb[0].mxu0
        %v2897 = vadd.f32 0.0, %v2896
        %v2898 = vpop.f32.mrb[0].mxu0
        %2899 = vmatprep.mubr.bf16.mxu0 0
        %2900 = vmatmul.mubr.bf16.gmra.mrb[0].mxu0 %v2718
        %v2901 = vpop.f32.mrb[0].mxu0
        %v2902 = vadd.f32 0.0, %v2901
        %v2903 = vpop.f32.mrb[0].mxu0
        %v2904 = vpop.f32.mrb[0].mxu0
        %v2905 = vadd.f32 0.0, %v2904
        %v2906 = vpop.f32.mrb[0].mxu0
        %2907 = vdwg.mxu0
        %v2908 = vadd.f32 %v2510, %v2814
        %v2909 = vadd.f32 %v2511, %v2817
        %v2910 = vadd.f32 %v2512, %v2822
        %v2911 = vadd.f32 %v2513, %v2825
        %v2912 = vadd.f32 %v2514, %v2830
        %v2913 = vadd.f32 %v2515, %v2833
        %v2914 = vadd.f32 %v2516, %v2838
        %v2915 = vadd.f32 %v2517, %v2841
        %v2916 = vadd.f32 %v2518, %v2846
        %v2917 = vadd.f32 %v2519, %v2849
        %v2918 = vadd.f32 %v2520, %v2854
        %v2919 = vadd.f32 %v2521, %v2857
        %v2920 = vadd.f32 %v2522, %v2862
        %v2921 = vadd.f32 %v2523, %v2865
        %v2922 = vadd.f32 %v2524, %v2870
        %v2923 = vadd.f32 %v2525, %v2873
        %v2924 = vadd.f32 %v2526, %v2878
        %v2925 = vadd.f32 %v2527, %v2881
        %v2926 = vadd.f32 %v2528, %v2886
        %v2927 = vadd.f32 %v2529, %v2889
        %v2928 = vadd.f32 %v2530, %v2894
        %v2929 = vadd.f32 %v2531, %v2897
        %v2930 = vadd.f32 %v2532, %v2902
        %v2931 = vadd.f32 %v2533, %v2905
        %s2932 = scalar_lea.vmem %s340, 24 [#allocation2]
        %v2933 = vld [vmem:[%s2932] sm:$0xf]
        %v2934 = vld [vmem:[%s2932 + $0x4] sm:$0xf]
        %v2935 = vld [vmem:[%s2932 + $0xc] sm:$0xf]
        %v2936 = vld [vmem:[%s2932 + $0x10] sm:$0xf]
        %v2937 = vld [vmem:[%s2932 + $0x18] sm:$0xf]
        %v2938 = vld [vmem:[%s2932 + $0x1c] sm:$0xf]
        %v2939 = vld [vmem:[%s2932 + $0x24] sm:$0xf]
        %v2940 = vld [vmem:[%s2932 + $0x28] sm:$0xf]
        %v2941 = vld [vmem:[%s2932 + $0x30] sm:$0xf]
        %v2942 = vld [vmem:[%s2932 + $0x34] sm:$0xf]
        %v2943 = vld [vmem:[%s2932 + $0x3c] sm:$0xf]
        %v2944 = vld [vmem:[%s2932 + $0x40] sm:$0xf]
        %v2945 = vld [vmem:[%s2932 + $0x48] sm:$0xf]
        %v2946 = vld [vmem:[%s2932 + $0x4c] sm:$0xf]
        %v2947 = vld [vmem:[%s2932 + $0x54] sm:$0xf]
        %v2948 = vld [vmem:[%s2932 + $0x58] sm:$0xf]
        %v2949 = vld [vmem:[%s2932 + $0x60] sm:$0xf]
        %v2950 = vld [vmem:[%s2932 + $0x64] sm:$0xf]
        %v2951 = vld [vmem:[%s2932 + $0x6c] sm:$0xf]
        %v2952 = vld [vmem:[%s2932 + $0x70] sm:$0xf]
        %v2953 = vld [vmem:[%s2932 + $0x78] sm:$0xf]
        %v2954 = vld [vmem:[%s2932 + $0x7c] sm:$0xf]
        %v2955 = vld [vmem:[%s2932 + $0x84] sm:$0xf]
        %v2956 = vld [vmem:[%s2932 + $0x88] sm:$0xf]
        %s2957 = scalar_lea.vmem [#allocation7], 384
        %v2958 = vld [vmem:[%s2957] sm:$0xf]
        %v2959 = vld [vmem:[%s2957 + $0x4] sm:$0xf]
        %v2960 = vld [vmem:[%s2957 + $0x8] sm:$0xf]
        %v2961 = vld [vmem:[%s2957 + $0xc] sm:$0xf]
        %v2962 = vld [vmem:[%s2957 + $0x10] sm:$0xf]
        %v2963 = vld [vmem:[%s2957 + $0x14] sm:$0xf]
        %v2964 = vld [vmem:[%s2957 + $0x18] sm:$0xf]
        %v2965 = vld [vmem:[%s2957 + $0x1c] sm:$0xf]
        %v2966 = vld [vmem:[%s2957 + $0x20] sm:$0xf]
        %v2967 = vld [vmem:[%s2957 + $0x24] sm:$0xf]
        %v2968 = vld [vmem:[%s2957 + $0x28] sm:$0xf]
        %v2969 = vld [vmem:[%s2957 + $0x2c] sm:$0xf]
        %v2970 = vld [vmem:[%s2957 + $0x30] sm:$0xf]
        %v2971 = vld [vmem:[%s2957 + $0x34] sm:$0xf]
        %v2972 = vld [vmem:[%s2957 + $0x38] sm:$0xf]
        %v2973 = vld [vmem:[%s2957 + $0x3c] sm:$0xf]
        %v2998 = vunpack.c.l.b16 %v2933
        %v2999 = vunpack.c.l.b16 %v2934
        %v3000 = vunpack.c.l.b16 %v2935
        %v3001 = vunpack.c.l.b16 %v2936
        %v3002 = vunpack.c.l.b16 %v2937
        %v3003 = vunpack.c.l.b16 %v2938
        %v3004 = vunpack.c.l.b16 %v2939
        %v3005 = vunpack.c.l.b16 %v2940
        %v3006 = vunpack.c.l.b16 %v2941
        %v3007 = vunpack.c.l.b16 %v2942
        %v3008 = vunpack.c.l.b16 %v2943
        %v3009 = vunpack.c.l.b16 %v2944
        %v3010 = vunpack.c.l.b16 %v2945
        %v3011 = vunpack.c.l.b16 %v2946
        %v3012 = vunpack.c.l.b16 %v2947
        %v3013 = vunpack.c.l.b16 %v2948
        %v3014 = vunpack.c.l.b16 %v2949
        %v3015 = vunpack.c.l.b16 %v2950
        %v3016 = vunpack.c.l.b16 %v2951
        %v3017 = vunpack.c.l.b16 %v2952
        %v3018 = vunpack.c.l.b16 %v2953
        %v3019 = vunpack.c.l.b16 %v2954
        %v3020 = vunpack.c.l.b16 %v2955
        %v3021 = vunpack.c.l.b16 %v2956
        %v3022 = vpack.c.b16 %v2999, %v2998
        %v3023 = vpack.c.b16 %v3001, %v3000
        %v3024 = vpack.c.b16 %v3003, %v3002
        %v3025 = vpack.c.b16 %v3005, %v3004
        %v3026 = vpack.c.b16 %v3007, %v3006
        %v3027 = vpack.c.b16 %v3009, %v3008
        %v3028 = vpack.c.b16 %v3011, %v3010
        %v3029 = vpack.c.b16 %v3013, %v3012
        %v3030 = vpack.c.b16 %v3015, %v3014
        %v3031 = vpack.c.b16 %v3017, %v3016
        %v3032 = vpack.c.b16 %v3019, %v3018
        %v3033 = vpack.c.b16 %v3021, %v3020
        %v3062 = vunpack.c.l.b16 %v2958
        %v3063 = vunpack.c.l.b16 %v2959
        %v3064 = vunpack.c.l.b16 %v2960
        %v3065 = vunpack.c.l.b16 %v2961
        %v3066 = vunpack.c.l.b16 %v2962
        %v3067 = vunpack.c.l.b16 %v2963
        %v3068 = vunpack.c.l.b16 %v2964
        %v3069 = vunpack.c.l.b16 %v2965
        %v3070 = vunpack.c.l.b16 %v2966
        %v3071 = vunpack.c.l.b16 %v2967
        %v3072 = vunpack.c.l.b16 %v2968
        %v3073 = vunpack.c.l.b16 %v2969
        %v3074 = vunpack.c.l.b16 %v2970
        %v3075 = vunpack.c.l.b16 %v2971
        %v3076 = vunpack.c.l.b16 %v2972
        %v3077 = vunpack.c.l.b16 %v2973
        %v3078 = vpack.c.b16 %v3063, %v3062
        %v3079 = vpack.c.b16 %v3065, %v3064
        %v3080 = vpack.c.b16 %v3067, %v3066
        %v3081 = vpack.c.b16 %v3069, %v3068
        %v3082 = vpack.c.b16 %v3071, %v3070
        %v3083 = vpack.c.b16 %v3073, %v3072
        %v3084 = vpack.c.b16 %v3075, %v3074
        %v3085 = vpack.c.b16 %v3077, %v3076
        %3094 = vmatprep.subr.bf16.mxu0 0
        %3095 = vmatpush1.bf16.msra.mxu0 %v3078
        %3096 = vmatprep.subr.bf16.mxu0 0
        %3097 = vmatpush1.bf16.msra.mxu0 %v3079
        %3098 = vmatprep.subr.bf16.mxu0 0
        %3099 = vmatpush1.bf16.msra.mxu0 %v3080
        %3100 = vmatprep.subr.bf16.mxu0 0
        %3101 = vmatpush1.bf16.msra.mxu0 %v3081
        %3102 = vmatprep.subr.bf16.mxu0 0
        %3103 = vmatpush1.bf16.msra.mxu0 %v3082
        %3104 = vmatprep.subr.bf16.mxu0 0
        %3105 = vmatpush1.bf16.msra.mxu0 %v3083
        %3106 = vmatprep.subr.bf16.mxu0 0
        %3107 = vmatpush1.bf16.msra.mxu0 %v3084
        %3108 = vmatprep.subr.bf16.mxu0 0
        %3109 = vmatpush1.bf16.msra.mxu0 %v3085
        %3110 = vmatprep.subr.bf16.mxu0 0
        %3111 = vmatpush1.bf16.msra.mxu0 0
        %3112 = vmatprep.subr.bf16.mxu0 0
        %3113 = vmatpush1.bf16.msra.mxu0 0
        %3114 = vmatprep.subr.bf16.mxu0 0
        %3115 = vmatpush1.bf16.msra.mxu0 0
        %3116 = vmatprep.subr.bf16.mxu0 0
        %3117 = vmatpush1.bf16.msra.mxu0 0
        %3118 = vmatprep.subr.bf16.mxu0 0
        %3119 = vmatpush1.bf16.msra.mxu0 0
        %3120 = vmatprep.subr.bf16.mxu0 0
        %3121 = vmatpush1.bf16.msra.mxu0 0
        %3122 = vmatprep.subr.bf16.mxu0 0
        %3123 = vmatpush1.bf16.msra.mxu0 0
        %3124 = vmatprep.subr.bf16.mxu0 0
        %3125 = vmatpush1.bf16.msra.mxu0 0
        %3126 = vmatprep.mubr.bf16.mxu0 0
        %3127 = vmatmul.mubr.bf16.gmra.mrb[0].mxu0 %v3022
        %v3128 = vpop.f32.mrb[0].mxu0
        %v3129 = vadd.f32 0.0, %v3128
        %v3130 = vpop.f32.mrb[0].mxu0
        %v3131 = vpop.f32.mrb[0].mxu0
        %v3132 = vadd.f32 0.0, %v3131
        %v3133 = vpop.f32.mrb[0].mxu0
        %3134 = vmatprep.mubr.bf16.mxu0 0
        %3135 = vmatmul.mubr.bf16.gmra.mrb[0].mxu0 %v3023
        %v3136 = vpop.f32.mrb[0].mxu0
        %v3137 = vadd.f32 0.0, %v3136
        %v3138 = vpop.f32.mrb[0].mxu0
        %v3139 = vpop.f32.mrb[0].mxu0
        %v3140 = vadd.f32 0.0, %v3139
        %v3141 = vpop.f32.mrb[0].mxu0
        %3142 = vmatprep.mubr.bf16.mxu0 0
        %3143 = vmatmul.mubr.bf16.gmra.mrb[0].mxu0 %v3024
        %v3144 = vpop.f32.mrb[0].mxu0
        %v3145 = vadd.f32 0.0, %v3144
        %v3146 = vpop.f32.mrb[0].mxu0
        %v3147 = vpop.f32.mrb[0].mxu0
        %v3148 = vadd.f32 0.0, %v3147
        %v3149 = vpop.f32.mrb[0].mxu0
        %3150 = vmatprep.mubr.bf16.mxu0 0
        %3151 = vmatmul.mubr.bf16.gmra.mrb[0].mxu0 %v3025
        %v3152 = vpop.f32.mrb[0].mxu0
        %v3153 = vadd.f32 0.0, %v3152
        %v3154 = vpop.f32.mrb[0].mxu0
        %v3155 = vpop.f32.mrb[0].mxu0
        %v3156 = vadd.f32 0.0, %v3155
        %v3157 = vpop.f32.mrb[0].mxu0
        %3158 = vmatprep.mubr.bf16.mxu0 0
        %3159 = vmatmul.mubr.bf16.gmra.mrb[0].mxu0 %v3026
        %v3160 = vpop.f32.mrb[0].mxu0
        %v3161 = vadd.f32 0.0, %v3160
        %v3162 = vpop.f32.mrb[0].mxu0
        %v3163 = vpop.f32.mrb[0].mxu0
        %v3164 = vadd.f32 0.0, %v3163
        %v3165 = vpop.f32.mrb[0].mxu0
        %3166 = vmatprep.mubr.bf16.mxu0 0
        %3167 = vmatmul.mubr.bf16.gmra.mrb[0].mxu0 %v3027
        %v3168 = vpop.f32.mrb[0].mxu0
        %v3169 = vadd.f32 0.0, %v3168
        %v3170 = vpop.f32.mrb[0].mxu0
        %v3171 = vpop.f32.mrb[0].mxu0
        %v3172 = vadd.f32 0.0, %v3171
        %v3173 = vpop.f32.mrb[0].mxu0
        %3174 = vmatprep.mubr.bf16.mxu0 0
        %3175 = vmatmul.mubr.bf16.gmra.mrb[0].mxu0 %v3028
        %v3176 = vpop.f32.mrb[0].mxu0
        %v3177 = vadd.f32 0.0, %v3176
        %v3178 = vpop.f32.mrb[0].mxu0
        %v3179 = vpop.f32.mrb[0].mxu0
        %v3180 = vadd.f32 0.0, %v3179
        %v3181 = vpop.f32.mrb[0].mxu0
        %3182 = vmatprep.mubr.bf16.mxu0 0
        %3183 = vmatmul.mubr.bf16.gmra.mrb[0].mxu0 %v3029
        %v3184 = vpop.f32.mrb[0].mxu0
        %v3185 = vadd.f32 0.0, %v3184
        %v3186 = vpop.f32.mrb[0].mxu0
        %v3187 = vpop.f32.mrb[0].mxu0
        %v3188 = vadd.f32 0.0, %v3187
        %v3189 = vpop.f32.mrb[0].mxu0
        %3190 = vmatprep.mubr.bf16.mxu0 0
        %3191 = vmatmul.mubr.bf16.gmra.mrb[0].mxu0 %v3030
        %v3192 = vpop.f32.mrb[0].mxu0
        %v3193 = vadd.f32 0.0, %v3192
        %v3194 = vpop.f32.mrb[0].mxu0
        %v3195 = vpop.f32.mrb[0].mxu0
        %v3196 = vadd.f32 0.0, %v3195
        %v3197 = vpop.f32.mrb[0].mxu0
        %3198 = vmatprep.mubr.bf16.mxu0 0
        %3199 = vmatmul.mubr.bf16.gmra.mrb[0].mxu0 %v3031
        %v3200 = vpop.f32.mrb[0].mxu0
        %v3201 = vadd.f32 0.0, %v3200
        %v3202 = vpop.f32.mrb[0].mxu0
        %v3203 = vpop.f32.mrb[0].mxu0
        %v3204 = vadd.f32 0.0, %v3203
        %v3205 = vpop.f32.mrb[0].mxu0
        %3206 = vmatprep.mubr.bf16.mxu0 0
        %3207 = vmatmul.mubr.bf16.gmra.mrb[0].mxu0 %v3032
        %v3208 = vpop.f32.mrb[0].mxu0
        %v3209 = vadd.f32 0.0, %v3208
        %v3210 = vpop.f32.mrb[0].mxu0
        %v3211 = vpop.f32.mrb[0].mxu0
        %v3212 = vadd.f32 0.0, %v3211
        %v3213 = vpop.f32.mrb[0].mxu0
        %3214 = vmatprep.mubr.bf16.mxu0 0
        %3215 = vmatmul.mubr.bf16.gmra.mrb[0].mxu0 %v3033
        %v3216 = vpop.f32.mrb[0].mxu0
        %v3217 = vadd.f32 0.0, %v3216
        %v3218 = vpop.f32.mrb[0].mxu0
        %v3219 = vpop.f32.mrb[0].mxu0
        %v3220 = vadd.f32 0.0, %v3219
        %v3221 = vpop.f32.mrb[0].mxu0
        %3222 = vdwg.mxu0
        %v3223 = vadd.f32 %v2908, %v3129
        %v3224 = vadd.f32 %v2909, %v3132
        %v3225 = vadd.f32 %v2910, %v3137
        %v3226 = vadd.f32 %v2911, %v3140
        %v3227 = vadd.f32 %v2912, %v3145
        %v3228 = vadd.f32 %v2913, %v3148
        %v3229 = vadd.f32 %v2914, %v3153
        %v3230 = vadd.f32 %v2915, %v3156
        %v3231 = vadd.f32 %v2916, %v3161
        %v3232 = vadd.f32 %v2917, %v3164
        %v3233 = vadd.f32 %v2918, %v3169
        %v3234 = vadd.f32 %v2919, %v3172
        %v3235 = vadd.f32 %v2920, %v3177
        %v3236 = vadd.f32 %v2921, %v3180
        %v3237 = vadd.f32 %v2922, %v3185
        %v3238 = vadd.f32 %v2923, %v3188
        %v3239 = vadd.f32 %v2924, %v3193
        %v3240 = vadd.f32 %v2925, %v3196
        %v3241 = vadd.f32 %v2926, %v3201
        %v3242 = vadd.f32 %v2927, %v3204
        %v3243 = vadd.f32 %v2928, %v3209
        %v3244 = vadd.f32 %v2929, %v3212
        %v3245 = vadd.f32 %v2930, %v3217
        %v3246 = vadd.f32 %v2931, %v3220
        %v3247 = vld [vmem:[%s2932] sm:$0xf]
        %v3248 = vld [vmem:[%s2932 + $0x4] sm:$0xf]
        %v3249 = vld [vmem:[%s2932 + $0x8] sm:$0x1]
        %v3250 = vld [vmem:[%s2932 + $0xc] sm:$0xf]
        %v3251 = vld [vmem:[%s2932 + $0x10] sm:$0xf]
        %v3252 = vld [vmem:[%s2932 + $0x14] sm:$0x1]
        %v3253 = vld [vmem:[%s2932 + $0x18] sm:$0xf]
        %v3254 = vld [vmem:[%s2932 + $0x1c] sm:$0xf]
        %v3255 = vld [vmem:[%s2932 + $0x20] sm:$0x1]
        %v3256 = vld [vmem:[%s2932 + $0x24] sm:$0xf]
        %v3257 = vld [vmem:[%s2932 + $0x28] sm:$0xf]
        %v3258 = vld [vmem:[%s2932 + $0x2c] sm:$0x1]
        %v3259 = vld [vmem:[%s2932 + $0x30] sm:$0xf]
        %v3260 = vld [vmem:[%s2932 + $0x34] sm:$0xf]
        %v3261 = vld [vmem:[%s2932 + $0x38] sm:$0x1]
        %v3262 = vld [vmem:[%s2932 + $0x3c] sm:$0xf]
        %v3263 = vld [vmem:[%s2932 + $0x40] sm:$0xf]
        %v3264 = vld [vmem:[%s2932 + $0x44] sm:$0x1]
        %v3265 = vld [vmem:[%s2932 + $0x48] sm:$0xf]
        %v3266 = vld [vmem:[%s2932 + $0x4c] sm:$0xf]
        %v3267 = vld [vmem:[%s2932 + $0x50] sm:$0x1]
        %v3268 = vld [vmem:[%s2932 + $0x54] sm:$0xf]
        %v3269 = vld [vmem:[%s2932 + $0x58] sm:$0xf]
        %v3270 = vld [vmem:[%s2932 + $0x5c] sm:$0x1]
        %v3271 = vld [vmem:[%s2932 + $0x60] sm:$0xf]
        %v3272 = vld [vmem:[%s2932 + $0x64] sm:$0xf]
        %v3273 = vld [vmem:[%s2932 + $0x68] sm:$0x1]
        %v3274 = vld [vmem:[%s2932 + $0x6c] sm:$0xf]
        %v3275 = vld [vmem:[%s2932 + $0x70] sm:$0xf]
        %v3276 = vld [vmem:[%s2932 + $0x74] sm:$0x1]
        %v3277 = vld [vmem:[%s2932 + $0x78] sm:$0xf]
        %v3278 = vld [vmem:[%s2932 + $0x7c] sm:$0xf]
        %v3279 = vld [vmem:[%s2932 + $0x80] sm:$0x1]
        %v3280 = vld [vmem:[%s2932 + $0x84] sm:$0xf]
        %v3281 = vld [vmem:[%s2932 + $0x88] sm:$0xf]
        %v3282 = vld [vmem:[%s2932 + $0x8c] sm:$0x1]
        %v3284 = vshrl.u32 %v3247, 16
        %v3286 = vrot.slane %v3284, 4
        %v3287 = vshll.u32 %v3247, 16
        %v3289 = vrot.slane %v3287, 5
        %v3290 = vor.u32 %v3286, %v3289
        %v3291 = vrot.slane %v3290, 4
        %v3293 = vshll.u32 %v3248, 16
        %v3295 = vrot.slane %v3293, 5
        %v3296 = vsel %vm460, %v3291, %v3295
        %v3297 = vshrl.u32 %v3248, 16
        %v3299 = vrot.slane %v3297, 4
        %v3300 = vor.u32 %v3299, %v3295
        %v3301 = vrot.slane %v3300, 4
        %v3303 = vshll.u32 %v3249, 16
        %v3305 = vrot.slane %v3303, 5
        %v3306 = vsel %vm460, %v3301, %v3305
        %v3308 = vshrl.u32 %v3250, 16
        %v3310 = vrot.slane %v3308, 4
        %v3311 = vshll.u32 %v3250, 16
        %v3313 = vrot.slane %v3311, 5
        %v3314 = vor.u32 %v3310, %v3313
        %v3315 = vrot.slane %v3314, 4
        %v3317 = vshll.u32 %v3251, 16
        %v3319 = vrot.slane %v3317, 5
        %v3320 = vsel %vm460, %v3315, %v3319
        %v3321 = vshrl.u32 %v3251, 16
        %v3323 = vrot.slane %v3321, 4
        %v3324 = vor.u32 %v3323, %v3319
        %v3325 = vrot.slane %v3324, 4
        %v3327 = vshll.u32 %v3252, 16
        %v3329 = vrot.slane %v3327, 5
        %v3330 = vsel %vm460, %v3325, %v3329
        %v3332 = vshrl.u32 %v3253, 16
        %v3334 = vrot.slane %v3332, 4
        %v3335 = vshll.u32 %v3253, 16
        %v3337 = vrot.slane %v3335, 5
        %v3338 = vor.u32 %v3334, %v3337
        %v3339 = vrot.slane %v3338, 4
        %v3341 = vshll.u32 %v3254, 16
        %v3343 = vrot.slane %v3341, 5
        %v3344 = vsel %vm460, %v3339, %v3343
        %v3345 = vshrl.u32 %v3254, 16
        %v3347 = vrot.slane %v3345, 4
        %v3348 = vor.u32 %v3347, %v3343
        %v3349 = vrot.slane %v3348, 4
        %v3351 = vshll.u32 %v3255, 16
        %v3353 = vrot.slane %v3351, 5
        %v3354 = vsel %vm460, %v3349, %v3353
        %v3356 = vshrl.u32 %v3256, 16
        %v3358 = vrot.slane %v3356, 4
        %v3359 = vshll.u32 %v3256, 16
        %v3361 = vrot.slane %v3359, 5
        %v3362 = vor.u32 %v3358, %v3361
        %v3363 = vrot.slane %v3362, 4
        %v3365 = vshll.u32 %v3257, 16
        %v3367 = vrot.slane %v3365, 5
        %v3368 = vsel %vm460, %v3363, %v3367
        %v3369 = vshrl.u32 %v3257, 16
        %v3371 = vrot.slane %v3369, 4
        %v3372 = vor.u32 %v3371, %v3367
        %v3373 = vrot.slane %v3372, 4
        %v3375 = vshll.u32 %v3258, 16
        %v3377 = vrot.slane %v3375, 5
        %v3378 = vsel %vm460, %v3373, %v3377
        %v3380 = vshrl.u32 %v3259, 16
        %v3382 = vrot.slane %v3380, 4
        %v3383 = vshll.u32 %v3259, 16
        %v3385 = vrot.slane %v3383, 5
        %v3386 = vor.u32 %v3382, %v3385
        %v3387 = vrot.slane %v3386, 4
        %v3389 = vshll.u32 %v3260, 16
        %v3391 = vrot.slane %v3389, 5
        %v3392 = vsel %vm460, %v3387, %v3391
        %v3393 = vshrl.u32 %v3260, 16
        %v3395 = vrot.slane %v3393, 4
        %v3396 = vor.u32 %v3395, %v3391
        %v3397 = vrot.slane %v3396, 4
        %v3399 = vshll.u32 %v3261, 16
        %v3401 = vrot.slane %v3399, 5
        %v3402 = vsel %vm460, %v3397, %v3401
        %v3404 = vshrl.u32 %v3262, 16
        %v3406 = vrot.slane %v3404, 4
        %v3407 = vshll.u32 %v3262, 16
        %v3409 = vrot.slane %v3407, 5
        %v3410 = vor.u32 %v3406, %v3409
        %v3411 = vrot.slane %v3410, 4
        %v3413 = vshll.u32 %v3263, 16
        %v3415 = vrot.slane %v3413, 5
        %v3416 = vsel %vm460, %v3411, %v3415
        %v3417 = vshrl.u32 %v3263, 16
        %v3419 = vrot.slane %v3417, 4
        %v3420 = vor.u32 %v3419, %v3415
        %v3421 = vrot.slane %v3420, 4
        %v3423 = vshll.u32 %v3264, 16
        %v3425 = vrot.slane %v3423, 5
        %v3426 = vsel %vm460, %v3421, %v3425
        %v3428 = vshrl.u32 %v3265, 16
        %v3430 = vrot.slane %v3428, 4
        %v3431 = vshll.u32 %v3265, 16
        %v3433 = vrot.slane %v3431, 5
        %v3434 = vor.u32 %v3430, %v3433
        %v3435 = vrot.slane %v3434, 4
        %v3437 = vshll.u32 %v3266, 16
        %v3439 = vrot.slane %v3437, 5
        %v3440 = vsel %vm460, %v3435, %v3439
        %v3441 = vshrl.u32 %v3266, 16
        %v3443 = vrot.slane %v3441, 4
        %v3444 = vor.u32 %v3443, %v3439
        %v3445 = vrot.slane %v3444, 4
        %v3447 = vshll.u32 %v3267, 16
        %v3449 = vrot.slane %v3447, 5
        %v3450 = vsel %vm460, %v3445, %v3449
        %v3452 = vshrl.u32 %v3268, 16
        %v3454 = vrot.slane %v3452, 4
        %v3455 = vshll.u32 %v3268, 16
        %v3457 = vrot.slane %v3455, 5
        %v3458 = vor.u32 %v3454, %v3457
        %v3459 = vrot.slane %v3458, 4
        %v3461 = vshll.u32 %v3269, 16
        %v3463 = vrot.slane %v3461, 5
        %v3464 = vsel %vm460, %v3459, %v3463
        %v3465 = vshrl.u32 %v3269, 16
        %v3467 = vrot.slane %v3465, 4
        %v3468 = vor.u32 %v3467, %v3463
        %v3469 = vrot.slane %v3468, 4
        %v3471 = vshll.u32 %v3270, 16
        %v3473 = vrot.slane %v3471, 5
        %v3474 = vsel %vm460, %v3469, %v3473
        %v3476 = vshrl.u32 %v3271, 16
        %v3478 = vrot.slane %v3476, 4
        %v3479 = vshll.u32 %v3271, 16
        %v3481 = vrot.slane %v3479, 5
        %v3482 = vor.u32 %v3478, %v3481
        %v3483 = vrot.slane %v3482, 4
        %v3485 = vshll.u32 %v3272, 16
        %v3487 = vrot.slane %v3485, 5
        %v3488 = vsel %vm460, %v3483, %v3487
        %v3489 = vshrl.u32 %v3272, 16
        %v3491 = vrot.slane %v3489, 4
        %v3492 = vor.u32 %v3491, %v3487
        %v3493 = vrot.slane %v3492, 4
        %v3495 = vshll.u32 %v3273, 16
        %v3497 = vrot.slane %v3495, 5
        %v3498 = vsel %vm460, %v3493, %v3497
        %v3500 = vshrl.u32 %v3274, 16
        %v3502 = vrot.slane %v3500, 4
        %v3503 = vshll.u32 %v3274, 16
        %v3505 = vrot.slane %v3503, 5
        %v3506 = vor.u32 %v3502, %v3505
        %v3507 = vrot.slane %v3506, 4
        %v3509 = vshll.u32 %v3275, 16
        %v3511 = vrot.slane %v3509, 5
        %v3512 = vsel %vm460, %v3507, %v3511
        %v3513 = vshrl.u32 %v3275, 16
        %v3515 = vrot.slane %v3513, 4
        %v3516 = vor.u32 %v3515, %v3511
        %v3517 = vrot.slane %v3516, 4
        %v3519 = vshll.u32 %v3276, 16
        %v3521 = vrot.slane %v3519, 5
        %v3522 = vsel %vm460, %v3517, %v3521
        %v3524 = vshrl.u32 %v3277, 16
        %v3526 = vrot.slane %v3524, 4
        %v3527 = vshll.u32 %v3277, 16
        %v3529 = vrot.slane %v3527, 5
        %v3530 = vor.u32 %v3526, %v3529
        %v3531 = vrot.slane %v3530, 4
        %v3533 = vshll.u32 %v3278, 16
        %v3535 = vrot.slane %v3533, 5
        %v3536 = vsel %vm460, %v3531, %v3535
        %v3537 = vshrl.u32 %v3278, 16
        %v3539 = vrot.slane %v3537, 4
        %v3540 = vor.u32 %v3539, %v3535
        %v3541 = vrot.slane %v3540, 4
        %v3543 = vshll.u32 %v3279, 16
        %v3545 = vrot.slane %v3543, 5
        %v3546 = vsel %vm460, %v3541, %v3545
        %v3548 = vshrl.u32 %v3280, 16
        %v3550 = vrot.slane %v3548, 4
        %v3551 = vshll.u32 %v3280, 16
        %v3553 = vrot.slane %v3551, 5
        %v3554 = vor.u32 %v3550, %v3553
        %v3555 = vrot.slane %v3554, 4
        %v3557 = vshll.u32 %v3281, 16
        %v3559 = vrot.slane %v3557, 5
        %v3560 = vsel %vm460, %v3555, %v3559
        %v3561 = vshrl.u32 %v3281, 16
        %v3563 = vrot.slane %v3561, 4
        %v3564 = vor.u32 %v3563, %v3559
        %v3565 = vrot.slane %v3564, 4
        %v3567 = vshll.u32 %v3282, 16
        %v3569 = vrot.slane %v3567, 5
        %v3570 = vsel %vm460, %v3565, %v3569
        %s3571 = scalar_lea.vmem [#allocation7], 448
        %v3572 = vld [vmem:[%s3571] sm:$0xf]
        %v3573 = vld [vmem:[%s3571 + $0x4] sm:$0xf]
        %v3574 = vld [vmem:[%s3571 + $0x8] sm:$0xf]
        %v3575 = vld [vmem:[%s3571 + $0xc] sm:$0xf]
        %v3576 = vld [vmem:[%s3571 + $0x10] sm:$0xf]
        %v3577 = vld [vmem:[%s3571 + $0x14] sm:$0xf]
        %v3578 = vld [vmem:[%s3571 + $0x18] sm:$0xf]
        %v3579 = vld [vmem:[%s3571 + $0x1c] sm:$0xf]
        %v3580 = vld [vmem:[%s3571 + $0x20] sm:$0xf]
        %v3581 = vld [vmem:[%s3571 + $0x24] sm:$0xf]
        %v3582 = vld [vmem:[%s3571 + $0x28] sm:$0xf]
        %v3583 = vld [vmem:[%s3571 + $0x2c] sm:$0xf]
        %v3584 = vld [vmem:[%s3571 + $0x30] sm:$0xf]
        %v3585 = vld [vmem:[%s3571 + $0x34] sm:$0xf]
        %v3586 = vld [vmem:[%s3571 + $0x38] sm:$0xf]
        %v3587 = vld [vmem:[%s3571 + $0x3c] sm:$0xf]
        %v3588 = vunpack.c.l.b16 %v3296
        %v3589 = vunpack.c.l.b16 %v3306
        %v3590 = vunpack.c.l.b16 %v3320
        %v3591 = vunpack.c.l.b16 %v3330
        %v3592 = vunpack.c.l.b16 %v3344
        %v3593 = vunpack.c.l.b16 %v3354
        %v3594 = vunpack.c.l.b16 %v3368
        %v3595 = vunpack.c.l.b16 %v3378
        %v3596 = vunpack.c.l.b16 %v3392
        %v3597 = vunpack.c.l.b16 %v3402
        %v3598 = vunpack.c.l.b16 %v3416
        %v3599 = vunpack.c.l.b16 %v3426
        %v3600 = vunpack.c.l.b16 %v3440
        %v3601 = vunpack.c.l.b16 %v3450
        %v3602 = vunpack.c.l.b16 %v3464
        %v3603 = vunpack.c.l.b16 %v3474
        %v3604 = vunpack.c.l.b16 %v3488
        %v3605 = vunpack.c.l.b16 %v3498
        %v3606 = vunpack.c.l.b16 %v3512
        %v3607 = vunpack.c.l.b16 %v3522
        %v3608 = vunpack.c.l.b16 %v3536
        %v3609 = vunpack.c.l.b16 %v3546
        %v3610 = vunpack.c.l.b16 %v3560
        %v3611 = vunpack.c.l.b16 %v3570
        %v3612 = vpack.c.b16 %v3589, %v3588
        %v3613 = vpack.c.b16 %v3591, %v3590
        %v3614 = vpack.c.b16 %v3593, %v3592
        %v3615 = vpack.c.b16 %v3595, %v3594
        %v3616 = vpack.c.b16 %v3597, %v3596
        %v3617 = vpack.c.b16 %v3599, %v3598
        %v3618 = vpack.c.b16 %v3601, %v3600
        %v3619 = vpack.c.b16 %v3603, %v3602
        %v3620 = vpack.c.b16 %v3605, %v3604
        %v3621 = vpack.c.b16 %v3607, %v3606
        %v3622 = vpack.c.b16 %v3609, %v3608
        %v3623 = vpack.c.b16 %v3611, %v3610
        %v3652 = vunpack.c.l.b16 %v3572
        %v3653 = vunpack.c.l.b16 %v3573
        %v3654 = vunpack.c.l.b16 %v3574
        %v3655 = vunpack.c.l.b16 %v3575
        %v3656 = vunpack.c.l.b16 %v3576
        %v3657 = vunpack.c.l.b16 %v3577
        %v3658 = vunpack.c.l.b16 %v3578
        %v3659 = vunpack.c.l.b16 %v3579
        %v3660 = vunpack.c.l.b16 %v3580
        %v3661 = vunpack.c.l.b16 %v3581
        %v3662 = vunpack.c.l.b16 %v3582
        %v3663 = vunpack.c.l.b16 %v3583
        %v3664 = vunpack.c.l.b16 %v3584
        %v3665 = vunpack.c.l.b16 %v3585
        %v3666 = vunpack.c.l.b16 %v3586
        %v3667 = vunpack.c.l.b16 %v3587
        %v3668 = vpack.c.b16 %v3653, %v3652
        %v3669 = vpack.c.b16 %v3655, %v3654
        %v3670 = vpack.c.b16 %v3657, %v3656
        %v3671 = vpack.c.b16 %v3659, %v3658
        %v3672 = vpack.c.b16 %v3661, %v3660
        %v3673 = vpack.c.b16 %v3663, %v3662
        %v3674 = vpack.c.b16 %v3665, %v3664
        %v3675 = vpack.c.b16 %v3667, %v3666
        %3684 = vmatprep.subr.bf16.mxu0 0
        %3685 = vmatpush1.bf16.msra.mxu0 %v3668
        %3686 = vmatprep.subr.bf16.mxu0 0
        %3687 = vmatpush1.bf16.msra.mxu0 %v3669
        %3688 = vmatprep.subr.bf16.mxu0 0
        %3689 = vmatpush1.bf16.msra.mxu0 %v3670
        %3690 = vmatprep.subr.bf16.mxu0 0
        %3691 = vmatpush1.bf16.msra.mxu0 %v3671
        %3692 = vmatprep.subr.bf16.mxu0 0
        %3693 = vmatpush1.bf16.msra.mxu0 %v3672
        %3694 = vmatprep.subr.bf16.mxu0 0
        %3695 = vmatpush1.bf16.msra.mxu0 %v3673
        %3696 = vmatprep.subr.bf16.mxu0 0
        %3697 = vmatpush1.bf16.msra.mxu0 %v3674
        %3698 = vmatprep.subr.bf16.mxu0 0
        %3699 = vmatpush1.bf16.msra.mxu0 %v3675
        %3700 = vmatprep.subr.bf16.mxu0 0
        %3701 = vmatpush1.bf16.msra.mxu0 0
        %3702 = vmatprep.subr.bf16.mxu0 0
        %3703 = vmatpush1.bf16.msra.mxu0 0
        %3704 = vmatprep.subr.bf16.mxu0 0
        %3705 = vmatpush1.bf16.msra.mxu0 0
        %3706 = vmatprep.subr.bf16.mxu0 0
        %3707 = vmatpush1.bf16.msra.mxu0 0
        %3708 = vmatprep.subr.bf16.mxu0 0
        %3709 = vmatpush1.bf16.msra.mxu0 0
        %3710 = vmatprep.subr.bf16.mxu0 0
        %3711 = vmatpush1.bf16.msra.mxu0 0
        %3712 = vmatprep.subr.bf16.mxu0 0
        %3713 = vmatpush1.bf16.msra.mxu0 0
        %3714 = vmatprep.subr.bf16.mxu0 0
        %3715 = vmatpush1.bf16.msra.mxu0 0
        %3716 = vmatprep.mubr.bf16.mxu0 0
        %3717 = vmatmul.mubr.bf16.gmra.mrb[0].mxu0 %v3612
        %v3718 = vpop.f32.mrb[0].mxu0
        %v3719 = vadd.f32 0.0, %v3718
        %v3720 = vpop.f32.mrb[0].mxu0
        %v3721 = vpop.f32.mrb[0].mxu0
        %v3722 = vadd.f32 0.0, %v3721
        %v3723 = vpop.f32.mrb[0].mxu0
        %3724 = vmatprep.mubr.bf16.mxu0 0
        %3725 = vmatmul.mubr.bf16.gmra.mrb[0].mxu0 %v3613
        %v3726 = vpop.f32.mrb[0].mxu0
        %v3727 = vadd.f32 0.0, %v3726
        %v3728 = vpop.f32.mrb[0].mxu0
        %v3729 = vpop.f32.mrb[0].mxu0
        %v3730 = vadd.f32 0.0, %v3729
        %v3731 = vpop.f32.mrb[0].mxu0
        %3732 = vmatprep.mubr.bf16.mxu0 0
        %3733 = vmatmul.mubr.bf16.gmra.mrb[0].mxu0 %v3614
        %v3734 = vpop.f32.mrb[0].mxu0
        %v3735 = vadd.f32 0.0, %v3734
        %v3736 = vpop.f32.mrb[0].mxu0
        %v3737 = vpop.f32.mrb[0].mxu0
        %v3738 = vadd.f32 0.0, %v3737
        %v3739 = vpop.f32.mrb[0].mxu0
        %3740 = vmatprep.mubr.bf16.mxu0 0
        %3741 = vmatmul.mubr.bf16.gmra.mrb[0].mxu0 %v3615
        %v3742 = vpop.f32.mrb[0].mxu0
        %v3743 = vadd.f32 0.0, %v3742
        %v3744 = vpop.f32.mrb[0].mxu0
        %v3745 = vpop.f32.mrb[0].mxu0
        %v3746 = vadd.f32 0.0, %v3745
        %v3747 = vpop.f32.mrb[0].mxu0
        %3748 = vmatprep.mubr.bf16.mxu0 0
        %3749 = vmatmul.mubr.bf16.gmra.mrb[0].mxu0 %v3616
        %v3750 = vpop.f32.mrb[0].mxu0
        %v3751 = vadd.f32 0.0, %v3750
        %v3752 = vpop.f32.mrb[0].mxu0
        %v3753 = vpop.f32.mrb[0].mxu0
        %v3754 = vadd.f32 0.0, %v3753
        %v3755 = vpop.f32.mrb[0].mxu0
        %3756 = vmatprep.mubr.bf16.mxu0 0
        %3757 = vmatmul.mubr.bf16.gmra.mrb[0].mxu0 %v3617
        %v3758 = vpop.f32.mrb[0].mxu0
        %v3759 = vadd.f32 0.0, %v3758
        %v3760 = vpop.f32.mrb[0].mxu0
        %v3761 = vpop.f32.mrb[0].mxu0
        %v3762 = vadd.f32 0.0, %v3761
        %v3763 = vpop.f32.mrb[0].mxu0
        %3764 = vmatprep.mubr.bf16.mxu0 0
        %3765 = vmatmul.mubr.bf16.gmra.mrb[0].mxu0 %v3618
        %v3766 = vpop.f32.mrb[0].mxu0
        %v3767 = vadd.f32 0.0, %v3766
        %v3768 = vpop.f32.mrb[0].mxu0
        %v3769 = vpop.f32.mrb[0].mxu0
        %v3770 = vadd.f32 0.0, %v3769
        %v3771 = vpop.f32.mrb[0].mxu0
        %3772 = vmatprep.mubr.bf16.mxu0 0
        %3773 = vmatmul.mubr.bf16.gmra.mrb[0].mxu0 %v3619
        %v3774 = vpop.f32.mrb[0].mxu0
        %v3775 = vadd.f32 0.0, %v3774
        %v3776 = vpop.f32.mrb[0].mxu0
        %v3777 = vpop.f32.mrb[0].mxu0
        %v3778 = vadd.f32 0.0, %v3777
        %v3779 = vpop.f32.mrb[0].mxu0
        %3780 = vmatprep.mubr.bf16.mxu0 0
        %3781 = vmatmul.mubr.bf16.gmra.mrb[0].mxu0 %v3620
        %v3782 = vpop.f32.mrb[0].mxu0
        %v3783 = vadd.f32 0.0, %v3782
        %v3784 = vpop.f32.mrb[0].mxu0
        %v3785 = vpop.f32.mrb[0].mxu0
        %v3786 = vadd.f32 0.0, %v3785
        %v3787 = vpop.f32.mrb[0].mxu0
        %3788 = vmatprep.mubr.bf16.mxu0 0
        %3789 = vmatmul.mubr.bf16.gmra.mrb[0].mxu0 %v3621
        %v3790 = vpop.f32.mrb[0].mxu0
        %v3791 = vadd.f32 0.0, %v3790
        %v3792 = vpop.f32.mrb[0].mxu0
        %v3793 = vpop.f32.mrb[0].mxu0
        %v3794 = vadd.f32 0.0, %v3793
        %v3795 = vpop.f32.mrb[0].mxu0
        %3796 = vmatprep.mubr.bf16.mxu0 0
        %3797 = vmatmul.mubr.bf16.gmra.mrb[0].mxu0 %v3622
        %v3798 = vpop.f32.mrb[0].mxu0
        %v3799 = vadd.f32 0.0, %v3798
        %v3800 = vpop.f32.mrb[0].mxu0
        %v3801 = vpop.f32.mrb[0].mxu0
        %v3802 = vadd.f32 0.0, %v3801
        %v3803 = vpop.f32.mrb[0].mxu0
        %3804 = vmatprep.mubr.bf16.mxu0 0
        %3805 = vmatmul.mubr.bf16.gmra.mrb[0].mxu0 %v3623
        %v3806 = vpop.f32.mrb[0].mxu0
        %v3807 = vadd.f32 0.0, %v3806
        %v3808 = vpop.f32.mrb[0].mxu0
        %v3809 = vpop.f32.mrb[0].mxu0
        %v3810 = vadd.f32 0.0, %v3809
        %v3811 = vpop.f32.mrb[0].mxu0
        %3812 = vdwg.mxu0
        %v3813 = vadd.f32 %v3223, %v3719
        %v3814 = vadd.f32 %v3224, %v3722
        %v3815 = vadd.f32 %v3225, %v3727
        %v3816 = vadd.f32 %v3226, %v3730
        %v3817 = vadd.f32 %v3227, %v3735
        %v3818 = vadd.f32 %v3228, %v3738
        %v3819 = vadd.f32 %v3229, %v3743
        %v3820 = vadd.f32 %v3230, %v3746
        %v3821 = vadd.f32 %v3231, %v3751
        %v3822 = vadd.f32 %v3232, %v3754
        %v3823 = vadd.f32 %v3233, %v3759
        %v3824 = vadd.f32 %v3234, %v3762
        %v3825 = vadd.f32 %v3235, %v3767
        %v3826 = vadd.f32 %v3236, %v3770
        %v3827 = vadd.f32 %v3237, %v3775
        %v3828 = vadd.f32 %v3238, %v3778
        %v3829 = vadd.f32 %v3239, %v3783
        %v3830 = vadd.f32 %v3240, %v3786
        %v3831 = vadd.f32 %v3241, %v3791
        %v3832 = vadd.f32 %v3242, %v3794
        %v3833 = vadd.f32 %v3243, %v3799
        %v3834 = vadd.f32 %v3244, %v3802
        %v3835 = vadd.f32 %v3245, %v3807
        %v3836 = vadd.f32 %v3246, %v3810
        %v3837 = vld [vmem:[%s2932] sm:$0xe]
        %v3838 = vld [vmem:[%s2932 + $0xc] sm:$0xe]
        %v3839 = vld [vmem:[%s2932 + $0x18] sm:$0xe]
        %v3840 = vld [vmem:[%s2932 + $0x24] sm:$0xe]
        %v3841 = vld [vmem:[%s2932 + $0x30] sm:$0xe]
        %v3842 = vld [vmem:[%s2932 + $0x3c] sm:$0xe]
        %v3843 = vld [vmem:[%s2932 + $0x48] sm:$0xe]
        %v3844 = vld [vmem:[%s2932 + $0x54] sm:$0xe]
        %v3845 = vld [vmem:[%s2932 + $0x60] sm:$0xe]
        %v3846 = vld [vmem:[%s2932 + $0x6c] sm:$0xe]
        %v3847 = vld [vmem:[%s2932 + $0x78] sm:$0xe]
        %v3848 = vld [vmem:[%s2932 + $0x84] sm:$0xe]
        %v3885 = vrot.slane %v3837, 5
        %v3886 = vrot.slane %v3885, 4
        %v3887 = vrot.slane %v3248, 5
        %v3888 = vsel %vm1278, %v3886, %v3887
        %v3889 = vrot.slane %v3887, 4
        %v3890 = vrot.slane %v3249, 5
        %v3891 = vsel %vm1278, %v3889, %v3890
        %v3892 = vrot.slane %v3838, 5
        %v3893 = vrot.slane %v3892, 4
        %v3894 = vrot.slane %v3251, 5
        %v3895 = vsel %vm1278, %v3893, %v3894
        %v3896 = vrot.slane %v3894, 4
        %v3897 = vrot.slane %v3252, 5
        %v3898 = vsel %vm1278, %v3896, %v3897
        %v3899 = vrot.slane %v3839, 5
        %v3900 = vrot.slane %v3899, 4
        %v3901 = vrot.slane %v3254, 5
        %v3902 = vsel %vm1278, %v3900, %v3901
        %v3903 = vrot.slane %v3901, 4
        %v3904 = vrot.slane %v3255, 5
        %v3905 = vsel %vm1278, %v3903, %v3904
        %v3906 = vrot.slane %v3840, 5
        %v3907 = vrot.slane %v3906, 4
        %v3908 = vrot.slane %v3257, 5
        %v3909 = vsel %vm1278, %v3907, %v3908
        %v3910 = vrot.slane %v3908, 4
        %v3911 = vrot.slane %v3258, 5
        %v3912 = vsel %vm1278, %v3910, %v3911
        %v3913 = vrot.slane %v3841, 5
        %v3914 = vrot.slane %v3913, 4
        %v3915 = vrot.slane %v3260, 5
        %v3916 = vsel %vm1278, %v3914, %v3915
        %v3917 = vrot.slane %v3915, 4
        %v3918 = vrot.slane %v3261, 5
        %v3919 = vsel %vm1278, %v3917, %v3918
        %v3920 = vrot.slane %v3842, 5
        %v3921 = vrot.slane %v3920, 4
        %v3922 = vrot.slane %v3263, 5
        %v3923 = vsel %vm1278, %v3921, %v3922
        %v3924 = vrot.slane %v3922, 4
        %v3925 = vrot.slane %v3264, 5
        %v3926 = vsel %vm1278, %v3924, %v3925
        %v3927 = vrot.slane %v3843, 5
        %v3928 = vrot.slane %v3927, 4
        %v3929 = vrot.slane %v3266, 5
        %v3930 = vsel %vm1278, %v3928, %v3929
        %v3931 = vrot.slane %v3929, 4
        %v3932 = vrot.slane %v3267, 5
        %v3933 = vsel %vm1278, %v3931, %v3932
        %v3934 = vrot.slane %v3844, 5
        %v3935 = vrot.slane %v3934, 4
        %v3936 = vrot.slane %v3269, 5
        %v3937 = vsel %vm1278, %v3935, %v3936
        %v3938 = vrot.slane %v3936, 4
        %v3939 = vrot.slane %v3270, 5
        %v3940 = vsel %vm1278, %v3938, %v3939
        %v3941 = vrot.slane %v3845, 5
        %v3942 = vrot.slane %v3941, 4
        %v3943 = vrot.slane %v3272, 5
        %v3944 = vsel %vm1278, %v3942, %v3943
        %v3945 = vrot.slane %v3943, 4
        %v3946 = vrot.slane %v3273, 5
        %v3947 = vsel %vm1278, %v3945, %v3946
        %v3948 = vrot.slane %v3846, 5
        %v3949 = vrot.slane %v3948, 4
        %v3950 = vrot.slane %v3275, 5
        %v3951 = vsel %vm1278, %v3949, %v3950
        %v3952 = vrot.slane %v3950, 4
        %v3953 = vrot.slane %v3276, 5
        %v3954 = vsel %vm1278, %v3952, %v3953
        %v3955 = vrot.slane %v3847, 5
        %v3956 = vrot.slane %v3955, 4
        %v3957 = vrot.slane %v3278, 5
        %v3958 = vsel %vm1278, %v3956, %v3957
        %v3959 = vrot.slane %v3957, 4
        %v3960 = vrot.slane %v3279, 5
        %v3961 = vsel %vm1278, %v3959, %v3960
        %v3962 = vrot.slane %v3848, 5
        %v3963 = vrot.slane %v3962, 4
        %v3964 = vrot.slane %v3281, 5
        %v3965 = vsel %vm1278, %v3963, %v3964
        %v3966 = vrot.slane %v3964, 4
        %v3967 = vrot.slane %v3282, 5
        %v3968 = vsel %vm1278, %v3966, %v3967
        %s3969 = scalar_lea.vmem [#allocation7], 512
        %v3970 = vld [vmem:[%s3969] sm:$0xf]
        %v3971 = vld [vmem:[%s3969 + $0x4] sm:$0xf]
        %v3972 = vld [vmem:[%s3969 + $0x8] sm:$0xf]
        %v3973 = vld [vmem:[%s3969 + $0xc] sm:$0xf]
        %v3974 = vld [vmem:[%s3969 + $0x10] sm:$0xf]
        %v3975 = vld [vmem:[%s3969 + $0x14] sm:$0xf]
        %v3976 = vld [vmem:[%s3969 + $0x18] sm:$0xf]
        %v3977 = vld [vmem:[%s3969 + $0x1c] sm:$0xf]
        %v3978 = vld [vmem:[%s3969 + $0x20] sm:$0xf]
        %v3979 = vld [vmem:[%s3969 + $0x24] sm:$0xf]
        %v3980 = vld [vmem:[%s3969 + $0x28] sm:$0xf]
        %v3981 = vld [vmem:[%s3969 + $0x2c] sm:$0xf]
        %v3982 = vld [vmem:[%s3969 + $0x30] sm:$0xf]
        %v3983 = vld [vmem:[%s3969 + $0x34] sm:$0xf]
        %v3984 = vld [vmem:[%s3969 + $0x38] sm:$0xf]
        %v3985 = vld [vmem:[%s3969 + $0x3c] sm:$0xf]
        %v3986 = vunpack.c.l.b16 %v3888
        %v3987 = vunpack.c.l.b16 %v3891
        %v3988 = vunpack.c.l.b16 %v3895
        %v3989 = vunpack.c.l.b16 %v3898
        %v3990 = vunpack.c.l.b16 %v3902
        %v3991 = vunpack.c.l.b16 %v3905
        %v3992 = vunpack.c.l.b16 %v3909
        %v3993 = vunpack.c.l.b16 %v3912
        %v3994 = vunpack.c.l.b16 %v3916
        %v3995 = vunpack.c.l.b16 %v3919
        %v3996 = vunpack.c.l.b16 %v3923
        %v3997 = vunpack.c.l.b16 %v3926
        %v3998 = vunpack.c.l.b16 %v3930
        %v3999 = vunpack.c.l.b16 %v3933
        %v4000 = vunpack.c.l.b16 %v3937
        %v4001 = vunpack.c.l.b16 %v3940
        %v4002 = vunpack.c.l.b16 %v3944
        %v4003 = vunpack.c.l.b16 %v3947
        %v4004 = vunpack.c.l.b16 %v3951
        %v4005 = vunpack.c.l.b16 %v3954
        %v4006 = vunpack.c.l.b16 %v3958
        %v4007 = vunpack.c.l.b16 %v3961
        %v4008 = vunpack.c.l.b16 %v3965
        %v4009 = vunpack.c.l.b16 %v3968
        %v4010 = vpack.c.b16 %v3987, %v3986
        %v4011 = vpack.c.b16 %v3989, %v3988
        %v4012 = vpack.c.b16 %v3991, %v3990
        %v4013 = vpack.c.b16 %v3993, %v3992
        %v4014 = vpack.c.b16 %v3995, %v3994
        %v4015 = vpack.c.b16 %v3997, %v3996
        %v4016 = vpack.c.b16 %v3999, %v3998
        %v4017 = vpack.c.b16 %v4001, %v4000
        %v4018 = vpack.c.b16 %v4003, %v4002
        %v4019 = vpack.c.b16 %v4005, %v4004
        %v4020 = vpack.c.b16 %v4007, %v4006
        %v4021 = vpack.c.b16 %v4009, %v4008
        %v4050 = vunpack.c.l.b16 %v3970
        %v4051 = vunpack.c.l.b16 %v3971
        %v4052 = vunpack.c.l.b16 %v3972
        %v4053 = vunpack.c.l.b16 %v3973
        %v4054 = vunpack.c.l.b16 %v3974
        %v4055 = vunpack.c.l.b16 %v3975
        %v4056 = vunpack.c.l.b16 %v3976
        %v4057 = vunpack.c.l.b16 %v3977
        %v4058 = vunpack.c.l.b16 %v3978
        %v4059 = vunpack.c.l.b16 %v3979
        %v4060 = vunpack.c.l.b16 %v3980
        %v4061 = vunpack.c.l.b16 %v3981
        %v4062 = vunpack.c.l.b16 %v3982
        %v4063 = vunpack.c.l.b16 %v3983
        %v4064 = vunpack.c.l.b16 %v3984
        %v4065 = vunpack.c.l.b16 %v3985
        %v4066 = vpack.c.b16 %v4051, %v4050
        %v4067 = vpack.c.b16 %v4053, %v4052
        %v4068 = vpack.c.b16 %v4055, %v4054
        %v4069 = vpack.c.b16 %v4057, %v4056
        %v4070 = vpack.c.b16 %v4059, %v4058
        %v4071 = vpack.c.b16 %v4061, %v4060
        %v4072 = vpack.c.b16 %v4063, %v4062
        %v4073 = vpack.c.b16 %v4065, %v4064
        %4082 = vmatprep.subr.bf16.mxu0 0
        %4083 = vmatpush1.bf16.msra.mxu0 %v4066
        %4084 = vmatprep.subr.bf16.mxu0 0
        %4085 = vmatpush1.bf16.msra.mxu0 %v4067
        %4086 = vmatprep.subr.bf16.mxu0 0
        %4087 = vmatpush1.bf16.msra.mxu0 %v4068
        %4088 = vmatprep.subr.bf16.mxu0 0
        %4089 = vmatpush1.bf16.msra.mxu0 %v4069
        %4090 = vmatprep.subr.bf16.mxu0 0
        %4091 = vmatpush1.bf16.msra.mxu0 %v4070
        %4092 = vmatprep.subr.bf16.mxu0 0
        %4093 = vmatpush1.bf16.msra.mxu0 %v4071
        %4094 = vmatprep.subr.bf16.mxu0 0
        %4095 = vmatpush1.bf16.msra.mxu0 %v4072
        %4096 = vmatprep.subr.bf16.mxu0 0
        %4097 = vmatpush1.bf16.msra.mxu0 %v4073
        %4098 = vmatprep.subr.bf16.mxu0 0
        %4099 = vmatpush1.bf16.msra.mxu0 0
        %4100 = vmatprep.subr.bf16.mxu0 0
        %4101 = vmatpush1.bf16.msra.mxu0 0
        %4102 = vmatprep.subr.bf16.mxu0 0
        %4103 = vmatpush1.bf16.msra.mxu0 0
        %4104 = vmatprep.subr.bf16.mxu0 0
        %4105 = vmatpush1.bf16.msra.mxu0 0
        %4106 = vmatprep.subr.bf16.mxu0 0
        %4107 = vmatpush1.bf16.msra.mxu0 0
        %4108 = vmatprep.subr.bf16.mxu0 0
        %4109 = vmatpush1.bf16.msra.mxu0 0
        %4110 = vmatprep.subr.bf16.mxu0 0
        %4111 = vmatpush1.bf16.msra.mxu0 0
        %4112 = vmatprep.subr.bf16.mxu0 0
        %4113 = vmatpush1.bf16.msra.mxu0 0
        %4114 = vmatprep.mubr.bf16.mxu0 0
        %4115 = vmatmul.mubr.bf16.gmra.mrb[0].mxu0 %v4010
        %v4116 = vpop.f32.mrb[0].mxu0
        %v4117 = vadd.f32 0.0, %v4116
        %v4118 = vpop.f32.mrb[0].mxu0
        %v4119 = vpop.f32.mrb[0].mxu0
        %v4120 = vadd.f32 0.0, %v4119
        %v4121 = vpop.f32.mrb[0].mxu0
        %4122 = vmatprep.mubr.bf16.mxu0 0
        %4123 = vmatmul.mubr.bf16.gmra.mrb[0].mxu0 %v4011
        %v4124 = vpop.f32.mrb[0].mxu0
        %v4125 = vadd.f32 0.0, %v4124
        %v4126 = vpop.f32.mrb[0].mxu0
        %v4127 = vpop.f32.mrb[0].mxu0
        %v4128 = vadd.f32 0.0, %v4127
        %v4129 = vpop.f32.mrb[0].mxu0
        %4130 = vmatprep.mubr.bf16.mxu0 0
        %4131 = vmatmul.mubr.bf16.gmra.mrb[0].mxu0 %v4012
        %v4132 = vpop.f32.mrb[0].mxu0
        %v4133 = vadd.f32 0.0, %v4132
        %v4134 = vpop.f32.mrb[0].mxu0
        %v4135 = vpop.f32.mrb[0].mxu0
        %v4136 = vadd.f32 0.0, %v4135
        %v4137 = vpop.f32.mrb[0].mxu0
        %4138 = vmatprep.mubr.bf16.mxu0 0
        %4139 = vmatmul.mubr.bf16.gmra.mrb[0].mxu0 %v4013
        %v4140 = vpop.f32.mrb[0].mxu0
        %v4141 = vadd.f32 0.0, %v4140
        %v4142 = vpop.f32.mrb[0].mxu0
        %v4143 = vpop.f32.mrb[0].mxu0
        %v4144 = vadd.f32 0.0, %v4143
        %v4145 = vpop.f32.mrb[0].mxu0
        %4146 = vmatprep.mubr.bf16.mxu0 0
        %4147 = vmatmul.mubr.bf16.gmra.mrb[0].mxu0 %v4014
        %v4148 = vpop.f32.mrb[0].mxu0
        %v4149 = vadd.f32 0.0, %v4148
        %v4150 = vpop.f32.mrb[0].mxu0
        %v4151 = vpop.f32.mrb[0].mxu0
        %v4152 = vadd.f32 0.0, %v4151
        %v4153 = vpop.f32.mrb[0].mxu0
        %4154 = vmatprep.mubr.bf16.mxu0 0
        %4155 = vmatmul.mubr.bf16.gmra.mrb[0].mxu0 %v4015
        %v4156 = vpop.f32.mrb[0].mxu0
        %v4157 = vadd.f32 0.0, %v4156
        %v4158 = vpop.f32.mrb[0].mxu0
        %v4159 = vpop.f32.mrb[0].mxu0
        %v4160 = vadd.f32 0.0, %v4159
        %v4161 = vpop.f32.mrb[0].mxu0
        %4162 = vmatprep.mubr.bf16.mxu0 0
        %4163 = vmatmul.mubr.bf16.gmra.mrb[0].mxu0 %v4016
        %v4164 = vpop.f32.mrb[0].mxu0
        %v4165 = vadd.f32 0.0, %v4164
        %v4166 = vpop.f32.mrb[0].mxu0
        %v4167 = vpop.f32.mrb[0].mxu0
        %v4168 = vadd.f32 0.0, %v4167
        %v4169 = vpop.f32.mrb[0].mxu0
        %4170 = vmatprep.mubr.bf16.mxu0 0
        %4171 = vmatmul.mubr.bf16.gmra.mrb[0].mxu0 %v4017
        %v4172 = vpop.f32.mrb[0].mxu0
        %v4173 = vadd.f32 0.0, %v4172
        %v4174 = vpop.f32.mrb[0].mxu0
        %v4175 = vpop.f32.mrb[0].mxu0
        %v4176 = vadd.f32 0.0, %v4175
        %v4177 = vpop.f32.mrb[0].mxu0
        %4178 = vmatprep.mubr.bf16.mxu0 0
        %4179 = vmatmul.mubr.bf16.gmra.mrb[0].mxu0 %v4018
        %v4180 = vpop.f32.mrb[0].mxu0
        %v4181 = vadd.f32 0.0, %v4180
        %v4182 = vpop.f32.mrb[0].mxu0
        %v4183 = vpop.f32.mrb[0].mxu0
        %v4184 = vadd.f32 0.0, %v4183
        %v4185 = vpop.f32.mrb[0].mxu0
        %4186 = vmatprep.mubr.bf16.mxu0 0
        %4187 = vmatmul.mubr.bf16.gmra.mrb[0].mxu0 %v4019
        %v4188 = vpop.f32.mrb[0].mxu0
        %v4189 = vadd.f32 0.0, %v4188
        %v4190 = vpop.f32.mrb[0].mxu0
        %v4191 = vpop.f32.mrb[0].mxu0
        %v4192 = vadd.f32 0.0, %v4191
        %v4193 = vpop.f32.mrb[0].mxu0
        %4194 = vmatprep.mubr.bf16.mxu0 0
        %4195 = vmatmul.mubr.bf16.gmra.mrb[0].mxu0 %v4020
        %v4196 = vpop.f32.mrb[0].mxu0
        %v4197 = vadd.f32 0.0, %v4196
        %v4198 = vpop.f32.mrb[0].mxu0
        %v4199 = vpop.f32.mrb[0].mxu0
        %v4200 = vadd.f32 0.0, %v4199
        %v4201 = vpop.f32.mrb[0].mxu0
        %4202 = vmatprep.mubr.bf16.mxu0 0
        %4203 = vmatmul.mubr.bf16.gmra.mrb[0].mxu0 %v4021
        %v4204 = vpop.f32.mrb[0].mxu0
        %v4205 = vadd.f32 0.0, %v4204
        %v4206 = vpop.f32.mrb[0].mxu0
        %v4207 = vpop.f32.mrb[0].mxu0
        %v4208 = vadd.f32 0.0, %v4207
        %v4209 = vpop.f32.mrb[0].mxu0
        %4210 = vdwg.mxu0
        %v4211 = vadd.f32 %v3813, %v4117
        %v4212 = vadd.f32 %v3814, %v4120
        %v4213 = vadd.f32 %v3815, %v4125
        %v4214 = vadd.f32 %v3816, %v4128
        %v4215 = vadd.f32 %v3817, %v4133
        %v4216 = vadd.f32 %v3818, %v4136
        %v4217 = vadd.f32 %v3819, %v4141
        %v4218 = vadd.f32 %v3820, %v4144
        %v4219 = vadd.f32 %v3821, %v4149
        %v4220 = vadd.f32 %v3822, %v4152
        %v4221 = vadd.f32 %v3823, %v4157
        %v4222 = vadd.f32 %v3824, %v4160
        %v4223 = vadd.f32 %v3825, %v4165
        %v4224 = vadd.f32 %v3826, %v4168
        %v4225 = vadd.f32 %v3827, %v4173
        %v4226 = vadd.f32 %v3828, %v4176
        %v4227 = vadd.f32 %v3829, %v4181
        %v4228 = vadd.f32 %v3830, %v4184
        %v4229 = vadd.f32 %v3831, %v4189
        %v4230 = vadd.f32 %v3832, %v4192
        %v4231 = vadd.f32 %v3833, %v4197
        %v4232 = vadd.f32 %v3834, %v4200
        %v4233 = vadd.f32 %v3835, %v4205
        %v4234 = vadd.f32 %v3836, %v4208
        %v4235 = vld [vmem:[#allocation8] sm:$0x1]
        %v4237 = vlaneseq
        %v4238 = vshrl.u32 %v4237, 7
        %v4239 = vsub.s32 0, %v4238
        %v4240 = vrot.slane %v4235, %v4239
        %v4242 = vmul.f32 %v4211, %v4240
        %v4243 = vmul.f32 %v4212, %v4240
        %v4244 = vmul.f32 %v4213, %v4240
        %v4245 = vmul.f32 %v4214, %v4240
        %v4246 = vmul.f32 %v4215, %v4240
        %v4247 = vmul.f32 %v4216, %v4240
        %v4248 = vmul.f32 %v4217, %v4240
        %v4249 = vmul.f32 %v4218, %v4240
        %v4250 = vmul.f32 %v4219, %v4240
        %v4251 = vmul.f32 %v4220, %v4240
        %v4252 = vmul.f32 %v4221, %v4240
        %v4253 = vmul.f32 %v4222, %v4240
        %v4254 = vmul.f32 %v4223, %v4240
        %v4255 = vmul.f32 %v4224, %v4240
        %v4256 = vmul.f32 %v4225, %v4240
        %v4257 = vmul.f32 %v4226, %v4240
        %v4258 = vmul.f32 %v4227, %v4240
        %v4259 = vmul.f32 %v4228, %v4240
        %v4260 = vmul.f32 %v4229, %v4240
        %v4261 = vmul.f32 %v4230, %v4240
        %v4262 = vmul.f32 %v4231, %v4240
        %v4263 = vmul.f32 %v4232, %v4240
        %v4264 = vmul.f32 %v4233, %v4240
        %v4265 = vmul.f32 %v4234, %v4240
        %v4266 = vld [vmem:[#allocation10] sm:$0x1]
        %v4268 = vlaneseq
        %v4269 = vshrl.u32 %v4268, 7
        %v4270 = vsub.s32 0, %v4269
        %v4271 = vrot.slane %v4266, %v4270
        %v4273 = vadd.f32 %v4242, %v4271
        %v4274 = vadd.f32 %v4243, %v4271
        %v4275 = vadd.f32 %v4244, %v4271
        %v4276 = vadd.f32 %v4245, %v4271
        %v4277 = vadd.f32 %v4246, %v4271
        %v4278 = vadd.f32 %v4247, %v4271
        %v4279 = vadd.f32 %v4248, %v4271
        %v4280 = vadd.f32 %v4249, %v4271
        %v4281 = vadd.f32 %v4250, %v4271
        %v4282 = vadd.f32 %v4251, %v4271
        %v4283 = vadd.f32 %v4252, %v4271
        %v4284 = vadd.f32 %v4253, %v4271
        %v4285 = vadd.f32 %v4254, %v4271
        %v4286 = vadd.f32 %v4255, %v4271
        %v4287 = vadd.f32 %v4256, %v4271
        %v4288 = vadd.f32 %v4257, %v4271
        %v4289 = vadd.f32 %v4258, %v4271
        %v4290 = vadd.f32 %v4259, %v4271
        %v4291 = vadd.f32 %v4260, %v4271
        %v4292 = vadd.f32 %v4261, %v4271
        %v4293 = vadd.f32 %v4262, %v4271
        %v4294 = vadd.f32 %v4263, %v4271
        %v4295 = vadd.f32 %v4264, %v4271
        %v4296 = vadd.f32 %v4265, %v4271
        %v4297 = vadd.f32 %v4273, %v4274
        %v4298 = vadd.f32 %v4297, %v4275
        %v4299 = vadd.f32 %v4298, %v4276
        %v4300 = vadd.f32 %v4299, %v4277
        %v4301 = vadd.f32 %v4300, %v4278
        %v4302 = vadd.f32 %v4301, %v4279
        %v4303 = vadd.f32 %v4302, %v4280
        %v4304 = vrot.slane %v4303, 4
        %v4305 = vadd.f32 %v4303, %v4304
        %v4306 = vrot.slane %v4305, 2
        %v4307 = vadd.f32 %v4305, %v4306
        %v4308 = vrot.slane %v4307, 1
        %v4309 = vadd.f32 %v4307, %v4308
        %v4310 = vmul.f32 %v4309, 0.015625
        %v4311 = vadd.f32 %v4281, %v4282
        %v4312 = vadd.f32 %v4311, %v4283
        %v4313 = vadd.f32 %v4312, %v4284
        %v4314 = vadd.f32 %v4313, %v4285
        %v4315 = vadd.f32 %v4314, %v4286
        %v4316 = vadd.f32 %v4315, %v4287
        %v4317 = vadd.f32 %v4316, %v4288
        %v4318 = vrot.slane %v4317, 4
        %v4319 = vadd.f32 %v4317, %v4318
        %v4320 = vrot.slane %v4319, 2
        %v4321 = vadd.f32 %v4319, %v4320
        %v4322 = vrot.slane %v4321, 1
        %v4323 = vadd.f32 %v4321, %v4322
        %v4324 = vmul.f32 %v4323, 0.015625
        %v4325 = vadd.f32 %v4289, %v4290
        %v4326 = vadd.f32 %v4325, %v4291
        %v4327 = vadd.f32 %v4326, %v4292
        %v4328 = vadd.f32 %v4327, %v4293
        %v4329 = vadd.f32 %v4328, %v4294
        %v4330 = vadd.f32 %v4329, %v4295
        %v4331 = vadd.f32 %v4330, %v4296
        %v4332 = vrot.slane %v4331, 4
        %v4333 = vadd.f32 %v4331, %v4332
        %v4334 = vrot.slane %v4333, 2
        %v4335 = vadd.f32 %v4333, %v4334
        %v4336 = vrot.slane %v4335, 1
        %v4337 = vadd.f32 %v4335, %v4336
        %v4338 = vmul.f32 %v4337, 0.015625
        %v4339 = vadd.f32 %v4310, %v4324
        %v4340 = vadd.f32 %v4339, %v4338
        %v4341 = vld [vmem:[#allocation11] sm:$0xff]
        %v4342 = vld [vmem:[#allocation11 + $0x8] sm:$0xff]
        %v4343 = vld [vmem:[#allocation11 + $0x10] sm:$0xff]
        %v4344 = vld [vmem:[#allocation11 + $0x18] sm:$0xff]
        %v4345 = vld [vmem:[#allocation11 + $0x20] sm:$0xff]
        %v4346 = vld [vmem:[#allocation11 + $0x28] sm:$0xff]
        %v4347 = vld [vmem:[#allocation11 + $0x30] sm:$0xff]
        %v4348 = vld [vmem:[#allocation11 + $0x38] sm:$0xff]
        %v4349 = vld [vmem:[#allocation11 + $0x40] sm:$0xff]
        %v4350 = vld [vmem:[#allocation11 + $0x48] sm:$0xff]
        %v4351 = vld [vmem:[#allocation11 + $0x50] sm:$0xff]
        %v4352 = vld [vmem:[#allocation11 + $0x58] sm:$0xff]
        %v4353 = vld [vmem:[#allocation11 + $0x60] sm:$0xff]
        %v4354 = vld [vmem:[#allocation11 + $0x68] sm:$0xff]
        %v4355 = vld [vmem:[#allocation11 + $0x70] sm:$0xff]
        %v4356 = vld [vmem:[#allocation11 + $0x78] sm:$0xff]
        %4357 = vmatprep.subr.mxu0 0.0
        %4358 = vmatpush1.msra.mxu0 %v4341
        %4359 = vmatprep.subr.mxu0 0.0
        %4360 = vmatpush1.msra.mxu0 %v4342
        %4361 = vmatprep.subr.mxu0 0.0
        %4362 = vmatpush1.msra.mxu0 %v4343
        %4363 = vmatprep.subr.mxu0 0.0
        %4364 = vmatpush1.msra.mxu0 %v4344
        %4365 = vmatprep.subr.mxu0 0.0
        %4366 = vmatpush1.msra.mxu0 %v4345
        %4367 = vmatprep.subr.mxu0 0.0
        %4368 = vmatpush1.msra.mxu0 %v4346
        %4369 = vmatprep.subr.mxu0 0.0
        %4370 = vmatpush1.msra.mxu0 %v4347
        %4371 = vmatprep.subr.mxu0 0.0
        %4372 = vmatpush1.msra.mxu0 %v4348
        %4373 = vmatprep.subr.mxu0 0.0
        %4374 = vmatpush1.msra.mxu0 %v4349
        %4375 = vmatprep.subr.mxu0 0.0
        %4376 = vmatpush1.msra.mxu0 %v4350
        %4377 = vmatprep.subr.mxu0 0.0
        %4378 = vmatpush1.msra.mxu0 %v4351
        %4379 = vmatprep.subr.mxu0 0.0
        %4380 = vmatpush1.msra.mxu0 %v4352
        %4381 = vmatprep.subr.mxu0 0.0
        %4382 = vmatpush1.msra.mxu0 %v4353
        %4383 = vmatprep.subr.mxu0 0.0
        %4384 = vmatpush1.msra.mxu0 %v4354
        %4385 = vmatprep.subr.mxu0 0.0
        %4386 = vmatpush1.msra.mxu0 %v4355
        %4387 = vmatprep.subr.mxu0 0.0
        %4388 = vmatpush1.msra.mxu0 %v4356
        %4389 = vmatprep.subr.mxu0 0.0
        %4390 = vmatpush1.msra.mxu0 0.0
        %4391 = vmatprep.subr.mxu0 0.0
        %4392 = vmatpush1.msra.mxu0 0.0
        %4393 = vmatprep.subr.mxu0 0.0
        %4394 = vmatpush1.msra.mxu0 0.0
        %4395 = vmatprep.subr.mxu0 0.0
        %4396 = vmatpush1.msra.mxu0 0.0
        %4397 = vmatprep.subr.mxu0 0.0
        %4398 = vmatpush1.msra.mxu0 0.0
        %4399 = vmatprep.subr.mxu0 0.0
        %4400 = vmatpush1.msra.mxu0 0.0
        %4401 = vmatprep.subr.mxu0 0.0
        %4402 = vmatpush1.msra.mxu0 0.0
        %4403 = vmatprep.subr.mxu0 0.0
        %4404 = vmatpush1.msra.mxu0 0.0
        %4405 = vmatprep.subr.mxu0 0.0
        %4406 = vmatpush1.msra.mxu0 0.0
        %4407 = vmatprep.subr.mxu0 0.0
        %4408 = vmatpush1.msra.mxu0 0.0
        %4409 = vmatprep.subr.mxu0 0.0
        %4410 = vmatpush1.msra.mxu0 0.0
        %4411 = vmatprep.subr.mxu0 0.0
        %4412 = vmatpush1.msra.mxu0 0.0
        %4413 = vmatprep.subr.mxu0 0.0
        %4414 = vmatpush1.msra.mxu0 0.0
        %4415 = vmatprep.subr.mxu0 0.0
        %4416 = vmatpush1.msra.mxu0 0.0
        %4417 = vmatprep.subr.mxu0 0.0
        %4418 = vmatpush1.msra.mxu0 0.0
        %4419 = vmatprep.subr.mxu0 0.0
        %4420 = vmatpush1.msra.mxu0 0.0
        %4421 = vmatprep.mubr.f32.mxu0 0.0
        %4422 = vmatmul.mubr.f32.gmra.mrb[0].mxu0 %v4340
        %v4423 = vpop.f32.mrb[0].mxu0
        %v4424 = vadd.f32 0.0, %v4423
        %v4425 = vpop.f32.mrb[0].mxu0
        %4426 = vdwg.mxu0
        %v4427 = vmax.f32 %v4424, 0.0
        %v4428 = vld [vmem:[#allocation13] sm:$0xff]
        %v4429 = vld [vmem:[#allocation13 + $0x8] sm:$0xff]
        %v4430 = vld [vmem:[#allocation13 + $0x10] sm:$0xff]
        %v4431 = vld [vmem:[#allocation13 + $0x18] sm:$0xff]
        %v4432 = vld [vmem:[#allocation13 + $0x20] sm:$0xff]
        %v4433 = vld [vmem:[#allocation13 + $0x28] sm:$0xff]
        %v4434 = vld [vmem:[#allocation13 + $0x30] sm:$0xff]
        %v4435 = vld [vmem:[#allocation13 + $0x38] sm:$0xff]
        %v4436 = vld [vmem:[#allocation13 + $0x40] sm:$0xff]
        %v4437 = vld [vmem:[#allocation13 + $0x48] sm:$0xff]
        %v4438 = vld [vmem:[#allocation13 + $0x50] sm:$0xff]
        %v4439 = vld [vmem:[#allocation13 + $0x58] sm:$0xff]
        %vm4440 = vcmask 261120
        %v4442 = vsel %vm4440, %v4427, 0
        %4444 = vmatprep.subr.mxu0 %v4429
        %4445 = vmatpush1.msra.mxu0 %v4428
        %4446 = vmatprep.subr.mxu0 %v4432
        %4447 = vmatpush1.msra.mxu0 %v4431
        %4448 = vmatprep.subr.mxu0 %v4435
        %4449 = vmatpush1.msra.mxu0 %v4434
        %4450 = vmatprep.subr.mxu0 %v4438
        %4451 = vmatpush1.msra.mxu0 %v4437
        %4452 = vmatprep.subr.mxu0 0.0
        %4453 = vmatpush1.msra.mxu0 0.0
        %4454 = vmatprep.subr.mxu0 0.0
        %4455 = vmatpush1.msra.mxu0 0.0
        %4456 = vmatprep.subr.mxu0 0.0
        %4457 = vmatpush1.msra.mxu0 0.0
        %4458 = vmatprep.subr.mxu0 0.0
        %4459 = vmatpush1.msra.mxu0 0.0
        %4460 = vmatprep.subr.mxu0 0.0
        %4461 = vmatpush1.msra.mxu0 0.0
        %4462 = vmatprep.subr.mxu0 0.0
        %4463 = vmatpush1.msra.mxu0 0.0
        %4464 = vmatprep.subr.mxu0 0.0
        %4465 = vmatpush1.msra.mxu0 0.0
        %4466 = vmatprep.subr.mxu0 0.0
        %4467 = vmatpush1.msra.mxu0 0.0
        %4468 = vmatprep.subr.mxu0 0.0
        %4469 = vmatpush1.msra.mxu0 0.0
        %4470 = vmatprep.subr.mxu0 0.0
        %4471 = vmatpush1.msra.mxu0 0.0
        %4472 = vmatprep.subr.mxu0 0.0
        %4473 = vmatpush1.msra.mxu0 0.0
        %4474 = vmatprep.subr.mxu0 0.0
        %4475 = vmatpush1.msra.mxu0 0.0
        %4476 = vmatprep.subr.mxu0 0.0
        %4477 = vmatpush1.msra.mxu0 0.0
        %4478 = vmatprep.subr.mxu0 0.0
        %4479 = vmatpush1.msra.mxu0 0.0
        %4480 = vmatprep.subr.mxu0 0.0
        %4481 = vmatpush1.msra.mxu0 0.0
        %4482 = vmatprep.subr.mxu0 0.0
        %4483 = vmatpush1.msra.mxu0 0.0
        %4484 = vmatprep.subr.mxu0 0.0
        %4485 = vmatpush1.msra.mxu0 0.0
        %4486 = vmatprep.subr.mxu0 0.0
        %4487 = vmatpush1.msra.mxu0 0.0
        %4488 = vmatprep.subr.mxu0 0.0
        %4489 = vmatpush1.msra.mxu0 0.0
        %4490 = vmatprep.subr.mxu0 0.0
        %4491 = vmatpush1.msra.mxu0 0.0
        %4492 = vmatprep.subr.mxu0 0.0
        %4493 = vmatpush1.msra.mxu0 0.0
        %4494 = vmatprep.subr.mxu0 0.0
        %4495 = vmatpush1.msra.mxu0 0.0
        %4496 = vmatprep.subr.mxu0 0.0
        %4497 = vmatpush1.msra.mxu0 0.0
        %4498 = vmatprep.subr.mxu0 0.0
        %4499 = vmatpush1.msra.mxu0 0.0
        %4500 = vmatprep.subr.mxu0 0.0
        %4501 = vmatpush1.msra.mxu0 0.0
        %4502 = vmatprep.subr.mxu0 0.0
        %4503 = vmatpush1.msra.mxu0 0.0
        %4504 = vmatprep.subr.mxu0 0.0
        %4505 = vmatpush1.msra.mxu0 0.0
        %4506 = vmatprep.subr.mxu0 0.0
        %4507 = vmatpush1.msra.mxu0 0.0
        %4508 = vmatprep.mubr.f32.mxu0 0.0
        %4509 = vmatmul.mubr.f32.gmra.mrb[0].mxu0 %v4442
        %v4510 = vpop.f32.mrb[0].mxu0
        %v4511 = vadd.f32 0.0, %v4510
        %v4512 = vpop.f32.mrb[0].mxu0
        %v4513 = vadd.f32 0.0, %v4512
        %4514 = vdwg.mxu0
        %4515 = vmatprep.subr.mxu0 0.0
        %4516 = vmatpush1.msra.mxu0 %v4430
        %4517 = vmatprep.subr.mxu0 0.0
        %4518 = vmatpush1.msra.mxu0 %v4433
        %4519 = vmatprep.subr.mxu0 0.0
        %4520 = vmatpush1.msra.mxu0 %v4436
        %4521 = vmatprep.subr.mxu0 0.0
        %4522 = vmatpush1.msra.mxu0 %v4439
        %4523 = vmatprep.subr.mxu0 0.0
        %4524 = vmatpush1.msra.mxu0 0.0
        %4525 = vmatprep.subr.mxu0 0.0
        %4526 = vmatpush1.msra.mxu0 0.0
        %4527 = vmatprep.subr.mxu0 0.0
        %4528 = vmatpush1.msra.mxu0 0.0
        %4529 = vmatprep.subr.mxu0 0.0
        %4530 = vmatpush1.msra.mxu0 0.0
        %4531 = vmatprep.subr.mxu0 0.0
        %4532 = vmatpush1.msra.mxu0 0.0
        %4533 = vmatprep.subr.mxu0 0.0
        %4534 = vmatpush1.msra.mxu0 0.0
        %4535 = vmatprep.subr.mxu0 0.0
        %4536 = vmatpush1.msra.mxu0 0.0
        %4537 = vmatprep.subr.mxu0 0.0
        %4538 = vmatpush1.msra.mxu0 0.0
        %4539 = vmatprep.subr.mxu0 0.0
        %4540 = vmatpush1.msra.mxu0 0.0
        %4541 = vmatprep.subr.mxu0 0.0
        %4542 = vmatpush1.msra.mxu0 0.0
        %4543 = vmatprep.subr.mxu0 0.0
        %4544 = vmatpush1.msra.mxu0 0.0
        %4545 = vmatprep.subr.mxu0 0.0
        %4546 = vmatpush1.msra.mxu0 0.0
        %4547 = vmatprep.subr.mxu0 0.0
        %4548 = vmatpush1.msra.mxu0 0.0
        %4549 = vmatprep.subr.mxu0 0.0
        %4550 = vmatpush1.msra.mxu0 0.0
        %4551 = vmatprep.subr.mxu0 0.0
        %4552 = vmatpush1.msra.mxu0 0.0
        %4553 = vmatprep.subr.mxu0 0.0
        %4554 = vmatpush1.msra.mxu0 0.0
        %4555 = vmatprep.subr.mxu0 0.0
        %4556 = vmatpush1.msra.mxu0 0.0
        %4557 = vmatprep.subr.mxu0 0.0
        %4558 = vmatpush1.msra.mxu0 0.0
        %4559 = vmatprep.subr.mxu0 0.0
        %4560 = vmatpush1.msra.mxu0 0.0
        %4561 = vmatprep.subr.mxu0 0.0
        %4562 = vmatpush1.msra.mxu0 0.0
        %4563 = vmatprep.subr.mxu0 0.0
        %4564 = vmatpush1.msra.mxu0 0.0
        %4565 = vmatprep.subr.mxu0 0.0
        %4566 = vmatpush1.msra.mxu0 0.0
        %4567 = vmatprep.subr.mxu0 0.0
        %4568 = vmatpush1.msra.mxu0 0.0
        %4569 = vmatprep.subr.mxu0 0.0
        %4570 = vmatpush1.msra.mxu0 0.0
        %4571 = vmatprep.subr.mxu0 0.0
        %4572 = vmatpush1.msra.mxu0 0.0
        %4573 = vmatprep.subr.mxu0 0.0
        %4574 = vmatpush1.msra.mxu0 0.0
        %4575 = vmatprep.subr.mxu0 0.0
        %4576 = vmatpush1.msra.mxu0 0.0
        %4577 = vmatprep.subr.mxu0 0.0
        %4578 = vmatpush1.msra.mxu0 0.0
        %4579 = vmatprep.mubr.f32.mxu0 0.0
        %4580 = vmatmul.mubr.f32.gmra.mrb[0].mxu0 %v4442
        %v4581 = vpop.f32.mrb[0].mxu0
        %v4582 = vadd.f32 0.0, %v4581
        %v4583 = vpop.f32.mrb[0].mxu0
        %4584 = vdwg.mxu0
        %v4585 = vmax.f32 %v4511, %v4513
        %v4586 = vmax.f32 %v4585, %v4582
        %v4587 = vsub.f32 %v4511, %v4586
        %v4588 = vmul.f32 %v4587, 1.442695
        %v4589 = vpow.pop %v4588
        %v4590 = vsub.f32 %v4513, %v4586
        %v4591 = vmul.f32 %v4590, 1.442695
        %v4592 = vpow.pop %v4591
        %v4593 = vsub.f32 %v4582, %v4586
        %v4594 = vmul.f32 %v4593, 1.442695
        %v4595 = vpow.pop %v4594
        %v4596 = vadd.f32 %v4589, %v4592
        %v4597 = vadd.f32 %v4596, %v4595
        %v4598 = vrcp.pop %v4597
        %v4599 = vmul.f32 %v4589, %v4598
        %v4600 = vmul.f32 %v4592, %v4598
        %v4601 = vmul.f32 %v4595, %v4598
        %v4602 = vlaneseq
        %v4603 = vshrl.u32 %v4602, 7
        %v4604 = vadd.s32 %v4603, 8
        %v4605 = vadd.s32 %v4603, 16
        %v4606 = vadd.s32 %v4603, 24
        %v4607 = vadd.s32 %v4603, 32
        %v4608 = vadd.s32 %v4603, 40
        %v4609 = vadd.s32 %v4603, 48
        %v4610 = vadd.s32 %v4603, 56
        %v4611 = vadd.s32 %v4603, 64
        %v4612 = vadd.s32 %v4603, 72
        %v4613 = vadd.s32 %v4603, 80
        %v4614 = vadd.s32 %v4603, 88
        %v4615 = vadd.s32 %v4603, 96
        %v4616 = vadd.s32 %v4603, 104
        %v4617 = vadd.s32 %v4603, 112
        %v4618 = vadd.s32 %v4603, 120
        %v4619 = vadd.s32 %v4603, 128
        %v4620 = vadd.s32 %v4603, 136
        %v4621 = vadd.s32 %v4603, 144
        %v4622 = vadd.s32 %v4603, 152
        %v4623 = vadd.s32 %v4603, 160
        %v4624 = vadd.s32 %v4603, 168
        %v4625 = vadd.s32 %v4603, 176
        %v4626 = vadd.s32 %v4603, 184
        %vm4627 = vcmp.lt.s32.totalorder %v4603, 64
        %vm4628 = vcmp.lt.s32.totalorder %v4604, 64
        %vm4629 = vcmp.lt.s32.totalorder %v4605, 64
        %vm4630 = vcmp.lt.s32.totalorder %v4606, 64
        %vm4631 = vcmp.lt.s32.totalorder %v4607, 64
        %vm4632 = vcmp.lt.s32.totalorder %v4608, 64
        %vm4633 = vcmp.lt.s32.totalorder %v4609, 64
        %vm4634 = vcmp.lt.s32.totalorder %v4610, 64
        %vm4635 = vcmp.lt.s32.totalorder %v4611, 64
        %vm4636 = vcmp.lt.s32.totalorder %v4612, 64
        %vm4637 = vcmp.lt.s32.totalorder %v4613, 64
        %vm4638 = vcmp.lt.s32.totalorder %v4614, 64
        %vm4639 = vcmp.lt.s32.totalorder %v4615, 64
        %vm4640 = vcmp.lt.s32.totalorder %v4616, 64
        %vm4641 = vcmp.lt.s32.totalorder %v4617, 64
        %vm4642 = vcmp.lt.s32.totalorder %v4618, 64
        %vm4643 = vcmp.lt.s32.totalorder %v4619, 64
        %vm4644 = vcmp.lt.s32.totalorder %v4620, 64
        %vm4645 = vcmp.lt.s32.totalorder %v4621, 64
        %vm4646 = vcmp.lt.s32.totalorder %v4622, 64
        %vm4647 = vcmp.lt.s32.totalorder %v4623, 64
        %vm4648 = vcmp.lt.s32.totalorder %v4624, 64
        %vm4649 = vcmp.lt.s32.totalorder %v4625, 64
        %vm4650 = vcmp.lt.s32.totalorder %v4626, 64
        %vm4651 = vcmp.lt.s32.totalorder %v4603, 128
        %vm4652 = vcmp.lt.s32.totalorder %v4604, 128
        %vm4653 = vcmp.lt.s32.totalorder %v4605, 128
        %vm4654 = vcmp.lt.s32.totalorder %v4606, 128
        %vm4655 = vcmp.lt.s32.totalorder %v4607, 128
        %vm4656 = vcmp.lt.s32.totalorder %v4608, 128
        %vm4657 = vcmp.lt.s32.totalorder %v4609, 128
        %vm4658 = vcmp.lt.s32.totalorder %v4610, 128
        %vm4659 = vcmp.lt.s32.totalorder %v4611, 128
        %vm4660 = vcmp.lt.s32.totalorder %v4612, 128
        %vm4661 = vcmp.lt.s32.totalorder %v4613, 128
        %vm4662 = vcmp.lt.s32.totalorder %v4614, 128
        %vm4663 = vcmp.lt.s32.totalorder %v4615, 128
        %vm4664 = vcmp.lt.s32.totalorder %v4616, 128
        %vm4665 = vcmp.lt.s32.totalorder %v4617, 128
        %vm4666 = vcmp.lt.s32.totalorder %v4618, 128
        %vm4667 = vcmp.lt.s32.totalorder %v4619, 128
        %vm4668 = vcmp.lt.s32.totalorder %v4620, 128
        %vm4669 = vcmp.lt.s32.totalorder %v4621, 128
        %vm4670 = vcmp.lt.s32.totalorder %v4622, 128
        %vm4671 = vcmp.lt.s32.totalorder %v4623, 128
        %vm4672 = vcmp.lt.s32.totalorder %v4624, 128
        %vm4673 = vcmp.lt.s32.totalorder %v4625, 128
        %vm4674 = vcmp.lt.s32.totalorder %v4626, 128
        %v4675 = vsel %vm4651, 1, 0
        %v4676 = vsel %vm4652, 1, 0
        %v4677 = vsel %vm4653, 1, 0
        %v4678 = vsel %vm4654, 1, 0
        %v4679 = vsel %vm4655, 1, 0
        %v4680 = vsel %vm4656, 1, 0
        %v4681 = vsel %vm4657, 1, 0
        %v4682 = vsel %vm4658, 1, 0
        %v4683 = vsel %vm4659, 1, 0
        %v4684 = vsel %vm4660, 1, 0
        %v4685 = vsel %vm4661, 1, 0
        %v4686 = vsel %vm4662, 1, 0
        %v4687 = vsel %vm4663, 1, 0
        %v4688 = vsel %vm4664, 1, 0
        %v4689 = vsel %vm4665, 1, 0
        %v4690 = vsel %vm4666, 1, 0
        %v4691 = vsel %vm4667, 1, 0
        %v4692 = vsel %vm4668, 1, 0
        %v4693 = vsel %vm4669, 1, 0
        %v4694 = vsel %vm4670, 1, 0
        %v4695 = vsel %vm4671, 1, 0
        %v4696 = vsel %vm4672, 1, 0
        %v4697 = vsel %vm4673, 1, 0
        %v4698 = vsel %vm4674, 1, 0
        %vm4699 = vcmp.eq.s32.totalorder %v4675, 1
        %vm4700 = vcmp.eq.s32.totalorder %v4676, 1
        %vm4701 = vcmp.eq.s32.totalorder %v4677, 1
        %vm4702 = vcmp.eq.s32.totalorder %v4678, 1
        %vm4703 = vcmp.eq.s32.totalorder %v4679, 1
        %vm4704 = vcmp.eq.s32.totalorder %v4680, 1
        %vm4705 = vcmp.eq.s32.totalorder %v4681, 1
        %vm4706 = vcmp.eq.s32.totalorder %v4682, 1
        %vm4707 = vcmp.eq.s32.totalorder %v4683, 1
        %vm4708 = vcmp.eq.s32.totalorder %v4684, 1
        %vm4709 = vcmp.eq.s32.totalorder %v4685, 1
        %vm4710 = vcmp.eq.s32.totalorder %v4686, 1
        %vm4711 = vcmp.eq.s32.totalorder %v4687, 1
        %vm4712 = vcmp.eq.s32.totalorder %v4688, 1
        %vm4713 = vcmp.eq.s32.totalorder %v4689, 1
        %vm4714 = vcmp.eq.s32.totalorder %v4690, 1
        %vm4715 = vcmp.eq.s32.totalorder %v4691, 1
        %vm4716 = vcmp.eq.s32.totalorder %v4692, 1
        %vm4717 = vcmp.eq.s32.totalorder %v4693, 1
        %vm4718 = vcmp.eq.s32.totalorder %v4694, 1
        %vm4719 = vcmp.eq.s32.totalorder %v4695, 1
        %vm4720 = vcmp.eq.s32.totalorder %v4696, 1
        %vm4721 = vcmp.eq.s32.totalorder %v4697, 1
        %vm4722 = vcmp.eq.s32.totalorder %v4698, 1
        %v4723 = vlaneseq
        %v4724 = vshrl.u32 %v4723, 7
        %v4725 = vsub.s32 0, %v4724
        %v4726 = vrot.slane %v4600, %v4725
        %v4727 = vlaneseq
        %v4728 = vshrl.u32 %v4727, 7
        %v4729 = vsub.s32 0, %v4728
        %v4730 = vrot.slane %v4601, %v4729
        %v4731 = vsel %vm4699, %v4726, %v4730
        %v4732 = vsel %vm4700, %v4726, %v4730
        %v4733 = vsel %vm4701, %v4726, %v4730
        %v4734 = vsel %vm4702, %v4726, %v4730
        %v4735 = vsel %vm4703, %v4726, %v4730
        %v4736 = vsel %vm4704, %v4726, %v4730
        %v4737 = vsel %vm4705, %v4726, %v4730
        %v4738 = vsel %vm4706, %v4726, %v4730
        %v4739 = vsel %vm4707, %v4726, %v4730
        %v4740 = vsel %vm4708, %v4726, %v4730
        %v4741 = vsel %vm4709, %v4726, %v4730
        %v4742 = vsel %vm4710, %v4726, %v4730
        %v4743 = vsel %vm4711, %v4726, %v4730
        %v4744 = vsel %vm4712, %v4726, %v4730
        %v4745 = vsel %vm4713, %v4726, %v4730
        %v4746 = vsel %vm4714, %v4726, %v4730
        %v4747 = vsel %vm4715, %v4726, %v4730
        %v4748 = vsel %vm4716, %v4726, %v4730
        %v4749 = vsel %vm4717, %v4726, %v4730
        %v4750 = vsel %vm4718, %v4726, %v4730
        %v4751 = vsel %vm4719, %v4726, %v4730
        %v4752 = vsel %vm4720, %v4726, %v4730
        %v4753 = vsel %vm4721, %v4726, %v4730
        %v4754 = vsel %vm4722, %v4726, %v4730
        %v4755 = vsel %vm4627, 1, 0
        %v4756 = vsel %vm4628, 1, 0
        %v4757 = vsel %vm4629, 1, 0
        %v4758 = vsel %vm4630, 1, 0
        %v4759 = vsel %vm4631, 1, 0
        %v4760 = vsel %vm4632, 1, 0
        %v4761 = vsel %vm4633, 1, 0
        %v4762 = vsel %vm4634, 1, 0
        %v4763 = vsel %vm4635, 1, 0
        %v4764 = vsel %vm4636, 1, 0
        %v4765 = vsel %vm4637, 1, 0
        %v4766 = vsel %vm4638, 1, 0
        %v4767 = vsel %vm4639, 1, 0
        %v4768 = vsel %vm4640, 1, 0
        %v4769 = vsel %vm4641, 1, 0
        %v4770 = vsel %vm4642, 1, 0
        %v4771 = vsel %vm4643, 1, 0
        %v4772 = vsel %vm4644, 1, 0
        %v4773 = vsel %vm4645, 1, 0
        %v4774 = vsel %vm4646, 1, 0
        %v4775 = vsel %vm4647, 1, 0
        %v4776 = vsel %vm4648, 1, 0
        %v4777 = vsel %vm4649, 1, 0
        %v4778 = vsel %vm4650, 1, 0
        %vm4779 = vcmp.eq.s32.totalorder %v4755, 1
        %vm4780 = vcmp.eq.s32.totalorder %v4756, 1
        %vm4781 = vcmp.eq.s32.totalorder %v4757, 1
        %vm4782 = vcmp.eq.s32.totalorder %v4758, 1
        %vm4783 = vcmp.eq.s32.totalorder %v4759, 1
        %vm4784 = vcmp.eq.s32.totalorder %v4760, 1
        %vm4785 = vcmp.eq.s32.totalorder %v4761, 1
        %vm4786 = vcmp.eq.s32.totalorder %v4762, 1
        %vm4787 = vcmp.eq.s32.totalorder %v4763, 1
        %vm4788 = vcmp.eq.s32.totalorder %v4764, 1
        %vm4789 = vcmp.eq.s32.totalorder %v4765, 1
        %vm4790 = vcmp.eq.s32.totalorder %v4766, 1
        %vm4791 = vcmp.eq.s32.totalorder %v4767, 1
        %vm4792 = vcmp.eq.s32.totalorder %v4768, 1
        %vm4793 = vcmp.eq.s32.totalorder %v4769, 1
        %vm4794 = vcmp.eq.s32.totalorder %v4770, 1
        %vm4795 = vcmp.eq.s32.totalorder %v4771, 1
        %vm4796 = vcmp.eq.s32.totalorder %v4772, 1
        %vm4797 = vcmp.eq.s32.totalorder %v4773, 1
        %vm4798 = vcmp.eq.s32.totalorder %v4774, 1
        %vm4799 = vcmp.eq.s32.totalorder %v4775, 1
        %vm4800 = vcmp.eq.s32.totalorder %v4776, 1
        %vm4801 = vcmp.eq.s32.totalorder %v4777, 1
        %vm4802 = vcmp.eq.s32.totalorder %v4778, 1
        %v4803 = vlaneseq
        %v4804 = vshrl.u32 %v4803, 7
        %v4805 = vsub.s32 0, %v4804
        %v4806 = vrot.slane %v4599, %v4805
        %v4807 = vsel %vm4779, %v4806, %v4731
        %v4808 = vsel %vm4780, %v4806, %v4732
        %v4809 = vsel %vm4781, %v4806, %v4733
        %v4810 = vsel %vm4782, %v4806, %v4734
        %v4811 = vsel %vm4783, %v4806, %v4735
        %v4812 = vsel %vm4784, %v4806, %v4736
        %v4813 = vsel %vm4785, %v4806, %v4737
        %v4814 = vsel %vm4786, %v4806, %v4738
        %v4815 = vsel %vm4787, %v4806, %v4739
        %v4816 = vsel %vm4788, %v4806, %v4740
        %v4817 = vsel %vm4789, %v4806, %v4741
        %v4818 = vsel %vm4790, %v4806, %v4742
        %v4819 = vsel %vm4791, %v4806, %v4743
        %v4820 = vsel %vm4792, %v4806, %v4744
        %v4821 = vsel %vm4793, %v4806, %v4745
        %v4822 = vsel %vm4794, %v4806, %v4746
        %v4823 = vsel %vm4795, %v4806, %v4747
        %v4824 = vsel %vm4796, %v4806, %v4748
        %v4825 = vsel %vm4797, %v4806, %v4749
        %v4826 = vsel %vm4798, %v4806, %v4750
        %v4827 = vsel %vm4799, %v4806, %v4751
        %v4828 = vsel %vm4800, %v4806, %v4752
        %v4829 = vsel %vm4801, %v4806, %v4753
        %v4830 = vsel %vm4802, %v4806, %v4754
        %v4831 = vmul.f32 %v4273, %v4807
        %v4832 = vmul.f32 %v4274, %v4808
        %v4833 = vmul.f32 %v4275, %v4809
        %v4834 = vmul.f32 %v4276, %v4810
        %v4835 = vmul.f32 %v4277, %v4811
        %v4836 = vmul.f32 %v4278, %v4812
        %v4837 = vmul.f32 %v4279, %v4813
        %v4838 = vmul.f32 %v4280, %v4814
        %v4839 = vmul.f32 %v4281, %v4815
        %v4840 = vmul.f32 %v4282, %v4816
        %v4841 = vmul.f32 %v4283, %v4817
        %v4842 = vmul.f32 %v4284, %v4818
        %v4843 = vmul.f32 %v4285, %v4819
        %v4844 = vmul.f32 %v4286, %v4820
        %v4845 = vmul.f32 %v4287, %v4821
        %v4846 = vmul.f32 %v4288, %v4822
        %v4847 = vmul.f32 %v4289, %v4823
        %v4848 = vmul.f32 %v4290, %v4824
        %v4849 = vmul.f32 %v4291, %v4825
        %v4850 = vmul.f32 %v4292, %v4826
        %v4851 = vmul.f32 %v4293, %v4827
        %v4852 = vmul.f32 %v4294, %v4828
        %v4853 = vmul.f32 %v4295, %v4829
        %v4854 = vmul.f32 %v4296, %v4830
        %v4855 = vld [vmem:[%s349] sm:$0xff]
        %v4856 = vld [vmem:[%s349 + $0x8] sm:$0xff]
        %v4857 = vld [vmem:[%s349 + $0x10] sm:$0xff]
        %v4858 = vld [vmem:[%s349 + $0x18] sm:$0xff]
        %v4859 = vld [vmem:[%s349 + $0x20] sm:$0xff]
        %v4860 = vld [vmem:[%s349 + $0x28] sm:$0xff]
        %v4861 = vld [vmem:[%s349 + $0x30] sm:$0xff]
        %v4862 = vld [vmem:[%s349 + $0x38] sm:$0xff]
        %v4863 = vld [vmem:[%s349 + $0x40] sm:$0xff]
        %v4864 = vld [vmem:[%s349 + $0x48] sm:$0xff]
        %v4865 = vld [vmem:[%s349 + $0x50] sm:$0xff]
        %v4866 = vld [vmem:[%s349 + $0x58] sm:$0xff]
        %v4867 = vld [vmem:[%s349 + $0x60] sm:$0xff]
        %v4868 = vld [vmem:[%s349 + $0x68] sm:$0xff]
        %v4869 = vld [vmem:[%s349 + $0x70] sm:$0xff]
        %v4870 = vld [vmem:[%s349 + $0x78] sm:$0xff]
        %v4871 = vld [vmem:[%s349 + $0x80] sm:$0xff]
        %v4872 = vld [vmem:[%s349 + $0x88] sm:$0xff]
        %v4873 = vld [vmem:[%s349 + $0x90] sm:$0xff]
        %v4874 = vld [vmem:[%s349 + $0x98] sm:$0xff]
        %v4875 = vld [vmem:[%s349 + $0xa0] sm:$0xff]
        %v4876 = vld [vmem:[%s349 + $0xa8] sm:$0xff]
        %v4877 = vld [vmem:[%s349 + $0xb0] sm:$0xff]
        %v4878 = vld [vmem:[%s349 + $0xb8] sm:$0xff]
        %v4879 = vadd.f32 %v4831, %v4855
        %v4880 = vadd.f32 %v4832, %v4856
        %v4881 = vadd.f32 %v4833, %v4857
        %v4882 = vadd.f32 %v4834, %v4858
        %v4883 = vadd.f32 %v4835, %v4859
        %v4884 = vadd.f32 %v4836, %v4860
        %v4885 = vadd.f32 %v4837, %v4861
        %v4886 = vadd.f32 %v4838, %v4862
        %v4887 = vadd.f32 %v4839, %v4863
        %v4888 = vadd.f32 %v4840, %v4864
        %v4889 = vadd.f32 %v4841, %v4865
        %v4890 = vadd.f32 %v4842, %v4866
        %v4891 = vadd.f32 %v4843, %v4867
        %v4892 = vadd.f32 %v4844, %v4868
        %v4893 = vadd.f32 %v4845, %v4869
        %v4894 = vadd.f32 %v4846, %v4870
        %v4895 = vadd.f32 %v4847, %v4871
        %v4896 = vadd.f32 %v4848, %v4872
        %v4897 = vadd.f32 %v4849, %v4873
        %v4898 = vadd.f32 %v4850, %v4874
        %v4899 = vadd.f32 %v4851, %v4875
        %v4900 = vadd.f32 %v4852, %v4876
        %v4901 = vadd.f32 %v4853, %v4877
        %v4902 = vadd.f32 %v4854, %v4878
        %v4903 = vmax.f32 %v4879, 0.0
        %v4904 = vmax.f32 %v4880, 0.0
        %v4905 = vmax.f32 %v4881, 0.0
        %v4906 = vmax.f32 %v4882, 0.0
        %v4907 = vmax.f32 %v4883, 0.0
        %v4908 = vmax.f32 %v4884, 0.0
        %v4909 = vmax.f32 %v4885, 0.0
        %v4910 = vmax.f32 %v4886, 0.0
        %v4911 = vmax.f32 %v4887, 0.0
        %v4912 = vmax.f32 %v4888, 0.0
        %v4913 = vmax.f32 %v4889, 0.0
        %v4914 = vmax.f32 %v4890, 0.0
        %v4915 = vmax.f32 %v4891, 0.0
        %v4916 = vmax.f32 %v4892, 0.0
        %v4917 = vmax.f32 %v4893, 0.0
        %v4918 = vmax.f32 %v4894, 0.0
        %v4919 = vmax.f32 %v4895, 0.0
        %v4920 = vmax.f32 %v4896, 0.0
        %v4921 = vmax.f32 %v4897, 0.0
        %v4922 = vmax.f32 %v4898, 0.0
        %v4923 = vmax.f32 %v4899, 0.0
        %v4924 = vmax.f32 %v4900, 0.0
        %v4925 = vmax.f32 %v4901, 0.0
        %v4926 = vmax.f32 %v4902, 0.0
        %4927 = vst [vmem:[%s404] sm:$0xff] %v4903
        %4928 = vst [vmem:[%s404 + $0x8] sm:$0xff] %v4904
        %4929 = vst [vmem:[%s404 + $0x10] sm:$0xff] %v4905
        %4930 = vst [vmem:[%s404 + $0x18] sm:$0xff] %v4906
        %4931 = vst [vmem:[%s404 + $0x20] sm:$0xff] %v4907
        %4932 = vst [vmem:[%s404 + $0x28] sm:$0xff] %v4908
        %4933 = vst [vmem:[%s404 + $0x30] sm:$0xff] %v4909
        %4934 = vst [vmem:[%s404 + $0x38] sm:$0xff] %v4910
        %4935 = vst [vmem:[%s404 + $0x40] sm:$0xff] %v4911
        %4936 = vst [vmem:[%s404 + $0x48] sm:$0xff] %v4912
        %4937 = vst [vmem:[%s404 + $0x50] sm:$0xff] %v4913
        %4938 = vst [vmem:[%s404 + $0x58] sm:$0xff] %v4914
        %4939 = vst [vmem:[%s404 + $0x60] sm:$0xff] %v4915
        %4940 = vst [vmem:[%s404 + $0x68] sm:$0xff] %v4916
        %4941 = vst [vmem:[%s404 + $0x70] sm:$0xff] %v4917
        %4942 = vst [vmem:[%s404 + $0x78] sm:$0xff] %v4918
        %4943 = vst [vmem:[%s404 + $0x80] sm:$0xff] %v4919
        %4944 = vst [vmem:[%s404 + $0x88] sm:$0xff] %v4920
        %4945 = vst [vmem:[%s404 + $0x90] sm:$0xff] %v4921
        %4946 = vst [vmem:[%s404 + $0x98] sm:$0xff] %v4922
        %4947 = vst [vmem:[%s404 + $0xa0] sm:$0xff] %v4923
        %4948 = vst [vmem:[%s404 + $0xa8] sm:$0xff] %v4924
        %4949 = vst [vmem:[%s404 + $0xb0] sm:$0xff] %v4925
        %4950 = vst [vmem:[%s404 + $0xb8] sm:$0xff] %v4926
        %s4951 = sand.u32 %s194, 1
        %s4952 = scalar_lea.sflag [#allocation4], %s4951
        %s4953 = sand.u32 %s194, 1
        %s4954 = smul.addr %s4953, 192
        %s4955 = scalar_lea.vmem [#allocation14], %s4954
        // Predicated region
        $region77: #{basic_block_forward.3} parent=47 // pred_check
          %p4956 = pneg %p204
        $region78: #{basic_block_forward.3} parent=47 // pred_check_branch
          %4958 = sbr.rel (%p4956) target = $region80
        $region79: #{basic_block_forward.3} parent=47 // pred_region
          %s4960 = ssub.s32 3072, 3072
          %4961 = vsyncadd %s4952, %s4960
          %s4962 = smul.addr %s29, 24
          %s4963 = smul.addr %s4962, 128
          %s4964 = scalar_lea.hbm %s7, %s4963
          %s4965 = sshll.u32 %s4955, 4
          %s4966 = int_to_ptr.vmem [resolvable:$true] %s4965
          %4971 = dma.vmem_to_hbm [thread:$0]  %s4966, 3072, %s4964, %s4952, 128, 128, 8
        $region80: #{basic_block_forward.3} parent=47 // pred_fallthru
          _
      $region48: #{basic_block_forward.3} parent=5 // pred_fallthru
        _
      %p4972 = scmp.le.s32.totalorder 2, %s24
      // Predicated region
      $region81: #{basic_block_forward.3} parent=5 // pred_check
        %p4973 = pneg %p4972
      $region82: #{basic_block_forward.3} parent=5 // pred_check_branch
        %4975 = sbr.rel (%p4973) target = $region84
      $region83: #{basic_block_forward.3} parent=5 // pred_region
        %s4976 = ssub.s32 %s24, 2
        // Predicated region
        $region85: #{basic_block_forward.3} parent=83 // pred_check
          %p4977 = pneg %p210
        $region86: #{basic_block_forward.3} parent=83 // pred_check_branch
          %4979 = sbr.rel (%p4977) target = $region88
        $region87: #{basic_block_forward.3} parent=83 // pred_region
          %s4980 = sand.u32 %s195, 1
          %s4981 = scalar_lea.sflag [#allocation4], %s4980
          %s4982 = sand.u32 %s195, 1
          %s4983 = smul.addr %s4982, 192
          %s4984 = scalar_lea.vmem [#allocation14], %s4983
          %4985 = dma.done %s4981, 3072
        $region88: #{basic_block_forward.3} parent=83 // pred_fallthru
          _
      $region84: #{basic_block_forward.3} parent=5 // pred_fallthru
        _
    $region6: #{basic_block_forward.3} parent=1 // loop_footer
      %s28 = sadd.s32 1, %s24
    $region7: #{basic_block_forward.3} parent=1 // loop_footer_branch
      %23 = sbr.rel target = $region3
    $region8: #{basic_block_forward.3} parent=1 // loop_exit
      _
    %4986 = vsyncpa [#allocation3], 1
    %s4987 = scalar_lea.sflag [#allocation3], 1
    %4988 = vsyncpa %s4987, 1
    %4989 = vsyncpa [#allocation6], 1
    %s4990 = scalar_lea.sflag [#allocation6], 1
    %4991 = vsyncpa %s4990, 1
    %4992 = vsyncpa [#allocation9], 1
    %4993 = vsyncpa [#allocation12], 1
    %4994 = vsyncpa [#allocation4], 1
    %s4995 = scalar_lea.sflag [#allocation4], 1
    %4996 = vsyncpa %s4995, 1

</llo_original>
